<compile_context>
chip_gen: v6e
topology: v6e:2x2x1
jax: 0.10.0
libtpu: 0.0.40
codegen_flags: <defaults>
</compile_context>

<pallas_src>
import functools

import jax
import jax.numpy as jnp
from jax.experimental import pallas as pl
from jax.experimental.pallas import tpu as pltpu

INPUT_SIZE = 14
HIDDEN1 = 144
HIDDEN2 = 96
HP1 = 256            # per-gate lane padding for layer 1 (next mult of 128 >= 144)
HP2 = 128            # per-gate lane padding for layer 2 (next mult of 128 >= 96)
BN_EPS = 1e-5

GATE_ORDER = (0, 1, 3, 2)   # PyTorch rows [i, f, g, o] -> packed columns [i, f, o, g]


# --------------------------- fused forward kernel ---------------------------
def _fused_forward_kernel(x_ref, wih1_ref, whh1_ref, b1_ref,
                          wih2_ref, whh2_ref, b2_ref, fcw_ref, fcb_ref,
                          out_ref, gx1_scr, gx2_scr, *, T, BP):
    f32 = jnp.float32
    H1, H2, P1, P2 = HIDDEN1, HIDDEN2, HP1, HP2

    # ---- LSTM1 hoisted input projection: one lane-dense matmul (bias folded
    # in), written to a tile-aligned (T*BP, 4*P1) scratch (8 rows / timestep).
    gx1_scr[...] = (jnp.dot(x_ref[...], wih1_ref[...],
                            preferred_element_type=f32) + b1_ref[...])

    # ---- LSTM1 recurrence (T static -> fully unrolled straight-line code).
    h1 = jnp.zeros((BP, H1), f32)
    c1 = jnp.zeros((BP, H1), f32)
    for t in range(T):
        r0 = t * BP
        # One packed recurrent matmul per step; weights streamed from the ref
        # at the use site (no long-lived SSA copy of W_hh).
        pre = gx1_scr[r0:r0 + BP, :] + jnp.dot(h1, whh1_ref[...],
                                               preferred_element_type=f32)
        ifo = jax.nn.sigmoid(pre[:, :3 * P1])            # i|f|o slab, one sigmoid
        gg = jnp.tanh(pre[:, 3 * P1:3 * P1 + H1])        # g gate
        c1 = ifo[:, P1:P1 + H1] * c1 + ifo[:, :H1] * gg
        h1 = ifo[:, 2 * P1:2 * P1 + H1] * jnp.tanh(c1)
        # LSTM2 input projection (BN1 already folded into wih2/b2): independent
        # of the h2 recurrence, hides under this step's elementwise work.
        gx2_scr[r0:r0 + BP, :] = (jnp.dot(h1, wih2_ref[...],
                                          preferred_element_type=f32)
                                  + b2_ref[...])

    # ---- LSTM2 recurrence.
    h2 = jnp.zeros((BP, H2), f32)
    c2 = jnp.zeros((BP, H2), f32)
    for t in range(T):
        r0 = t * BP
        pre = gx2_scr[r0:r0 + BP, :] + jnp.dot(h2, whh2_ref[...],
                                               preferred_element_type=f32)
        ifo = jax.nn.sigmoid(pre[:, :3 * P2])
        gg = jnp.tanh(pre[:, 3 * P2:3 * P2 + H2])
        c2 = ifo[:, P2:P2 + H2] * c2 + ifo[:, :H2] * gg
        h2 = ifo[:, 2 * P2:2 * P2 + H2] * jnp.tanh(c2)

    # ---- FC (BN2 folded): VPU multiply + lane reduction (no N=1 MXU matmul).
    out_ref[...] = (jnp.sum(h2 * fcw_ref[...], axis=-1, keepdims=True)
                    + fcb_ref[...])


def _fused_forward(x2d, pp, *, T, BP):
    kernel = functools.partial(_fused_forward_kernel, T=T, BP=BP)
    vmem = lambda: pl.BlockSpec(memory_space=pltpu.MemorySpace.VMEM)

    flops = int(2 * T * BP * (INPUT_SIZE * 4 * HP1 + HIDDEN1 * 4 * HP1
                              + HIDDEN1 * 4 * HP2 + HIDDEN2 * 4 * HP2)
                + 2 * BP * HIDDEN2)
    transcendentals = int(T * BP * (3 * HP1 + 2 * HIDDEN1 + 3 * HP2 + 2 * HIDDEN2))
    bytes_accessed = int(4 * (x2d.size + sum(int(v.size) for v in pp.values()) + BP))

    return pl.pallas_call(
        kernel,
        out_shape=jax.ShapeDtypeStruct((BP, 1), jnp.float32),
        in_specs=[vmem() for _ in range(9)],
        out_specs=vmem(),
        scratch_shapes=[pltpu.VMEM((T * BP, 4 * HP1), jnp.float32),   # gx1
                        pltpu.VMEM((T * BP, 4 * HP2), jnp.float32)],  # gx2
        cost_estimate=pl.CostEstimate(flops=flops,
                                      transcendentals=transcendentals,
                                      bytes_accessed=bytes_accessed),
    )(x2d, pp["wih1"], pp["whh1"], pp["b1"],
      pp["wih2"], pp["whh2"], pp["b2"], pp["fcw"], pp["fcb"])


# --------------------------- parameter preparation ---------------------------
def _pack_w(w, h, hpad):
    """(4h, din) PyTorch layout [i,f,g,o] -> (din, 4*hpad) packed [i|f|o|g],
    each gate's columns zero-padded to hpad (lane-tile-aligned offsets)."""
    blocks = []
    for k in GATE_ORDER:
        blk = w[k * h:(k + 1) * h, :].T                     # (din, h)
        blocks.append(jnp.pad(blk, ((0, 0), (0, hpad - h))))
    return jnp.concatenate(blocks, axis=1)


def _pack_b(b, h, hpad):
    segs = [jnp.pad(b[k * h:(k + 1) * h], (0, hpad - h)) for k in GATE_ORDER]
    return jnp.concatenate(segs).reshape(1, 4 * hpad)


def prepare_params(p):
    """Fold eval-mode BatchNorms into adjacent weights and gate-pack / pad the
    LSTM weights once, outside jit, so the kernel does no weight reshuffling."""
    a1 = p["bn1_gamma"] / jnp.sqrt(p["bn1_var"] + BN_EPS)
    c1 = p["bn1_beta"] - p["bn1_mean"] * a1
    a2 = p["bn2_gamma"] / jnp.sqrt(p["bn2_var"] + BN_EPS)
    c2 = p["bn2_beta"] - p["bn2_mean"] * a2

    wih2_packed = _pack_w(p["w_ih2"], HIDDEN2, HP2)          # (H1, 4*HP2), unfolded
    prepared = {
        "wih1": _pack_w(p["w_ih1"], HIDDEN1, HP1),           # (D,  4*HP1)
        "whh1": _pack_w(p["w_hh1"], HIDDEN1, HP1),           # (H1, 4*HP1)
        "b1":   _pack_b(p["b1"], HIDDEN1, HP1),               # (1,  4*HP1)
        # BN1 folded into LSTM2's input projection: y = a1*h1 + c1.
        "wih2": wih2_packed * a1[:, None],                    # (H1, 4*HP2)
        "whh2": _pack_w(p["w_hh2"], HIDDEN2, HP2),            # (H2, 4*HP2)
        "b2":   _pack_b(p["b2"], HIDDEN2, HP2) + (c1 @ wih2_packed)[None, :],
        # BN2 folded into the FC layer (valid: fc only consumes last timestep).
        "fcw":  p["fc_w"] * a2[None, :],                      # (1, H2)
        "fcb":  (p["fc_b"] + jnp.sum(c2 * p["fc_w"][0])).reshape(1, 1),
    }
    return jax.tree_util.tree_map(lambda a: jnp.asarray(a, jnp.float32), prepared)


# --------------------------------- forward ----------------------------------
@jax.jit
def lstm_model_with_bn(x, prepared):
    """x: (B, T, INPUT_SIZE) batch-first, like the PyTorch module. Returns (B, 1)."""
    B, T, D = x.shape
    BP = max(8, -(-B // 8) * 8)                 # pad batch rows to sublane tile
    x_tm = jnp.transpose(x, (1, 0, 2)).astype(jnp.float32)      # (T, B, D)
    x_pad = jnp.pad(x_tm, ((0, 0), (0, BP - B), (0, 0)))        # (T, BP, D)
    y = _fused_forward(x_pad.reshape(T * BP, D), prepared, T=T, BP=BP)
    return y[:B]


# ----------------------------- parameter init --------------------------------
def init_params(key):
    ks = jax.random.split(key, 18)

    def uni(k, shape, lo, hi):
        return jax.random.uniform(k, shape, jnp.float32, lo, hi)

    k1 = float(1.0 / (HIDDEN1 ** 0.5))
    k2 = float(1.0 / (HIDDEN2 ** 0.5))
    return {
        # lstm1 (PyTorch gate order i, f, g, o; bias = b_ih + b_hh)
        "w_ih1": uni(ks[0], (4 * HIDDEN1, INPUT_SIZE), -k1, k1),
        "w_hh1": uni(ks[1], (4 * HIDDEN1, HIDDEN1), -k1, k1),
        "b1": uni(ks[2], (4 * HIDDEN1,), -k1, k1) + uni(ks[3], (4 * HIDDEN1,), -k1, k1),
        # bn1 (non-trivial stats to actually exercise the fold)
        "bn1_gamma": uni(ks[4], (HIDDEN1,), 0.5, 1.5),
        "bn1_beta": uni(ks[5], (HIDDEN1,), -0.2, 0.2),
        "bn1_mean": uni(ks[6], (HIDDEN1,), -0.2, 0.2),
        "bn1_var": uni(ks[7], (HIDDEN1,), 0.5, 1.5),
        # lstm2
        "w_ih2": uni(ks[8], (4 * HIDDEN2, HIDDEN1), -k2, k2),
        "w_hh2": uni(ks[9], (4 * HIDDEN2, HIDDEN2), -k2, k2),
        "b2": uni(ks[10], (4 * HIDDEN2,), -k2, k2) + uni(ks[11], (4 * HIDDEN2,), -k2, k2),
        # bn2
        "bn2_gamma": uni(ks[12], (HIDDEN2,), 0.5, 1.5),
        "bn2_beta": uni(ks[13], (HIDDEN2,), -0.2, 0.2),
        "bn2_mean": uni(ks[14], (HIDDEN2,), -0.2, 0.2),
        "bn2_var": uni(ks[15], (HIDDEN2,), 0.5, 1.5),
        # fc
        "fc_w": uni(ks[16], (1, HIDDEN2), -k2, k2),
        "fc_b": uni(ks[17], (1,), -k2, k2),
    }


# ------------------------- pure-JAX reference (check) ------------------------
def reference_forward(x, p):
    """Unfused XLA reference of the PyTorch eval-mode forward (for validation)."""
    def lstm(xs, w_ih, w_hh, b, H):
        Bb = xs.shape[0]
        h = jnp.zeros((Bb, H), jnp.float32)
        c = jnp.zeros((Bb, H), jnp.float32)
        outs = []
        for t in range(xs.shape[1]):
            g = xs[:, t] @ w_ih.T + h @ w_hh.T + b
            i = jax.nn.sigmoid(g[:, 0:H])
            f = jax.nn.sigmoid(g[:, H:2 * H])
            gg = jnp.tanh(g[:, 2 * H:3 * H])
            o = jax.nn.sigmoid(g[:, 3 * H:4 * H])
            c = f * c + i * gg
            h = o * jnp.tanh(c)
            outs.append(h)
        return jnp.stack(outs, axis=1)                       # (B, T, H)

    def bn(y, g, b, m, v):
        return (y - m) / jnp.sqrt(v + BN_EPS) * g + b

    o = lstm(x, p["w_ih1"], p["w_hh1"], p["b1"], HIDDEN1)
    o = bn(o, p["bn1_gamma"], p["bn1_beta"], p["bn1_mean"], p["bn1_var"])
    o = lstm(o, p["w_ih2"], p["w_hh2"], p["b2"], HIDDEN2)
    o = bn(o, p["bn2_gamma"], p["bn2_beta"], p["bn2_mean"], p["bn2_var"])
    return o[:, -1] @ p["fc_w"].T + p["fc_b"]


if __name__ == "__main__":
    key = jax.random.PRNGKey(0)
    k_x, k_p = jax.random.split(key)

    batch, seq = 2, 8
    x = jax.random.normal(k_x, (batch, seq, INPUT_SIZE), jnp.float32)
    params = init_params(k_p)
    prepared = prepare_params(params)            # BN-folded, gate-packed layout

    y = lstm_model_with_bn(x, prepared)
    jax.block_until_ready(y)
    assert y.shape == (batch, 1), y.shape

    with jax.default_matmul_precision("float32"):
        y_ref = reference_forward(x, params)
    assert jnp.allclose(y, y_ref, atol=1e-2, rtol=1e-2), (y, y_ref)

    print("KERNEL_OK")
</pallas_src>

<mosaic_0001>
module attributes {stable_mosaic.version = 11 : i64} {
  func.func @_fused_forward_kernel(%arg0: memref<64x14xf32, #tpu.memory_space<vmem>>, %arg1: memref<14x1024xf32, #tpu.memory_space<vmem>>, %arg2: memref<144x1024xf32, #tpu.memory_space<vmem>>, %arg3: memref<1x1024xf32, #tpu.memory_space<vmem>>, %arg4: memref<144x512xf32, #tpu.memory_space<vmem>>, %arg5: memref<96x512xf32, #tpu.memory_space<vmem>>, %arg6: memref<1x512xf32, #tpu.memory_space<vmem>>, %arg7: memref<1x96xf32, #tpu.memory_space<vmem>>, %arg8: memref<1x1xf32, #tpu.memory_space<vmem>>, %arg9: memref<8x1xf32, #tpu.memory_space<vmem>>, %arg10: memref<64x1024xf32, #tpu.memory_space<vmem>>, %arg11: memref<64x512xf32, #tpu.memory_space<vmem>>) attributes {dimension_semantics = [], scalar_prefetch = 0 : i64, scratch_operands = 2 : i64, tpu.core_type = #tpu.core_type<tc>} {
    %c0 = arith.constant 0 : index
    %c0_0 = arith.constant 0 : index
    %0 = vector.load %arg0[%c0, %c0_0] : memref<64x14xf32, #tpu.memory_space<vmem>>, vector<64x14xf32>
    %c0_1 = arith.constant 0 : index
    %c0_2 = arith.constant 0 : index
    %1 = vector.load %arg1[%c0_1, %c0_2] : memref<14x1024xf32, #tpu.memory_space<vmem>>, vector<14x1024xf32>
    %cst = arith.constant dense<0.000000e+00> : vector<64x1024xf32>
    %2 = tpu.matmul %0, %1, %cst {dimension_numbers = #tpu.dot_dimension_numbers<[1], [0], [0], [1], [0, 0, 1, 1], [], []>} : vector<64x14xf32>, vector<14x1024xf32>, vector<64x1024xf32> -> vector<64x1024xf32>
    %c0_3 = arith.constant 0 : index
    %c0_4 = arith.constant 0 : index
    %3 = vector.load %arg3[%c0_3, %c0_4] : memref<1x1024xf32, #tpu.memory_space<vmem>>, vector<1x1024xf32>
    %4 = vector.broadcast %3 : vector<1x1024xf32> to vector<64x1024xf32>
    %5 = arith.addf %2, %4 : vector<64x1024xf32>
    %c0_5 = arith.constant 0 : index
    %c0_6 = arith.constant 0 : index
    %6 = vector.load %arg10[%c0_5, %c0_6] : memref<64x1024xf32, #tpu.memory_space<vmem>>, vector<64x1024xf32>
    tpu.vector_store %arg10[%c0_5, %c0_6], %5 {strides = array<i32>} : memref<64x1024xf32, #tpu.memory_space<vmem>>, vector<64x1024xf32>,
    %cst_7 = arith.constant 0.000000e+00 : f32
    %7 = vector.broadcast %cst_7 : f32 to vector<8x144xf32>
    %cst_8 = arith.constant 0.000000e+00 : f32
    %8 = vector.broadcast %cst_8 : f32 to vector<8x144xf32>
    %c0_9 = arith.constant 0 : index
    %c0_10 = arith.constant 0 : index
    %9 = vector.load %arg10[%c0_9, %c0_10] : memref<64x1024xf32, #tpu.memory_space<vmem>>, vector<8x1024xf32>
    %c0_11 = arith.constant 0 : index
    %c0_12 = arith.constant 0 : index
    %10 = vector.load %arg2[%c0_11, %c0_12] : memref<144x1024xf32, #tpu.memory_space<vmem>>, vector<144x1024xf32>
    %cst_13 = arith.constant dense<0.000000e+00> : vector<8x1024xf32>
    %11 = tpu.matmul %7, %10, %cst_13 {dimension_numbers = #tpu.dot_dimension_numbers<[1], [0], [0], [1], [0, 0, 1, 1], [], []>} : vector<8x144xf32>, vector<144x1024xf32>, vector<8x1024xf32> -> vector<8x1024xf32>
    %12 = arith.addf %9, %11 : vector<8x1024xf32>
    %13 = vector.extract_strided_slice %12 {offsets = [0, 0], sizes = [8, 768], strides = [1, 1]} : vector<8x1024xf32> to vector<8x768xf32>
    %14 = arith.negf %13 : vector<8x768xf32>
    %15 = math.exp %14 : vector<8x768xf32>
    %cst_14 = arith.constant 1.000000e+00 : f32
    %16 = vector.broadcast %cst_14 : f32 to vector<8x768xf32>
    %17 = arith.addf %16, %15 : vector<8x768xf32>
    %18 = arith.divf %16, %17 : vector<8x768xf32>
    %19 = vector.extract_strided_slice %12 {offsets = [0, 768], sizes = [8, 144], strides = [1, 1]} : vector<8x1024xf32> to vector<8x144xf32>
    %20 = math.tanh %19 : vector<8x144xf32>
    %21 = vector.extract_strided_slice %18 {offsets = [0, 256], sizes = [8, 144], strides = [1, 1]} : vector<8x768xf32> to vector<8x144xf32>
    %22 = arith.mulf %21, %8 : vector<8x144xf32>
    %23 = vector.extract_strided_slice %18 {offsets = [0, 0], sizes = [8, 144], strides = [1, 1]} : vector<8x768xf32> to vector<8x144xf32>
    %24 = arith.mulf %23, %20 : vector<8x144xf32>
    %25 = arith.addf %22, %24 : vector<8x144xf32>
    %26 = vector.extract_strided_slice %18 {offsets = [0, 512], sizes = [8, 144], strides = [1, 1]} : vector<8x768xf32> to vector<8x144xf32>
    %27 = math.tanh %25 : vector<8x144xf32>
    %28 = arith.mulf %26, %27 : vector<8x144xf32>
    %c0_15 = arith.constant 0 : index
    %c0_16 = arith.constant 0 : index
    %29 = vector.load %arg4[%c0_15, %c0_16] : memref<144x512xf32, #tpu.memory_space<vmem>>, vector<144x512xf32>
    %cst_17 = arith.constant dense<0.000000e+00> : vector<8x512xf32>
    %30 = tpu.matmul %28, %29, %cst_17 {dimension_numbers = #tpu.dot_dimension_numbers<[1], [0], [0], [1], [0, 0, 1, 1], [], []>} : vector<8x144xf32>, vector<144x512xf32>, vector<8x512xf32> -> vector<8x512xf32>
    %c0_18 = arith.constant 0 : index
    %c0_19 = arith.constant 0 : index
    %31 = vector.load %arg6[%c0_18, %c0_19] : memref<1x512xf32, #tpu.memory_space<vmem>>, vector<1x512xf32>
    %32 = vector.broadcast %31 : vector<1x512xf32> to vector<8x512xf32>
    %33 = arith.addf %30, %32 : vector<8x512xf32>
    %c0_20 = arith.constant 0 : index
    %c0_21 = arith.constant 0 : index
    %34 = vector.load %arg11[%c0_20, %c0_21] : memref<64x512xf32, #tpu.memory_space<vmem>>, vector<8x512xf32>
    tpu.vector_store %arg11[%c0_20, %c0_21], %33 {strides = array<i32>} : memref<64x512xf32, #tpu.memory_space<vmem>>, vector<8x512xf32>,
    %c8 = arith.constant 8 : index
    %c0_22 = arith.constant 0 : index
    %35 = vector.load %arg10[%c8, %c0_22] : memref<64x1024xf32, #tpu.memory_space<vmem>>, vector<8x1024xf32>
    %c0_23 = arith.constant 0 : index
    %c0_24 = arith.constant 0 : index
    %36 = vector.load %arg2[%c0_23, %c0_24] : memref<144x1024xf32, #tpu.memory_space<vmem>>, vector<144x1024xf32>
    %cst_25 = arith.constant dense<0.000000e+00> : vector<8x1024xf32>
    %37 = tpu.matmul %28, %36, %cst_25 {dimension_numbers = #tpu.dot_dimension_numbers<[1], [0], [0], [1], [0, 0, 1, 1], [], []>} : vector<8x144xf32>, vector<144x1024xf32>, vector<8x1024xf32> -> vector<8x1024xf32>
    %38 = arith.addf %35, %37 : vector<8x1024xf32>
    %39 = vector.extract_strided_slice %38 {offsets = [0, 0], sizes = [8, 768], strides = [1, 1]} : vector<8x1024xf32> to vector<8x768xf32>
    %40 = arith.negf %39 : vector<8x768xf32>
    %41 = math.exp %40 : vector<8x768xf32>
    %cst_26 = arith.constant 1.000000e+00 : f32
    %42 = vector.broadcast %cst_26 : f32 to vector<8x768xf32>
    %43 = arith.addf %42, %41 : vector<8x768xf32>
    %44 = arith.divf %42, %43 : vector<8x768xf32>
    %45 = vector.extract_strided_slice %38 {offsets = [0, 768], sizes = [8, 144], strides = [1, 1]} : vector<8x1024xf32> to vector<8x144xf32>
    %46 = math.tanh %45 : vector<8x144xf32>
    %47 = vector.extract_strided_slice %44 {offsets = [0, 256], sizes = [8, 144], strides = [1, 1]} : vector<8x768xf32> to vector<8x144xf32>
    %48 = arith.mulf %47, %25 : vector<8x144xf32>
    %49 = vector.extract_strided_slice %44 {offsets = [0, 0], sizes = [8, 144], strides = [1, 1]} : vector<8x768xf32> to vector<8x144xf32>
    %50 = arith.mulf %49, %46 : vector<8x144xf32>
    %51 = arith.addf %48, %50 : vector<8x144xf32>
    %52 = vector.extract_strided_slice %44 {offsets = [0, 512], sizes = [8, 144], strides = [1, 1]} : vector<8x768xf32> to vector<8x144xf32>
    %53 = math.tanh %51 : vector<8x144xf32>
    %54 = arith.mulf %52, %53 : vector<8x144xf32>
    %c0_27 = arith.constant 0 : index
    %c0_28 = arith.constant 0 : index
    %55 = vector.load %arg4[%c0_27, %c0_28] : memref<144x512xf32, #tpu.memory_space<vmem>>, vector<144x512xf32>
    %cst_29 = arith.constant dense<0.000000e+00> : vector<8x512xf32>
    %56 = tpu.matmul %54, %55, %cst_29 {dimension_numbers = #tpu.dot_dimension_numbers<[1], [0], [0], [1], [0, 0, 1, 1], [], []>} : vector<8x144xf32>, vector<144x512xf32>, vector<8x512xf32> -> vector<8x512xf32>
    %c0_30 = arith.constant 0 : index
    %c0_31 = arith.constant 0 : index
    %57 = vector.load %arg6[%c0_30, %c0_31] : memref<1x512xf32, #tpu.memory_space<vmem>>, vector<1x512xf32>
    %58 = vector.broadcast %57 : vector<1x512xf32> to vector<8x512xf32>
    %59 = arith.addf %56, %58 : vector<8x512xf32>
    %c8_32 = arith.constant 8 : index
    %c0_33 = arith.constant 0 : index
    %60 = vector.load %arg11[%c8_32, %c0_33] : memref<64x512xf32, #tpu.memory_space<vmem>>, vector<8x512xf32>
    tpu.vector_store %arg11[%c8_32, %c0_33], %59 {strides = array<i32>} : memref<64x512xf32, #tpu.memory_space<vmem>>, vector<8x512xf32>,
    %c16 = arith.constant 16 : index
    %c0_34 = arith.constant 0 : index
    %61 = vector.load %arg10[%c16, %c0_34] : memref<64x1024xf32, #tpu.memory_space<vmem>>, vector<8x1024xf32>
    %c0_35 = arith.constant 0 : index
    %c0_36 = arith.constant 0 : index
    %62 = vector.load %arg2[%c0_35, %c0_36] : memref<144x1024xf32, #tpu.memory_space<vmem>>, vector<144x1024xf32>
    %cst_37 = arith.constant dense<0.000000e+00> : vector<8x1024xf32>
    %63 = tpu.matmul %54, %62, %cst_37 {dimension_numbers = #tpu.dot_dimension_numbers<[1], [0], [0], [1], [0, 0, 1, 1], [], []>} : vector<8x144xf32>, vector<144x1024xf32>, vector<8x1024xf32> -> vector<8x1024xf32>
    %64 = arith.addf %61, %63 : vector<8x1024xf32>
    %65 = vector.extract_strided_slice %64 {offsets = [0, 0], sizes = [8, 768], strides = [1, 1]} : vector<8x1024xf32> to vector<8x768xf32>
    %66 = arith.negf %65 : vector<8x768xf32>
    %67 = math.exp %66 : vector<8x768xf32>
    %cst_38 = arith.constant 1.000000e+00 : f32
    %68 = vector.broadcast %cst_38 : f32 to vector<8x768xf32>
    %69 = arith.addf %68, %67 : vector<8x768xf32>
    %70 = arith.divf %68, %69 : vector<8x768xf32>
    %71 = vector.extract_strided_slice %64 {offsets = [0, 768], sizes = [8, 144], strides = [1, 1]} : vector<8x1024xf32> to vector<8x144xf32>
    %72 = math.tanh %71 : vector<8x144xf32>
    %73 = vector.extract_strided_slice %70 {offsets = [0, 256], sizes = [8, 144], strides = [1, 1]} : vector<8x768xf32> to vector<8x144xf32>
    %74 = arith.mulf %73, %51 : vector<8x144xf32>
    %75 = vector.extract_strided_slice %70 {offsets = [0, 0], sizes = [8, 144], strides = [1, 1]} : vector<8x768xf32> to vector<8x144xf32>
    %76 = arith.mulf %75, %72 : vector<8x144xf32>
    %77 = arith.addf %74, %76 : vector<8x144xf32>
    %78 = vector.extract_strided_slice %70 {offsets = [0, 512], sizes = [8, 144], strides = [1, 1]} : vector<8x768xf32> to vector<8x144xf32>
    %79 = math.tanh %77 : vector<8x144xf32>
    %80 = arith.mulf %78, %79 : vector<8x144xf32>
    %c0_39 = arith.constant 0 : index
    %c0_40 = arith.constant 0 : index
    %81 = vector.load %arg4[%c0_39, %c0_40] : memref<144x512xf32, #tpu.memory_space<vmem>>, vector<144x512xf32>
    %cst_41 = arith.constant dense<0.000000e+00> : vector<8x512xf32>
    %82 = tpu.matmul %80, %81, %cst_41 {dimension_numbers = #tpu.dot_dimension_numbers<[1], [0], [0], [1], [0, 0, 1, 1], [], []>} : vector<8x144xf32>, vector<144x512xf32>, vector<8x512xf32> -> vector<8x512xf32>
    %c0_42 = arith.constant 0 : index
    %c0_43 = arith.constant 0 : index
    %83 = vector.load %arg6[%c0_42, %c0_43] : memref<1x512xf32, #tpu.memory_space<vmem>>, vector<1x512xf32>
    %84 = vector.broadcast %83 : vector<1x512xf32> to vector<8x512xf32>
    %85 = arith.addf %82, %84 : vector<8x512xf32>
    %c16_44 = arith.constant 16 : index
    %c0_45 = arith.constant 0 : index
    %86 = vector.load %arg11[%c16_44, %c0_45] : memref<64x512xf32, #tpu.memory_space<vmem>>, vector<8x512xf32>
    tpu.vector_store %arg11[%c16_44, %c0_45], %85 {strides = array<i32>} : memref<64x512xf32, #tpu.memory_space<vmem>>, vector<8x512xf32>,
    %c24 = arith.constant 24 : index
    %c0_46 = arith.constant 0 : index
    %87 = vector.load %arg10[%c24, %c0_46] : memref<64x1024xf32, #tpu.memory_space<vmem>>, vector<8x1024xf32>
    %c0_47 = arith.constant 0 : index
    %c0_48 = arith.constant 0 : index
    %88 = vector.load %arg2[%c0_47, %c0_48] : memref<144x1024xf32, #tpu.memory_space<vmem>>, vector<144x1024xf32>
    %cst_49 = arith.constant dense<0.000000e+00> : vector<8x1024xf32>
    %89 = tpu.matmul %80, %88, %cst_49 {dimension_numbers = #tpu.dot_dimension_numbers<[1], [0], [0], [1], [0, 0, 1, 1], [], []>} : vector<8x144xf32>, vector<144x1024xf32>, vector<8x1024xf32> -> vector<8x1024xf32>
    %90 = arith.addf %87, %89 : vector<8x1024xf32>
    %91 = vector.extract_strided_slice %90 {offsets = [0, 0], sizes = [8, 768], strides = [1, 1]} : vector<8x1024xf32> to vector<8x768xf32>
    %92 = arith.negf %91 : vector<8x768xf32>
    %93 = math.exp %92 : vector<8x768xf32>
    %cst_50 = arith.constant 1.000000e+00 : f32
    %94 = vector.broadcast %cst_50 : f32 to vector<8x768xf32>
    %95 = arith.addf %94, %93 : vector<8x768xf32>
    %96 = arith.divf %94, %95 : vector<8x768xf32>
    %97 = vector.extract_strided_slice %90 {offsets = [0, 768], sizes = [8, 144], strides = [1, 1]} : vector<8x1024xf32> to vector<8x144xf32>
    %98 = math.tanh %97 : vector<8x144xf32>
    %99 = vector.extract_strided_slice %96 {offsets = [0, 256], sizes = [8, 144], strides = [1, 1]} : vector<8x768xf32> to vector<8x144xf32>
    %100 = arith.mulf %99, %77 : vector<8x144xf32>
    %101 = vector.extract_strided_slice %96 {offsets = [0, 0], sizes = [8, 144], strides = [1, 1]} : vector<8x768xf32> to vector<8x144xf32>
    %102 = arith.mulf %101, %98 : vector<8x144xf32>
    %103 = arith.addf %100, %102 : vector<8x144xf32>
    %104 = vector.extract_strided_slice %96 {offsets = [0, 512], sizes = [8, 144], strides = [1, 1]} : vector<8x768xf32> to vector<8x144xf32>
    %105 = math.tanh %103 : vector<8x144xf32>
    %106 = arith.mulf %104, %105 : vector<8x144xf32>
    %c0_51 = arith.constant 0 : index
    %c0_52 = arith.constant 0 : index
    %107 = vector.load %arg4[%c0_51, %c0_52] : memref<144x512xf32, #tpu.memory_space<vmem>>, vector<144x512xf32>
    %cst_53 = arith.constant dense<0.000000e+00> : vector<8x512xf32>
    %108 = tpu.matmul %106, %107, %cst_53 {dimension_numbers = #tpu.dot_dimension_numbers<[1], [0], [0], [1], [0, 0, 1, 1], [], []>} : vector<8x144xf32>, vector<144x512xf32>, vector<8x512xf32> -> vector<8x512xf32>
    %c0_54 = arith.constant 0 : index
    %c0_55 = arith.constant 0 : index
    %109 = vector.load %arg6[%c0_54, %c0_55] : memref<1x512xf32, #tpu.memory_space<vmem>>, vector<1x512xf32>
    %110 = vector.broadcast %109 : vector<1x512xf32> to vector<8x512xf32>
    %111 = arith.addf %108, %110 : vector<8x512xf32>
    %c24_56 = arith.constant 24 : index
    %c0_57 = arith.constant 0 : index
    %112 = vector.load %arg11[%c24_56, %c0_57] : memref<64x512xf32, #tpu.memory_space<vmem>>, vector<8x512xf32>
    tpu.vector_store %arg11[%c24_56, %c0_57], %111 {strides = array<i32>} : memref<64x512xf32, #tpu.memory_space<vmem>>, vector<8x512xf32>,
    %c32 = arith.constant 32 : index
    %c0_58 = arith.constant 0 : index
    %113 = vector.load %arg10[%c32, %c0_58] : memref<64x1024xf32, #tpu.memory_space<vmem>>, vector<8x1024xf32>
    %c0_59 = arith.constant 0 : index
    %c0_60 = arith.constant 0 : index
    %114 = vector.load %arg2[%c0_59, %c0_60] : memref<144x1024xf32, #tpu.memory_space<vmem>>, vector<144x1024xf32>
    %cst_61 = arith.constant dense<0.000000e+00> : vector<8x1024xf32>
    %115 = tpu.matmul %106, %114, %cst_61 {dimension_numbers = #tpu.dot_dimension_numbers<[1], [0], [0], [1], [0, 0, 1, 1], [], []>} : vector<8x144xf32>, vector<144x1024xf32>, vector<8x1024xf32> -> vector<8x1024xf32>
    %116 = arith.addf %113, %115 : vector<8x1024xf32>
    %117 = vector.extract_strided_slice %116 {offsets = [0, 0], sizes = [8, 768], strides = [1, 1]} : vector<8x1024xf32> to vector<8x768xf32>
    %118 = arith.negf %117 : vector<8x768xf32>
    %119 = math.exp %118 : vector<8x768xf32>
    %cst_62 = arith.constant 1.000000e+00 : f32
    %120 = vector.broadcast %cst_62 : f32 to vector<8x768xf32>
    %121 = arith.addf %120, %119 : vector<8x768xf32>
    %122 = arith.divf %120, %121 : vector<8x768xf32>
    %123 = vector.extract_strided_slice %116 {offsets = [0, 768], sizes = [8, 144], strides = [1, 1]} : vector<8x1024xf32> to vector<8x144xf32>
    %124 = math.tanh %123 : vector<8x144xf32>
    %125 = vector.extract_strided_slice %122 {offsets = [0, 256], sizes = [8, 144], strides = [1, 1]} : vector<8x768xf32> to vector<8x144xf32>
    %126 = arith.mulf %125, %103 : vector<8x144xf32>
    %127 = vector.extract_strided_slice %122 {offsets = [0, 0], sizes = [8, 144], strides = [1, 1]} : vector<8x768xf32> to vector<8x144xf32>
    %128 = arith.mulf %127, %124 : vector<8x144xf32>
    %129 = arith.addf %126, %128 : vector<8x144xf32>
    %130 = vector.extract_strided_slice %122 {offsets = [0, 512], sizes = [8, 144], strides = [1, 1]} : vector<8x768xf32> to vector<8x144xf32>
    %131 = math.tanh %129 : vector<8x144xf32>
    %132 = arith.mulf %130, %131 : vector<8x144xf32>
    %c0_63 = arith.constant 0 : index
    %c0_64 = arith.constant 0 : index
    %133 = vector.load %arg4[%c0_63, %c0_64] : memref<144x512xf32, #tpu.memory_space<vmem>>, vector<144x512xf32>
    %cst_65 = arith.constant dense<0.000000e+00> : vector<8x512xf32>
    %134 = tpu.matmul %132, %133, %cst_65 {dimension_numbers = #tpu.dot_dimension_numbers<[1], [0], [0], [1], [0, 0, 1, 1], [], []>} : vector<8x144xf32>, vector<144x512xf32>, vector<8x512xf32> -> vector<8x512xf32>
    %c0_66 = arith.constant 0 : index
    %c0_67 = arith.constant 0 : index
    %135 = vector.load %arg6[%c0_66, %c0_67] : memref<1x512xf32, #tpu.memory_space<vmem>>, vector<1x512xf32>
    %136 = vector.broadcast %135 : vector<1x512xf32> to vector<8x512xf32>
    %137 = arith.addf %134, %136 : vector<8x512xf32>
    %c32_68 = arith.constant 32 : index
    %c0_69 = arith.constant 0 : index
    %138 = vector.load %arg11[%c32_68, %c0_69] : memref<64x512xf32, #tpu.memory_space<vmem>>, vector<8x512xf32>
    tpu.vector_store %arg11[%c32_68, %c0_69], %137 {strides = array<i32>} : memref<64x512xf32, #tpu.memory_space<vmem>>, vector<8x512xf32>,
    %c40 = arith.constant 40 : index
    %c0_70 = arith.constant 0 : index
    %139 = vector.load %arg10[%c40, %c0_70] : memref<64x1024xf32, #tpu.memory_space<vmem>>, vector<8x1024xf32>
    %c0_71 = arith.constant 0 : index
    %c0_72 = arith.constant 0 : index
    %140 = vector.load %arg2[%c0_71, %c0_72] : memref<144x1024xf32, #tpu.memory_space<vmem>>, vector<144x1024xf32>
    %cst_73 = arith.constant dense<0.000000e+00> : vector<8x1024xf32>
    %141 = tpu.matmul %132, %140, %cst_73 {dimension_numbers = #tpu.dot_dimension_numbers<[1], [0], [0], [1], [0, 0, 1, 1], [], []>} : vector<8x144xf32>, vector<144x1024xf32>, vector<8x1024xf32> -> vector<8x1024xf32>
    %142 = arith.addf %139, %141 : vector<8x1024xf32>
    %143 = vector.extract_strided_slice %142 {offsets = [0, 0], sizes = [8, 768], strides = [1, 1]} : vector<8x1024xf32> to vector<8x768xf32>
    %144 = arith.negf %143 : vector<8x768xf32>
    %145 = math.exp %144 : vector<8x768xf32>
    %cst_74 = arith.constant 1.000000e+00 : f32
    %146 = vector.broadcast %cst_74 : f32 to vector<8x768xf32>
    %147 = arith.addf %146, %145 : vector<8x768xf32>
    %148 = arith.divf %146, %147 : vector<8x768xf32>
    %149 = vector.extract_strided_slice %142 {offsets = [0, 768], sizes = [8, 144], strides = [1, 1]} : vector<8x1024xf32> to vector<8x144xf32>
    %150 = math.tanh %149 : vector<8x144xf32>
    %151 = vector.extract_strided_slice %148 {offsets = [0, 256], sizes = [8, 144], strides = [1, 1]} : vector<8x768xf32> to vector<8x144xf32>
    %152 = arith.mulf %151, %129 : vector<8x144xf32>
    %153 = vector.extract_strided_slice %148 {offsets = [0, 0], sizes = [8, 144], strides = [1, 1]} : vector<8x768xf32> to vector<8x144xf32>
    %154 = arith.mulf %153, %150 : vector<8x144xf32>
    %155 = arith.addf %152, %154 : vector<8x144xf32>
    %156 = vector.extract_strided_slice %148 {offsets = [0, 512], sizes = [8, 144], strides = [1, 1]} : vector<8x768xf32> to vector<8x144xf32>
    %157 = math.tanh %155 : vector<8x144xf32>
    %158 = arith.mulf %156, %157 : vector<8x144xf32>
    %c0_75 = arith.constant 0 : index
    %c0_76 = arith.constant 0 : index
    %159 = vector.load %arg4[%c0_75, %c0_76] : memref<144x512xf32, #tpu.memory_space<vmem>>, vector<144x512xf32>
    %cst_77 = arith.constant dense<0.000000e+00> : vector<8x512xf32>
    %160 = tpu.matmul %158, %159, %cst_77 {dimension_numbers = #tpu.dot_dimension_numbers<[1], [0], [0], [1], [0, 0, 1, 1], [], []>} : vector<8x144xf32>, vector<144x512xf32>, vector<8x512xf32> -> vector<8x512xf32>
    %c0_78 = arith.constant 0 : index
    %c0_79 = arith.constant 0 : index
    %161 = vector.load %arg6[%c0_78, %c0_79] : memref<1x512xf32, #tpu.memory_space<vmem>>, vector<1x512xf32>
    %162 = vector.broadcast %161 : vector<1x512xf32> to vector<8x512xf32>
    %163 = arith.addf %160, %162 : vector<8x512xf32>
    %c40_80 = arith.constant 40 : index
    %c0_81 = arith.constant 0 : index
    %164 = vector.load %arg11[%c40_80, %c0_81] : memref<64x512xf32, #tpu.memory_space<vmem>>, vector<8x512xf32>
    tpu.vector_store %arg11[%c40_80, %c0_81], %163 {strides = array<i32>} : memref<64x512xf32, #tpu.memory_space<vmem>>, vector<8x512xf32>,
    %c48 = arith.constant 48 : index
    %c0_82 = arith.constant 0 : index
    %165 = vector.load %arg10[%c48, %c0_82] : memref<64x1024xf32, #tpu.memory_space<vmem>>, vector<8x1024xf32>
    %c0_83 = arith.constant 0 : index
    %c0_84 = arith.constant 0 : index
    %166 = vector.load %arg2[%c0_83, %c0_84] : memref<144x1024xf32, #tpu.memory_space<vmem>>, vector<144x1024xf32>
    %cst_85 = arith.constant dense<0.000000e+00> : vector<8x1024xf32>
    %167 = tpu.matmul %158, %166, %cst_85 {dimension_numbers = #tpu.dot_dimension_numbers<[1], [0], [0], [1], [0, 0, 1, 1], [], []>} : vector<8x144xf32>, vector<144x1024xf32>, vector<8x1024xf32> -> vector<8x1024xf32>
    %168 = arith.addf %165, %167 : vector<8x1024xf32>
    %169 = vector.extract_strided_slice %168 {offsets = [0, 0], sizes = [8, 768], strides = [1, 1]} : vector<8x1024xf32> to vector<8x768xf32>
    %170 = arith.negf %169 : vector<8x768xf32>
    %171 = math.exp %170 : vector<8x768xf32>
    %cst_86 = arith.constant 1.000000e+00 : f32
    %172 = vector.broadcast %cst_86 : f32 to vector<8x768xf32>
    %173 = arith.addf %172, %171 : vector<8x768xf32>
    %174 = arith.divf %172, %173 : vector<8x768xf32>
    %175 = vector.extract_strided_slice %168 {offsets = [0, 768], sizes = [8, 144], strides = [1, 1]} : vector<8x1024xf32> to vector<8x144xf32>
    %176 = math.tanh %175 : vector<8x144xf32>
    %177 = vector.extract_strided_slice %174 {offsets = [0, 256], sizes = [8, 144], strides = [1, 1]} : vector<8x768xf32> to vector<8x144xf32>
    %178 = arith.mulf %177, %155 : vector<8x144xf32>
    %179 = vector.extract_strided_slice %174 {offsets = [0, 0], sizes = [8, 144], strides = [1, 1]} : vector<8x768xf32> to vector<8x144xf32>
    %180 = arith.mulf %179, %176 : vector<8x144xf32>
    %181 = arith.addf %178, %180 : vector<8x144xf32>
    %182 = vector.extract_strided_slice %174 {offsets = [0, 512], sizes = [8, 144], strides = [1, 1]} : vector<8x768xf32> to vector<8x144xf32>
    %183 = math.tanh %181 : vector<8x144xf32>
    %184 = arith.mulf %182, %183 : vector<8x144xf32>
    %c0_87 = arith.constant 0 : index
    %c0_88 = arith.constant 0 : index
    %185 = vector.load %arg4[%c0_87, %c0_88] : memref<144x512xf32, #tpu.memory_space<vmem>>, vector<144x512xf32>
    %cst_89 = arith.constant dense<0.000000e+00> : vector<8x512xf32>
    %186 = tpu.matmul %184, %185, %cst_89 {dimension_numbers = #tpu.dot_dimension_numbers<[1], [0], [0], [1], [0, 0, 1, 1], [], []>} : vector<8x144xf32>, vector<144x512xf32>, vector<8x512xf32> -> vector<8x512xf32>
    %c0_90 = arith.constant 0 : index
    %c0_91 = arith.constant 0 : index
    %187 = vector.load %arg6[%c0_90, %c0_91] : memref<1x512xf32, #tpu.memory_space<vmem>>, vector<1x512xf32>
    %188 = vector.broadcast %187 : vector<1x512xf32> to vector<8x512xf32>
    %189 = arith.addf %186, %188 : vector<8x512xf32>
    %c48_92 = arith.constant 48 : index
    %c0_93 = arith.constant 0 : index
    %190 = vector.load %arg11[%c48_92, %c0_93] : memref<64x512xf32, #tpu.memory_space<vmem>>, vector<8x512xf32>
    tpu.vector_store %arg11[%c48_92, %c0_93], %189 {strides = array<i32>} : memref<64x512xf32, #tpu.memory_space<vmem>>, vector<8x512xf32>,
    %c56 = arith.constant 56 : index
    %c0_94 = arith.constant 0 : index
    %191 = vector.load %arg10[%c56, %c0_94] : memref<64x1024xf32, #tpu.memory_space<vmem>>, vector<8x1024xf32>
    %c0_95 = arith.constant 0 : index
    %c0_96 = arith.constant 0 : index
    %192 = vector.load %arg2[%c0_95, %c0_96] : memref<144x1024xf32, #tpu.memory_space<vmem>>, vector<144x1024xf32>
    %cst_97 = arith.constant dense<0.000000e+00> : vector<8x1024xf32>
    %193 = tpu.matmul %184, %192, %cst_97 {dimension_numbers = #tpu.dot_dimension_numbers<[1], [0], [0], [1], [0, 0, 1, 1], [], []>} : vector<8x144xf32>, vector<144x1024xf32>, vector<8x1024xf32> -> vector<8x1024xf32>
    %194 = arith.addf %191, %193 : vector<8x1024xf32>
    %195 = vector.extract_strided_slice %194 {offsets = [0, 0], sizes = [8, 768], strides = [1, 1]} : vector<8x1024xf32> to vector<8x768xf32>
    %196 = arith.negf %195 : vector<8x768xf32>
    %197 = math.exp %196 : vector<8x768xf32>
    %cst_98 = arith.constant 1.000000e+00 : f32
    %198 = vector.broadcast %cst_98 : f32 to vector<8x768xf32>
    %199 = arith.addf %198, %197 : vector<8x768xf32>
    %200 = arith.divf %198, %199 : vector<8x768xf32>
    %201 = vector.extract_strided_slice %194 {offsets = [0, 768], sizes = [8, 144], strides = [1, 1]} : vector<8x1024xf32> to vector<8x144xf32>
    %202 = math.tanh %201 : vector<8x144xf32>
    %203 = vector.extract_strided_slice %200 {offsets = [0, 256], sizes = [8, 144], strides = [1, 1]} : vector<8x768xf32> to vector<8x144xf32>
    %204 = arith.mulf %203, %181 : vector<8x144xf32>
    %205 = vector.extract_strided_slice %200 {offsets = [0, 0], sizes = [8, 144], strides = [1, 1]} : vector<8x768xf32> to vector<8x144xf32>
    %206 = arith.mulf %205, %202 : vector<8x144xf32>
    %207 = arith.addf %204, %206 : vector<8x144xf32>
    %208 = vector.extract_strided_slice %200 {offsets = [0, 512], sizes = [8, 144], strides = [1, 1]} : vector<8x768xf32> to vector<8x144xf32>
    %209 = math.tanh %207 : vector<8x144xf32>
    %210 = arith.mulf %208, %209 : vector<8x144xf32>
    %c0_99 = arith.constant 0 : index
    %c0_100 = arith.constant 0 : index
    %211 = vector.load %arg4[%c0_99, %c0_100] : memref<144x512xf32, #tpu.memory_space<vmem>>, vector<144x512xf32>
    %cst_101 = arith.constant dense<0.000000e+00> : vector<8x512xf32>
    %212 = tpu.matmul %210, %211, %cst_101 {dimension_numbers = #tpu.dot_dimension_numbers<[1], [0], [0], [1], [0, 0, 1, 1], [], []>} : vector<8x144xf32>, vector<144x512xf32>, vector<8x512xf32> -> vector<8x512xf32>
    %c0_102 = arith.constant 0 : index
    %c0_103 = arith.constant 0 : index
    %213 = vector.load %arg6[%c0_102, %c0_103] : memref<1x512xf32, #tpu.memory_space<vmem>>, vector<1x512xf32>
    %214 = vector.broadcast %213 : vector<1x512xf32> to vector<8x512xf32>
    %215 = arith.addf %212, %214 : vector<8x512xf32>
    %c56_104 = arith.constant 56 : index
    %c0_105 = arith.constant 0 : index
    %216 = vector.load %arg11[%c56_104, %c0_105] : memref<64x512xf32, #tpu.memory_space<vmem>>, vector<8x512xf32>
    tpu.vector_store %arg11[%c56_104, %c0_105], %215 {strides = array<i32>} : memref<64x512xf32, #tpu.memory_space<vmem>>, vector<8x512xf32>,
    %cst_106 = arith.constant 0.000000e+00 : f32
    %217 = vector.broadcast %cst_106 : f32 to vector<8x96xf32>
    %cst_107 = arith.constant 0.000000e+00 : f32
    %218 = vector.broadcast %cst_107 : f32 to vector<8x96xf32>
    %c0_108 = arith.constant 0 : index
    %c0_109 = arith.constant 0 : index
    %219 = vector.load %arg11[%c0_108, %c0_109] : memref<64x512xf32, #tpu.memory_space<vmem>>, vector<8x512xf32>
    %c0_110 = arith.constant 0 : index
    %c0_111 = arith.constant 0 : index
    %220 = vector.load %arg5[%c0_110, %c0_111] : memref<96x512xf32, #tpu.memory_space<vmem>>, vector<96x512xf32>
    %cst_112 = arith.constant dense<0.000000e+00> : vector<8x512xf32>
    %221 = tpu.matmul %217, %220, %cst_112 {dimension_numbers = #tpu.dot_dimension_numbers<[1], [0], [0], [1], [0, 0, 1, 1], [], []>} : vector<8x96xf32>, vector<96x512xf32>, vector<8x512xf32> -> vector<8x512xf32>
    %222 = arith.addf %219, %221 : vector<8x512xf32>
    %223 = vector.extract_strided_slice %222 {offsets = [0, 0], sizes = [8, 384], strides = [1, 1]} : vector<8x512xf32> to vector<8x384xf32>
    %224 = arith.negf %223 : vector<8x384xf32>
    %225 = math.exp %224 : vector<8x384xf32>
    %cst_113 = arith.constant 1.000000e+00 : f32
    %226 = vector.broadcast %cst_113 : f32 to vector<8x384xf32>
    %227 = arith.addf %226, %225 : vector<8x384xf32>
    %228 = arith.divf %226, %227 : vector<8x384xf32>
    %229 = vector.extract_strided_slice %222 {offsets = [0, 384], sizes = [8, 96], strides = [1, 1]} : vector<8x512xf32> to vector<8x96xf32>
    %230 = math.tanh %229 : vector<8x96xf32>
    %231 = vector.extract_strided_slice %228 {offsets = [0, 128], sizes = [8, 96], strides = [1, 1]} : vector<8x384xf32> to vector<8x96xf32>
    %232 = arith.mulf %231, %218 : vector<8x96xf32>
    %233 = vector.extract_strided_slice %228 {offsets = [0, 0], sizes = [8, 96], strides = [1, 1]} : vector<8x384xf32> to vector<8x96xf32>
    %234 = arith.mulf %233, %230 : vector<8x96xf32>
    %235 = arith.addf %232, %234 : vector<8x96xf32>
    %236 = vector.extract_strided_slice %228 {offsets = [0, 256], sizes = [8, 96], strides = [1, 1]} : vector<8x384xf32> to vector<8x96xf32>
    %237 = math.tanh %235 : vector<8x96xf32>
    %238 = arith.mulf %236, %237 : vector<8x96xf32>
    %c8_114 = arith.constant 8 : index
    %c0_115 = arith.constant 0 : index
    %239 = vector.load %arg11[%c8_114, %c0_115] : memref<64x512xf32, #tpu.memory_space<vmem>>, vector<8x512xf32>
    %c0_116 = arith.constant 0 : index
    %c0_117 = arith.constant 0 : index
    %240 = vector.load %arg5[%c0_116, %c0_117] : memref<96x512xf32, #tpu.memory_space<vmem>>, vector<96x512xf32>
    %cst_118 = arith.constant dense<0.000000e+00> : vector<8x512xf32>
    %241 = tpu.matmul %238, %240, %cst_118 {dimension_numbers = #tpu.dot_dimension_numbers<[1], [0], [0], [1], [0, 0, 1, 1], [], []>} : vector<8x96xf32>, vector<96x512xf32>, vector<8x512xf32> -> vector<8x512xf32>
    %242 = arith.addf %239, %241 : vector<8x512xf32>
    %243 = vector.extract_strided_slice %242 {offsets = [0, 0], sizes = [8, 384], strides = [1, 1]} : vector<8x512xf32> to vector<8x384xf32>
    %244 = arith.negf %243 : vector<8x384xf32>
    %245 = math.exp %244 : vector<8x384xf32>
    %cst_119 = arith.constant 1.000000e+00 : f32
    %246 = vector.broadcast %cst_119 : f32 to vector<8x384xf32>
    %247 = arith.addf %246, %245 : vector<8x384xf32>
    %248 = arith.divf %246, %247 : vector<8x384xf32>
    %249 = vector.extract_strided_slice %242 {offsets = [0, 384], sizes = [8, 96], strides = [1, 1]} : vector<8x512xf32> to vector<8x96xf32>
    %250 = math.tanh %249 : vector<8x96xf32>
    %251 = vector.extract_strided_slice %248 {offsets = [0, 128], sizes = [8, 96], strides = [1, 1]} : vector<8x384xf32> to vector<8x96xf32>
    %252 = arith.mulf %251, %235 : vector<8x96xf32>
    %253 = vector.extract_strided_slice %248 {offsets = [0, 0], sizes = [8, 96], strides = [1, 1]} : vector<8x384xf32> to vector<8x96xf32>
    %254 = arith.mulf %253, %250 : vector<8x96xf32>
    %255 = arith.addf %252, %254 : vector<8x96xf32>
    %256 = vector.extract_strided_slice %248 {offsets = [0, 256], sizes = [8, 96], strides = [1, 1]} : vector<8x384xf32> to vector<8x96xf32>
    %257 = math.tanh %255 : vector<8x96xf32>
    %258 = arith.mulf %256, %257 : vector<8x96xf32>
    %c16_120 = arith.constant 16 : index
    %c0_121 = arith.constant 0 : index
    %259 = vector.load %arg11[%c16_120, %c0_121] : memref<64x512xf32, #tpu.memory_space<vmem>>, vector<8x512xf32>
    %c0_122 = arith.constant 0 : index
    %c0_123 = arith.constant 0 : index
    %260 = vector.load %arg5[%c0_122, %c0_123] : memref<96x512xf32, #tpu.memory_space<vmem>>, vector<96x512xf32>
    %cst_124 = arith.constant dense<0.000000e+00> : vector<8x512xf32>
    %261 = tpu.matmul %258, %260, %cst_124 {dimension_numbers = #tpu.dot_dimension_numbers<[1], [0], [0], [1], [0, 0, 1, 1], [], []>} : vector<8x96xf32>, vector<96x512xf32>, vector<8x512xf32> -> vector<8x512xf32>
    %262 = arith.addf %259, %261 : vector<8x512xf32>
    %263 = vector.extract_strided_slice %262 {offsets = [0, 0], sizes = [8, 384], strides = [1, 1]} : vector<8x512xf32> to vector<8x384xf32>
    %264 = arith.negf %263 : vector<8x384xf32>
    %265 = math.exp %264 : vector<8x384xf32>
    %cst_125 = arith.constant 1.000000e+00 : f32
    %266 = vector.broadcast %cst_125 : f32 to vector<8x384xf32>
    %267 = arith.addf %266, %265 : vector<8x384xf32>
    %268 = arith.divf %266, %267 : vector<8x384xf32>
    %269 = vector.extract_strided_slice %262 {offsets = [0, 384], sizes = [8, 96], strides = [1, 1]} : vector<8x512xf32> to vector<8x96xf32>
    %270 = math.tanh %269 : vector<8x96xf32>
    %271 = vector.extract_strided_slice %268 {offsets = [0, 128], sizes = [8, 96], strides = [1, 1]} : vector<8x384xf32> to vector<8x96xf32>
    %272 = arith.mulf %271, %255 : vector<8x96xf32>
    %273 = vector.extract_strided_slice %268 {offsets = [0, 0], sizes = [8, 96], strides = [1, 1]} : vector<8x384xf32> to vector<8x96xf32>
    %274 = arith.mulf %273, %270 : vector<8x96xf32>
    %275 = arith.addf %272, %274 : vector<8x96xf32>
    %276 = vector.extract_strided_slice %268 {offsets = [0, 256], sizes = [8, 96], strides = [1, 1]} : vector<8x384xf32> to vector<8x96xf32>
    %277 = math.tanh %275 : vector<8x96xf32>
    %278 = arith.mulf %276, %277 : vector<8x96xf32>
    %c24_126 = arith.constant 24 : index
    %c0_127 = arith.constant 0 : index
    %279 = vector.load %arg11[%c24_126, %c0_127] : memref<64x512xf32, #tpu.memory_space<vmem>>, vector<8x512xf32>
    %c0_128 = arith.constant 0 : index
    %c0_129 = arith.constant 0 : index
    %280 = vector.load %arg5[%c0_128, %c0_129] : memref<96x512xf32, #tpu.memory_space<vmem>>, vector<96x512xf32>
    %cst_130 = arith.constant dense<0.000000e+00> : vector<8x512xf32>
    %281 = tpu.matmul %278, %280, %cst_130 {dimension_numbers = #tpu.dot_dimension_numbers<[1], [0], [0], [1], [0, 0, 1, 1], [], []>} : vector<8x96xf32>, vector<96x512xf32>, vector<8x512xf32> -> vector<8x512xf32>
    %282 = arith.addf %279, %281 : vector<8x512xf32>
    %283 = vector.extract_strided_slice %282 {offsets = [0, 0], sizes = [8, 384], strides = [1, 1]} : vector<8x512xf32> to vector<8x384xf32>
    %284 = arith.negf %283 : vector<8x384xf32>
    %285 = math.exp %284 : vector<8x384xf32>
    %cst_131 = arith.constant 1.000000e+00 : f32
    %286 = vector.broadcast %cst_131 : f32 to vector<8x384xf32>
    %287 = arith.addf %286, %285 : vector<8x384xf32>
    %288 = arith.divf %286, %287 : vector<8x384xf32>
    %289 = vector.extract_strided_slice %282 {offsets = [0, 384], sizes = [8, 96], strides = [1, 1]} : vector<8x512xf32> to vector<8x96xf32>
    %290 = math.tanh %289 : vector<8x96xf32>
    %291 = vector.extract_strided_slice %288 {offsets = [0, 128], sizes = [8, 96], strides = [1, 1]} : vector<8x384xf32> to vector<8x96xf32>
    %292 = arith.mulf %291, %275 : vector<8x96xf32>
    %293 = vector.extract_strided_slice %288 {offsets = [0, 0], sizes = [8, 96], strides = [1, 1]} : vector<8x384xf32> to vector<8x96xf32>
    %294 = arith.mulf %293, %290 : vector<8x96xf32>
    %295 = arith.addf %292, %294 : vector<8x96xf32>
    %296 = vector.extract_strided_slice %288 {offsets = [0, 256], sizes = [8, 96], strides = [1, 1]} : vector<8x384xf32> to vector<8x96xf32>
    %297 = math.tanh %295 : vector<8x96xf32>
    %298 = arith.mulf %296, %297 : vector<8x96xf32>
    %c32_132 = arith.constant 32 : index
    %c0_133 = arith.constant 0 : index
    %299 = vector.load %arg11[%c32_132, %c0_133] : memref<64x512xf32, #tpu.memory_space<vmem>>, vector<8x512xf32>
    %c0_134 = arith.constant 0 : index
    %c0_135 = arith.constant 0 : index
    %300 = vector.load %arg5[%c0_134, %c0_135] : memref<96x512xf32, #tpu.memory_space<vmem>>, vector<96x512xf32>
    %cst_136 = arith.constant dense<0.000000e+00> : vector<8x512xf32>
    %301 = tpu.matmul %298, %300, %cst_136 {dimension_numbers = #tpu.dot_dimension_numbers<[1], [0], [0], [1], [0, 0, 1, 1], [], []>} : vector<8x96xf32>, vector<96x512xf32>, vector<8x512xf32> -> vector<8x512xf32>
    %302 = arith.addf %299, %301 : vector<8x512xf32>
    %303 = vector.extract_strided_slice %302 {offsets = [0, 0], sizes = [8, 384], strides = [1, 1]} : vector<8x512xf32> to vector<8x384xf32>
    %304 = arith.negf %303 : vector<8x384xf32>
    %305 = math.exp %304 : vector<8x384xf32>
    %cst_137 = arith.constant 1.000000e+00 : f32
    %306 = vector.broadcast %cst_137 : f32 to vector<8x384xf32>
    %307 = arith.addf %306, %305 : vector<8x384xf32>
    %308 = arith.divf %306, %307 : vector<8x384xf32>
    %309 = vector.extract_strided_slice %302 {offsets = [0, 384], sizes = [8, 96], strides = [1, 1]} : vector<8x512xf32> to vector<8x96xf32>
    %310 = math.tanh %309 : vector<8x96xf32>
    %311 = vector.extract_strided_slice %308 {offsets = [0, 128], sizes = [8, 96], strides = [1, 1]} : vector<8x384xf32> to vector<8x96xf32>
    %312 = arith.mulf %311, %295 : vector<8x96xf32>
    %313 = vector.extract_strided_slice %308 {offsets = [0, 0], sizes = [8, 96], strides = [1, 1]} : vector<8x384xf32> to vector<8x96xf32>
    %314 = arith.mulf %313, %310 : vector<8x96xf32>
    %315 = arith.addf %312, %314 : vector<8x96xf32>
    %316 = vector.extract_strided_slice %308 {offsets = [0, 256], sizes = [8, 96], strides = [1, 1]} : vector<8x384xf32> to vector<8x96xf32>
    %317 = math.tanh %315 : vector<8x96xf32>
    %318 = arith.mulf %316, %317 : vector<8x96xf32>
    %c40_138 = arith.constant 40 : index
    %c0_139 = arith.constant 0 : index
    %319 = vector.load %arg11[%c40_138, %c0_139] : memref<64x512xf32, #tpu.memory_space<vmem>>, vector<8x512xf32>
    %c0_140 = arith.constant 0 : index
    %c0_141 = arith.constant 0 : index
    %320 = vector.load %arg5[%c0_140, %c0_141] : memref<96x512xf32, #tpu.memory_space<vmem>>, vector<96x512xf32>
    %cst_142 = arith.constant dense<0.000000e+00> : vector<8x512xf32>
    %321 = tpu.matmul %318, %320, %cst_142 {dimension_numbers = #tpu.dot_dimension_numbers<[1], [0], [0], [1], [0, 0, 1, 1], [], []>} : vector<8x96xf32>, vector<96x512xf32>, vector<8x512xf32> -> vector<8x512xf32>
    %322 = arith.addf %319, %321 : vector<8x512xf32>
    %323 = vector.extract_strided_slice %322 {offsets = [0, 0], sizes = [8, 384], strides = [1, 1]} : vector<8x512xf32> to vector<8x384xf32>
    %324 = arith.negf %323 : vector<8x384xf32>
    %325 = math.exp %324 : vector<8x384xf32>
    %cst_143 = arith.constant 1.000000e+00 : f32
    %326 = vector.broadcast %cst_143 : f32 to vector<8x384xf32>
    %327 = arith.addf %326, %325 : vector<8x384xf32>
    %328 = arith.divf %326, %327 : vector<8x384xf32>
    %329 = vector.extract_strided_slice %322 {offsets = [0, 384], sizes = [8, 96], strides = [1, 1]} : vector<8x512xf32> to vector<8x96xf32>
    %330 = math.tanh %329 : vector<8x96xf32>
    %331 = vector.extract_strided_slice %328 {offsets = [0, 128], sizes = [8, 96], strides = [1, 1]} : vector<8x384xf32> to vector<8x96xf32>
    %332 = arith.mulf %331, %315 : vector<8x96xf32>
    %333 = vector.extract_strided_slice %328 {offsets = [0, 0], sizes = [8, 96], strides = [1, 1]} : vector<8x384xf32> to vector<8x96xf32>
    %334 = arith.mulf %333, %330 : vector<8x96xf32>
    %335 = arith.addf %332, %334 : vector<8x96xf32>
    %336 = vector.extract_strided_slice %328 {offsets = [0, 256], sizes = [8, 96], strides = [1, 1]} : vector<8x384xf32> to vector<8x96xf32>
    %337 = math.tanh %335 : vector<8x96xf32>
    %338 = arith.mulf %336, %337 : vector<8x96xf32>
    %c48_144 = arith.constant 48 : index
    %c0_145 = arith.constant 0 : index
    %339 = vector.load %arg11[%c48_144, %c0_145] : memref<64x512xf32, #tpu.memory_space<vmem>>, vector<8x512xf32>
    %c0_146 = arith.constant 0 : index
    %c0_147 = arith.constant 0 : index
    %340 = vector.load %arg5[%c0_146, %c0_147] : memref<96x512xf32, #tpu.memory_space<vmem>>, vector<96x512xf32>
    %cst_148 = arith.constant dense<0.000000e+00> : vector<8x512xf32>
    %341 = tpu.matmul %338, %340, %cst_148 {dimension_numbers = #tpu.dot_dimension_numbers<[1], [0], [0], [1], [0, 0, 1, 1], [], []>} : vector<8x96xf32>, vector<96x512xf32>, vector<8x512xf32> -> vector<8x512xf32>
    %342 = arith.addf %339, %341 : vector<8x512xf32>
    %343 = vector.extract_strided_slice %342 {offsets = [0, 0], sizes = [8, 384], strides = [1, 1]} : vector<8x512xf32> to vector<8x384xf32>
    %344 = arith.negf %343 : vector<8x384xf32>
    %345 = math.exp %344 : vector<8x384xf32>
    %cst_149 = arith.constant 1.000000e+00 : f32
    %346 = vector.broadcast %cst_149 : f32 to vector<8x384xf32>
    %347 = arith.addf %346, %345 : vector<8x384xf32>
    %348 = arith.divf %346, %347 : vector<8x384xf32>
    %349 = vector.extract_strided_slice %342 {offsets = [0, 384], sizes = [8, 96], strides = [1, 1]} : vector<8x512xf32> to vector<8x96xf32>
    %350 = math.tanh %349 : vector<8x96xf32>
    %351 = vector.extract_strided_slice %348 {offsets = [0, 128], sizes = [8, 96], strides = [1, 1]} : vector<8x384xf32> to vector<8x96xf32>
    %352 = arith.mulf %351, %335 : vector<8x96xf32>
    %353 = vector.extract_strided_slice %348 {offsets = [0, 0], sizes = [8, 96], strides = [1, 1]} : vector<8x384xf32> to vector<8x96xf32>
    %354 = arith.mulf %353, %350 : vector<8x96xf32>
    %355 = arith.addf %352, %354 : vector<8x96xf32>
    %356 = vector.extract_strided_slice %348 {offsets = [0, 256], sizes = [8, 96], strides = [1, 1]} : vector<8x384xf32> to vector<8x96xf32>
    %357 = math.tanh %355 : vector<8x96xf32>
    %358 = arith.mulf %356, %357 : vector<8x96xf32>
    %c56_150 = arith.constant 56 : index
    %c0_151 = arith.constant 0 : index
    %359 = vector.load %arg11[%c56_150, %c0_151] : memref<64x512xf32, #tpu.memory_space<vmem>>, vector<8x512xf32>
    %c0_152 = arith.constant 0 : index
    %c0_153 = arith.constant 0 : index
    %360 = vector.load %arg5[%c0_152, %c0_153] : memref<96x512xf32, #tpu.memory_space<vmem>>, vector<96x512xf32>
    %cst_154 = arith.constant dense<0.000000e+00> : vector<8x512xf32>
    %361 = tpu.matmul %358, %360, %cst_154 {dimension_numbers = #tpu.dot_dimension_numbers<[1], [0], [0], [1], [0, 0, 1, 1], [], []>} : vector<8x96xf32>, vector<96x512xf32>, vector<8x512xf32> -> vector<8x512xf32>
    %362 = arith.addf %359, %361 : vector<8x512xf32>
    %363 = vector.extract_strided_slice %362 {offsets = [0, 0], sizes = [8, 384], strides = [1, 1]} : vector<8x512xf32> to vector<8x384xf32>
    %364 = arith.negf %363 : vector<8x384xf32>
    %365 = math.exp %364 : vector<8x384xf32>
    %cst_155 = arith.constant 1.000000e+00 : f32
    %366 = vector.broadcast %cst_155 : f32 to vector<8x384xf32>
    %367 = arith.addf %366, %365 : vector<8x384xf32>
    %368 = arith.divf %366, %367 : vector<8x384xf32>
    %369 = vector.extract_strided_slice %362 {offsets = [0, 384], sizes = [8, 96], strides = [1, 1]} : vector<8x512xf32> to vector<8x96xf32>
    %370 = math.tanh %369 : vector<8x96xf32>
    %371 = vector.extract_strided_slice %368 {offsets = [0, 128], sizes = [8, 96], strides = [1, 1]} : vector<8x384xf32> to vector<8x96xf32>
    %372 = arith.mulf %371, %355 : vector<8x96xf32>
    %373 = vector.extract_strided_slice %368 {offsets = [0, 0], sizes = [8, 96], strides = [1, 1]} : vector<8x384xf32> to vector<8x96xf32>
    %374 = arith.mulf %373, %370 : vector<8x96xf32>
    %375 = arith.addf %372, %374 : vector<8x96xf32>
    %376 = vector.extract_strided_slice %368 {offsets = [0, 256], sizes = [8, 96], strides = [1, 1]} : vector<8x384xf32> to vector<8x96xf32>
    %377 = math.tanh %375 : vector<8x96xf32>
    %378 = arith.mulf %376, %377 : vector<8x96xf32>
    %c0_156 = arith.constant 0 : index
    %c0_157 = arith.constant 0 : index
    %379 = vector.load %arg7[%c0_156, %c0_157] : memref<1x96xf32, #tpu.memory_space<vmem>>, vector<1x96xf32>
    %380 = vector.broadcast %379 : vector<1x96xf32> to vector<8x96xf32>
    %381 = arith.mulf %378, %380 : vector<8x96xf32>
    %cst_158 = arith.constant dense<0.000000e+00> : vector<8xf32>
    %382 = vector.multi_reduction <add>, %381, %cst_158 [1] : vector<8x96xf32> to vector<8xf32>
    %383 = vector.shape_cast %382 : vector<8xf32> to vector<8x1xf32>
    %c0_159 = arith.constant 0 : index
    %c0_160 = arith.constant 0 : index
    %384 = vector.load %arg8[%c0_159, %c0_160] : memref<1x1xf32, #tpu.memory_space<vmem>>, vector<1x1xf32>
    %385 = vector.broadcast %384 : vector<1x1xf32> to vector<8x1xf32>
    %386 = arith.addf %383, %385 : vector<8x1xf32>
    %c0_161 = arith.constant 0 : index
    %c0_162 = arith.constant 0 : index
    %387 = vector.load %arg9[%c0_161, %c0_162] : memref<8x1xf32, #tpu.memory_space<vmem>>, vector<8x1xf32>
    tpu.vector_store %arg9[%c0_161, %c0_162], %386 {strides = array<i32>} : memref<8x1xf32, #tpu.memory_space<vmem>>, vector<8x1xf32>,
    return
  }
}

</mosaic_0001>

<llo_original>
// kernel: lstm_model_with_bn.1
$region0: #{lstm_model_with_bn.1}
  #allocation0 [shape = 'u32[]', space=smem, size = 0x4, offset = 0x4, fixed_abs, tag = 'smem constant byte address 0x4 - core index']
  #allocation1 [shape = 'u32[144,128]{1,0:T(1,128)}', space=vmem, size = 0x12000, scoped, tag = 'internal scratch']
  #allocation2 [shape = 'f32[64,1024]{1,0:T(8,128)}', space=vmem, size = 0x40000, scoped, tag = 'scratch operand']
  #allocation3 [shape = 'f32[64,512]{1,0:T(8,128)}', space=vmem, size = 0x20000, scoped, tag = 'scratch operand']
  #allocation4 [shape = 'f32[1,1]{1,0:T(1,128)S(1)}', space=vmem, size = 0x200, scoped, tag = 'scoped memory for lstm_model_with_bn.1']
  %s0 = inlined_call_operand.vmem [shape: f32[64,14], index: 0, kind: input, shape index: {}]
  %s1 = inlined_call_operand.hbm [shape: f32[14,1024], index: 1, kind: input, shape index: {}]
  %s2 = inlined_call_operand.hbm [shape: f32[144,1024], index: 2, kind: input, shape index: {}]
  %s3 = inlined_call_operand.vmem [shape: f32[1,1024], index: 3, kind: input, shape index: {}]
  %s4 = inlined_call_operand.hbm [shape: f32[144,512], index: 4, kind: input, shape index: {}]
  %s5 = inlined_call_operand.hbm [shape: f32[96,512], index: 5, kind: input, shape index: {}]
  %s6 = inlined_call_operand.vmem [shape: f32[1,512], index: 6, kind: input, shape index: {}]
  %s7 = inlined_call_operand.vmem [shape: f32[1,96], index: 7, kind: input, shape index: {}]
  %s8 = inlined_call_operand.<no memory space> [shape: f32[1,1], index: 8, kind: input, shape index: {}]
  %s9 = inlined_call_operand.vmem [shape: f32[8,1], index: 9, kind: output, shape index: {}]
  %s10 = sld [smem:[#allocation0]]
  $region62: #{lstm_model_with_bn.1} parent=0
    _
  %s12 = ssub.s32 1, %s10
  %s13 = scalar_select 0, %s12, %s10
  %v14 = vstv %s8
  %15 = vst [vmem:[#allocation4] sm:$0x1] %v14
  $region1: #{lstm_model_with_bn.1} parent=0
    #allocation5 [shape = 'u8[65536]{0}', space=vmem, size = 0x10000, scoped, tag = 'input window, operand 1, single buffered']
    #allocation6 [shape = 's32[1]{0}', space=sflag, size = 0x4, scoped, tag = 'scoped memory for lstm_model_with_bn.1']
    #allocation7 [shape = 'u8[589824]{0}', space=vmem, size = 0x90000, scoped, tag = 'input window, operand 2, single buffered']
    #allocation8 [shape = 's32[1]{0}', space=sflag, size = 0x4, scoped, tag = 'scoped memory for lstm_model_with_bn.1']
    #allocation9 [shape = 'u8[294912]{0}', space=vmem, size = 0x48000, scoped, tag = 'input window, operand 4, single buffered']
    #allocation10 [shape = 'u8[196608]{0}', space=vmem, size = 0x30000, scoped, tag = 'input window, operand 5, single buffered']
    #allocation11 [shape = 's32[1]{0}', space=sflag, size = 0x4, scoped, tag = 'scoped memory for lstm_model_with_bn.1']
    %16 = vsyncpa [#allocation6], 0
    %17 = vsyncpa [#allocation8], 0
    %18 = vsyncpa [#allocation11], 0
    // Predicated region
    $region2: #{lstm_model_with_bn.1} parent=1 // pred_check
      _
    $region3: #{lstm_model_with_bn.1} parent=1 // pred_check_branch
      %20 = sbr.rel (0) target = $region5
    $region4: #{lstm_model_with_bn.1} parent=1 // pred_region
      _
    $region5: #{lstm_model_with_bn.1} parent=1 // pred_fallthru
      _
    // Predicated region
    $region6: #{lstm_model_with_bn.1} parent=1 // pred_check
      _
    $region7: #{lstm_model_with_bn.1} parent=1 // pred_check_branch
      %22 = sbr.rel (0) target = $region9
    $region8: #{lstm_model_with_bn.1} parent=1 // pred_region
      %s24 = ssub.s32 2048, 2048
      %25 = vsyncadd [#allocation6], %s24
      %s26 = sshll.u32 [#allocation5], 4
      %s27 = int_to_ptr.vmem [resolvable:$true] %s26
      %32 = dma.hbm_to_vmem [thread:$0]  %s1, 2048, %s27, [#allocation6], 1024, 1024, 64
    $region9: #{lstm_model_with_bn.1} parent=1 // pred_fallthru
      _
    // Predicated region
    $region10: #{lstm_model_with_bn.1} parent=1 // pred_check
      _
    $region11: #{lstm_model_with_bn.1} parent=1 // pred_check_branch
      %34 = sbr.rel (0) target = $region13
    $region12: #{lstm_model_with_bn.1} parent=1 // pred_region
      %s36 = ssub.s32 18432, 18432
      %37 = vsyncadd [#allocation8], %s36
      %s38 = sshll.u32 [#allocation7], 4
      %s39 = int_to_ptr.vmem [resolvable:$true] %s38
      %44 = dma.hbm_to_vmem [thread:$0]  %s2, 18432, %s39, [#allocation8], 1024, 1024, 64
    $region13: #{lstm_model_with_bn.1} parent=1 // pred_fallthru
      _
    // Predicated region
    $region14: #{lstm_model_with_bn.1} parent=1 // pred_check
      _
    $region15: #{lstm_model_with_bn.1} parent=1 // pred_check_branch
      %46 = sbr.rel (0) target = $region17
    $region16: #{lstm_model_with_bn.1} parent=1 // pred_region
      _
    $region17: #{lstm_model_with_bn.1} parent=1 // pred_fallthru
      _
    // Predicated region
    $region18: #{lstm_model_with_bn.1} parent=1 // pred_check
      _
    $region19: #{lstm_model_with_bn.1} parent=1 // pred_check_branch
      %48 = sbr.rel (0) target = $region21
    $region20: #{lstm_model_with_bn.1} parent=1 // pred_region
      %s50 = ssub.s32 9216, 9216
      %51 = vsyncadd [#allocation8], %s50
      %s52 = sshll.u32 [#allocation9], 4
      %s53 = int_to_ptr.vmem [resolvable:$true] %s52
      %58 = dma.hbm_to_vmem [thread:$0]  %s4, 9216, %s53, [#allocation8], 512, 512, 32
    $region21: #{lstm_model_with_bn.1} parent=1 // pred_fallthru
      _
    // Predicated region
    $region22: #{lstm_model_with_bn.1} parent=1 // pred_check
      _
    $region23: #{lstm_model_with_bn.1} parent=1 // pred_check_branch
      %60 = sbr.rel (0) target = $region25
    $region24: #{lstm_model_with_bn.1} parent=1 // pred_region
      %s62 = ssub.s32 6144, 6144
      %63 = vsyncadd [#allocation11], %s62
      %s64 = sshll.u32 [#allocation10], 4
      %s65 = int_to_ptr.vmem [resolvable:$true] %s64
      %70 = dma.hbm_to_vmem [thread:$0]  %s5, 6144, %s65, [#allocation11], 512, 512, 32
    $region25: #{lstm_model_with_bn.1} parent=1 // pred_fallthru
      _
    // Predicated region
    $region26: #{lstm_model_with_bn.1} parent=1 // pred_check
      _
    $region27: #{lstm_model_with_bn.1} parent=1 // pred_check_branch
      %72 = sbr.rel (0) target = $region29
    $region28: #{lstm_model_with_bn.1} parent=1 // pred_region
      _
    $region29: #{lstm_model_with_bn.1} parent=1 // pred_fallthru
      _
    // Predicated region
    $region30: #{lstm_model_with_bn.1} parent=1 // pred_check
      _
    $region31: #{lstm_model_with_bn.1} parent=1 // pred_check_branch
      %74 = sbr.rel (0) target = $region33
    $region32: #{lstm_model_with_bn.1} parent=1 // pred_region
      _
    $region33: #{lstm_model_with_bn.1} parent=1 // pred_fallthru
      _
    // Predicated region
    $region34: #{lstm_model_with_bn.1} parent=1 // pred_check
      _
    $region35: #{lstm_model_with_bn.1} parent=1 // pred_check_branch
      %76 = sbr.rel (0) target = $region37
    $region36: #{lstm_model_with_bn.1} parent=1 // pred_region
      _
    $region37: #{lstm_model_with_bn.1} parent=1 // pred_fallthru
      _
    // Predicated region
    $region38: #{lstm_model_with_bn.1} parent=1 // pred_check
      _
    $region39: #{lstm_model_with_bn.1} parent=1 // pred_check_branch
      %78 = sbr.rel (0) target = $region41
    $region40: #{lstm_model_with_bn.1} parent=1 // pred_region
      %79 = dma.done [#allocation6], 2048
    $region41: #{lstm_model_with_bn.1} parent=1 // pred_fallthru
      _
    // Predicated region
    $region42: #{lstm_model_with_bn.1} parent=1 // pred_check
      _
    $region43: #{lstm_model_with_bn.1} parent=1 // pred_check_branch
      %81 = sbr.rel (0) target = $region45
    $region44: #{lstm_model_with_bn.1} parent=1 // pred_region
      %82 = dma.done [#allocation8], 18432
    $region45: #{lstm_model_with_bn.1} parent=1 // pred_fallthru
      _
    // Predicated region
    $region46: #{lstm_model_with_bn.1} parent=1 // pred_check
      _
    $region47: #{lstm_model_with_bn.1} parent=1 // pred_check_branch
      %84 = sbr.rel (0) target = $region49
    $region48: #{lstm_model_with_bn.1} parent=1 // pred_region
      %85 = dma.done [#allocation8], 9216
    $region49: #{lstm_model_with_bn.1} parent=1 // pred_fallthru
      _
    // Predicated region
    $region50: #{lstm_model_with_bn.1} parent=1 // pred_check
      _
    $region51: #{lstm_model_with_bn.1} parent=1 // pred_check_branch
      %87 = sbr.rel (0) target = $region53
    $region52: #{lstm_model_with_bn.1} parent=1 // pred_region
      %88 = dma.done [#allocation11], 6144
    $region53: #{lstm_model_with_bn.1} parent=1 // pred_fallthru
      _
    %v89 = vld [vmem:[%s0] sm:$0xff]
    %v90 = vld [vmem:[%s0 + $0x8] sm:$0xff]
    %v91 = vld [vmem:[%s0 + $0x10] sm:$0xff]
    %v92 = vld [vmem:[%s0 + $0x18] sm:$0xff]
    %v93 = vld [vmem:[%s0 + $0x20] sm:$0xff]
    %v94 = vld [vmem:[%s0 + $0x28] sm:$0xff]
    %v95 = vld [vmem:[%s0 + $0x30] sm:$0xff]
    %v96 = vld [vmem:[%s0 + $0x38] sm:$0xff]
    %v97 = vld [vmem:[#allocation5] sm:$0xff]
    %v98 = vld [vmem:[#allocation5 + $0x8] sm:$0xff]
    %v99 = vld [vmem:[#allocation5 + $0x10] sm:$0xff]
    %v100 = vld [vmem:[#allocation5 + $0x18] sm:$0xff]
    %v101 = vld [vmem:[#allocation5 + $0x20] sm:$0xff]
    %v102 = vld [vmem:[#allocation5 + $0x28] sm:$0xff]
    %v103 = vld [vmem:[#allocation5 + $0x30] sm:$0xff]
    %v104 = vld [vmem:[#allocation5 + $0x38] sm:$0xff]
    %v105 = vld [vmem:[#allocation5 + $0x40] sm:$0x3f]
    %v106 = vld [vmem:[#allocation5 + $0x48] sm:$0x3f]
    %v107 = vld [vmem:[#allocation5 + $0x50] sm:$0x3f]
    %v108 = vld [vmem:[#allocation5 + $0x58] sm:$0x3f]
    %v109 = vld [vmem:[#allocation5 + $0x60] sm:$0x3f]
    %v110 = vld [vmem:[#allocation5 + $0x68] sm:$0x3f]
    %v111 = vld [vmem:[#allocation5 + $0x70] sm:$0x3f]
    %v112 = vld [vmem:[#allocation5 + $0x78] sm:$0x3f]
    %v113 = vld [vmem:[%s3] sm:$0xff]
    %v115 = vlaneseq
    %v116 = vshrl.u32 %v115, 7
    %v117 = vsub.s32 0, %v116
    %v118 = vrot.slane %v113, %v117
    %v119 = vlaneseq
    %v120 = vshrl.u32 %v119, 7
    %v121 = vsub.s32 1, %v120
    %v122 = vrot.slane %v113, %v121
    %v123 = vlaneseq
    %v124 = vshrl.u32 %v123, 7
    %v125 = vsub.s32 2, %v124
    %v126 = vrot.slane %v113, %v125
    %v127 = vlaneseq
    %v128 = vshrl.u32 %v127, 7
    %v129 = vsub.s32 3, %v128
    %v130 = vrot.slane %v113, %v129
    %v131 = vlaneseq
    %v132 = vshrl.u32 %v131, 7
    %v133 = vsub.s32 4, %v132
    %v134 = vrot.slane %v113, %v133
    %v135 = vlaneseq
    %v136 = vshrl.u32 %v135, 7
    %v137 = vsub.s32 5, %v136
    %v138 = vrot.slane %v113, %v137
    %v139 = vlaneseq
    %v140 = vshrl.u32 %v139, 7
    %v141 = vsub.s32 6, %v140
    %v142 = vrot.slane %v113, %v141
    %v143 = vlaneseq
    %v144 = vshrl.u32 %v143, 7
    %v145 = vsub.s32 7, %v144
    %v146 = vrot.slane %v113, %v145
    %vm155 = vcmask 113664
    %v157 = vsel %vm155, %v89, 0
    %v160 = vsel %vm155, %v90, 0
    %v163 = vsel %vm155, %v91, 0
    %v166 = vsel %vm155, %v92, 0
    %v169 = vsel %vm155, %v93, 0
    %v172 = vsel %vm155, %v94, 0
    %v175 = vsel %vm155, %v95, 0
    %v178 = vsel %vm155, %v96, 0
    %vm180 = vcmask 1045504
    %v182 = vsel %vm180, %v105, 0
    %v185 = vsel %vm180, %v106, 0
    %v188 = vsel %vm180, %v107, 0
    %v191 = vsel %vm180, %v108, 0
    %v194 = vsel %vm180, %v109, 0
    %v197 = vsel %vm180, %v110, 0
    %v200 = vsel %vm180, %v111, 0
    %v203 = vsel %vm180, %v112, 0
    %205 = vmatprep.subr.mxu0 0.0
    %206 = vmatpush1.msra.mxu0 0.0
    %207 = vmatprep.subr.mxu0 0.0
    %208 = vmatpush1.msra.mxu0 0.0
    %209 = vmatprep.subr.mxu0 0.0
    %210 = vmatpush1.msra.mxu0 0.0
    %211 = vmatprep.subr.mxu0 0.0
    %212 = vmatpush1.msra.mxu0 0.0
    %213 = vmatprep.subr.mxu0 0.0
    %214 = vmatpush1.msra.mxu0 0.0
    %215 = vmatprep.subr.mxu0 0.0
    %216 = vmatpush1.msra.mxu0 0.0
    %217 = vmatprep.subr.mxu0 0.0
    %218 = vmatpush1.msra.mxu0 0.0
    %219 = vmatprep.subr.mxu0 0.0
    %220 = vmatpush1.msra.mxu0 0.0
    %221 = vmatprep.subr.mxu0 0.0
    %222 = vmatpush1.msra.mxu0 0.0
    %223 = vmatprep.subr.mxu0 0.0
    %224 = vmatpush1.msra.mxu0 0.0
    %225 = vmatprep.subr.mxu0 0.0
    %226 = vmatpush1.msra.mxu0 0.0
    %227 = vmatprep.subr.mxu0 0.0
    %228 = vmatpush1.msra.mxu0 0.0
    %229 = vmatprep.subr.mxu0 0.0
    %230 = vmatpush1.msra.mxu0 0.0
    %231 = vmatprep.subr.mxu0 0.0
    %232 = vmatpush1.msra.mxu0 0.0
    %233 = vmatprep.subr.mxu0 %v185
    %234 = vmatpush1.msra.mxu0 %v182
    %235 = vmatprep.subr.mxu0 %v98
    %236 = vmatpush1.msra.mxu0 %v97
    %237 = vmatprep.subr.mxu0 0.0
    %238 = vmatpush2.msra.mxu0 0.0
    %239 = vmatprep.subr.mxu0 0.0
    %240 = vmatpush2.msra.mxu0 0.0
    %241 = vmatprep.subr.mxu0 0.0
    %242 = vmatpush2.msra.mxu0 0.0
    %243 = vmatprep.subr.mxu0 0.0
    %244 = vmatpush2.msra.mxu0 0.0
    %245 = vmatprep.subr.mxu0 0.0
    %246 = vmatpush2.msra.mxu0 0.0
    %247 = vmatprep.subr.mxu0 0.0
    %248 = vmatpush2.msra.mxu0 0.0
    %249 = vmatprep.subr.mxu0 0.0
    %250 = vmatpush2.msra.mxu0 0.0
    %251 = vmatprep.subr.mxu0 0.0
    %252 = vmatpush2.msra.mxu0 0.0
    %253 = vmatprep.subr.mxu0 0.0
    %254 = vmatpush2.msra.mxu0 0.0
    %255 = vmatprep.subr.mxu0 0.0
    %256 = vmatpush2.msra.mxu0 0.0
    %257 = vmatprep.subr.mxu0 0.0
    %258 = vmatpush2.msra.mxu0 0.0
    %259 = vmatprep.subr.mxu0 0.0
    %260 = vmatpush2.msra.mxu0 0.0
    %261 = vmatprep.subr.mxu0 0.0
    %262 = vmatpush2.msra.mxu0 0.0
    %263 = vmatprep.subr.mxu0 0.0
    %264 = vmatpush2.msra.mxu0 0.0
    %265 = vmatprep.subr.mxu0 0.0
    %266 = vmatpush2.msra.mxu0 0.0
    %267 = vmatprep.subr.mxu0 0.0
    %268 = vmatpush2.msra.mxu0 0.0
    %269 = vmatprep.mubr.f32.mxu0 0.0
    %270 = vmatmul.mubr.f32.gmra.mxu0 %v157
    %v271 = vpop.f32.mrf.mxu0
    %v272 = vadd.f32 %v118, %v271
    %v273 = vpop.f32.mrf.mxu0
    %v274 = vadd.f32 %v122, %v273
    %275 = vmatprep.mubr.f32.mxu0 0.0
    %276 = vmatmul.mubr.f32.gmra.mxu0 %v160
    %v277 = vpop.f32.mrf.mxu0
    %v278 = vadd.f32 %v118, %v277
    %v279 = vpop.f32.mrf.mxu0
    %v280 = vadd.f32 %v122, %v279
    %281 = vmatprep.mubr.f32.mxu0 0.0
    %282 = vmatmul.mubr.f32.gmra.mxu0 %v163
    %v283 = vpop.f32.mrf.mxu0
    %v284 = vadd.f32 %v118, %v283
    %v285 = vpop.f32.mrf.mxu0
    %v286 = vadd.f32 %v122, %v285
    %287 = vmatprep.mubr.f32.mxu0 0.0
    %288 = vmatmul.mubr.f32.gmra.mxu0 %v166
    %v289 = vpop.f32.mrf.mxu0
    %v290 = vadd.f32 %v118, %v289
    %v291 = vpop.f32.mrf.mxu0
    %v292 = vadd.f32 %v122, %v291
    %293 = vmatprep.mubr.f32.mxu0 0.0
    %294 = vmatmul.mubr.f32.gmra.mxu0 %v169
    %v295 = vpop.f32.mrf.mxu0
    %v296 = vadd.f32 %v118, %v295
    %v297 = vpop.f32.mrf.mxu0
    %v298 = vadd.f32 %v122, %v297
    %299 = vmatprep.mubr.f32.mxu0 0.0
    %300 = vmatmul.mubr.f32.gmra.mxu0 %v172
    %v301 = vpop.f32.mrf.mxu0
    %v302 = vadd.f32 %v118, %v301
    %v303 = vpop.f32.mrf.mxu0
    %v304 = vadd.f32 %v122, %v303
    %305 = vmatprep.mubr.f32.mxu0 0.0
    %306 = vmatmul.mubr.f32.gmra.mxu0 %v175
    %v307 = vpop.f32.mrf.mxu0
    %v308 = vadd.f32 %v118, %v307
    %v309 = vpop.f32.mrf.mxu0
    %v310 = vadd.f32 %v122, %v309
    %311 = vmatprep.mubr.f32.mxu0 0.0
    %312 = vmatmul.mubr.f32.gmra.mxu0 %v178
    %v313 = vpop.f32.mrf.mxu0
    %v314 = vadd.f32 %v118, %v313
    %v315 = vpop.f32.mrf.mxu0
    %v316 = vadd.f32 %v122, %v315
    %317 = vdwg.mxu0
    %318 = vmatprep.subr.mxu0 0.0
    %319 = vmatpush1.msra.mxu0 0.0
    %320 = vmatprep.subr.mxu0 0.0
    %321 = vmatpush1.msra.mxu0 0.0
    %322 = vmatprep.subr.mxu0 0.0
    %323 = vmatpush1.msra.mxu0 0.0
    %324 = vmatprep.subr.mxu0 0.0
    %325 = vmatpush1.msra.mxu0 0.0
    %326 = vmatprep.subr.mxu0 0.0
    %327 = vmatpush1.msra.mxu0 0.0
    %328 = vmatprep.subr.mxu0 0.0
    %329 = vmatpush1.msra.mxu0 0.0
    %330 = vmatprep.subr.mxu0 0.0
    %331 = vmatpush1.msra.mxu0 0.0
    %332 = vmatprep.subr.mxu0 0.0
    %333 = vmatpush1.msra.mxu0 0.0
    %334 = vmatprep.subr.mxu0 0.0
    %335 = vmatpush1.msra.mxu0 0.0
    %336 = vmatprep.subr.mxu0 0.0
    %337 = vmatpush1.msra.mxu0 0.0
    %338 = vmatprep.subr.mxu0 0.0
    %339 = vmatpush1.msra.mxu0 0.0
    %340 = vmatprep.subr.mxu0 0.0
    %341 = vmatpush1.msra.mxu0 0.0
    %342 = vmatprep.subr.mxu0 0.0
    %343 = vmatpush1.msra.mxu0 0.0
    %344 = vmatprep.subr.mxu0 0.0
    %345 = vmatpush1.msra.mxu0 0.0
    %346 = vmatprep.subr.mxu0 %v191
    %347 = vmatpush1.msra.mxu0 %v188
    %348 = vmatprep.subr.mxu0 %v100
    %349 = vmatpush1.msra.mxu0 %v99
    %350 = vmatprep.subr.mxu0 0.0
    %351 = vmatpush2.msra.mxu0 0.0
    %352 = vmatprep.subr.mxu0 0.0
    %353 = vmatpush2.msra.mxu0 0.0
    %354 = vmatprep.subr.mxu0 0.0
    %355 = vmatpush2.msra.mxu0 0.0
    %356 = vmatprep.subr.mxu0 0.0
    %357 = vmatpush2.msra.mxu0 0.0
    %358 = vmatprep.subr.mxu0 0.0
    %359 = vmatpush2.msra.mxu0 0.0
    %360 = vmatprep.subr.mxu0 0.0
    %361 = vmatpush2.msra.mxu0 0.0
    %362 = vmatprep.subr.mxu0 0.0
    %363 = vmatpush2.msra.mxu0 0.0
    %364 = vmatprep.subr.mxu0 0.0
    %365 = vmatpush2.msra.mxu0 0.0
    %366 = vmatprep.subr.mxu0 0.0
    %367 = vmatpush2.msra.mxu0 0.0
    %368 = vmatprep.subr.mxu0 0.0
    %369 = vmatpush2.msra.mxu0 0.0
    %370 = vmatprep.subr.mxu0 0.0
    %371 = vmatpush2.msra.mxu0 0.0
    %372 = vmatprep.subr.mxu0 0.0
    %373 = vmatpush2.msra.mxu0 0.0
    %374 = vmatprep.subr.mxu0 0.0
    %375 = vmatpush2.msra.mxu0 0.0
    %376 = vmatprep.subr.mxu0 0.0
    %377 = vmatpush2.msra.mxu0 0.0
    %378 = vmatprep.subr.mxu0 0.0
    %379 = vmatpush2.msra.mxu0 0.0
    %380 = vmatprep.subr.mxu0 0.0
    %381 = vmatpush2.msra.mxu0 0.0
    %382 = vmatprep.mubr.f32.mxu0 0.0
    %383 = vmatmul.mubr.f32.gmra.mxu0 %v157
    %v384 = vpop.f32.mrf.mxu0
    %v385 = vadd.f32 %v126, %v384
    %v386 = vpop.f32.mrf.mxu0
    %v387 = vadd.f32 %v130, %v386
    %388 = vmatprep.mubr.f32.mxu0 0.0
    %389 = vmatmul.mubr.f32.gmra.mxu0 %v160
    %v390 = vpop.f32.mrf.mxu0
    %v391 = vadd.f32 %v126, %v390
    %v392 = vpop.f32.mrf.mxu0
    %v393 = vadd.f32 %v130, %v392
    %394 = vmatprep.mubr.f32.mxu0 0.0
    %395 = vmatmul.mubr.f32.gmra.mxu0 %v163
    %v396 = vpop.f32.mrf.mxu0
    %v397 = vadd.f32 %v126, %v396
    %v398 = vpop.f32.mrf.mxu0
    %v399 = vadd.f32 %v130, %v398
    %400 = vmatprep.mubr.f32.mxu0 0.0
    %401 = vmatmul.mubr.f32.gmra.mxu0 %v166
    %v402 = vpop.f32.mrf.mxu0
    %v403 = vadd.f32 %v126, %v402
    %v404 = vpop.f32.mrf.mxu0
    %v405 = vadd.f32 %v130, %v404
    %406 = vmatprep.mubr.f32.mxu0 0.0
    %407 = vmatmul.mubr.f32.gmra.mxu0 %v169
    %v408 = vpop.f32.mrf.mxu0
    %v409 = vadd.f32 %v126, %v408
    %v410 = vpop.f32.mrf.mxu0
    %v411 = vadd.f32 %v130, %v410
    %412 = vmatprep.mubr.f32.mxu0 0.0
    %413 = vmatmul.mubr.f32.gmra.mxu0 %v172
    %v414 = vpop.f32.mrf.mxu0
    %v415 = vadd.f32 %v126, %v414
    %v416 = vpop.f32.mrf.mxu0
    %v417 = vadd.f32 %v130, %v416
    %418 = vmatprep.mubr.f32.mxu0 0.0
    %419 = vmatmul.mubr.f32.gmra.mxu0 %v175
    %v420 = vpop.f32.mrf.mxu0
    %v421 = vadd.f32 %v126, %v420
    %v422 = vpop.f32.mrf.mxu0
    %v423 = vadd.f32 %v130, %v422
    %424 = vmatprep.mubr.f32.mxu0 0.0
    %425 = vmatmul.mubr.f32.gmra.mxu0 %v178
    %v426 = vpop.f32.mrf.mxu0
    %v427 = vadd.f32 %v126, %v426
    %v428 = vpop.f32.mrf.mxu0
    %v429 = vadd.f32 %v130, %v428
    %430 = vdwg.mxu0
    %431 = vmatprep.subr.mxu0 0.0
    %432 = vmatpush1.msra.mxu0 0.0
    %433 = vmatprep.subr.mxu0 0.0
    %434 = vmatpush1.msra.mxu0 0.0
    %435 = vmatprep.subr.mxu0 0.0
    %436 = vmatpush1.msra.mxu0 0.0
    %437 = vmatprep.subr.mxu0 0.0
    %438 = vmatpush1.msra.mxu0 0.0
    %439 = vmatprep.subr.mxu0 0.0
    %440 = vmatpush1.msra.mxu0 0.0
    %441 = vmatprep.subr.mxu0 0.0
    %442 = vmatpush1.msra.mxu0 0.0
    %443 = vmatprep.subr.mxu0 0.0
    %444 = vmatpush1.msra.mxu0 0.0
    %445 = vmatprep.subr.mxu0 0.0
    %446 = vmatpush1.msra.mxu0 0.0
    %447 = vmatprep.subr.mxu0 0.0
    %448 = vmatpush1.msra.mxu0 0.0
    %449 = vmatprep.subr.mxu0 0.0
    %450 = vmatpush1.msra.mxu0 0.0
    %451 = vmatprep.subr.mxu0 0.0
    %452 = vmatpush1.msra.mxu0 0.0
    %453 = vmatprep.subr.mxu0 0.0
    %454 = vmatpush1.msra.mxu0 0.0
    %455 = vmatprep.subr.mxu0 0.0
    %456 = vmatpush1.msra.mxu0 0.0
    %457 = vmatprep.subr.mxu0 0.0
    %458 = vmatpush1.msra.mxu0 0.0
    %459 = vmatprep.subr.mxu0 %v197
    %460 = vmatpush1.msra.mxu0 %v194
    %461 = vmatprep.subr.mxu0 %v102
    %462 = vmatpush1.msra.mxu0 %v101
    %463 = vmatprep.subr.mxu0 0.0
    %464 = vmatpush2.msra.mxu0 0.0
    %465 = vmatprep.subr.mxu0 0.0
    %466 = vmatpush2.msra.mxu0 0.0
    %467 = vmatprep.subr.mxu0 0.0
    %468 = vmatpush2.msra.mxu0 0.0
    %469 = vmatprep.subr.mxu0 0.0
    %470 = vmatpush2.msra.mxu0 0.0
    %471 = vmatprep.subr.mxu0 0.0
    %472 = vmatpush2.msra.mxu0 0.0
    %473 = vmatprep.subr.mxu0 0.0
    %474 = vmatpush2.msra.mxu0 0.0
    %475 = vmatprep.subr.mxu0 0.0
    %476 = vmatpush2.msra.mxu0 0.0
    %477 = vmatprep.subr.mxu0 0.0
    %478 = vmatpush2.msra.mxu0 0.0
    %479 = vmatprep.subr.mxu0 0.0
    %480 = vmatpush2.msra.mxu0 0.0
    %481 = vmatprep.subr.mxu0 0.0
    %482 = vmatpush2.msra.mxu0 0.0
    %483 = vmatprep.subr.mxu0 0.0
    %484 = vmatpush2.msra.mxu0 0.0
    %485 = vmatprep.subr.mxu0 0.0
    %486 = vmatpush2.msra.mxu0 0.0
    %487 = vmatprep.subr.mxu0 0.0
    %488 = vmatpush2.msra.mxu0 0.0
    %489 = vmatprep.subr.mxu0 0.0
    %490 = vmatpush2.msra.mxu0 0.0
    %491 = vmatprep.subr.mxu0 0.0
    %492 = vmatpush2.msra.mxu0 0.0
    %493 = vmatprep.subr.mxu0 0.0
    %494 = vmatpush2.msra.mxu0 0.0
    %495 = vmatprep.mubr.f32.mxu0 0.0
    %496 = vmatmul.mubr.f32.gmra.mxu0 %v157
    %v497 = vpop.f32.mrf.mxu0
    %v498 = vadd.f32 %v134, %v497
    %v499 = vpop.f32.mrf.mxu0
    %v500 = vadd.f32 %v138, %v499
    %501 = vmatprep.mubr.f32.mxu0 0.0
    %502 = vmatmul.mubr.f32.gmra.mxu0 %v160
    %v503 = vpop.f32.mrf.mxu0
    %v504 = vadd.f32 %v134, %v503
    %v505 = vpop.f32.mrf.mxu0
    %v506 = vadd.f32 %v138, %v505
    %507 = vmatprep.mubr.f32.mxu0 0.0
    %508 = vmatmul.mubr.f32.gmra.mxu0 %v163
    %v509 = vpop.f32.mrf.mxu0
    %v510 = vadd.f32 %v134, %v509
    %v511 = vpop.f32.mrf.mxu0
    %v512 = vadd.f32 %v138, %v511
    %513 = vmatprep.mubr.f32.mxu0 0.0
    %514 = vmatmul.mubr.f32.gmra.mxu0 %v166
    %v515 = vpop.f32.mrf.mxu0
    %v516 = vadd.f32 %v134, %v515
    %v517 = vpop.f32.mrf.mxu0
    %v518 = vadd.f32 %v138, %v517
    %519 = vmatprep.mubr.f32.mxu0 0.0
    %520 = vmatmul.mubr.f32.gmra.mxu0 %v169
    %v521 = vpop.f32.mrf.mxu0
    %v522 = vadd.f32 %v134, %v521
    %v523 = vpop.f32.mrf.mxu0
    %v524 = vadd.f32 %v138, %v523
    %525 = vmatprep.mubr.f32.mxu0 0.0
    %526 = vmatmul.mubr.f32.gmra.mxu0 %v172
    %v527 = vpop.f32.mrf.mxu0
    %v528 = vadd.f32 %v134, %v527
    %v529 = vpop.f32.mrf.mxu0
    %v530 = vadd.f32 %v138, %v529
    %531 = vmatprep.mubr.f32.mxu0 0.0
    %532 = vmatmul.mubr.f32.gmra.mxu0 %v175
    %v533 = vpop.f32.mrf.mxu0
    %v534 = vadd.f32 %v134, %v533
    %v535 = vpop.f32.mrf.mxu0
    %v536 = vadd.f32 %v138, %v535
    %537 = vmatprep.mubr.f32.mxu0 0.0
    %538 = vmatmul.mubr.f32.gmra.mxu0 %v178
    %v539 = vpop.f32.mrf.mxu0
    %v540 = vadd.f32 %v134, %v539
    %v541 = vpop.f32.mrf.mxu0
    %v542 = vadd.f32 %v138, %v541
    %543 = vdwg.mxu0
    %544 = vmatprep.subr.mxu0 0.0
    %545 = vmatpush1.msra.mxu0 0.0
    %546 = vmatprep.subr.mxu0 0.0
    %547 = vmatpush1.msra.mxu0 0.0
    %548 = vmatprep.subr.mxu0 0.0
    %549 = vmatpush1.msra.mxu0 0.0
    %550 = vmatprep.subr.mxu0 0.0
    %551 = vmatpush1.msra.mxu0 0.0
    %552 = vmatprep.subr.mxu0 0.0
    %553 = vmatpush1.msra.mxu0 0.0
    %554 = vmatprep.subr.mxu0 0.0
    %555 = vmatpush1.msra.mxu0 0.0
    %556 = vmatprep.subr.mxu0 0.0
    %557 = vmatpush1.msra.mxu0 0.0
    %558 = vmatprep.subr.mxu0 0.0
    %559 = vmatpush1.msra.mxu0 0.0
    %560 = vmatprep.subr.mxu0 0.0
    %561 = vmatpush1.msra.mxu0 0.0
    %562 = vmatprep.subr.mxu0 0.0
    %563 = vmatpush1.msra.mxu0 0.0
    %564 = vmatprep.subr.mxu0 0.0
    %565 = vmatpush1.msra.mxu0 0.0
    %566 = vmatprep.subr.mxu0 0.0
    %567 = vmatpush1.msra.mxu0 0.0
    %568 = vmatprep.subr.mxu0 0.0
    %569 = vmatpush1.msra.mxu0 0.0
    %570 = vmatprep.subr.mxu0 0.0
    %571 = vmatpush1.msra.mxu0 0.0
    %572 = vmatprep.subr.mxu0 %v203
    %573 = vmatpush1.msra.mxu0 %v200
    %574 = vmatprep.subr.mxu0 %v104
    %575 = vmatpush1.msra.mxu0 %v103
    %576 = vmatprep.subr.mxu0 0.0
    %577 = vmatpush2.msra.mxu0 0.0
    %578 = vmatprep.subr.mxu0 0.0
    %579 = vmatpush2.msra.mxu0 0.0
    %580 = vmatprep.subr.mxu0 0.0
    %581 = vmatpush2.msra.mxu0 0.0
    %582 = vmatprep.subr.mxu0 0.0
    %583 = vmatpush2.msra.mxu0 0.0
    %584 = vmatprep.subr.mxu0 0.0
    %585 = vmatpush2.msra.mxu0 0.0
    %586 = vmatprep.subr.mxu0 0.0
    %587 = vmatpush2.msra.mxu0 0.0
    %588 = vmatprep.subr.mxu0 0.0
    %589 = vmatpush2.msra.mxu0 0.0
    %590 = vmatprep.subr.mxu0 0.0
    %591 = vmatpush2.msra.mxu0 0.0
    %592 = vmatprep.subr.mxu0 0.0
    %593 = vmatpush2.msra.mxu0 0.0
    %594 = vmatprep.subr.mxu0 0.0
    %595 = vmatpush2.msra.mxu0 0.0
    %596 = vmatprep.subr.mxu0 0.0
    %597 = vmatpush2.msra.mxu0 0.0
    %598 = vmatprep.subr.mxu0 0.0
    %599 = vmatpush2.msra.mxu0 0.0
    %600 = vmatprep.subr.mxu0 0.0
    %601 = vmatpush2.msra.mxu0 0.0
    %602 = vmatprep.subr.mxu0 0.0
    %603 = vmatpush2.msra.mxu0 0.0
    %604 = vmatprep.subr.mxu0 0.0
    %605 = vmatpush2.msra.mxu0 0.0
    %606 = vmatprep.subr.mxu0 0.0
    %607 = vmatpush2.msra.mxu0 0.0
    %608 = vmatprep.mubr.f32.mxu0 0.0
    %609 = vmatmul.mubr.f32.gmra.mxu0 %v157
    %v610 = vpop.f32.mrf.mxu0
    %v611 = vadd.f32 %v142, %v610
    %v612 = vpop.f32.mrf.mxu0
    %v613 = vadd.f32 %v146, %v612
    %614 = vmatprep.mubr.f32.mxu0 0.0
    %615 = vmatmul.mubr.f32.gmra.mxu0 %v160
    %v616 = vpop.f32.mrf.mxu0
    %v617 = vadd.f32 %v142, %v616
    %v618 = vpop.f32.mrf.mxu0
    %v619 = vadd.f32 %v146, %v618
    %620 = vmatprep.mubr.f32.mxu0 0.0
    %621 = vmatmul.mubr.f32.gmra.mxu0 %v163
    %v622 = vpop.f32.mrf.mxu0
    %v623 = vadd.f32 %v142, %v622
    %v624 = vpop.f32.mrf.mxu0
    %v625 = vadd.f32 %v146, %v624
    %626 = vmatprep.mubr.f32.mxu0 0.0
    %627 = vmatmul.mubr.f32.gmra.mxu0 %v166
    %v628 = vpop.f32.mrf.mxu0
    %v629 = vadd.f32 %v142, %v628
    %v630 = vpop.f32.mrf.mxu0
    %v631 = vadd.f32 %v146, %v630
    %632 = vmatprep.mubr.f32.mxu0 0.0
    %633 = vmatmul.mubr.f32.gmra.mxu0 %v169
    %v634 = vpop.f32.mrf.mxu0
    %v635 = vadd.f32 %v142, %v634
    %v636 = vpop.f32.mrf.mxu0
    %v637 = vadd.f32 %v146, %v636
    %638 = vmatprep.mubr.f32.mxu0 0.0
    %639 = vmatmul.mubr.f32.gmra.mxu0 %v172
    %v640 = vpop.f32.mrf.mxu0
    %v641 = vadd.f32 %v142, %v640
    %v642 = vpop.f32.mrf.mxu0
    %v643 = vadd.f32 %v146, %v642
    %644 = vmatprep.mubr.f32.mxu0 0.0
    %645 = vmatmul.mubr.f32.gmra.mxu0 %v175
    %v646 = vpop.f32.mrf.mxu0
    %v647 = vadd.f32 %v142, %v646
    %v648 = vpop.f32.mrf.mxu0
    %v649 = vadd.f32 %v146, %v648
    %650 = vmatprep.mubr.f32.mxu0 0.0
    %651 = vmatmul.mubr.f32.gmra.mxu0 %v178
    %v652 = vpop.f32.mrf.mxu0
    %v653 = vadd.f32 %v142, %v652
    %v654 = vpop.f32.mrf.mxu0
    %v655 = vadd.f32 %v146, %v654
    %656 = vdwg.mxu0
    %657 = vst [vmem:[#allocation2] sm:$0xff] %v272
    %658 = vst [vmem:[#allocation2 + $0x8] sm:$0xff] %v274
    %659 = vst [vmem:[#allocation2 + $0x10] sm:$0xff] %v385
    %660 = vst [vmem:[#allocation2 + $0x18] sm:$0xff] %v387
    %661 = vst [vmem:[#allocation2 + $0x20] sm:$0xff] %v498
    %662 = vst [vmem:[#allocation2 + $0x28] sm:$0xff] %v500
    %663 = vst [vmem:[#allocation2 + $0x30] sm:$0xff] %v611
    %664 = vst [vmem:[#allocation2 + $0x38] sm:$0xff] %v613
    %665 = vst [vmem:[#allocation2 + $0x40] sm:$0xff] %v278
    %666 = vst [vmem:[#allocation2 + $0x48] sm:$0xff] %v280
    %667 = vst [vmem:[#allocation2 + $0x50] sm:$0xff] %v391
    %668 = vst [vmem:[#allocation2 + $0x58] sm:$0xff] %v393
    %669 = vst [vmem:[#allocation2 + $0x60] sm:$0xff] %v504
    %670 = vst [vmem:[#allocation2 + $0x68] sm:$0xff] %v506
    %671 = vst [vmem:[#allocation2 + $0x70] sm:$0xff] %v617
    %672 = vst [vmem:[#allocation2 + $0x78] sm:$0xff] %v619
    %673 = vst [vmem:[#allocation2 + $0x80] sm:$0xff] %v284
    %674 = vst [vmem:[#allocation2 + $0x88] sm:$0xff] %v286
    %675 = vst [vmem:[#allocation2 + $0x90] sm:$0xff] %v397
    %676 = vst [vmem:[#allocation2 + $0x98] sm:$0xff] %v399
    %677 = vst [vmem:[#allocation2 + $0xa0] sm:$0xff] %v510
    %678 = vst [vmem:[#allocation2 + $0xa8] sm:$0xff] %v512
    %679 = vst [vmem:[#allocation2 + $0xb0] sm:$0xff] %v623
    %680 = vst [vmem:[#allocation2 + $0xb8] sm:$0xff] %v625
    %681 = vst [vmem:[#allocation2 + $0xc0] sm:$0xff] %v290
    %682 = vst [vmem:[#allocation2 + $0xc8] sm:$0xff] %v292
    %683 = vst [vmem:[#allocation2 + $0xd0] sm:$0xff] %v403
    %684 = vst [vmem:[#allocation2 + $0xd8] sm:$0xff] %v405
    %685 = vst [vmem:[#allocation2 + $0xe0] sm:$0xff] %v516
    %686 = vst [vmem:[#allocation2 + $0xe8] sm:$0xff] %v518
    %687 = vst [vmem:[#allocation2 + $0xf0] sm:$0xff] %v629
    %688 = vst [vmem:[#allocation2 + $0xf8] sm:$0xff] %v631
    %689 = vst [vmem:[#allocation2 + $0x100] sm:$0xff] %v296
    %690 = vst [vmem:[#allocation2 + $0x108] sm:$0xff] %v298
    %691 = vst [vmem:[#allocation2 + $0x110] sm:$0xff] %v409
    %692 = vst [vmem:[#allocation2 + $0x118] sm:$0xff] %v411
    %693 = vst [vmem:[#allocation2 + $0x120] sm:$0xff] %v522
    %694 = vst [vmem:[#allocation2 + $0x128] sm:$0xff] %v524
    %695 = vst [vmem:[#allocation2 + $0x130] sm:$0xff] %v635
    %696 = vst [vmem:[#allocation2 + $0x138] sm:$0xff] %v637
    %697 = vst [vmem:[#allocation2 + $0x140] sm:$0xff] %v302
    %698 = vst [vmem:[#allocation2 + $0x148] sm:$0xff] %v304
    %699 = vst [vmem:[#allocation2 + $0x150] sm:$0xff] %v415
    %700 = vst [vmem:[#allocation2 + $0x158] sm:$0xff] %v417
    %701 = vst [vmem:[#allocation2 + $0x160] sm:$0xff] %v528
    %702 = vst [vmem:[#allocation2 + $0x168] sm:$0xff] %v530
    %703 = vst [vmem:[#allocation2 + $0x170] sm:$0xff] %v641
    %704 = vst [vmem:[#allocation2 + $0x178] sm:$0xff] %v643
    %705 = vst [vmem:[#allocation2 + $0x180] sm:$0xff] %v308
    %706 = vst [vmem:[#allocation2 + $0x188] sm:$0xff] %v310
    %707 = vst [vmem:[#allocation2 + $0x190] sm:$0xff] %v421
    %708 = vst [vmem:[#allocation2 + $0x198] sm:$0xff] %v423
    %709 = vst [vmem:[#allocation2 + $0x1a0] sm:$0xff] %v534
    %710 = vst [vmem:[#allocation2 + $0x1a8] sm:$0xff] %v536
    %711 = vst [vmem:[#allocation2 + $0x1b0] sm:$0xff] %v647
    %712 = vst [vmem:[#allocation2 + $0x1b8] sm:$0xff] %v649
    %713 = vst [vmem:[#allocation2 + $0x1c0] sm:$0xff] %v314
    %714 = vst [vmem:[#allocation2 + $0x1c8] sm:$0xff] %v316
    %715 = vst [vmem:[#allocation2 + $0x1d0] sm:$0xff] %v427
    %716 = vst [vmem:[#allocation2 + $0x1d8] sm:$0xff] %v429
    %717 = vst [vmem:[#allocation2 + $0x1e0] sm:$0xff] %v540
    %718 = vst [vmem:[#allocation2 + $0x1e8] sm:$0xff] %v542
    %719 = vst [vmem:[#allocation2 + $0x1f0] sm:$0xff] %v653
    %720 = vst [vmem:[#allocation2 + $0x1f8] sm:$0xff] %v655
    %v721 = vld [vmem:[#allocation2] sm:$0xff]
    %v722 = vld [vmem:[#allocation2 + $0x8] sm:$0xff]
    %v723 = vld [vmem:[#allocation2 + $0x10] sm:$0xff]
    %v724 = vld [vmem:[#allocation2 + $0x18] sm:$0xff]
    %v725 = vld [vmem:[#allocation2 + $0x20] sm:$0xff]
    %v726 = vld [vmem:[#allocation2 + $0x28] sm:$0xff]
    %v727 = vld [vmem:[#allocation2 + $0x30] sm:$0xff]
    %v728 = vld [vmem:[#allocation2 + $0x38] sm:$0xff]
    %v729 = vld [vmem:[#allocation7] sm:$0xff]
    %v730 = vld [vmem:[#allocation7 + $0x8] sm:$0xff]
    %v731 = vld [vmem:[#allocation7 + $0x10] sm:$0xff]
    %v732 = vld [vmem:[#allocation7 + $0x18] sm:$0xff]
    %v733 = vld [vmem:[#allocation7 + $0x20] sm:$0xff]
    %v734 = vld [vmem:[#allocation7 + $0x28] sm:$0xff]
    %v735 = vld [vmem:[#allocation7 + $0x30] sm:$0xff]
    %v736 = vld [vmem:[#allocation7 + $0x38] sm:$0xff]
    %v737 = vld [vmem:[#allocation7 + $0x40] sm:$0xff]
    %v738 = vld [vmem:[#allocation7 + $0x48] sm:$0xff]
    %v739 = vld [vmem:[#allocation7 + $0x50] sm:$0xff]
    %v740 = vld [vmem:[#allocation7 + $0x58] sm:$0xff]
    %v741 = vld [vmem:[#allocation7 + $0x60] sm:$0xff]
    %v742 = vld [vmem:[#allocation7 + $0x68] sm:$0xff]
    %v743 = vld [vmem:[#allocation7 + $0x70] sm:$0xff]
    %v744 = vld [vmem:[#allocation7 + $0x78] sm:$0xff]
    %v745 = vld [vmem:[#allocation7 + $0x80] sm:$0xff]
    %v746 = vld [vmem:[#allocation7 + $0x88] sm:$0xff]
    %v747 = vld [vmem:[#allocation7 + $0x90] sm:$0xff]
    %v748 = vld [vmem:[#allocation7 + $0x98] sm:$0xff]
    %v749 = vld [vmem:[#allocation7 + $0xa0] sm:$0xff]
    %v750 = vld [vmem:[#allocation7 + $0xa8] sm:$0xff]
    %v751 = vld [vmem:[#allocation7 + $0xb0] sm:$0xff]
    %v752 = vld [vmem:[#allocation7 + $0xb8] sm:$0xff]
    %v753 = vld [vmem:[#allocation7 + $0xc0] sm:$0xff]
    %v754 = vld [vmem:[#allocation7 + $0xc8] sm:$0xff]
    %v755 = vld [vmem:[#allocation7 + $0xd0] sm:$0xff]
    %v756 = vld [vmem:[#allocation7 + $0xd8] sm:$0xff]
    %v757 = vld [vmem:[#allocation7 + $0xe0] sm:$0xff]
    %v758 = vld [vmem:[#allocation7 + $0xe8] sm:$0xff]
    %v759 = vld [vmem:[#allocation7 + $0xf0] sm:$0xff]
    %v760 = vld [vmem:[#allocation7 + $0xf8] sm:$0xff]
    %v761 = vld [vmem:[#allocation7 + $0x100] sm:$0xff]
    %v762 = vld [vmem:[#allocation7 + $0x108] sm:$0xff]
    %v763 = vld [vmem:[#allocation7 + $0x110] sm:$0xff]
    %v764 = vld [vmem:[#allocation7 + $0x118] sm:$0xff]
    %v765 = vld [vmem:[#allocation7 + $0x120] sm:$0xff]
    %v766 = vld [vmem:[#allocation7 + $0x128] sm:$0xff]
    %v767 = vld [vmem:[#allocation7 + $0x130] sm:$0xff]
    %v768 = vld [vmem:[#allocation7 + $0x138] sm:$0xff]
    %v769 = vld [vmem:[#allocation7 + $0x140] sm:$0xff]
    %v770 = vld [vmem:[#allocation7 + $0x148] sm:$0xff]
    %v771 = vld [vmem:[#allocation7 + $0x150] sm:$0xff]
    %v772 = vld [vmem:[#allocation7 + $0x158] sm:$0xff]
    %v773 = vld [vmem:[#allocation7 + $0x160] sm:$0xff]
    %v774 = vld [vmem:[#allocation7 + $0x168] sm:$0xff]
    %v775 = vld [vmem:[#allocation7 + $0x170] sm:$0xff]
    %v776 = vld [vmem:[#allocation7 + $0x178] sm:$0xff]
    %v777 = vld [vmem:[#allocation7 + $0x180] sm:$0xff]
    %v778 = vld [vmem:[#allocation7 + $0x188] sm:$0xff]
    %v779 = vld [vmem:[#allocation7 + $0x190] sm:$0xff]
    %v780 = vld [vmem:[#allocation7 + $0x198] sm:$0xff]
    %v781 = vld [vmem:[#allocation7 + $0x1a0] sm:$0xff]
    %v782 = vld [vmem:[#allocation7 + $0x1a8] sm:$0xff]
    %v783 = vld [vmem:[#allocation7 + $0x1b0] sm:$0xff]
    %v784 = vld [vmem:[#allocation7 + $0x1b8] sm:$0xff]
    %v785 = vld [vmem:[#allocation7 + $0x1c0] sm:$0xff]
    %v786 = vld [vmem:[#allocation7 + $0x1c8] sm:$0xff]
    %v787 = vld [vmem:[#allocation7 + $0x1d0] sm:$0xff]
    %v788 = vld [vmem:[#allocation7 + $0x1d8] sm:$0xff]
    %v789 = vld [vmem:[#allocation7 + $0x1e0] sm:$0xff]
    %v790 = vld [vmem:[#allocation7 + $0x1e8] sm:$0xff]
    %v791 = vld [vmem:[#allocation7 + $0x1f0] sm:$0xff]
    %v792 = vld [vmem:[#allocation7 + $0x1f8] sm:$0xff]
    %v793 = vld [vmem:[#allocation7 + $0x200] sm:$0xff]
    %v794 = vld [vmem:[#allocation7 + $0x208] sm:$0xff]
    %v795 = vld [vmem:[#allocation7 + $0x210] sm:$0xff]
    %v796 = vld [vmem:[#allocation7 + $0x218] sm:$0xff]
    %v797 = vld [vmem:[#allocation7 + $0x220] sm:$0xff]
    %v798 = vld [vmem:[#allocation7 + $0x228] sm:$0xff]
    %v799 = vld [vmem:[#allocation7 + $0x230] sm:$0xff]
    %v800 = vld [vmem:[#allocation7 + $0x238] sm:$0xff]
    %v801 = vld [vmem:[#allocation7 + $0x240] sm:$0xff]
    %v802 = vld [vmem:[#allocation7 + $0x248] sm:$0xff]
    %v803 = vld [vmem:[#allocation7 + $0x250] sm:$0xff]
    %v804 = vld [vmem:[#allocation7 + $0x258] sm:$0xff]
    %v805 = vld [vmem:[#allocation7 + $0x260] sm:$0xff]
    %v806 = vld [vmem:[#allocation7 + $0x268] sm:$0xff]
    %v807 = vld [vmem:[#allocation7 + $0x270] sm:$0xff]
    %v808 = vld [vmem:[#allocation7 + $0x278] sm:$0xff]
    %v809 = vld [vmem:[#allocation7 + $0x280] sm:$0xff]
    %v810 = vld [vmem:[#allocation7 + $0x288] sm:$0xff]
    %v811 = vld [vmem:[#allocation7 + $0x290] sm:$0xff]
    %v812 = vld [vmem:[#allocation7 + $0x298] sm:$0xff]
    %v813 = vld [vmem:[#allocation7 + $0x2a0] sm:$0xff]
    %v814 = vld [vmem:[#allocation7 + $0x2a8] sm:$0xff]
    %v815 = vld [vmem:[#allocation7 + $0x2b0] sm:$0xff]
    %v816 = vld [vmem:[#allocation7 + $0x2b8] sm:$0xff]
    %v817 = vld [vmem:[#allocation7 + $0x2c0] sm:$0xff]
    %v818 = vld [vmem:[#allocation7 + $0x2c8] sm:$0xff]
    %v819 = vld [vmem:[#allocation7 + $0x2d0] sm:$0xff]
    %v820 = vld [vmem:[#allocation7 + $0x2d8] sm:$0xff]
    %v821 = vld [vmem:[#allocation7 + $0x2e0] sm:$0xff]
    %v822 = vld [vmem:[#allocation7 + $0x2e8] sm:$0xff]
    %v823 = vld [vmem:[#allocation7 + $0x2f0] sm:$0xff]
    %v824 = vld [vmem:[#allocation7 + $0x2f8] sm:$0xff]
    %v825 = vld [vmem:[#allocation7 + $0x300] sm:$0xff]
    %v826 = vld [vmem:[#allocation7 + $0x308] sm:$0xff]
    %v827 = vld [vmem:[#allocation7 + $0x310] sm:$0xff]
    %v828 = vld [vmem:[#allocation7 + $0x318] sm:$0xff]
    %v829 = vld [vmem:[#allocation7 + $0x320] sm:$0xff]
    %v830 = vld [vmem:[#allocation7 + $0x328] sm:$0xff]
    %v831 = vld [vmem:[#allocation7 + $0x330] sm:$0xff]
    %v832 = vld [vmem:[#allocation7 + $0x338] sm:$0xff]
    %v833 = vld [vmem:[#allocation7 + $0x340] sm:$0xff]
    %v834 = vld [vmem:[#allocation7 + $0x348] sm:$0xff]
    %v835 = vld [vmem:[#allocation7 + $0x350] sm:$0xff]
    %v836 = vld [vmem:[#allocation7 + $0x358] sm:$0xff]
    %v837 = vld [vmem:[#allocation7 + $0x360] sm:$0xff]
    %v838 = vld [vmem:[#allocation7 + $0x368] sm:$0xff]
    %v839 = vld [vmem:[#allocation7 + $0x370] sm:$0xff]
    %v840 = vld [vmem:[#allocation7 + $0x378] sm:$0xff]
    %v841 = vld [vmem:[#allocation7 + $0x380] sm:$0xff]
    %v842 = vld [vmem:[#allocation7 + $0x388] sm:$0xff]
    %v843 = vld [vmem:[#allocation7 + $0x390] sm:$0xff]
    %v844 = vld [vmem:[#allocation7 + $0x398] sm:$0xff]
    %v845 = vld [vmem:[#allocation7 + $0x3a0] sm:$0xff]
    %v846 = vld [vmem:[#allocation7 + $0x3a8] sm:$0xff]
    %v847 = vld [vmem:[#allocation7 + $0x3b0] sm:$0xff]
    %v848 = vld [vmem:[#allocation7 + $0x3b8] sm:$0xff]
    %v849 = vld [vmem:[#allocation7 + $0x3c0] sm:$0xff]
    %v850 = vld [vmem:[#allocation7 + $0x3c8] sm:$0xff]
    %v851 = vld [vmem:[#allocation7 + $0x3d0] sm:$0xff]
    %v852 = vld [vmem:[#allocation7 + $0x3d8] sm:$0xff]
    %v853 = vld [vmem:[#allocation7 + $0x3e0] sm:$0xff]
    %v854 = vld [vmem:[#allocation7 + $0x3e8] sm:$0xff]
    %v855 = vld [vmem:[#allocation7 + $0x3f0] sm:$0xff]
    %v856 = vld [vmem:[#allocation7 + $0x3f8] sm:$0xff]
    %v857 = vld [vmem:[#allocation7 + $0x400] sm:$0xff]
    %v858 = vld [vmem:[#allocation7 + $0x408] sm:$0xff]
    %v859 = vld [vmem:[#allocation7 + $0x410] sm:$0xff]
    %v860 = vld [vmem:[#allocation7 + $0x418] sm:$0xff]
    %v861 = vld [vmem:[#allocation7 + $0x420] sm:$0xff]
    %v862 = vld [vmem:[#allocation7 + $0x428] sm:$0xff]
    %v863 = vld [vmem:[#allocation7 + $0x430] sm:$0xff]
    %v864 = vld [vmem:[#allocation7 + $0x438] sm:$0xff]
    %v865 = vld [vmem:[#allocation7 + $0x440] sm:$0xff]
    %v866 = vld [vmem:[#allocation7 + $0x448] sm:$0xff]
    %v867 = vld [vmem:[#allocation7 + $0x450] sm:$0xff]
    %v868 = vld [vmem:[#allocation7 + $0x458] sm:$0xff]
    %v869 = vld [vmem:[#allocation7 + $0x460] sm:$0xff]
    %v870 = vld [vmem:[#allocation7 + $0x468] sm:$0xff]
    %v871 = vld [vmem:[#allocation7 + $0x470] sm:$0xff]
    %v872 = vld [vmem:[#allocation7 + $0x478] sm:$0xff]
    %vm873 = vcmask 130048
    %v875 = vsel %vm873, 0.0, 0
    %877 = vmatprep.subr.mxu0 %v850
    %878 = vmatpush1.msra.mxu0 %v849
    %879 = vmatprep.subr.mxu0 %v842
    %880 = vmatpush1.msra.mxu0 %v841
    %881 = vmatprep.subr.mxu0 %v834
    %882 = vmatpush1.msra.mxu0 %v833
    %883 = vmatprep.subr.mxu0 %v826
    %884 = vmatpush1.msra.mxu0 %v825
    %885 = vmatprep.subr.mxu0 %v818
    %886 = vmatpush1.msra.mxu0 %v817
    %887 = vmatprep.subr.mxu0 %v810
    %888 = vmatpush1.msra.mxu0 %v809
    %889 = vmatprep.subr.mxu0 %v802
    %890 = vmatpush1.msra.mxu0 %v801
    %891 = vmatprep.subr.mxu0 %v794
    %892 = vmatpush1.msra.mxu0 %v793
    %893 = vmatprep.subr.mxu0 %v786
    %894 = vmatpush1.msra.mxu0 %v785
    %895 = vmatprep.subr.mxu0 %v778
    %896 = vmatpush1.msra.mxu0 %v777
    %897 = vmatprep.subr.mxu0 %v770
    %898 = vmatpush1.msra.mxu0 %v769
    %899 = vmatprep.subr.mxu0 %v762
    %900 = vmatpush1.msra.mxu0 %v761
    %901 = vmatprep.subr.mxu0 %v754
    %902 = vmatpush1.msra.mxu0 %v753
    %903 = vmatprep.subr.mxu0 %v746
    %904 = vmatpush1.msra.mxu0 %v745
    %905 = vmatprep.subr.mxu0 %v738
    %906 = vmatpush1.msra.mxu0 %v737
    %907 = vmatprep.subr.mxu0 %v730
    %908 = vmatpush1.msra.mxu0 %v729
    %909 = vmatprep.subr.mxu0 0.0
    %910 = vmatpush2.msra.mxu0 0.0
    %911 = vmatprep.subr.mxu0 0.0
    %912 = vmatpush2.msra.mxu0 0.0
    %913 = vmatprep.subr.mxu0 0.0
    %914 = vmatpush2.msra.mxu0 0.0
    %915 = vmatprep.subr.mxu0 0.0
    %916 = vmatpush2.msra.mxu0 0.0
    %917 = vmatprep.subr.mxu0 0.0
    %918 = vmatpush2.msra.mxu0 0.0
    %919 = vmatprep.subr.mxu0 0.0
    %920 = vmatpush2.msra.mxu0 0.0
    %921 = vmatprep.subr.mxu0 0.0
    %922 = vmatpush2.msra.mxu0 0.0
    %923 = vmatprep.subr.mxu0 0.0
    %924 = vmatpush2.msra.mxu0 0.0
    %925 = vmatprep.subr.mxu0 0.0
    %926 = vmatpush2.msra.mxu0 0.0
    %927 = vmatprep.subr.mxu0 0.0
    %928 = vmatpush2.msra.mxu0 0.0
    %929 = vmatprep.subr.mxu0 0.0
    %930 = vmatpush2.msra.mxu0 0.0
    %931 = vmatprep.subr.mxu0 0.0
    %932 = vmatpush2.msra.mxu0 0.0
    %933 = vmatprep.subr.mxu0 0.0
    %934 = vmatpush2.msra.mxu0 0.0
    %935 = vmatprep.subr.mxu0 0.0
    %936 = vmatpush2.msra.mxu0 0.0
    %937 = vmatprep.subr.mxu0 %v866
    %938 = vmatpush2.msra.mxu0 %v865
    %939 = vmatprep.subr.mxu0 %v858
    %940 = vmatpush2.msra.mxu0 %v857
    %941 = vmatprep.mubr.f32.mxu0 %v875
    %942 = vmatmul.mubr.f32.gmra.mxu0 0.0
    %v943 = vpop.f32.mrf.mxu0
    %v944 = vadd.f32 0.0, %v943
    %v945 = vpop.f32.mrf.mxu0
    %v946 = vadd.f32 0.0, %v945
    %947 = vdwg.mxu0
    %948 = vmatprep.subr.mxu0 %v852
    %949 = vmatpush1.msra.mxu0 %v851
    %950 = vmatprep.subr.mxu0 %v844
    %951 = vmatpush1.msra.mxu0 %v843
    %952 = vmatprep.subr.mxu0 %v836
    %953 = vmatpush1.msra.mxu0 %v835
    %954 = vmatprep.subr.mxu0 %v828
    %955 = vmatpush1.msra.mxu0 %v827
    %956 = vmatprep.subr.mxu0 %v820
    %957 = vmatpush1.msra.mxu0 %v819
    %958 = vmatprep.subr.mxu0 %v812
    %959 = vmatpush1.msra.mxu0 %v811
    %960 = vmatprep.subr.mxu0 %v804
    %961 = vmatpush1.msra.mxu0 %v803
    %962 = vmatprep.subr.mxu0 %v796
    %963 = vmatpush1.msra.mxu0 %v795
    %964 = vmatprep.subr.mxu0 %v788
    %965 = vmatpush1.msra.mxu0 %v787
    %966 = vmatprep.subr.mxu0 %v780
    %967 = vmatpush1.msra.mxu0 %v779
    %968 = vmatprep.subr.mxu0 %v772
    %969 = vmatpush1.msra.mxu0 %v771
    %970 = vmatprep.subr.mxu0 %v764
    %971 = vmatpush1.msra.mxu0 %v763
    %972 = vmatprep.subr.mxu0 %v756
    %973 = vmatpush1.msra.mxu0 %v755
    %974 = vmatprep.subr.mxu0 %v748
    %975 = vmatpush1.msra.mxu0 %v747
    %976 = vmatprep.subr.mxu0 %v740
    %977 = vmatpush1.msra.mxu0 %v739
    %978 = vmatprep.subr.mxu0 %v732
    %979 = vmatpush1.msra.mxu0 %v731
    %980 = vmatprep.subr.mxu0 0.0
    %981 = vmatpush2.msra.mxu0 0.0
    %982 = vmatprep.subr.mxu0 0.0
    %983 = vmatpush2.msra.mxu0 0.0
    %984 = vmatprep.subr.mxu0 0.0
    %985 = vmatpush2.msra.mxu0 0.0
    %986 = vmatprep.subr.mxu0 0.0
    %987 = vmatpush2.msra.mxu0 0.0
    %988 = vmatprep.subr.mxu0 0.0
    %989 = vmatpush2.msra.mxu0 0.0
    %990 = vmatprep.subr.mxu0 0.0
    %991 = vmatpush2.msra.mxu0 0.0
    %992 = vmatprep.subr.mxu0 0.0
    %993 = vmatpush2.msra.mxu0 0.0
    %994 = vmatprep.subr.mxu0 0.0
    %995 = vmatpush2.msra.mxu0 0.0
    %996 = vmatprep.subr.mxu0 0.0
    %997 = vmatpush2.msra.mxu0 0.0
    %998 = vmatprep.subr.mxu0 0.0
    %999 = vmatpush2.msra.mxu0 0.0
    %1000 = vmatprep.subr.mxu0 0.0
    %1001 = vmatpush2.msra.mxu0 0.0
    %1002 = vmatprep.subr.mxu0 0.0
    %1003 = vmatpush2.msra.mxu0 0.0
    %1004 = vmatprep.subr.mxu0 0.0
    %1005 = vmatpush2.msra.mxu0 0.0
    %1006 = vmatprep.subr.mxu0 0.0
    %1007 = vmatpush2.msra.mxu0 0.0
    %1008 = vmatprep.subr.mxu0 %v868
    %1009 = vmatpush2.msra.mxu0 %v867
    %1010 = vmatprep.subr.mxu0 %v860
    %1011 = vmatpush2.msra.mxu0 %v859
    %1012 = vmatprep.mubr.f32.mxu0 %v875
    %1013 = vmatmul.mubr.f32.gmra.mxu0 0.0
    %v1014 = vpop.f32.mrf.mxu0
    %v1015 = vadd.f32 0.0, %v1014
    %v1016 = vpop.f32.mrf.mxu0
    %v1017 = vadd.f32 0.0, %v1016
    %1018 = vdwg.mxu0
    %1019 = vmatprep.subr.mxu0 %v854
    %1020 = vmatpush1.msra.mxu0 %v853
    %1021 = vmatprep.subr.mxu0 %v846
    %1022 = vmatpush1.msra.mxu0 %v845
    %1023 = vmatprep.subr.mxu0 %v838
    %1024 = vmatpush1.msra.mxu0 %v837
    %1025 = vmatprep.subr.mxu0 %v830
    %1026 = vmatpush1.msra.mxu0 %v829
    %1027 = vmatprep.subr.mxu0 %v822
    %1028 = vmatpush1.msra.mxu0 %v821
    %1029 = vmatprep.subr.mxu0 %v814
    %1030 = vmatpush1.msra.mxu0 %v813
    %1031 = vmatprep.subr.mxu0 %v806
    %1032 = vmatpush1.msra.mxu0 %v805
    %1033 = vmatprep.subr.mxu0 %v798
    %1034 = vmatpush1.msra.mxu0 %v797
    %1035 = vmatprep.subr.mxu0 %v790
    %1036 = vmatpush1.msra.mxu0 %v789
    %1037 = vmatprep.subr.mxu0 %v782
    %1038 = vmatpush1.msra.mxu0 %v781
    %1039 = vmatprep.subr.mxu0 %v774
    %1040 = vmatpush1.msra.mxu0 %v773
    %1041 = vmatprep.subr.mxu0 %v766
    %1042 = vmatpush1.msra.mxu0 %v765
    %1043 = vmatprep.subr.mxu0 %v758
    %1044 = vmatpush1.msra.mxu0 %v757
    %1045 = vmatprep.subr.mxu0 %v750
    %1046 = vmatpush1.msra.mxu0 %v749
    %1047 = vmatprep.subr.mxu0 %v742
    %1048 = vmatpush1.msra.mxu0 %v741
    %1049 = vmatprep.subr.mxu0 %v734
    %1050 = vmatpush1.msra.mxu0 %v733
    %1051 = vmatprep.subr.mxu0 0.0
    %1052 = vmatpush2.msra.mxu0 0.0
    %1053 = vmatprep.subr.mxu0 0.0
    %1054 = vmatpush2.msra.mxu0 0.0
    %1055 = vmatprep.subr.mxu0 0.0
    %1056 = vmatpush2.msra.mxu0 0.0
    %1057 = vmatprep.subr.mxu0 0.0
    %1058 = vmatpush2.msra.mxu0 0.0
    %1059 = vmatprep.subr.mxu0 0.0
    %1060 = vmatpush2.msra.mxu0 0.0
    %1061 = vmatprep.subr.mxu0 0.0
    %1062 = vmatpush2.msra.mxu0 0.0
    %1063 = vmatprep.subr.mxu0 0.0
    %1064 = vmatpush2.msra.mxu0 0.0
    %1065 = vmatprep.subr.mxu0 0.0
    %1066 = vmatpush2.msra.mxu0 0.0
    %1067 = vmatprep.subr.mxu0 0.0
    %1068 = vmatpush2.msra.mxu0 0.0
    %1069 = vmatprep.subr.mxu0 0.0
    %1070 = vmatpush2.msra.mxu0 0.0
    %1071 = vmatprep.subr.mxu0 0.0
    %1072 = vmatpush2.msra.mxu0 0.0
    %1073 = vmatprep.subr.mxu0 0.0
    %1074 = vmatpush2.msra.mxu0 0.0
    %1075 = vmatprep.subr.mxu0 0.0
    %1076 = vmatpush2.msra.mxu0 0.0
    %1077 = vmatprep.subr.mxu0 0.0
    %1078 = vmatpush2.msra.mxu0 0.0
    %1079 = vmatprep.subr.mxu0 %v870
    %1080 = vmatpush2.msra.mxu0 %v869
    %1081 = vmatprep.subr.mxu0 %v862
    %1082 = vmatpush2.msra.mxu0 %v861
    %1083 = vmatprep.mubr.f32.mxu0 %v875
    %1084 = vmatmul.mubr.f32.gmra.mxu0 0.0
    %v1085 = vpop.f32.mrf.mxu0
    %v1086 = vadd.f32 0.0, %v1085
    %v1087 = vpop.f32.mrf.mxu0
    %v1088 = vadd.f32 0.0, %v1087
    %1089 = vdwg.mxu0
    %1090 = vmatprep.subr.mxu0 %v856
    %1091 = vmatpush1.msra.mxu0 %v855
    %1092 = vmatprep.subr.mxu0 %v848
    %1093 = vmatpush1.msra.mxu0 %v847
    %1094 = vmatprep.subr.mxu0 %v840
    %1095 = vmatpush1.msra.mxu0 %v839
    %1096 = vmatprep.subr.mxu0 %v832
    %1097 = vmatpush1.msra.mxu0 %v831
    %1098 = vmatprep.subr.mxu0 %v824
    %1099 = vmatpush1.msra.mxu0 %v823
    %1100 = vmatprep.subr.mxu0 %v816
    %1101 = vmatpush1.msra.mxu0 %v815
    %1102 = vmatprep.subr.mxu0 %v808
    %1103 = vmatpush1.msra.mxu0 %v807
    %1104 = vmatprep.subr.mxu0 %v800
    %1105 = vmatpush1.msra.mxu0 %v799
    %1106 = vmatprep.subr.mxu0 %v792
    %1107 = vmatpush1.msra.mxu0 %v791
    %1108 = vmatprep.subr.mxu0 %v784
    %1109 = vmatpush1.msra.mxu0 %v783
    %1110 = vmatprep.subr.mxu0 %v776
    %1111 = vmatpush1.msra.mxu0 %v775
    %1112 = vmatprep.subr.mxu0 %v768
    %1113 = vmatpush1.msra.mxu0 %v767
    %1114 = vmatprep.subr.mxu0 %v760
    %1115 = vmatpush1.msra.mxu0 %v759
    %1116 = vmatprep.subr.mxu0 %v752
    %1117 = vmatpush1.msra.mxu0 %v751
    %1118 = vmatprep.subr.mxu0 %v744
    %1119 = vmatpush1.msra.mxu0 %v743
    %1120 = vmatprep.subr.mxu0 %v736
    %1121 = vmatpush1.msra.mxu0 %v735
    %1122 = vmatprep.subr.mxu0 0.0
    %1123 = vmatpush2.msra.mxu0 0.0
    %1124 = vmatprep.subr.mxu0 0.0
    %1125 = vmatpush2.msra.mxu0 0.0
    %1126 = vmatprep.subr.mxu0 0.0
    %1127 = vmatpush2.msra.mxu0 0.0
    %1128 = vmatprep.subr.mxu0 0.0
    %1129 = vmatpush2.msra.mxu0 0.0
    %1130 = vmatprep.subr.mxu0 0.0
    %1131 = vmatpush2.msra.mxu0 0.0
    %1132 = vmatprep.subr.mxu0 0.0
    %1133 = vmatpush2.msra.mxu0 0.0
    %1134 = vmatprep.subr.mxu0 0.0
    %1135 = vmatpush2.msra.mxu0 0.0
    %1136 = vmatprep.subr.mxu0 0.0
    %1137 = vmatpush2.msra.mxu0 0.0
    %1138 = vmatprep.subr.mxu0 0.0
    %1139 = vmatpush2.msra.mxu0 0.0
    %1140 = vmatprep.subr.mxu0 0.0
    %1141 = vmatpush2.msra.mxu0 0.0
    %1142 = vmatprep.subr.mxu0 0.0
    %1143 = vmatpush2.msra.mxu0 0.0
    %1144 = vmatprep.subr.mxu0 0.0
    %1145 = vmatpush2.msra.mxu0 0.0
    %1146 = vmatprep.subr.mxu0 0.0
    %1147 = vmatpush2.msra.mxu0 0.0
    %1148 = vmatprep.subr.mxu0 0.0
    %1149 = vmatpush2.msra.mxu0 0.0
    %1150 = vmatprep.subr.mxu0 %v872
    %1151 = vmatpush2.msra.mxu0 %v871
    %1152 = vmatprep.subr.mxu0 %v864
    %1153 = vmatpush2.msra.mxu0 %v863
    %1154 = vmatprep.mubr.f32.mxu0 %v875
    %1155 = vmatmul.mubr.f32.gmra.mxu0 0.0
    %v1156 = vpop.f32.mrf.mxu0
    %v1157 = vadd.f32 0.0, %v1156
    %v1158 = vpop.f32.mrf.mxu0
    %v1159 = vadd.f32 0.0, %v1158
    %1160 = vdwg.mxu0
    %v1161 = vadd.f32 %v721, %v944
    %v1162 = vadd.f32 %v722, %v946
    %v1163 = vadd.f32 %v723, %v1015
    %v1164 = vadd.f32 %v724, %v1017
    %v1165 = vadd.f32 %v725, %v1086
    %v1166 = vadd.f32 %v726, %v1088
    %v1167 = vadd.f32 %v727, %v1157
    %v1168 = vadd.f32 %v728, %v1159
    %v1169 = vxor.u32 %v1161, 2147483648
    %v1170 = vxor.u32 %v1162, 2147483648
    %v1171 = vxor.u32 %v1163, 2147483648
    %v1172 = vxor.u32 %v1164, 2147483648
    %v1173 = vxor.u32 %v1165, 2147483648
    %v1174 = vxor.u32 %v1166, 2147483648
    %v1175 = vmul.f32 %v1169, 1.442695
    %v1176 = vpow.pop %v1175
    %v1177 = vmul.f32 %v1170, 1.442695
    %v1178 = vpow.pop %v1177
    %v1179 = vmul.f32 %v1171, 1.442695
    %v1180 = vpow.pop %v1179
    %v1181 = vmul.f32 %v1172, 1.442695
    %v1182 = vpow.pop %v1181
    %v1183 = vmul.f32 %v1173, 1.442695
    %v1184 = vpow.pop %v1183
    %v1185 = vmul.f32 %v1174, 1.442695
    %v1186 = vpow.pop %v1185
    %v1187 = vadd.f32 %v1176, 1.0
    %v1188 = vadd.f32 %v1178, 1.0
    %v1189 = vadd.f32 %v1180, 1.0
    %v1190 = vadd.f32 %v1182, 1.0
    %v1191 = vadd.f32 %v1184, 1.0
    %v1192 = vadd.f32 %v1186, 1.0
    %v1193 = vrcp.pop %v1187
    %v1194 = vmul.f32 1.0, %v1193
    %v1195 = vrcp.pop %v1188
    %v1196 = vmul.f32 1.0, %v1195
    %v1197 = vrcp.pop %v1189
    %v1198 = vmul.f32 1.0, %v1197
    %v1199 = vrcp.pop %v1190
    %v1200 = vmul.f32 1.0, %v1199
    %v1201 = vrcp.pop %v1191
    %v1202 = vmul.f32 1.0, %v1201
    %v1203 = vrcp.pop %v1192
    %v1204 = vmul.f32 1.0, %v1203
    %v1205 = vtanh.pop %v1167
    %v1206 = vtanh.pop %v1168
    %v1207 = vmul.f32 %v1198, 0.0
    %v1208 = vmul.f32 %v1200, 0.0
    %v1209 = vmul.f32 %v1194, %v1205
    %v1210 = vmul.f32 %v1196, %v1206
    %v1211 = vadd.f32 %v1207, %v1209
    %v1212 = vadd.f32 %v1208, %v1210
    %v1213 = vtanh.pop %v1211
    %v1214 = vtanh.pop %v1212
    %v1215 = vmul.f32 %v1202, %v1213
    %v1216 = vmul.f32 %v1204, %v1214
    %v1217 = vld [vmem:[#allocation9] sm:$0xff]
    %v1218 = vld [vmem:[#allocation9 + $0x8] sm:$0xff]
    %v1219 = vld [vmem:[#allocation9 + $0x10] sm:$0xff]
    %v1220 = vld [vmem:[#allocation9 + $0x18] sm:$0xff]
    %v1221 = vld [vmem:[#allocation9 + $0x20] sm:$0xff]
    %v1222 = vld [vmem:[#allocation9 + $0x28] sm:$0xff]
    %v1223 = vld [vmem:[#allocation9 + $0x30] sm:$0xff]
    %v1224 = vld [vmem:[#allocation9 + $0x38] sm:$0xff]
    %v1225 = vld [vmem:[#allocation9 + $0x40] sm:$0xff]
    %v1226 = vld [vmem:[#allocation9 + $0x48] sm:$0xff]
    %v1227 = vld [vmem:[#allocation9 + $0x50] sm:$0xff]
    %v1228 = vld [vmem:[#allocation9 + $0x58] sm:$0xff]
    %v1229 = vld [vmem:[#allocation9 + $0x60] sm:$0xff]
    %v1230 = vld [vmem:[#allocation9 + $0x68] sm:$0xff]
    %v1231 = vld [vmem:[#allocation9 + $0x70] sm:$0xff]
    %v1232 = vld [vmem:[#allocation9 + $0x78] sm:$0xff]
    %v1233 = vld [vmem:[#allocation9 + $0x80] sm:$0xff]
    %v1234 = vld [vmem:[#allocation9 + $0x88] sm:$0xff]
    %v1235 = vld [vmem:[#allocation9 + $0x90] sm:$0xff]
    %v1236 = vld [vmem:[#allocation9 + $0x98] sm:$0xff]
    %v1237 = vld [vmem:[#allocation9 + $0xa0] sm:$0xff]
    %v1238 = vld [vmem:[#allocation9 + $0xa8] sm:$0xff]
    %v1239 = vld [vmem:[#allocation9 + $0xb0] sm:$0xff]
    %v1240 = vld [vmem:[#allocation9 + $0xb8] sm:$0xff]
    %v1241 = vld [vmem:[#allocation9 + $0xc0] sm:$0xff]
    %v1242 = vld [vmem:[#allocation9 + $0xc8] sm:$0xff]
    %v1243 = vld [vmem:[#allocation9 + $0xd0] sm:$0xff]
    %v1244 = vld [vmem:[#allocation9 + $0xd8] sm:$0xff]
    %v1245 = vld [vmem:[#allocation9 + $0xe0] sm:$0xff]
    %v1246 = vld [vmem:[#allocation9 + $0xe8] sm:$0xff]
    %v1247 = vld [vmem:[#allocation9 + $0xf0] sm:$0xff]
    %v1248 = vld [vmem:[#allocation9 + $0xf8] sm:$0xff]
    %v1249 = vld [vmem:[#allocation9 + $0x100] sm:$0xff]
    %v1250 = vld [vmem:[#allocation9 + $0x108] sm:$0xff]
    %v1251 = vld [vmem:[#allocation9 + $0x110] sm:$0xff]
    %v1252 = vld [vmem:[#allocation9 + $0x118] sm:$0xff]
    %v1253 = vld [vmem:[#allocation9 + $0x120] sm:$0xff]
    %v1254 = vld [vmem:[#allocation9 + $0x128] sm:$0xff]
    %v1255 = vld [vmem:[#allocation9 + $0x130] sm:$0xff]
    %v1256 = vld [vmem:[#allocation9 + $0x138] sm:$0xff]
    %v1257 = vld [vmem:[#allocation9 + $0x140] sm:$0xff]
    %v1258 = vld [vmem:[#allocation9 + $0x148] sm:$0xff]
    %v1259 = vld [vmem:[#allocation9 + $0x150] sm:$0xff]
    %v1260 = vld [vmem:[#allocation9 + $0x158] sm:$0xff]
    %v1261 = vld [vmem:[#allocation9 + $0x160] sm:$0xff]
    %v1262 = vld [vmem:[#allocation9 + $0x168] sm:$0xff]
    %v1263 = vld [vmem:[#allocation9 + $0x170] sm:$0xff]
    %v1264 = vld [vmem:[#allocation9 + $0x178] sm:$0xff]
    %v1265 = vld [vmem:[#allocation9 + $0x180] sm:$0xff]
    %v1266 = vld [vmem:[#allocation9 + $0x188] sm:$0xff]
    %v1267 = vld [vmem:[#allocation9 + $0x190] sm:$0xff]
    %v1268 = vld [vmem:[#allocation9 + $0x198] sm:$0xff]
    %v1269 = vld [vmem:[#allocation9 + $0x1a0] sm:$0xff]
    %v1270 = vld [vmem:[#allocation9 + $0x1a8] sm:$0xff]
    %v1271 = vld [vmem:[#allocation9 + $0x1b0] sm:$0xff]
    %v1272 = vld [vmem:[#allocation9 + $0x1b8] sm:$0xff]
    %v1273 = vld [vmem:[#allocation9 + $0x1c0] sm:$0xff]
    %v1274 = vld [vmem:[#allocation9 + $0x1c8] sm:$0xff]
    %v1275 = vld [vmem:[#allocation9 + $0x1d0] sm:$0xff]
    %v1276 = vld [vmem:[#allocation9 + $0x1d8] sm:$0xff]
    %v1277 = vld [vmem:[#allocation9 + $0x1e0] sm:$0xff]
    %v1278 = vld [vmem:[#allocation9 + $0x1e8] sm:$0xff]
    %v1279 = vld [vmem:[#allocation9 + $0x1f0] sm:$0xff]
    %v1280 = vld [vmem:[#allocation9 + $0x1f8] sm:$0xff]
    %v1281 = vld [vmem:[#allocation9 + $0x200] sm:$0xff]
    %v1282 = vld [vmem:[#allocation9 + $0x208] sm:$0xff]
    %v1283 = vld [vmem:[#allocation9 + $0x210] sm:$0xff]
    %v1284 = vld [vmem:[#allocation9 + $0x218] sm:$0xff]
    %v1285 = vld [vmem:[#allocation9 + $0x220] sm:$0xff]
    %v1286 = vld [vmem:[#allocation9 + $0x228] sm:$0xff]
    %v1287 = vld [vmem:[#allocation9 + $0x230] sm:$0xff]
    %v1288 = vld [vmem:[#allocation9 + $0x238] sm:$0xff]
    %v1289 = vld [vmem:[%s6] sm:$0xf]
    %v1291 = vlaneseq
    %v1292 = vshrl.u32 %v1291, 7
    %v1293 = vsub.s32 0, %v1292
    %v1294 = vrot.slane %v1289, %v1293
    %v1295 = vlaneseq
    %v1296 = vshrl.u32 %v1295, 7
    %v1297 = vsub.s32 1, %v1296
    %v1298 = vrot.slane %v1289, %v1297
    %v1299 = vlaneseq
    %v1300 = vshrl.u32 %v1299, 7
    %v1301 = vsub.s32 2, %v1300
    %v1302 = vrot.slane %v1289, %v1301
    %v1303 = vlaneseq
    %v1304 = vshrl.u32 %v1303, 7
    %v1305 = vsub.s32 3, %v1304
    %v1306 = vrot.slane %v1289, %v1305
    %v1312 = vsel %vm873, %v1216, 0
    %1314 = vmatprep.subr.mxu0 %v1278
    %1315 = vmatpush1.msra.mxu0 %v1277
    %1316 = vmatprep.subr.mxu0 %v1274
    %1317 = vmatpush1.msra.mxu0 %v1273
    %1318 = vmatprep.subr.mxu0 %v1270
    %1319 = vmatpush1.msra.mxu0 %v1269
    %1320 = vmatprep.subr.mxu0 %v1266
    %1321 = vmatpush1.msra.mxu0 %v1265
    %1322 = vmatprep.subr.mxu0 %v1262
    %1323 = vmatpush1.msra.mxu0 %v1261
    %1324 = vmatprep.subr.mxu0 %v1258
    %1325 = vmatpush1.msra.mxu0 %v1257
    %1326 = vmatprep.subr.mxu0 %v1254
    %1327 = vmatpush1.msra.mxu0 %v1253
    %1328 = vmatprep.subr.mxu0 %v1250
    %1329 = vmatpush1.msra.mxu0 %v1249
    %1330 = vmatprep.subr.mxu0 %v1246
    %1331 = vmatpush1.msra.mxu0 %v1245
    %1332 = vmatprep.subr.mxu0 %v1242
    %1333 = vmatpush1.msra.mxu0 %v1241
    %1334 = vmatprep.subr.mxu0 %v1238
    %1335 = vmatpush1.msra.mxu0 %v1237
    %1336 = vmatprep.subr.mxu0 %v1234
    %1337 = vmatpush1.msra.mxu0 %v1233
    %1338 = vmatprep.subr.mxu0 %v1230
    %1339 = vmatpush1.msra.mxu0 %v1229
    %1340 = vmatprep.subr.mxu0 %v1226
    %1341 = vmatpush1.msra.mxu0 %v1225
    %1342 = vmatprep.subr.mxu0 %v1222
    %1343 = vmatpush1.msra.mxu0 %v1221
    %1344 = vmatprep.subr.mxu0 %v1218
    %1345 = vmatpush1.msra.mxu0 %v1217
    %1346 = vmatprep.subr.mxu0 0.0
    %1347 = vmatpush2.msra.mxu0 0.0
    %1348 = vmatprep.subr.mxu0 0.0
    %1349 = vmatpush2.msra.mxu0 0.0
    %1350 = vmatprep.subr.mxu0 0.0
    %1351 = vmatpush2.msra.mxu0 0.0
    %1352 = vmatprep.subr.mxu0 0.0
    %1353 = vmatpush2.msra.mxu0 0.0
    %1354 = vmatprep.subr.mxu0 0.0
    %1355 = vmatpush2.msra.mxu0 0.0
    %1356 = vmatprep.subr.mxu0 0.0
    %1357 = vmatpush2.msra.mxu0 0.0
    %1358 = vmatprep.subr.mxu0 0.0
    %1359 = vmatpush2.msra.mxu0 0.0
    %1360 = vmatprep.subr.mxu0 0.0
    %1361 = vmatpush2.msra.mxu0 0.0
    %1362 = vmatprep.subr.mxu0 0.0
    %1363 = vmatpush2.msra.mxu0 0.0
    %1364 = vmatprep.subr.mxu0 0.0
    %1365 = vmatpush2.msra.mxu0 0.0
    %1366 = vmatprep.subr.mxu0 0.0
    %1367 = vmatpush2.msra.mxu0 0.0
    %1368 = vmatprep.subr.mxu0 0.0
    %1369 = vmatpush2.msra.mxu0 0.0
    %1370 = vmatprep.subr.mxu0 0.0
    %1371 = vmatpush2.msra.mxu0 0.0
    %1372 = vmatprep.subr.mxu0 0.0
    %1373 = vmatpush2.msra.mxu0 0.0
    %1374 = vmatprep.subr.mxu0 %v1286
    %1375 = vmatpush2.msra.mxu0 %v1285
    %1376 = vmatprep.subr.mxu0 %v1282
    %1377 = vmatpush2.msra.mxu0 %v1281
    %1378 = vmatprep.mubr.f32.mxu0 %v1312
    %1379 = vmatmul.mubr.f32.gmra.mxu0 %v1215
    %v1380 = vpop.f32.mrf.mxu0
    %v1381 = vadd.f32 %v1294, %v1380
    %v1382 = vpop.f32.mrf.mxu0
    %v1383 = vadd.f32 %v1298, %v1382
    %1384 = vdwg.mxu0
    %1385 = vmatprep.subr.mxu0 %v1280
    %1386 = vmatpush1.msra.mxu0 %v1279
    %1387 = vmatprep.subr.mxu0 %v1276
    %1388 = vmatpush1.msra.mxu0 %v1275
    %1389 = vmatprep.subr.mxu0 %v1272
    %1390 = vmatpush1.msra.mxu0 %v1271
    %1391 = vmatprep.subr.mxu0 %v1268
    %1392 = vmatpush1.msra.mxu0 %v1267
    %1393 = vmatprep.subr.mxu0 %v1264
    %1394 = vmatpush1.msra.mxu0 %v1263
    %1395 = vmatprep.subr.mxu0 %v1260
    %1396 = vmatpush1.msra.mxu0 %v1259
    %1397 = vmatprep.subr.mxu0 %v1256
    %1398 = vmatpush1.msra.mxu0 %v1255
    %1399 = vmatprep.subr.mxu0 %v1252
    %1400 = vmatpush1.msra.mxu0 %v1251
    %1401 = vmatprep.subr.mxu0 %v1248
    %1402 = vmatpush1.msra.mxu0 %v1247
    %1403 = vmatprep.subr.mxu0 %v1244
    %1404 = vmatpush1.msra.mxu0 %v1243
    %1405 = vmatprep.subr.mxu0 %v1240
    %1406 = vmatpush1.msra.mxu0 %v1239
    %1407 = vmatprep.subr.mxu0 %v1236
    %1408 = vmatpush1.msra.mxu0 %v1235
    %1409 = vmatprep.subr.mxu0 %v1232
    %1410 = vmatpush1.msra.mxu0 %v1231
    %1411 = vmatprep.subr.mxu0 %v1228
    %1412 = vmatpush1.msra.mxu0 %v1227
    %1413 = vmatprep.subr.mxu0 %v1224
    %1414 = vmatpush1.msra.mxu0 %v1223
    %1415 = vmatprep.subr.mxu0 %v1220
    %1416 = vmatpush1.msra.mxu0 %v1219
    %1417 = vmatprep.subr.mxu0 0.0
    %1418 = vmatpush2.msra.mxu0 0.0
    %1419 = vmatprep.subr.mxu0 0.0
    %1420 = vmatpush2.msra.mxu0 0.0
    %1421 = vmatprep.subr.mxu0 0.0
    %1422 = vmatpush2.msra.mxu0 0.0
    %1423 = vmatprep.subr.mxu0 0.0
    %1424 = vmatpush2.msra.mxu0 0.0
    %1425 = vmatprep.subr.mxu0 0.0
    %1426 = vmatpush2.msra.mxu0 0.0
    %1427 = vmatprep.subr.mxu0 0.0
    %1428 = vmatpush2.msra.mxu0 0.0
    %1429 = vmatprep.subr.mxu0 0.0
    %1430 = vmatpush2.msra.mxu0 0.0
    %1431 = vmatprep.subr.mxu0 0.0
    %1432 = vmatpush2.msra.mxu0 0.0
    %1433 = vmatprep.subr.mxu0 0.0
    %1434 = vmatpush2.msra.mxu0 0.0
    %1435 = vmatprep.subr.mxu0 0.0
    %1436 = vmatpush2.msra.mxu0 0.0
    %1437 = vmatprep.subr.mxu0 0.0
    %1438 = vmatpush2.msra.mxu0 0.0
    %1439 = vmatprep.subr.mxu0 0.0
    %1440 = vmatpush2.msra.mxu0 0.0
    %1441 = vmatprep.subr.mxu0 0.0
    %1442 = vmatpush2.msra.mxu0 0.0
    %1443 = vmatprep.subr.mxu0 0.0
    %1444 = vmatpush2.msra.mxu0 0.0
    %1445 = vmatprep.subr.mxu0 %v1288
    %1446 = vmatpush2.msra.mxu0 %v1287
    %1447 = vmatprep.subr.mxu0 %v1284
    %1448 = vmatpush2.msra.mxu0 %v1283
    %1449 = vmatprep.mubr.f32.mxu0 %v1312
    %1450 = vmatmul.mubr.f32.gmra.mxu0 %v1215
    %v1451 = vpop.f32.mrf.mxu0
    %v1452 = vadd.f32 %v1302, %v1451
    %v1453 = vpop.f32.mrf.mxu0
    %v1454 = vadd.f32 %v1306, %v1453
    %1455 = vdwg.mxu0
    %1456 = vst [vmem:[#allocation3] sm:$0xff] %v1381
    %1457 = vst [vmem:[#allocation3 + $0x8] sm:$0xff] %v1383
    %1458 = vst [vmem:[#allocation3 + $0x10] sm:$0xff] %v1452
    %1459 = vst [vmem:[#allocation3 + $0x18] sm:$0xff] %v1454
    %v1460 = vld [vmem:[#allocation2 + $0x40] sm:$0xff]
    %v1461 = vld [vmem:[#allocation2 + $0x48] sm:$0xff]
    %v1462 = vld [vmem:[#allocation2 + $0x50] sm:$0xff]
    %v1463 = vld [vmem:[#allocation2 + $0x58] sm:$0xff]
    %v1464 = vld [vmem:[#allocation2 + $0x60] sm:$0xff]
    %v1465 = vld [vmem:[#allocation2 + $0x68] sm:$0xff]
    %v1466 = vld [vmem:[#allocation2 + $0x70] sm:$0xff]
    %v1467 = vld [vmem:[#allocation2 + $0x78] sm:$0xff]
    %v1468 = vld [vmem:[#allocation7] sm:$0xff]
    %v1469 = vld [vmem:[#allocation7 + $0x8] sm:$0xff]
    %v1470 = vld [vmem:[#allocation7 + $0x10] sm:$0xff]
    %v1471 = vld [vmem:[#allocation7 + $0x18] sm:$0xff]
    %v1472 = vld [vmem:[#allocation7 + $0x20] sm:$0xff]
    %v1473 = vld [vmem:[#allocation7 + $0x28] sm:$0xff]
    %v1474 = vld [vmem:[#allocation7 + $0x30] sm:$0xff]
    %v1475 = vld [vmem:[#allocation7 + $0x38] sm:$0xff]
    %v1476 = vld [vmem:[#allocation7 + $0x40] sm:$0xff]
    %v1477 = vld [vmem:[#allocation7 + $0x48] sm:$0xff]
    %v1478 = vld [vmem:[#allocation7 + $0x50] sm:$0xff]
    %v1479 = vld [vmem:[#allocation7 + $0x58] sm:$0xff]
    %v1480 = vld [vmem:[#allocation7 + $0x60] sm:$0xff]
    %v1481 = vld [vmem:[#allocation7 + $0x68] sm:$0xff]
    %v1482 = vld [vmem:[#allocation7 + $0x70] sm:$0xff]
    %v1483 = vld [vmem:[#allocation7 + $0x78] sm:$0xff]
    %v1484 = vld [vmem:[#allocation7 + $0x80] sm:$0xff]
    %v1485 = vld [vmem:[#allocation7 + $0x88] sm:$0xff]
    %v1486 = vld [vmem:[#allocation7 + $0x90] sm:$0xff]
    %v1487 = vld [vmem:[#allocation7 + $0x98] sm:$0xff]
    %v1488 = vld [vmem:[#allocation7 + $0xa0] sm:$0xff]
    %v1489 = vld [vmem:[#allocation7 + $0xa8] sm:$0xff]
    %v1490 = vld [vmem:[#allocation7 + $0xb0] sm:$0xff]
    %v1491 = vld [vmem:[#allocation7 + $0xb8] sm:$0xff]
    %v1492 = vld [vmem:[#allocation7 + $0xc0] sm:$0xff]
    %v1493 = vld [vmem:[#allocation7 + $0xc8] sm:$0xff]
    %v1494 = vld [vmem:[#allocation7 + $0xd0] sm:$0xff]
    %v1495 = vld [vmem:[#allocation7 + $0xd8] sm:$0xff]
    %v1496 = vld [vmem:[#allocation7 + $0xe0] sm:$0xff]
    %v1497 = vld [vmem:[#allocation7 + $0xe8] sm:$0xff]
    %v1498 = vld [vmem:[#allocation7 + $0xf0] sm:$0xff]
    %v1499 = vld [vmem:[#allocation7 + $0xf8] sm:$0xff]
    %v1500 = vld [vmem:[#allocation7 + $0x100] sm:$0xff]
    %v1501 = vld [vmem:[#allocation7 + $0x108] sm:$0xff]
    %v1502 = vld [vmem:[#allocation7 + $0x110] sm:$0xff]
    %v1503 = vld [vmem:[#allocation7 + $0x118] sm:$0xff]
    %v1504 = vld [vmem:[#allocation7 + $0x120] sm:$0xff]
    %v1505 = vld [vmem:[#allocation7 + $0x128] sm:$0xff]
    %v1506 = vld [vmem:[#allocation7 + $0x130] sm:$0xff]
    %v1507 = vld [vmem:[#allocation7 + $0x138] sm:$0xff]
    %v1508 = vld [vmem:[#allocation7 + $0x140] sm:$0xff]
    %v1509 = vld [vmem:[#allocation7 + $0x148] sm:$0xff]
    %v1510 = vld [vmem:[#allocation7 + $0x150] sm:$0xff]
    %v1511 = vld [vmem:[#allocation7 + $0x158] sm:$0xff]
    %v1512 = vld [vmem:[#allocation7 + $0x160] sm:$0xff]
    %v1513 = vld [vmem:[#allocation7 + $0x168] sm:$0xff]
    %v1514 = vld [vmem:[#allocation7 + $0x170] sm:$0xff]
    %v1515 = vld [vmem:[#allocation7 + $0x178] sm:$0xff]
    %v1516 = vld [vmem:[#allocation7 + $0x180] sm:$0xff]
    %v1517 = vld [vmem:[#allocation7 + $0x188] sm:$0xff]
    %v1518 = vld [vmem:[#allocation7 + $0x190] sm:$0xff]
    %v1519 = vld [vmem:[#allocation7 + $0x198] sm:$0xff]
    %v1520 = vld [vmem:[#allocation7 + $0x1a0] sm:$0xff]
    %v1521 = vld [vmem:[#allocation7 + $0x1a8] sm:$0xff]
    %v1522 = vld [vmem:[#allocation7 + $0x1b0] sm:$0xff]
    %v1523 = vld [vmem:[#allocation7 + $0x1b8] sm:$0xff]
    %v1524 = vld [vmem:[#allocation7 + $0x1c0] sm:$0xff]
    %v1525 = vld [vmem:[#allocation7 + $0x1c8] sm:$0xff]
    %v1526 = vld [vmem:[#allocation7 + $0x1d0] sm:$0xff]
    %v1527 = vld [vmem:[#allocation7 + $0x1d8] sm:$0xff]
    %v1528 = vld [vmem:[#allocation7 + $0x1e0] sm:$0xff]
    %v1529 = vld [vmem:[#allocation7 + $0x1e8] sm:$0xff]
    %v1530 = vld [vmem:[#allocation7 + $0x1f0] sm:$0xff]
    %v1531 = vld [vmem:[#allocation7 + $0x1f8] sm:$0xff]
    %v1532 = vld [vmem:[#allocation7 + $0x200] sm:$0xff]
    %v1533 = vld [vmem:[#allocation7 + $0x208] sm:$0xff]
    %v1534 = vld [vmem:[#allocation7 + $0x210] sm:$0xff]
    %v1535 = vld [vmem:[#allocation7 + $0x218] sm:$0xff]
    %v1536 = vld [vmem:[#allocation7 + $0x220] sm:$0xff]
    %v1537 = vld [vmem:[#allocation7 + $0x228] sm:$0xff]
    %v1538 = vld [vmem:[#allocation7 + $0x230] sm:$0xff]
    %v1539 = vld [vmem:[#allocation7 + $0x238] sm:$0xff]
    %v1540 = vld [vmem:[#allocation7 + $0x240] sm:$0xff]
    %v1541 = vld [vmem:[#allocation7 + $0x248] sm:$0xff]
    %v1542 = vld [vmem:[#allocation7 + $0x250] sm:$0xff]
    %v1543 = vld [vmem:[#allocation7 + $0x258] sm:$0xff]
    %v1544 = vld [vmem:[#allocation7 + $0x260] sm:$0xff]
    %v1545 = vld [vmem:[#allocation7 + $0x268] sm:$0xff]
    %v1546 = vld [vmem:[#allocation7 + $0x270] sm:$0xff]
    %v1547 = vld [vmem:[#allocation7 + $0x278] sm:$0xff]
    %v1548 = vld [vmem:[#allocation7 + $0x280] sm:$0xff]
    %v1549 = vld [vmem:[#allocation7 + $0x288] sm:$0xff]
    %v1550 = vld [vmem:[#allocation7 + $0x290] sm:$0xff]
    %v1551 = vld [vmem:[#allocation7 + $0x298] sm:$0xff]
    %v1552 = vld [vmem:[#allocation7 + $0x2a0] sm:$0xff]
    %v1553 = vld [vmem:[#allocation7 + $0x2a8] sm:$0xff]
    %v1554 = vld [vmem:[#allocation7 + $0x2b0] sm:$0xff]
    %v1555 = vld [vmem:[#allocation7 + $0x2b8] sm:$0xff]
    %v1556 = vld [vmem:[#allocation7 + $0x2c0] sm:$0xff]
    %v1557 = vld [vmem:[#allocation7 + $0x2c8] sm:$0xff]
    %v1558 = vld [vmem:[#allocation7 + $0x2d0] sm:$0xff]
    %v1559 = vld [vmem:[#allocation7 + $0x2d8] sm:$0xff]
    %v1560 = vld [vmem:[#allocation7 + $0x2e0] sm:$0xff]
    %v1561 = vld [vmem:[#allocation7 + $0x2e8] sm:$0xff]
    %v1562 = vld [vmem:[#allocation7 + $0x2f0] sm:$0xff]
    %v1563 = vld [vmem:[#allocation7 + $0x2f8] sm:$0xff]
    %v1564 = vld [vmem:[#allocation7 + $0x300] sm:$0xff]
    %v1565 = vld [vmem:[#allocation7 + $0x308] sm:$0xff]
    %v1566 = vld [vmem:[#allocation7 + $0x310] sm:$0xff]
    %v1567 = vld [vmem:[#allocation7 + $0x318] sm:$0xff]
    %v1568 = vld [vmem:[#allocation7 + $0x320] sm:$0xff]
    %v1569 = vld [vmem:[#allocation7 + $0x328] sm:$0xff]
    %v1570 = vld [vmem:[#allocation7 + $0x330] sm:$0xff]
    %v1571 = vld [vmem:[#allocation7 + $0x338] sm:$0xff]
    %v1572 = vld [vmem:[#allocation7 + $0x340] sm:$0xff]
    %v1573 = vld [vmem:[#allocation7 + $0x348] sm:$0xff]
    %v1574 = vld [vmem:[#allocation7 + $0x350] sm:$0xff]
    %v1575 = vld [vmem:[#allocation7 + $0x358] sm:$0xff]
    %v1576 = vld [vmem:[#allocation7 + $0x360] sm:$0xff]
    %v1577 = vld [vmem:[#allocation7 + $0x368] sm:$0xff]
    %v1578 = vld [vmem:[#allocation7 + $0x370] sm:$0xff]
    %v1579 = vld [vmem:[#allocation7 + $0x378] sm:$0xff]
    %v1580 = vld [vmem:[#allocation7 + $0x380] sm:$0xff]
    %v1581 = vld [vmem:[#allocation7 + $0x388] sm:$0xff]
    %v1582 = vld [vmem:[#allocation7 + $0x390] sm:$0xff]
    %v1583 = vld [vmem:[#allocation7 + $0x398] sm:$0xff]
    %v1584 = vld [vmem:[#allocation7 + $0x3a0] sm:$0xff]
    %v1585 = vld [vmem:[#allocation7 + $0x3a8] sm:$0xff]
    %v1586 = vld [vmem:[#allocation7 + $0x3b0] sm:$0xff]
    %v1587 = vld [vmem:[#allocation7 + $0x3b8] sm:$0xff]
    %v1588 = vld [vmem:[#allocation7 + $0x3c0] sm:$0xff]
    %v1589 = vld [vmem:[#allocation7 + $0x3c8] sm:$0xff]
    %v1590 = vld [vmem:[#allocation7 + $0x3d0] sm:$0xff]
    %v1591 = vld [vmem:[#allocation7 + $0x3d8] sm:$0xff]
    %v1592 = vld [vmem:[#allocation7 + $0x3e0] sm:$0xff]
    %v1593 = vld [vmem:[#allocation7 + $0x3e8] sm:$0xff]
    %v1594 = vld [vmem:[#allocation7 + $0x3f0] sm:$0xff]
    %v1595 = vld [vmem:[#allocation7 + $0x3f8] sm:$0xff]
    %v1596 = vld [vmem:[#allocation7 + $0x400] sm:$0xff]
    %v1597 = vld [vmem:[#allocation7 + $0x408] sm:$0xff]
    %v1598 = vld [vmem:[#allocation7 + $0x410] sm:$0xff]
    %v1599 = vld [vmem:[#allocation7 + $0x418] sm:$0xff]
    %v1600 = vld [vmem:[#allocation7 + $0x420] sm:$0xff]
    %v1601 = vld [vmem:[#allocation7 + $0x428] sm:$0xff]
    %v1602 = vld [vmem:[#allocation7 + $0x430] sm:$0xff]
    %v1603 = vld [vmem:[#allocation7 + $0x438] sm:$0xff]
    %v1604 = vld [vmem:[#allocation7 + $0x440] sm:$0xff]
    %v1605 = vld [vmem:[#allocation7 + $0x448] sm:$0xff]
    %v1606 = vld [vmem:[#allocation7 + $0x450] sm:$0xff]
    %v1607 = vld [vmem:[#allocation7 + $0x458] sm:$0xff]
    %v1608 = vld [vmem:[#allocation7 + $0x460] sm:$0xff]
    %v1609 = vld [vmem:[#allocation7 + $0x468] sm:$0xff]
    %v1610 = vld [vmem:[#allocation7 + $0x470] sm:$0xff]
    %v1611 = vld [vmem:[#allocation7 + $0x478] sm:$0xff]
    %1612 = vmatprep.subr.mxu0 %v1589
    %1613 = vmatpush1.msra.mxu0 %v1588
    %1614 = vmatprep.subr.mxu0 %v1581
    %1615 = vmatpush1.msra.mxu0 %v1580
    %1616 = vmatprep.subr.mxu0 %v1573
    %1617 = vmatpush1.msra.mxu0 %v1572
    %1618 = vmatprep.subr.mxu0 %v1565
    %1619 = vmatpush1.msra.mxu0 %v1564
    %1620 = vmatprep.subr.mxu0 %v1557
    %1621 = vmatpush1.msra.mxu0 %v1556
    %1622 = vmatprep.subr.mxu0 %v1549
    %1623 = vmatpush1.msra.mxu0 %v1548
    %1624 = vmatprep.subr.mxu0 %v1541
    %1625 = vmatpush1.msra.mxu0 %v1540
    %1626 = vmatprep.subr.mxu0 %v1533
    %1627 = vmatpush1.msra.mxu0 %v1532
    %1628 = vmatprep.subr.mxu0 %v1525
    %1629 = vmatpush1.msra.mxu0 %v1524
    %1630 = vmatprep.subr.mxu0 %v1517
    %1631 = vmatpush1.msra.mxu0 %v1516
    %1632 = vmatprep.subr.mxu0 %v1509
    %1633 = vmatpush1.msra.mxu0 %v1508
    %1634 = vmatprep.subr.mxu0 %v1501
    %1635 = vmatpush1.msra.mxu0 %v1500
    %1636 = vmatprep.subr.mxu0 %v1493
    %1637 = vmatpush1.msra.mxu0 %v1492
    %1638 = vmatprep.subr.mxu0 %v1485
    %1639 = vmatpush1.msra.mxu0 %v1484
    %1640 = vmatprep.subr.mxu0 %v1477
    %1641 = vmatpush1.msra.mxu0 %v1476
    %1642 = vmatprep.subr.mxu0 %v1469
    %1643 = vmatpush1.msra.mxu0 %v1468
    %1644 = vmatprep.subr.mxu0 0.0
    %1645 = vmatpush2.msra.mxu0 0.0
    %1646 = vmatprep.subr.mxu0 0.0
    %1647 = vmatpush2.msra.mxu0 0.0
    %1648 = vmatprep.subr.mxu0 0.0
    %1649 = vmatpush2.msra.mxu0 0.0
    %1650 = vmatprep.subr.mxu0 0.0
    %1651 = vmatpush2.msra.mxu0 0.0
    %1652 = vmatprep.subr.mxu0 0.0
    %1653 = vmatpush2.msra.mxu0 0.0
    %1654 = vmatprep.subr.mxu0 0.0
    %1655 = vmatpush2.msra.mxu0 0.0
    %1656 = vmatprep.subr.mxu0 0.0
    %1657 = vmatpush2.msra.mxu0 0.0
    %1658 = vmatprep.subr.mxu0 0.0
    %1659 = vmatpush2.msra.mxu0 0.0
    %1660 = vmatprep.subr.mxu0 0.0
    %1661 = vmatpush2.msra.mxu0 0.0
    %1662 = vmatprep.subr.mxu0 0.0
    %1663 = vmatpush2.msra.mxu0 0.0
    %1664 = vmatprep.subr.mxu0 0.0
    %1665 = vmatpush2.msra.mxu0 0.0
    %1666 = vmatprep.subr.mxu0 0.0
    %1667 = vmatpush2.msra.mxu0 0.0
    %1668 = vmatprep.subr.mxu0 0.0
    %1669 = vmatpush2.msra.mxu0 0.0
    %1670 = vmatprep.subr.mxu0 0.0
    %1671 = vmatpush2.msra.mxu0 0.0
    %1672 = vmatprep.subr.mxu0 %v1605
    %1673 = vmatpush2.msra.mxu0 %v1604
    %1674 = vmatprep.subr.mxu0 %v1597
    %1675 = vmatpush2.msra.mxu0 %v1596
    %1676 = vmatprep.mubr.f32.mxu0 %v1312
    %1677 = vmatmul.mubr.f32.gmra.mxu0 %v1215
    %v1678 = vpop.f32.mrf.mxu0
    %v1679 = vadd.f32 0.0, %v1678
    %v1680 = vpop.f32.mrf.mxu0
    %v1681 = vadd.f32 0.0, %v1680
    %1682 = vdwg.mxu0
    %1683 = vmatprep.subr.mxu0 %v1591
    %1684 = vmatpush1.msra.mxu0 %v1590
    %1685 = vmatprep.subr.mxu0 %v1583
    %1686 = vmatpush1.msra.mxu0 %v1582
    %1687 = vmatprep.subr.mxu0 %v1575
    %1688 = vmatpush1.msra.mxu0 %v1574
    %1689 = vmatprep.subr.mxu0 %v1567
    %1690 = vmatpush1.msra.mxu0 %v1566
    %1691 = vmatprep.subr.mxu0 %v1559
    %1692 = vmatpush1.msra.mxu0 %v1558
    %1693 = vmatprep.subr.mxu0 %v1551
    %1694 = vmatpush1.msra.mxu0 %v1550
    %1695 = vmatprep.subr.mxu0 %v1543
    %1696 = vmatpush1.msra.mxu0 %v1542
    %1697 = vmatprep.subr.mxu0 %v1535
    %1698 = vmatpush1.msra.mxu0 %v1534
    %1699 = vmatprep.subr.mxu0 %v1527
    %1700 = vmatpush1.msra.mxu0 %v1526
    %1701 = vmatprep.subr.mxu0 %v1519
    %1702 = vmatpush1.msra.mxu0 %v1518
    %1703 = vmatprep.subr.mxu0 %v1511
    %1704 = vmatpush1.msra.mxu0 %v1510
    %1705 = vmatprep.subr.mxu0 %v1503
    %1706 = vmatpush1.msra.mxu0 %v1502
    %1707 = vmatprep.subr.mxu0 %v1495
    %1708 = vmatpush1.msra.mxu0 %v1494
    %1709 = vmatprep.subr.mxu0 %v1487
    %1710 = vmatpush1.msra.mxu0 %v1486
    %1711 = vmatprep.subr.mxu0 %v1479
    %1712 = vmatpush1.msra.mxu0 %v1478
    %1713 = vmatprep.subr.mxu0 %v1471
    %1714 = vmatpush1.msra.mxu0 %v1470
    %1715 = vmatprep.subr.mxu0 0.0
    %1716 = vmatpush2.msra.mxu0 0.0
    %1717 = vmatprep.subr.mxu0 0.0
    %1718 = vmatpush2.msra.mxu0 0.0
    %1719 = vmatprep.subr.mxu0 0.0
    %1720 = vmatpush2.msra.mxu0 0.0
    %1721 = vmatprep.subr.mxu0 0.0
    %1722 = vmatpush2.msra.mxu0 0.0
    %1723 = vmatprep.subr.mxu0 0.0
    %1724 = vmatpush2.msra.mxu0 0.0
    %1725 = vmatprep.subr.mxu0 0.0
    %1726 = vmatpush2.msra.mxu0 0.0
    %1727 = vmatprep.subr.mxu0 0.0
    %1728 = vmatpush2.msra.mxu0 0.0
    %1729 = vmatprep.subr.mxu0 0.0
    %1730 = vmatpush2.msra.mxu0 0.0
    %1731 = vmatprep.subr.mxu0 0.0
    %1732 = vmatpush2.msra.mxu0 0.0
    %1733 = vmatprep.subr.mxu0 0.0
    %1734 = vmatpush2.msra.mxu0 0.0
    %1735 = vmatprep.subr.mxu0 0.0
    %1736 = vmatpush2.msra.mxu0 0.0
    %1737 = vmatprep.subr.mxu0 0.0
    %1738 = vmatpush2.msra.mxu0 0.0
    %1739 = vmatprep.subr.mxu0 0.0
    %1740 = vmatpush2.msra.mxu0 0.0
    %1741 = vmatprep.subr.mxu0 0.0
    %1742 = vmatpush2.msra.mxu0 0.0
    %1743 = vmatprep.subr.mxu0 %v1607
    %1744 = vmatpush2.msra.mxu0 %v1606
    %1745 = vmatprep.subr.mxu0 %v1599
    %1746 = vmatpush2.msra.mxu0 %v1598
    %1747 = vmatprep.mubr.f32.mxu0 %v1312
    %1748 = vmatmul.mubr.f32.gmra.mxu0 %v1215
    %v1749 = vpop.f32.mrf.mxu0
    %v1750 = vadd.f32 0.0, %v1749
    %v1751 = vpop.f32.mrf.mxu0
    %v1752 = vadd.f32 0.0, %v1751
    %1753 = vdwg.mxu0
    %1754 = vmatprep.subr.mxu0 %v1593
    %1755 = vmatpush1.msra.mxu0 %v1592
    %1756 = vmatprep.subr.mxu0 %v1585
    %1757 = vmatpush1.msra.mxu0 %v1584
    %1758 = vmatprep.subr.mxu0 %v1577
    %1759 = vmatpush1.msra.mxu0 %v1576
    %1760 = vmatprep.subr.mxu0 %v1569
    %1761 = vmatpush1.msra.mxu0 %v1568
    %1762 = vmatprep.subr.mxu0 %v1561
    %1763 = vmatpush1.msra.mxu0 %v1560
    %1764 = vmatprep.subr.mxu0 %v1553
    %1765 = vmatpush1.msra.mxu0 %v1552
    %1766 = vmatprep.subr.mxu0 %v1545
    %1767 = vmatpush1.msra.mxu0 %v1544
    %1768 = vmatprep.subr.mxu0 %v1537
    %1769 = vmatpush1.msra.mxu0 %v1536
    %1770 = vmatprep.subr.mxu0 %v1529
    %1771 = vmatpush1.msra.mxu0 %v1528
    %1772 = vmatprep.subr.mxu0 %v1521
    %1773 = vmatpush1.msra.mxu0 %v1520
    %1774 = vmatprep.subr.mxu0 %v1513
    %1775 = vmatpush1.msra.mxu0 %v1512
    %1776 = vmatprep.subr.mxu0 %v1505
    %1777 = vmatpush1.msra.mxu0 %v1504
    %1778 = vmatprep.subr.mxu0 %v1497
    %1779 = vmatpush1.msra.mxu0 %v1496
    %1780 = vmatprep.subr.mxu0 %v1489
    %1781 = vmatpush1.msra.mxu0 %v1488
    %1782 = vmatprep.subr.mxu0 %v1481
    %1783 = vmatpush1.msra.mxu0 %v1480
    %1784 = vmatprep.subr.mxu0 %v1473
    %1785 = vmatpush1.msra.mxu0 %v1472
    %1786 = vmatprep.subr.mxu0 0.0
    %1787 = vmatpush2.msra.mxu0 0.0
    %1788 = vmatprep.subr.mxu0 0.0
    %1789 = vmatpush2.msra.mxu0 0.0
    %1790 = vmatprep.subr.mxu0 0.0
    %1791 = vmatpush2.msra.mxu0 0.0
    %1792 = vmatprep.subr.mxu0 0.0
    %1793 = vmatpush2.msra.mxu0 0.0
    %1794 = vmatprep.subr.mxu0 0.0
    %1795 = vmatpush2.msra.mxu0 0.0
    %1796 = vmatprep.subr.mxu0 0.0
    %1797 = vmatpush2.msra.mxu0 0.0
    %1798 = vmatprep.subr.mxu0 0.0
    %1799 = vmatpush2.msra.mxu0 0.0
    %1800 = vmatprep.subr.mxu0 0.0
    %1801 = vmatpush2.msra.mxu0 0.0
    %1802 = vmatprep.subr.mxu0 0.0
    %1803 = vmatpush2.msra.mxu0 0.0
    %1804 = vmatprep.subr.mxu0 0.0
    %1805 = vmatpush2.msra.mxu0 0.0
    %1806 = vmatprep.subr.mxu0 0.0
    %1807 = vmatpush2.msra.mxu0 0.0
    %1808 = vmatprep.subr.mxu0 0.0
    %1809 = vmatpush2.msra.mxu0 0.0
    %1810 = vmatprep.subr.mxu0 0.0
    %1811 = vmatpush2.msra.mxu0 0.0
    %1812 = vmatprep.subr.mxu0 0.0
    %1813 = vmatpush2.msra.mxu0 0.0
    %1814 = vmatprep.subr.mxu0 %v1609
    %1815 = vmatpush2.msra.mxu0 %v1608
    %1816 = vmatprep.subr.mxu0 %v1601
    %1817 = vmatpush2.msra.mxu0 %v1600
    %1818 = vmatprep.mubr.f32.mxu0 %v1312
    %1819 = vmatmul.mubr.f32.gmra.mxu0 %v1215
    %v1820 = vpop.f32.mrf.mxu0
    %v1821 = vadd.f32 0.0, %v1820
    %v1822 = vpop.f32.mrf.mxu0
    %v1823 = vadd.f32 0.0, %v1822
    %1824 = vdwg.mxu0
    %1825 = vmatprep.subr.mxu0 %v1595
    %1826 = vmatpush1.msra.mxu0 %v1594
    %1827 = vmatprep.subr.mxu0 %v1587
    %1828 = vmatpush1.msra.mxu0 %v1586
    %1829 = vmatprep.subr.mxu0 %v1579
    %1830 = vmatpush1.msra.mxu0 %v1578
    %1831 = vmatprep.subr.mxu0 %v1571
    %1832 = vmatpush1.msra.mxu0 %v1570
    %1833 = vmatprep.subr.mxu0 %v1563
    %1834 = vmatpush1.msra.mxu0 %v1562
    %1835 = vmatprep.subr.mxu0 %v1555
    %1836 = vmatpush1.msra.mxu0 %v1554
    %1837 = vmatprep.subr.mxu0 %v1547
    %1838 = vmatpush1.msra.mxu0 %v1546
    %1839 = vmatprep.subr.mxu0 %v1539
    %1840 = vmatpush1.msra.mxu0 %v1538
    %1841 = vmatprep.subr.mxu0 %v1531
    %1842 = vmatpush1.msra.mxu0 %v1530
    %1843 = vmatprep.subr.mxu0 %v1523
    %1844 = vmatpush1.msra.mxu0 %v1522
    %1845 = vmatprep.subr.mxu0 %v1515
    %1846 = vmatpush1.msra.mxu0 %v1514
    %1847 = vmatprep.subr.mxu0 %v1507
    %1848 = vmatpush1.msra.mxu0 %v1506
    %1849 = vmatprep.subr.mxu0 %v1499
    %1850 = vmatpush1.msra.mxu0 %v1498
    %1851 = vmatprep.subr.mxu0 %v1491
    %1852 = vmatpush1.msra.mxu0 %v1490
    %1853 = vmatprep.subr.mxu0 %v1483
    %1854 = vmatpush1.msra.mxu0 %v1482
    %1855 = vmatprep.subr.mxu0 %v1475
    %1856 = vmatpush1.msra.mxu0 %v1474
    %1857 = vmatprep.subr.mxu0 0.0
    %1858 = vmatpush2.msra.mxu0 0.0
    %1859 = vmatprep.subr.mxu0 0.0
    %1860 = vmatpush2.msra.mxu0 0.0
    %1861 = vmatprep.subr.mxu0 0.0
    %1862 = vmatpush2.msra.mxu0 0.0
    %1863 = vmatprep.subr.mxu0 0.0
    %1864 = vmatpush2.msra.mxu0 0.0
    %1865 = vmatprep.subr.mxu0 0.0
    %1866 = vmatpush2.msra.mxu0 0.0
    %1867 = vmatprep.subr.mxu0 0.0
    %1868 = vmatpush2.msra.mxu0 0.0
    %1869 = vmatprep.subr.mxu0 0.0
    %1870 = vmatpush2.msra.mxu0 0.0
    %1871 = vmatprep.subr.mxu0 0.0
    %1872 = vmatpush2.msra.mxu0 0.0
    %1873 = vmatprep.subr.mxu0 0.0
    %1874 = vmatpush2.msra.mxu0 0.0
    %1875 = vmatprep.subr.mxu0 0.0
    %1876 = vmatpush2.msra.mxu0 0.0
    %1877 = vmatprep.subr.mxu0 0.0
    %1878 = vmatpush2.msra.mxu0 0.0
    %1879 = vmatprep.subr.mxu0 0.0
    %1880 = vmatpush2.msra.mxu0 0.0
    %1881 = vmatprep.subr.mxu0 0.0
    %1882 = vmatpush2.msra.mxu0 0.0
    %1883 = vmatprep.subr.mxu0 0.0
    %1884 = vmatpush2.msra.mxu0 0.0
    %1885 = vmatprep.subr.mxu0 %v1611
    %1886 = vmatpush2.msra.mxu0 %v1610
    %1887 = vmatprep.subr.mxu0 %v1603
    %1888 = vmatpush2.msra.mxu0 %v1602
    %1889 = vmatprep.mubr.f32.mxu0 %v1312
    %1890 = vmatmul.mubr.f32.gmra.mxu0 %v1215
    %v1891 = vpop.f32.mrf.mxu0
    %v1892 = vadd.f32 0.0, %v1891
    %v1893 = vpop.f32.mrf.mxu0
    %v1894 = vadd.f32 0.0, %v1893
    %1895 = vdwg.mxu0
    %v1896 = vadd.f32 %v1460, %v1679
    %v1897 = vadd.f32 %v1461, %v1681
    %v1898 = vadd.f32 %v1462, %v1750
    %v1899 = vadd.f32 %v1463, %v1752
    %v1900 = vadd.f32 %v1464, %v1821
    %v1901 = vadd.f32 %v1465, %v1823
    %v1902 = vadd.f32 %v1466, %v1892
    %v1903 = vadd.f32 %v1467, %v1894
    %v1904 = vxor.u32 %v1896, 2147483648
    %v1905 = vxor.u32 %v1897, 2147483648
    %v1906 = vxor.u32 %v1898, 2147483648
    %v1907 = vxor.u32 %v1899, 2147483648
    %v1908 = vxor.u32 %v1900, 2147483648
    %v1909 = vxor.u32 %v1901, 2147483648
    %v1910 = vmul.f32 %v1904, 1.442695
    %v1911 = vpow.pop %v1910
    %v1912 = vmul.f32 %v1905, 1.442695
    %v1913 = vpow.pop %v1912
    %v1914 = vmul.f32 %v1906, 1.442695
    %v1915 = vpow.pop %v1914
    %v1916 = vmul.f32 %v1907, 1.442695
    %v1917 = vpow.pop %v1916
    %v1918 = vmul.f32 %v1908, 1.442695
    %v1919 = vpow.pop %v1918
    %v1920 = vmul.f32 %v1909, 1.442695
    %v1921 = vpow.pop %v1920
    %v1922 = vadd.f32 %v1911, 1.0
    %v1923 = vadd.f32 %v1913, 1.0
    %v1924 = vadd.f32 %v1915, 1.0
    %v1925 = vadd.f32 %v1917, 1.0
    %v1926 = vadd.f32 %v1919, 1.0
    %v1927 = vadd.f32 %v1921, 1.0
    %v1928 = vrcp.pop %v1922
    %v1929 = vmul.f32 1.0, %v1928
    %v1930 = vrcp.pop %v1923
    %v1931 = vmul.f32 1.0, %v1930
    %v1932 = vrcp.pop %v1924
    %v1933 = vmul.f32 1.0, %v1932
    %v1934 = vrcp.pop %v1925
    %v1935 = vmul.f32 1.0, %v1934
    %v1936 = vrcp.pop %v1926
    %v1937 = vmul.f32 1.0, %v1936
    %v1938 = vrcp.pop %v1927
    %v1939 = vmul.f32 1.0, %v1938
    %v1940 = vtanh.pop %v1902
    %v1941 = vtanh.pop %v1903
    %v1942 = vmul.f32 %v1933, %v1211
    %v1943 = vmul.f32 %v1935, %v1212
    %v1944 = vmul.f32 %v1929, %v1940
    %v1945 = vmul.f32 %v1931, %v1941
    %v1946 = vadd.f32 %v1942, %v1944
    %v1947 = vadd.f32 %v1943, %v1945
    %v1948 = vtanh.pop %v1946
    %v1949 = vtanh.pop %v1947
    %v1950 = vmul.f32 %v1937, %v1948
    %v1951 = vmul.f32 %v1939, %v1949
    %v1952 = vld [vmem:[#allocation9] sm:$0xff]
    %v1953 = vld [vmem:[#allocation9 + $0x8] sm:$0xff]
    %v1954 = vld [vmem:[#allocation9 + $0x10] sm:$0xff]
    %v1955 = vld [vmem:[#allocation9 + $0x18] sm:$0xff]
    %v1956 = vld [vmem:[#allocation9 + $0x20] sm:$0xff]
    %v1957 = vld [vmem:[#allocation9 + $0x28] sm:$0xff]
    %v1958 = vld [vmem:[#allocation9 + $0x30] sm:$0xff]
    %v1959 = vld [vmem:[#allocation9 + $0x38] sm:$0xff]
    %v1960 = vld [vmem:[#allocation9 + $0x40] sm:$0xff]
    %v1961 = vld [vmem:[#allocation9 + $0x48] sm:$0xff]
    %v1962 = vld [vmem:[#allocation9 + $0x50] sm:$0xff]
    %v1963 = vld [vmem:[#allocation9 + $0x58] sm:$0xff]
    %v1964 = vld [vmem:[#allocation9 + $0x60] sm:$0xff]
    %v1965 = vld [vmem:[#allocation9 + $0x68] sm:$0xff]
    %v1966 = vld [vmem:[#allocation9 + $0x70] sm:$0xff]
    %v1967 = vld [vmem:[#allocation9 + $0x78] sm:$0xff]
    %v1968 = vld [vmem:[#allocation9 + $0x80] sm:$0xff]
    %v1969 = vld [vmem:[#allocation9 + $0x88] sm:$0xff]
    %v1970 = vld [vmem:[#allocation9 + $0x90] sm:$0xff]
    %v1971 = vld [vmem:[#allocation9 + $0x98] sm:$0xff]
    %v1972 = vld [vmem:[#allocation9 + $0xa0] sm:$0xff]
    %v1973 = vld [vmem:[#allocation9 + $0xa8] sm:$0xff]
    %v1974 = vld [vmem:[#allocation9 + $0xb0] sm:$0xff]
    %v1975 = vld [vmem:[#allocation9 + $0xb8] sm:$0xff]
    %v1976 = vld [vmem:[#allocation9 + $0xc0] sm:$0xff]
    %v1977 = vld [vmem:[#allocation9 + $0xc8] sm:$0xff]
    %v1978 = vld [vmem:[#allocation9 + $0xd0] sm:$0xff]
    %v1979 = vld [vmem:[#allocation9 + $0xd8] sm:$0xff]
    %v1980 = vld [vmem:[#allocation9 + $0xe0] sm:$0xff]
    %v1981 = vld [vmem:[#allocation9 + $0xe8] sm:$0xff]
    %v1982 = vld [vmem:[#allocation9 + $0xf0] sm:$0xff]
    %v1983 = vld [vmem:[#allocation9 + $0xf8] sm:$0xff]
    %v1984 = vld [vmem:[#allocation9 + $0x100] sm:$0xff]
    %v1985 = vld [vmem:[#allocation9 + $0x108] sm:$0xff]
    %v1986 = vld [vmem:[#allocation9 + $0x110] sm:$0xff]
    %v1987 = vld [vmem:[#allocation9 + $0x118] sm:$0xff]
    %v1988 = vld [vmem:[#allocation9 + $0x120] sm:$0xff]
    %v1989 = vld [vmem:[#allocation9 + $0x128] sm:$0xff]
    %v1990 = vld [vmem:[#allocation9 + $0x130] sm:$0xff]
    %v1991 = vld [vmem:[#allocation9 + $0x138] sm:$0xff]
    %v1992 = vld [vmem:[#allocation9 + $0x140] sm:$0xff]
    %v1993 = vld [vmem:[#allocation9 + $0x148] sm:$0xff]
    %v1994 = vld [vmem:[#allocation9 + $0x150] sm:$0xff]
    %v1995 = vld [vmem:[#allocation9 + $0x158] sm:$0xff]
    %v1996 = vld [vmem:[#allocation9 + $0x160] sm:$0xff]
    %v1997 = vld [vmem:[#allocation9 + $0x168] sm:$0xff]
    %v1998 = vld [vmem:[#allocation9 + $0x170] sm:$0xff]
    %v1999 = vld [vmem:[#allocation9 + $0x178] sm:$0xff]
    %v2000 = vld [vmem:[#allocation9 + $0x180] sm:$0xff]
    %v2001 = vld [vmem:[#allocation9 + $0x188] sm:$0xff]
    %v2002 = vld [vmem:[#allocation9 + $0x190] sm:$0xff]
    %v2003 = vld [vmem:[#allocation9 + $0x198] sm:$0xff]
    %v2004 = vld [vmem:[#allocation9 + $0x1a0] sm:$0xff]
    %v2005 = vld [vmem:[#allocation9 + $0x1a8] sm:$0xff]
    %v2006 = vld [vmem:[#allocation9 + $0x1b0] sm:$0xff]
    %v2007 = vld [vmem:[#allocation9 + $0x1b8] sm:$0xff]
    %v2008 = vld [vmem:[#allocation9 + $0x1c0] sm:$0xff]
    %v2009 = vld [vmem:[#allocation9 + $0x1c8] sm:$0xff]
    %v2010 = vld [vmem:[#allocation9 + $0x1d0] sm:$0xff]
    %v2011 = vld [vmem:[#allocation9 + $0x1d8] sm:$0xff]
    %v2012 = vld [vmem:[#allocation9 + $0x1e0] sm:$0xff]
    %v2013 = vld [vmem:[#allocation9 + $0x1e8] sm:$0xff]
    %v2014 = vld [vmem:[#allocation9 + $0x1f0] sm:$0xff]
    %v2015 = vld [vmem:[#allocation9 + $0x1f8] sm:$0xff]
    %v2016 = vld [vmem:[#allocation9 + $0x200] sm:$0xff]
    %v2017 = vld [vmem:[#allocation9 + $0x208] sm:$0xff]
    %v2018 = vld [vmem:[#allocation9 + $0x210] sm:$0xff]
    %v2019 = vld [vmem:[#allocation9 + $0x218] sm:$0xff]
    %v2020 = vld [vmem:[#allocation9 + $0x220] sm:$0xff]
    %v2021 = vld [vmem:[#allocation9 + $0x228] sm:$0xff]
    %v2022 = vld [vmem:[#allocation9 + $0x230] sm:$0xff]
    %v2023 = vld [vmem:[#allocation9 + $0x238] sm:$0xff]
    %v2024 = vld [vmem:[%s6] sm:$0xf]
    %v2026 = vlaneseq
    %v2027 = vshrl.u32 %v2026, 7
    %v2028 = vsub.s32 0, %v2027
    %v2029 = vrot.slane %v2024, %v2028
    %v2030 = vlaneseq
    %v2031 = vshrl.u32 %v2030, 7
    %v2032 = vsub.s32 1, %v2031
    %v2033 = vrot.slane %v2024, %v2032
    %v2034 = vlaneseq
    %v2035 = vshrl.u32 %v2034, 7
    %v2036 = vsub.s32 2, %v2035
    %v2037 = vrot.slane %v2024, %v2036
    %v2038 = vlaneseq
    %v2039 = vshrl.u32 %v2038, 7
    %v2040 = vsub.s32 3, %v2039
    %v2041 = vrot.slane %v2024, %v2040
    %v2047 = vsel %vm873, %v1951, 0
    %2049 = vmatprep.subr.mxu0 %v2013
    %2050 = vmatpush1.msra.mxu0 %v2012
    %2051 = vmatprep.subr.mxu0 %v2009
    %2052 = vmatpush1.msra.mxu0 %v2008
    %2053 = vmatprep.subr.mxu0 %v2005
    %2054 = vmatpush1.msra.mxu0 %v2004
    %2055 = vmatprep.subr.mxu0 %v2001
    %2056 = vmatpush1.msra.mxu0 %v2000
    %2057 = vmatprep.subr.mxu0 %v1997
    %2058 = vmatpush1.msra.mxu0 %v1996
    %2059 = vmatprep.subr.mxu0 %v1993
    %2060 = vmatpush1.msra.mxu0 %v1992
    %2061 = vmatprep.subr.mxu0 %v1989
    %2062 = vmatpush1.msra.mxu0 %v1988
    %2063 = vmatprep.subr.mxu0 %v1985
    %2064 = vmatpush1.msra.mxu0 %v1984
    %2065 = vmatprep.subr.mxu0 %v1981
    %2066 = vmatpush1.msra.mxu0 %v1980
    %2067 = vmatprep.subr.mxu0 %v1977
    %2068 = vmatpush1.msra.mxu0 %v1976
    %2069 = vmatprep.subr.mxu0 %v1973
    %2070 = vmatpush1.msra.mxu0 %v1972
    %2071 = vmatprep.subr.mxu0 %v1969
    %2072 = vmatpush1.msra.mxu0 %v1968
    %2073 = vmatprep.subr.mxu0 %v1965
    %2074 = vmatpush1.msra.mxu0 %v1964
    %2075 = vmatprep.subr.mxu0 %v1961
    %2076 = vmatpush1.msra.mxu0 %v1960
    %2077 = vmatprep.subr.mxu0 %v1957
    %2078 = vmatpush1.msra.mxu0 %v1956
    %2079 = vmatprep.subr.mxu0 %v1953
    %2080 = vmatpush1.msra.mxu0 %v1952
    %2081 = vmatprep.subr.mxu0 0.0
    %2082 = vmatpush2.msra.mxu0 0.0
    %2083 = vmatprep.subr.mxu0 0.0
    %2084 = vmatpush2.msra.mxu0 0.0
    %2085 = vmatprep.subr.mxu0 0.0
    %2086 = vmatpush2.msra.mxu0 0.0
    %2087 = vmatprep.subr.mxu0 0.0
    %2088 = vmatpush2.msra.mxu0 0.0
    %2089 = vmatprep.subr.mxu0 0.0
    %2090 = vmatpush2.msra.mxu0 0.0
    %2091 = vmatprep.subr.mxu0 0.0
    %2092 = vmatpush2.msra.mxu0 0.0
    %2093 = vmatprep.subr.mxu0 0.0
    %2094 = vmatpush2.msra.mxu0 0.0
    %2095 = vmatprep.subr.mxu0 0.0
    %2096 = vmatpush2.msra.mxu0 0.0
    %2097 = vmatprep.subr.mxu0 0.0
    %2098 = vmatpush2.msra.mxu0 0.0
    %2099 = vmatprep.subr.mxu0 0.0
    %2100 = vmatpush2.msra.mxu0 0.0
    %2101 = vmatprep.subr.mxu0 0.0
    %2102 = vmatpush2.msra.mxu0 0.0
    %2103 = vmatprep.subr.mxu0 0.0
    %2104 = vmatpush2.msra.mxu0 0.0
    %2105 = vmatprep.subr.mxu0 0.0
    %2106 = vmatpush2.msra.mxu0 0.0
    %2107 = vmatprep.subr.mxu0 0.0
    %2108 = vmatpush2.msra.mxu0 0.0
    %2109 = vmatprep.subr.mxu0 %v2021
    %2110 = vmatpush2.msra.mxu0 %v2020
    %2111 = vmatprep.subr.mxu0 %v2017
    %2112 = vmatpush2.msra.mxu0 %v2016
    %2113 = vmatprep.mubr.f32.mxu0 %v2047
    %2114 = vmatmul.mubr.f32.gmra.mxu0 %v1950
    %v2115 = vpop.f32.mrf.mxu0
    %v2116 = vadd.f32 %v2029, %v2115
    %v2117 = vpop.f32.mrf.mxu0
    %v2118 = vadd.f32 %v2033, %v2117
    %2119 = vdwg.mxu0
    %2120 = vmatprep.subr.mxu0 %v2015
    %2121 = vmatpush1.msra.mxu0 %v2014
    %2122 = vmatprep.subr.mxu0 %v2011
    %2123 = vmatpush1.msra.mxu0 %v2010
    %2124 = vmatprep.subr.mxu0 %v2007
    %2125 = vmatpush1.msra.mxu0 %v2006
    %2126 = vmatprep.subr.mxu0 %v2003
    %2127 = vmatpush1.msra.mxu0 %v2002
    %2128 = vmatprep.subr.mxu0 %v1999
    %2129 = vmatpush1.msra.mxu0 %v1998
    %2130 = vmatprep.subr.mxu0 %v1995
    %2131 = vmatpush1.msra.mxu0 %v1994
    %2132 = vmatprep.subr.mxu0 %v1991
    %2133 = vmatpush1.msra.mxu0 %v1990
    %2134 = vmatprep.subr.mxu0 %v1987
    %2135 = vmatpush1.msra.mxu0 %v1986
    %2136 = vmatprep.subr.mxu0 %v1983
    %2137 = vmatpush1.msra.mxu0 %v1982
    %2138 = vmatprep.subr.mxu0 %v1979
    %2139 = vmatpush1.msra.mxu0 %v1978
    %2140 = vmatprep.subr.mxu0 %v1975
    %2141 = vmatpush1.msra.mxu0 %v1974
    %2142 = vmatprep.subr.mxu0 %v1971
    %2143 = vmatpush1.msra.mxu0 %v1970
    %2144 = vmatprep.subr.mxu0 %v1967
    %2145 = vmatpush1.msra.mxu0 %v1966
    %2146 = vmatprep.subr.mxu0 %v1963
    %2147 = vmatpush1.msra.mxu0 %v1962
    %2148 = vmatprep.subr.mxu0 %v1959
    %2149 = vmatpush1.msra.mxu0 %v1958
    %2150 = vmatprep.subr.mxu0 %v1955
    %2151 = vmatpush1.msra.mxu0 %v1954
    %2152 = vmatprep.subr.mxu0 0.0
    %2153 = vmatpush2.msra.mxu0 0.0
    %2154 = vmatprep.subr.mxu0 0.0
    %2155 = vmatpush2.msra.mxu0 0.0
    %2156 = vmatprep.subr.mxu0 0.0
    %2157 = vmatpush2.msra.mxu0 0.0
    %2158 = vmatprep.subr.mxu0 0.0
    %2159 = vmatpush2.msra.mxu0 0.0
    %2160 = vmatprep.subr.mxu0 0.0
    %2161 = vmatpush2.msra.mxu0 0.0
    %2162 = vmatprep.subr.mxu0 0.0
    %2163 = vmatpush2.msra.mxu0 0.0
    %2164 = vmatprep.subr.mxu0 0.0
    %2165 = vmatpush2.msra.mxu0 0.0
    %2166 = vmatprep.subr.mxu0 0.0
    %2167 = vmatpush2.msra.mxu0 0.0
    %2168 = vmatprep.subr.mxu0 0.0
    %2169 = vmatpush2.msra.mxu0 0.0
    %2170 = vmatprep.subr.mxu0 0.0
    %2171 = vmatpush2.msra.mxu0 0.0
    %2172 = vmatprep.subr.mxu0 0.0
    %2173 = vmatpush2.msra.mxu0 0.0
    %2174 = vmatprep.subr.mxu0 0.0
    %2175 = vmatpush2.msra.mxu0 0.0
    %2176 = vmatprep.subr.mxu0 0.0
    %2177 = vmatpush2.msra.mxu0 0.0
    %2178 = vmatprep.subr.mxu0 0.0
    %2179 = vmatpush2.msra.mxu0 0.0
    %2180 = vmatprep.subr.mxu0 %v2023
    %2181 = vmatpush2.msra.mxu0 %v2022
    %2182 = vmatprep.subr.mxu0 %v2019
    %2183 = vmatpush2.msra.mxu0 %v2018
    %2184 = vmatprep.mubr.f32.mxu0 %v2047
    %2185 = vmatmul.mubr.f32.gmra.mxu0 %v1950
    %v2186 = vpop.f32.mrf.mxu0
    %v2187 = vadd.f32 %v2037, %v2186
    %v2188 = vpop.f32.mrf.mxu0
    %v2189 = vadd.f32 %v2041, %v2188
    %2190 = vdwg.mxu0
    %2191 = vst [vmem:[#allocation3 + $0x20] sm:$0xff] %v2116
    %2192 = vst [vmem:[#allocation3 + $0x28] sm:$0xff] %v2118
    %2193 = vst [vmem:[#allocation3 + $0x30] sm:$0xff] %v2187
    %2194 = vst [vmem:[#allocation3 + $0x38] sm:$0xff] %v2189
    %v2195 = vld [vmem:[#allocation2 + $0x80] sm:$0xff]
    %v2196 = vld [vmem:[#allocation2 + $0x88] sm:$0xff]
    %v2197 = vld [vmem:[#allocation2 + $0x90] sm:$0xff]
    %v2198 = vld [vmem:[#allocation2 + $0x98] sm:$0xff]
    %v2199 = vld [vmem:[#allocation2 + $0xa0] sm:$0xff]
    %v2200 = vld [vmem:[#allocation2 + $0xa8] sm:$0xff]
    %v2201 = vld [vmem:[#allocation2 + $0xb0] sm:$0xff]
    %v2202 = vld [vmem:[#allocation2 + $0xb8] sm:$0xff]
    %v2203 = vld [vmem:[#allocation7] sm:$0xff]
    %v2204 = vld [vmem:[#allocation7 + $0x8] sm:$0xff]
    %v2205 = vld [vmem:[#allocation7 + $0x10] sm:$0xff]
    %v2206 = vld [vmem:[#allocation7 + $0x18] sm:$0xff]
    %v2207 = vld [vmem:[#allocation7 + $0x20] sm:$0xff]
    %v2208 = vld [vmem:[#allocation7 + $0x28] sm:$0xff]
    %v2209 = vld [vmem:[#allocation7 + $0x30] sm:$0xff]
    %v2210 = vld [vmem:[#allocation7 + $0x38] sm:$0xff]
    %v2211 = vld [vmem:[#allocation7 + $0x40] sm:$0xff]
    %v2212 = vld [vmem:[#allocation7 + $0x48] sm:$0xff]
    %v2213 = vld [vmem:[#allocation7 + $0x50] sm:$0xff]
    %v2214 = vld [vmem:[#allocation7 + $0x58] sm:$0xff]
    %v2215 = vld [vmem:[#allocation7 + $0x60] sm:$0xff]
    %v2216 = vld [vmem:[#allocation7 + $0x68] sm:$0xff]
    %v2217 = vld [vmem:[#allocation7 + $0x70] sm:$0xff]
    %v2218 = vld [vmem:[#allocation7 + $0x78] sm:$0xff]
    %v2219 = vld [vmem:[#allocation7 + $0x80] sm:$0xff]
    %v2220 = vld [vmem:[#allocation7 + $0x88] sm:$0xff]
    %v2221 = vld [vmem:[#allocation7 + $0x90] sm:$0xff]
    %v2222 = vld [vmem:[#allocation7 + $0x98] sm:$0xff]
    %v2223 = vld [vmem:[#allocation7 + $0xa0] sm:$0xff]
    %v2224 = vld [vmem:[#allocation7 + $0xa8] sm:$0xff]
    %v2225 = vld [vmem:[#allocation7 + $0xb0] sm:$0xff]
    %v2226 = vld [vmem:[#allocation7 + $0xb8] sm:$0xff]
    %v2227 = vld [vmem:[#allocation7 + $0xc0] sm:$0xff]
    %v2228 = vld [vmem:[#allocation7 + $0xc8] sm:$0xff]
    %v2229 = vld [vmem:[#allocation7 + $0xd0] sm:$0xff]
    %v2230 = vld [vmem:[#allocation7 + $0xd8] sm:$0xff]
    %v2231 = vld [vmem:[#allocation7 + $0xe0] sm:$0xff]
    %v2232 = vld [vmem:[#allocation7 + $0xe8] sm:$0xff]
    %v2233 = vld [vmem:[#allocation7 + $0xf0] sm:$0xff]
    %v2234 = vld [vmem:[#allocation7 + $0xf8] sm:$0xff]
    %v2235 = vld [vmem:[#allocation7 + $0x100] sm:$0xff]
    %v2236 = vld [vmem:[#allocation7 + $0x108] sm:$0xff]
    %v2237 = vld [vmem:[#allocation7 + $0x110] sm:$0xff]
    %v2238 = vld [vmem:[#allocation7 + $0x118] sm:$0xff]
    %v2239 = vld [vmem:[#allocation7 + $0x120] sm:$0xff]
    %v2240 = vld [vmem:[#allocation7 + $0x128] sm:$0xff]
    %v2241 = vld [vmem:[#allocation7 + $0x130] sm:$0xff]
    %v2242 = vld [vmem:[#allocation7 + $0x138] sm:$0xff]
    %v2243 = vld [vmem:[#allocation7 + $0x140] sm:$0xff]
    %v2244 = vld [vmem:[#allocation7 + $0x148] sm:$0xff]
    %v2245 = vld [vmem:[#allocation7 + $0x150] sm:$0xff]
    %v2246 = vld [vmem:[#allocation7 + $0x158] sm:$0xff]
    %v2247 = vld [vmem:[#allocation7 + $0x160] sm:$0xff]
    %v2248 = vld [vmem:[#allocation7 + $0x168] sm:$0xff]
    %v2249 = vld [vmem:[#allocation7 + $0x170] sm:$0xff]
    %v2250 = vld [vmem:[#allocation7 + $0x178] sm:$0xff]
    %v2251 = vld [vmem:[#allocation7 + $0x180] sm:$0xff]
    %v2252 = vld [vmem:[#allocation7 + $0x188] sm:$0xff]
    %v2253 = vld [vmem:[#allocation7 + $0x190] sm:$0xff]
    %v2254 = vld [vmem:[#allocation7 + $0x198] sm:$0xff]
    %v2255 = vld [vmem:[#allocation7 + $0x1a0] sm:$0xff]
    %v2256 = vld [vmem:[#allocation7 + $0x1a8] sm:$0xff]
    %v2257 = vld [vmem:[#allocation7 + $0x1b0] sm:$0xff]
    %v2258 = vld [vmem:[#allocation7 + $0x1b8] sm:$0xff]
    %v2259 = vld [vmem:[#allocation7 + $0x1c0] sm:$0xff]
    %v2260 = vld [vmem:[#allocation7 + $0x1c8] sm:$0xff]
    %v2261 = vld [vmem:[#allocation7 + $0x1d0] sm:$0xff]
    %v2262 = vld [vmem:[#allocation7 + $0x1d8] sm:$0xff]
    %v2263 = vld [vmem:[#allocation7 + $0x1e0] sm:$0xff]
    %v2264 = vld [vmem:[#allocation7 + $0x1e8] sm:$0xff]
    %v2265 = vld [vmem:[#allocation7 + $0x1f0] sm:$0xff]
    %v2266 = vld [vmem:[#allocation7 + $0x1f8] sm:$0xff]
    %v2267 = vld [vmem:[#allocation7 + $0x200] sm:$0xff]
    %v2268 = vld [vmem:[#allocation7 + $0x208] sm:$0xff]
    %v2269 = vld [vmem:[#allocation7 + $0x210] sm:$0xff]
    %v2270 = vld [vmem:[#allocation7 + $0x218] sm:$0xff]
    %v2271 = vld [vmem:[#allocation7 + $0x220] sm:$0xff]
    %v2272 = vld [vmem:[#allocation7 + $0x228] sm:$0xff]
    %v2273 = vld [vmem:[#allocation7 + $0x230] sm:$0xff]
    %v2274 = vld [vmem:[#allocation7 + $0x238] sm:$0xff]
    %v2275 = vld [vmem:[#allocation7 + $0x240] sm:$0xff]
    %v2276 = vld [vmem:[#allocation7 + $0x248] sm:$0xff]
    %v2277 = vld [vmem:[#allocation7 + $0x250] sm:$0xff]
    %v2278 = vld [vmem:[#allocation7 + $0x258] sm:$0xff]
    %v2279 = vld [vmem:[#allocation7 + $0x260] sm:$0xff]
    %v2280 = vld [vmem:[#allocation7 + $0x268] sm:$0xff]
    %v2281 = vld [vmem:[#allocation7 + $0x270] sm:$0xff]
    %v2282 = vld [vmem:[#allocation7 + $0x278] sm:$0xff]
    %v2283 = vld [vmem:[#allocation7 + $0x280] sm:$0xff]
    %v2284 = vld [vmem:[#allocation7 + $0x288] sm:$0xff]
    %v2285 = vld [vmem:[#allocation7 + $0x290] sm:$0xff]
    %v2286 = vld [vmem:[#allocation7 + $0x298] sm:$0xff]
    %v2287 = vld [vmem:[#allocation7 + $0x2a0] sm:$0xff]
    %v2288 = vld [vmem:[#allocation7 + $0x2a8] sm:$0xff]
    %v2289 = vld [vmem:[#allocation7 + $0x2b0] sm:$0xff]
    %v2290 = vld [vmem:[#allocation7 + $0x2b8] sm:$0xff]
    %v2291 = vld [vmem:[#allocation7 + $0x2c0] sm:$0xff]
    %v2292 = vld [vmem:[#allocation7 + $0x2c8] sm:$0xff]
    %v2293 = vld [vmem:[#allocation7 + $0x2d0] sm:$0xff]
    %v2294 = vld [vmem:[#allocation7 + $0x2d8] sm:$0xff]
    %v2295 = vld [vmem:[#allocation7 + $0x2e0] sm:$0xff]
    %v2296 = vld [vmem:[#allocation7 + $0x2e8] sm:$0xff]
    %v2297 = vld [vmem:[#allocation7 + $0x2f0] sm:$0xff]
    %v2298 = vld [vmem:[#allocation7 + $0x2f8] sm:$0xff]
    %v2299 = vld [vmem:[#allocation7 + $0x300] sm:$0xff]
    %v2300 = vld [vmem:[#allocation7 + $0x308] sm:$0xff]
    %v2301 = vld [vmem:[#allocation7 + $0x310] sm:$0xff]
    %v2302 = vld [vmem:[#allocation7 + $0x318] sm:$0xff]
    %v2303 = vld [vmem:[#allocation7 + $0x320] sm:$0xff]
    %v2304 = vld [vmem:[#allocation7 + $0x328] sm:$0xff]
    %v2305 = vld [vmem:[#allocation7 + $0x330] sm:$0xff]
    %v2306 = vld [vmem:[#allocation7 + $0x338] sm:$0xff]
    %v2307 = vld [vmem:[#allocation7 + $0x340] sm:$0xff]
    %v2308 = vld [vmem:[#allocation7 + $0x348] sm:$0xff]
    %v2309 = vld [vmem:[#allocation7 + $0x350] sm:$0xff]
    %v2310 = vld [vmem:[#allocation7 + $0x358] sm:$0xff]
    %v2311 = vld [vmem:[#allocation7 + $0x360] sm:$0xff]
    %v2312 = vld [vmem:[#allocation7 + $0x368] sm:$0xff]
    %v2313 = vld [vmem:[#allocation7 + $0x370] sm:$0xff]
    %v2314 = vld [vmem:[#allocation7 + $0x378] sm:$0xff]
    %v2315 = vld [vmem:[#allocation7 + $0x380] sm:$0xff]
    %v2316 = vld [vmem:[#allocation7 + $0x388] sm:$0xff]
    %v2317 = vld [vmem:[#allocation7 + $0x390] sm:$0xff]
    %v2318 = vld [vmem:[#allocation7 + $0x398] sm:$0xff]
    %v2319 = vld [vmem:[#allocation7 + $0x3a0] sm:$0xff]
    %v2320 = vld [vmem:[#allocation7 + $0x3a8] sm:$0xff]
    %v2321 = vld [vmem:[#allocation7 + $0x3b0] sm:$0xff]
    %v2322 = vld [vmem:[#allocation7 + $0x3b8] sm:$0xff]
    %v2323 = vld [vmem:[#allocation7 + $0x3c0] sm:$0xff]
    %v2324 = vld [vmem:[#allocation7 + $0x3c8] sm:$0xff]
    %v2325 = vld [vmem:[#allocation7 + $0x3d0] sm:$0xff]
    %v2326 = vld [vmem:[#allocation7 + $0x3d8] sm:$0xff]
    %v2327 = vld [vmem:[#allocation7 + $0x3e0] sm:$0xff]
    %v2328 = vld [vmem:[#allocation7 + $0x3e8] sm:$0xff]
    %v2329 = vld [vmem:[#allocation7 + $0x3f0] sm:$0xff]
    %v2330 = vld [vmem:[#allocation7 + $0x3f8] sm:$0xff]
    %v2331 = vld [vmem:[#allocation7 + $0x400] sm:$0xff]
    %v2332 = vld [vmem:[#allocation7 + $0x408] sm:$0xff]
    %v2333 = vld [vmem:[#allocation7 + $0x410] sm:$0xff]
    %v2334 = vld [vmem:[#allocation7 + $0x418] sm:$0xff]
    %v2335 = vld [vmem:[#allocation7 + $0x420] sm:$0xff]
    %v2336 = vld [vmem:[#allocation7 + $0x428] sm:$0xff]
    %v2337 = vld [vmem:[#allocation7 + $0x430] sm:$0xff]
    %v2338 = vld [vmem:[#allocation7 + $0x438] sm:$0xff]
    %v2339 = vld [vmem:[#allocation7 + $0x440] sm:$0xff]
    %v2340 = vld [vmem:[#allocation7 + $0x448] sm:$0xff]
    %v2341 = vld [vmem:[#allocation7 + $0x450] sm:$0xff]
    %v2342 = vld [vmem:[#allocation7 + $0x458] sm:$0xff]
    %v2343 = vld [vmem:[#allocation7 + $0x460] sm:$0xff]
    %v2344 = vld [vmem:[#allocation7 + $0x468] sm:$0xff]
    %v2345 = vld [vmem:[#allocation7 + $0x470] sm:$0xff]
    %v2346 = vld [vmem:[#allocation7 + $0x478] sm:$0xff]
    %2347 = vmatprep.subr.mxu0 %v2324
    %2348 = vmatpush1.msra.mxu0 %v2323
    %2349 = vmatprep.subr.mxu0 %v2316
    %2350 = vmatpush1.msra.mxu0 %v2315
    %2351 = vmatprep.subr.mxu0 %v2308
    %2352 = vmatpush1.msra.mxu0 %v2307
    %2353 = vmatprep.subr.mxu0 %v2300
    %2354 = vmatpush1.msra.mxu0 %v2299
    %2355 = vmatprep.subr.mxu0 %v2292
    %2356 = vmatpush1.msra.mxu0 %v2291
    %2357 = vmatprep.subr.mxu0 %v2284
    %2358 = vmatpush1.msra.mxu0 %v2283
    %2359 = vmatprep.subr.mxu0 %v2276
    %2360 = vmatpush1.msra.mxu0 %v2275
    %2361 = vmatprep.subr.mxu0 %v2268
    %2362 = vmatpush1.msra.mxu0 %v2267
    %2363 = vmatprep.subr.mxu0 %v2260
    %2364 = vmatpush1.msra.mxu0 %v2259
    %2365 = vmatprep.subr.mxu0 %v2252
    %2366 = vmatpush1.msra.mxu0 %v2251
    %2367 = vmatprep.subr.mxu0 %v2244
    %2368 = vmatpush1.msra.mxu0 %v2243
    %2369 = vmatprep.subr.mxu0 %v2236
    %2370 = vmatpush1.msra.mxu0 %v2235
    %2371 = vmatprep.subr.mxu0 %v2228
    %2372 = vmatpush1.msra.mxu0 %v2227
    %2373 = vmatprep.subr.mxu0 %v2220
    %2374 = vmatpush1.msra.mxu0 %v2219
    %2375 = vmatprep.subr.mxu0 %v2212
    %2376 = vmatpush1.msra.mxu0 %v2211
    %2377 = vmatprep.subr.mxu0 %v2204
    %2378 = vmatpush1.msra.mxu0 %v2203
    %2379 = vmatprep.subr.mxu0 0.0
    %2380 = vmatpush2.msra.mxu0 0.0
    %2381 = vmatprep.subr.mxu0 0.0
    %2382 = vmatpush2.msra.mxu0 0.0
    %2383 = vmatprep.subr.mxu0 0.0
    %2384 = vmatpush2.msra.mxu0 0.0
    %2385 = vmatprep.subr.mxu0 0.0
    %2386 = vmatpush2.msra.mxu0 0.0
    %2387 = vmatprep.subr.mxu0 0.0
    %2388 = vmatpush2.msra.mxu0 0.0
    %2389 = vmatprep.subr.mxu0 0.0
    %2390 = vmatpush2.msra.mxu0 0.0
    %2391 = vmatprep.subr.mxu0 0.0
    %2392 = vmatpush2.msra.mxu0 0.0
    %2393 = vmatprep.subr.mxu0 0.0
    %2394 = vmatpush2.msra.mxu0 0.0
    %2395 = vmatprep.subr.mxu0 0.0
    %2396 = vmatpush2.msra.mxu0 0.0
    %2397 = vmatprep.subr.mxu0 0.0
    %2398 = vmatpush2.msra.mxu0 0.0
    %2399 = vmatprep.subr.mxu0 0.0
    %2400 = vmatpush2.msra.mxu0 0.0
    %2401 = vmatprep.subr.mxu0 0.0
    %2402 = vmatpush2.msra.mxu0 0.0
    %2403 = vmatprep.subr.mxu0 0.0
    %2404 = vmatpush2.msra.mxu0 0.0
    %2405 = vmatprep.subr.mxu0 0.0
    %2406 = vmatpush2.msra.mxu0 0.0
    %2407 = vmatprep.subr.mxu0 %v2340
    %2408 = vmatpush2.msra.mxu0 %v2339
    %2409 = vmatprep.subr.mxu0 %v2332
    %2410 = vmatpush2.msra.mxu0 %v2331
    %2411 = vmatprep.mubr.f32.mxu0 %v2047
    %2412 = vmatmul.mubr.f32.gmra.mxu0 %v1950
    %v2413 = vpop.f32.mrf.mxu0
    %v2414 = vadd.f32 0.0, %v2413
    %v2415 = vpop.f32.mrf.mxu0
    %v2416 = vadd.f32 0.0, %v2415
    %2417 = vdwg.mxu0
    %2418 = vmatprep.subr.mxu0 %v2326
    %2419 = vmatpush1.msra.mxu0 %v2325
    %2420 = vmatprep.subr.mxu0 %v2318
    %2421 = vmatpush1.msra.mxu0 %v2317
    %2422 = vmatprep.subr.mxu0 %v2310
    %2423 = vmatpush1.msra.mxu0 %v2309
    %2424 = vmatprep.subr.mxu0 %v2302
    %2425 = vmatpush1.msra.mxu0 %v2301
    %2426 = vmatprep.subr.mxu0 %v2294
    %2427 = vmatpush1.msra.mxu0 %v2293
    %2428 = vmatprep.subr.mxu0 %v2286
    %2429 = vmatpush1.msra.mxu0 %v2285
    %2430 = vmatprep.subr.mxu0 %v2278
    %2431 = vmatpush1.msra.mxu0 %v2277
    %2432 = vmatprep.subr.mxu0 %v2270
    %2433 = vmatpush1.msra.mxu0 %v2269
    %2434 = vmatprep.subr.mxu0 %v2262
    %2435 = vmatpush1.msra.mxu0 %v2261
    %2436 = vmatprep.subr.mxu0 %v2254
    %2437 = vmatpush1.msra.mxu0 %v2253
    %2438 = vmatprep.subr.mxu0 %v2246
    %2439 = vmatpush1.msra.mxu0 %v2245
    %2440 = vmatprep.subr.mxu0 %v2238
    %2441 = vmatpush1.msra.mxu0 %v2237
    %2442 = vmatprep.subr.mxu0 %v2230
    %2443 = vmatpush1.msra.mxu0 %v2229
    %2444 = vmatprep.subr.mxu0 %v2222
    %2445 = vmatpush1.msra.mxu0 %v2221
    %2446 = vmatprep.subr.mxu0 %v2214
    %2447 = vmatpush1.msra.mxu0 %v2213
    %2448 = vmatprep.subr.mxu0 %v2206
    %2449 = vmatpush1.msra.mxu0 %v2205
    %2450 = vmatprep.subr.mxu0 0.0
    %2451 = vmatpush2.msra.mxu0 0.0
    %2452 = vmatprep.subr.mxu0 0.0
    %2453 = vmatpush2.msra.mxu0 0.0
    %2454 = vmatprep.subr.mxu0 0.0
    %2455 = vmatpush2.msra.mxu0 0.0
    %2456 = vmatprep.subr.mxu0 0.0
    %2457 = vmatpush2.msra.mxu0 0.0
    %2458 = vmatprep.subr.mxu0 0.0
    %2459 = vmatpush2.msra.mxu0 0.0
    %2460 = vmatprep.subr.mxu0 0.0
    %2461 = vmatpush2.msra.mxu0 0.0
    %2462 = vmatprep.subr.mxu0 0.0
    %2463 = vmatpush2.msra.mxu0 0.0
    %2464 = vmatprep.subr.mxu0 0.0
    %2465 = vmatpush2.msra.mxu0 0.0
    %2466 = vmatprep.subr.mxu0 0.0
    %2467 = vmatpush2.msra.mxu0 0.0
    %2468 = vmatprep.subr.mxu0 0.0
    %2469 = vmatpush2.msra.mxu0 0.0
    %2470 = vmatprep.subr.mxu0 0.0
    %2471 = vmatpush2.msra.mxu0 0.0
    %2472 = vmatprep.subr.mxu0 0.0
    %2473 = vmatpush2.msra.mxu0 0.0
    %2474 = vmatprep.subr.mxu0 0.0
    %2475 = vmatpush2.msra.mxu0 0.0
    %2476 = vmatprep.subr.mxu0 0.0
    %2477 = vmatpush2.msra.mxu0 0.0
    %2478 = vmatprep.subr.mxu0 %v2342
    %2479 = vmatpush2.msra.mxu0 %v2341
    %2480 = vmatprep.subr.mxu0 %v2334
    %2481 = vmatpush2.msra.mxu0 %v2333
    %2482 = vmatprep.mubr.f32.mxu0 %v2047
    %2483 = vmatmul.mubr.f32.gmra.mxu0 %v1950
    %v2484 = vpop.f32.mrf.mxu0
    %v2485 = vadd.f32 0.0, %v2484
    %v2486 = vpop.f32.mrf.mxu0
    %v2487 = vadd.f32 0.0, %v2486
    %2488 = vdwg.mxu0
    %2489 = vmatprep.subr.mxu0 %v2328
    %2490 = vmatpush1.msra.mxu0 %v2327
    %2491 = vmatprep.subr.mxu0 %v2320
    %2492 = vmatpush1.msra.mxu0 %v2319
    %2493 = vmatprep.subr.mxu0 %v2312
    %2494 = vmatpush1.msra.mxu0 %v2311
    %2495 = vmatprep.subr.mxu0 %v2304
    %2496 = vmatpush1.msra.mxu0 %v2303
    %2497 = vmatprep.subr.mxu0 %v2296
    %2498 = vmatpush1.msra.mxu0 %v2295
    %2499 = vmatprep.subr.mxu0 %v2288
    %2500 = vmatpush1.msra.mxu0 %v2287
    %2501 = vmatprep.subr.mxu0 %v2280
    %2502 = vmatpush1.msra.mxu0 %v2279
    %2503 = vmatprep.subr.mxu0 %v2272
    %2504 = vmatpush1.msra.mxu0 %v2271
    %2505 = vmatprep.subr.mxu0 %v2264
    %2506 = vmatpush1.msra.mxu0 %v2263
    %2507 = vmatprep.subr.mxu0 %v2256
    %2508 = vmatpush1.msra.mxu0 %v2255
    %2509 = vmatprep.subr.mxu0 %v2248
    %2510 = vmatpush1.msra.mxu0 %v2247
    %2511 = vmatprep.subr.mxu0 %v2240
    %2512 = vmatpush1.msra.mxu0 %v2239
    %2513 = vmatprep.subr.mxu0 %v2232
    %2514 = vmatpush1.msra.mxu0 %v2231
    %2515 = vmatprep.subr.mxu0 %v2224
    %2516 = vmatpush1.msra.mxu0 %v2223
    %2517 = vmatprep.subr.mxu0 %v2216
    %2518 = vmatpush1.msra.mxu0 %v2215
    %2519 = vmatprep.subr.mxu0 %v2208
    %2520 = vmatpush1.msra.mxu0 %v2207
    %2521 = vmatprep.subr.mxu0 0.0
    %2522 = vmatpush2.msra.mxu0 0.0
    %2523 = vmatprep.subr.mxu0 0.0
    %2524 = vmatpush2.msra.mxu0 0.0
    %2525 = vmatprep.subr.mxu0 0.0
    %2526 = vmatpush2.msra.mxu0 0.0
    %2527 = vmatprep.subr.mxu0 0.0
    %2528 = vmatpush2.msra.mxu0 0.0
    %2529 = vmatprep.subr.mxu0 0.0
    %2530 = vmatpush2.msra.mxu0 0.0
    %2531 = vmatprep.subr.mxu0 0.0
    %2532 = vmatpush2.msra.mxu0 0.0
    %2533 = vmatprep.subr.mxu0 0.0
    %2534 = vmatpush2.msra.mxu0 0.0
    %2535 = vmatprep.subr.mxu0 0.0
    %2536 = vmatpush2.msra.mxu0 0.0
    %2537 = vmatprep.subr.mxu0 0.0
    %2538 = vmatpush2.msra.mxu0 0.0
    %2539 = vmatprep.subr.mxu0 0.0
    %2540 = vmatpush2.msra.mxu0 0.0
    %2541 = vmatprep.subr.mxu0 0.0
    %2542 = vmatpush2.msra.mxu0 0.0
    %2543 = vmatprep.subr.mxu0 0.0
    %2544 = vmatpush2.msra.mxu0 0.0
    %2545 = vmatprep.subr.mxu0 0.0
    %2546 = vmatpush2.msra.mxu0 0.0
    %2547 = vmatprep.subr.mxu0 0.0
    %2548 = vmatpush2.msra.mxu0 0.0
    %2549 = vmatprep.subr.mxu0 %v2344
    %2550 = vmatpush2.msra.mxu0 %v2343
    %2551 = vmatprep.subr.mxu0 %v2336
    %2552 = vmatpush2.msra.mxu0 %v2335
    %2553 = vmatprep.mubr.f32.mxu0 %v2047
    %2554 = vmatmul.mubr.f32.gmra.mxu0 %v1950
    %v2555 = vpop.f32.mrf.mxu0
    %v2556 = vadd.f32 0.0, %v2555
    %v2557 = vpop.f32.mrf.mxu0
    %v2558 = vadd.f32 0.0, %v2557
    %2559 = vdwg.mxu0
    %2560 = vmatprep.subr.mxu0 %v2330
    %2561 = vmatpush1.msra.mxu0 %v2329
    %2562 = vmatprep.subr.mxu0 %v2322
    %2563 = vmatpush1.msra.mxu0 %v2321
    %2564 = vmatprep.subr.mxu0 %v2314
    %2565 = vmatpush1.msra.mxu0 %v2313
    %2566 = vmatprep.subr.mxu0 %v2306
    %2567 = vmatpush1.msra.mxu0 %v2305
    %2568 = vmatprep.subr.mxu0 %v2298
    %2569 = vmatpush1.msra.mxu0 %v2297
    %2570 = vmatprep.subr.mxu0 %v2290
    %2571 = vmatpush1.msra.mxu0 %v2289
    %2572 = vmatprep.subr.mxu0 %v2282
    %2573 = vmatpush1.msra.mxu0 %v2281
    %2574 = vmatprep.subr.mxu0 %v2274
    %2575 = vmatpush1.msra.mxu0 %v2273
    %2576 = vmatprep.subr.mxu0 %v2266
    %2577 = vmatpush1.msra.mxu0 %v2265
    %2578 = vmatprep.subr.mxu0 %v2258
    %2579 = vmatpush1.msra.mxu0 %v2257
    %2580 = vmatprep.subr.mxu0 %v2250
    %2581 = vmatpush1.msra.mxu0 %v2249
    %2582 = vmatprep.subr.mxu0 %v2242
    %2583 = vmatpush1.msra.mxu0 %v2241
    %2584 = vmatprep.subr.mxu0 %v2234
    %2585 = vmatpush1.msra.mxu0 %v2233
    %2586 = vmatprep.subr.mxu0 %v2226
    %2587 = vmatpush1.msra.mxu0 %v2225
    %2588 = vmatprep.subr.mxu0 %v2218
    %2589 = vmatpush1.msra.mxu0 %v2217
    %2590 = vmatprep.subr.mxu0 %v2210
    %2591 = vmatpush1.msra.mxu0 %v2209
    %2592 = vmatprep.subr.mxu0 0.0
    %2593 = vmatpush2.msra.mxu0 0.0
    %2594 = vmatprep.subr.mxu0 0.0
    %2595 = vmatpush2.msra.mxu0 0.0
    %2596 = vmatprep.subr.mxu0 0.0
    %2597 = vmatpush2.msra.mxu0 0.0
    %2598 = vmatprep.subr.mxu0 0.0
    %2599 = vmatpush2.msra.mxu0 0.0
    %2600 = vmatprep.subr.mxu0 0.0
    %2601 = vmatpush2.msra.mxu0 0.0
    %2602 = vmatprep.subr.mxu0 0.0
    %2603 = vmatpush2.msra.mxu0 0.0
    %2604 = vmatprep.subr.mxu0 0.0
    %2605 = vmatpush2.msra.mxu0 0.0
    %2606 = vmatprep.subr.mxu0 0.0
    %2607 = vmatpush2.msra.mxu0 0.0
    %2608 = vmatprep.subr.mxu0 0.0
    %2609 = vmatpush2.msra.mxu0 0.0
    %2610 = vmatprep.subr.mxu0 0.0
    %2611 = vmatpush2.msra.mxu0 0.0
    %2612 = vmatprep.subr.mxu0 0.0
    %2613 = vmatpush2.msra.mxu0 0.0
    %2614 = vmatprep.subr.mxu0 0.0
    %2615 = vmatpush2.msra.mxu0 0.0
    %2616 = vmatprep.subr.mxu0 0.0
    %2617 = vmatpush2.msra.mxu0 0.0
    %2618 = vmatprep.subr.mxu0 0.0
    %2619 = vmatpush2.msra.mxu0 0.0
    %2620 = vmatprep.subr.mxu0 %v2346
    %2621 = vmatpush2.msra.mxu0 %v2345
    %2622 = vmatprep.subr.mxu0 %v2338
    %2623 = vmatpush2.msra.mxu0 %v2337
    %2624 = vmatprep.mubr.f32.mxu0 %v2047
    %2625 = vmatmul.mubr.f32.gmra.mxu0 %v1950
    %v2626 = vpop.f32.mrf.mxu0
    %v2627 = vadd.f32 0.0, %v2626
    %v2628 = vpop.f32.mrf.mxu0
    %v2629 = vadd.f32 0.0, %v2628
    %2630 = vdwg.mxu0
    %v2631 = vadd.f32 %v2195, %v2414
    %v2632 = vadd.f32 %v2196, %v2416
    %v2633 = vadd.f32 %v2197, %v2485
    %v2634 = vadd.f32 %v2198, %v2487
    %v2635 = vadd.f32 %v2199, %v2556
    %v2636 = vadd.f32 %v2200, %v2558
    %v2637 = vadd.f32 %v2201, %v2627
    %v2638 = vadd.f32 %v2202, %v2629
    %v2639 = vxor.u32 %v2631, 2147483648
    %v2640 = vxor.u32 %v2632, 2147483648
    %v2641 = vxor.u32 %v2633, 2147483648
    %v2642 = vxor.u32 %v2634, 2147483648
    %v2643 = vxor.u32 %v2635, 2147483648
    %v2644 = vxor.u32 %v2636, 2147483648
    %v2645 = vmul.f32 %v2639, 1.442695
    %v2646 = vpow.pop %v2645
    %v2647 = vmul.f32 %v2640, 1.442695
    %v2648 = vpow.pop %v2647
    %v2649 = vmul.f32 %v2641, 1.442695
    %v2650 = vpow.pop %v2649
    %v2651 = vmul.f32 %v2642, 1.442695
    %v2652 = vpow.pop %v2651
    %v2653 = vmul.f32 %v2643, 1.442695
    %v2654 = vpow.pop %v2653
    %v2655 = vmul.f32 %v2644, 1.442695
    %v2656 = vpow.pop %v2655
    %v2657 = vadd.f32 %v2646, 1.0
    %v2658 = vadd.f32 %v2648, 1.0
    %v2659 = vadd.f32 %v2650, 1.0
    %v2660 = vadd.f32 %v2652, 1.0
    %v2661 = vadd.f32 %v2654, 1.0
    %v2662 = vadd.f32 %v2656, 1.0
    %v2663 = vrcp.pop %v2657
    %v2664 = vmul.f32 1.0, %v2663
    %v2665 = vrcp.pop %v2658
    %v2666 = vmul.f32 1.0, %v2665
    %v2667 = vrcp.pop %v2659
    %v2668 = vmul.f32 1.0, %v2667
    %v2669 = vrcp.pop %v2660
    %v2670 = vmul.f32 1.0, %v2669
    %v2671 = vrcp.pop %v2661
    %v2672 = vmul.f32 1.0, %v2671
    %v2673 = vrcp.pop %v2662
    %v2674 = vmul.f32 1.0, %v2673
    %v2675 = vtanh.pop %v2637
    %v2676 = vtanh.pop %v2638
    %v2677 = vmul.f32 %v2668, %v1946
    %v2678 = vmul.f32 %v2670, %v1947
    %v2679 = vmul.f32 %v2664, %v2675
    %v2680 = vmul.f32 %v2666, %v2676
    %v2681 = vadd.f32 %v2677, %v2679
    %v2682 = vadd.f32 %v2678, %v2680
    %v2683 = vtanh.pop %v2681
    %v2684 = vtanh.pop %v2682
    %v2685 = vmul.f32 %v2672, %v2683
    %v2686 = vmul.f32 %v2674, %v2684
    %v2687 = vld [vmem:[#allocation9] sm:$0xff]
    %v2688 = vld [vmem:[#allocation9 + $0x8] sm:$0xff]
    %v2689 = vld [vmem:[#allocation9 + $0x10] sm:$0xff]
    %v2690 = vld [vmem:[#allocation9 + $0x18] sm:$0xff]
    %v2691 = vld [vmem:[#allocation9 + $0x20] sm:$0xff]
    %v2692 = vld [vmem:[#allocation9 + $0x28] sm:$0xff]
    %v2693 = vld [vmem:[#allocation9 + $0x30] sm:$0xff]
    %v2694 = vld [vmem:[#allocation9 + $0x38] sm:$0xff]
    %v2695 = vld [vmem:[#allocation9 + $0x40] sm:$0xff]
    %v2696 = vld [vmem:[#allocation9 + $0x48] sm:$0xff]
    %v2697 = vld [vmem:[#allocation9 + $0x50] sm:$0xff]
    %v2698 = vld [vmem:[#allocation9 + $0x58] sm:$0xff]
    %v2699 = vld [vmem:[#allocation9 + $0x60] sm:$0xff]
    %v2700 = vld [vmem:[#allocation9 + $0x68] sm:$0xff]
    %v2701 = vld [vmem:[#allocation9 + $0x70] sm:$0xff]
    %v2702 = vld [vmem:[#allocation9 + $0x78] sm:$0xff]
    %v2703 = vld [vmem:[#allocation9 + $0x80] sm:$0xff]
    %v2704 = vld [vmem:[#allocation9 + $0x88] sm:$0xff]
    %v2705 = vld [vmem:[#allocation9 + $0x90] sm:$0xff]
    %v2706 = vld [vmem:[#allocation9 + $0x98] sm:$0xff]
    %v2707 = vld [vmem:[#allocation9 + $0xa0] sm:$0xff]
    %v2708 = vld [vmem:[#allocation9 + $0xa8] sm:$0xff]
    %v2709 = vld [vmem:[#allocation9 + $0xb0] sm:$0xff]
    %v2710 = vld [vmem:[#allocation9 + $0xb8] sm:$0xff]
    %v2711 = vld [vmem:[#allocation9 + $0xc0] sm:$0xff]
    %v2712 = vld [vmem:[#allocation9 + $0xc8] sm:$0xff]
    %v2713 = vld [vmem:[#allocation9 + $0xd0] sm:$0xff]
    %v2714 = vld [vmem:[#allocation9 + $0xd8] sm:$0xff]
    %v2715 = vld [vmem:[#allocation9 + $0xe0] sm:$0xff]
    %v2716 = vld [vmem:[#allocation9 + $0xe8] sm:$0xff]
    %v2717 = vld [vmem:[#allocation9 + $0xf0] sm:$0xff]
    %v2718 = vld [vmem:[#allocation9 + $0xf8] sm:$0xff]
    %v2719 = vld [vmem:[#allocation9 + $0x100] sm:$0xff]
    %v2720 = vld [vmem:[#allocation9 + $0x108] sm:$0xff]
    %v2721 = vld [vmem:[#allocation9 + $0x110] sm:$0xff]
    %v2722 = vld [vmem:[#allocation9 + $0x118] sm:$0xff]
    %v2723 = vld [vmem:[#allocation9 + $0x120] sm:$0xff]
    %v2724 = vld [vmem:[#allocation9 + $0x128] sm:$0xff]
    %v2725 = vld [vmem:[#allocation9 + $0x130] sm:$0xff]
    %v2726 = vld [vmem:[#allocation9 + $0x138] sm:$0xff]
    %v2727 = vld [vmem:[#allocation9 + $0x140] sm:$0xff]
    %v2728 = vld [vmem:[#allocation9 + $0x148] sm:$0xff]
    %v2729 = vld [vmem:[#allocation9 + $0x150] sm:$0xff]
    %v2730 = vld [vmem:[#allocation9 + $0x158] sm:$0xff]
    %v2731 = vld [vmem:[#allocation9 + $0x160] sm:$0xff]
    %v2732 = vld [vmem:[#allocation9 + $0x168] sm:$0xff]
    %v2733 = vld [vmem:[#allocation9 + $0x170] sm:$0xff]
    %v2734 = vld [vmem:[#allocation9 + $0x178] sm:$0xff]
    %v2735 = vld [vmem:[#allocation9 + $0x180] sm:$0xff]
    %v2736 = vld [vmem:[#allocation9 + $0x188] sm:$0xff]
    %v2737 = vld [vmem:[#allocation9 + $0x190] sm:$0xff]
    %v2738 = vld [vmem:[#allocation9 + $0x198] sm:$0xff]
    %v2739 = vld [vmem:[#allocation9 + $0x1a0] sm:$0xff]
    %v2740 = vld [vmem:[#allocation9 + $0x1a8] sm:$0xff]
    %v2741 = vld [vmem:[#allocation9 + $0x1b0] sm:$0xff]
    %v2742 = vld [vmem:[#allocation9 + $0x1b8] sm:$0xff]
    %v2743 = vld [vmem:[#allocation9 + $0x1c0] sm:$0xff]
    %v2744 = vld [vmem:[#allocation9 + $0x1c8] sm:$0xff]
    %v2745 = vld [vmem:[#allocation9 + $0x1d0] sm:$0xff]
    %v2746 = vld [vmem:[#allocation9 + $0x1d8] sm:$0xff]
    %v2747 = vld [vmem:[#allocation9 + $0x1e0] sm:$0xff]
    %v2748 = vld [vmem:[#allocation9 + $0x1e8] sm:$0xff]
    %v2749 = vld [vmem:[#allocation9 + $0x1f0] sm:$0xff]
    %v2750 = vld [vmem:[#allocation9 + $0x1f8] sm:$0xff]
    %v2751 = vld [vmem:[#allocation9 + $0x200] sm:$0xff]
    %v2752 = vld [vmem:[#allocation9 + $0x208] sm:$0xff]
    %v2753 = vld [vmem:[#allocation9 + $0x210] sm:$0xff]
    %v2754 = vld [vmem:[#allocation9 + $0x218] sm:$0xff]
    %v2755 = vld [vmem:[#allocation9 + $0x220] sm:$0xff]
    %v2756 = vld [vmem:[#allocation9 + $0x228] sm:$0xff]
    %v2757 = vld [vmem:[#allocation9 + $0x230] sm:$0xff]
    %v2758 = vld [vmem:[#allocation9 + $0x238] sm:$0xff]
    %v2759 = vld [vmem:[%s6] sm:$0xf]
    %v2761 = vlaneseq
    %v2762 = vshrl.u32 %v2761, 7
    %v2763 = vsub.s32 0, %v2762
    %v2764 = vrot.slane %v2759, %v2763
    %v2765 = vlaneseq
    %v2766 = vshrl.u32 %v2765, 7
    %v2767 = vsub.s32 1, %v2766
    %v2768 = vrot.slane %v2759, %v2767
    %v2769 = vlaneseq
    %v2770 = vshrl.u32 %v2769, 7
    %v2771 = vsub.s32 2, %v2770
    %v2772 = vrot.slane %v2759, %v2771
    %v2773 = vlaneseq
    %v2774 = vshrl.u32 %v2773, 7
    %v2775 = vsub.s32 3, %v2774
    %v2776 = vrot.slane %v2759, %v2775
    %v2782 = vsel %vm873, %v2686, 0
    %2784 = vmatprep.subr.mxu0 %v2748
    %2785 = vmatpush1.msra.mxu0 %v2747
    %2786 = vmatprep.subr.mxu0 %v2744
    %2787 = vmatpush1.msra.mxu0 %v2743
    %2788 = vmatprep.subr.mxu0 %v2740
    %2789 = vmatpush1.msra.mxu0 %v2739
    %2790 = vmatprep.subr.mxu0 %v2736
    %2791 = vmatpush1.msra.mxu0 %v2735
    %2792 = vmatprep.subr.mxu0 %v2732
    %2793 = vmatpush1.msra.mxu0 %v2731
    %2794 = vmatprep.subr.mxu0 %v2728
    %2795 = vmatpush1.msra.mxu0 %v2727
    %2796 = vmatprep.subr.mxu0 %v2724
    %2797 = vmatpush1.msra.mxu0 %v2723
    %2798 = vmatprep.subr.mxu0 %v2720
    %2799 = vmatpush1.msra.mxu0 %v2719
    %2800 = vmatprep.subr.mxu0 %v2716
    %2801 = vmatpush1.msra.mxu0 %v2715
    %2802 = vmatprep.subr.mxu0 %v2712
    %2803 = vmatpush1.msra.mxu0 %v2711
    %2804 = vmatprep.subr.mxu0 %v2708
    %2805 = vmatpush1.msra.mxu0 %v2707
    %2806 = vmatprep.subr.mxu0 %v2704
    %2807 = vmatpush1.msra.mxu0 %v2703
    %2808 = vmatprep.subr.mxu0 %v2700
    %2809 = vmatpush1.msra.mxu0 %v2699
    %2810 = vmatprep.subr.mxu0 %v2696
    %2811 = vmatpush1.msra.mxu0 %v2695
    %2812 = vmatprep.subr.mxu0 %v2692
    %2813 = vmatpush1.msra.mxu0 %v2691
    %2814 = vmatprep.subr.mxu0 %v2688
    %2815 = vmatpush1.msra.mxu0 %v2687
    %2816 = vmatprep.subr.mxu0 0.0
    %2817 = vmatpush2.msra.mxu0 0.0
    %2818 = vmatprep.subr.mxu0 0.0
    %2819 = vmatpush2.msra.mxu0 0.0
    %2820 = vmatprep.subr.mxu0 0.0
    %2821 = vmatpush2.msra.mxu0 0.0
    %2822 = vmatprep.subr.mxu0 0.0
    %2823 = vmatpush2.msra.mxu0 0.0
    %2824 = vmatprep.subr.mxu0 0.0
    %2825 = vmatpush2.msra.mxu0 0.0
    %2826 = vmatprep.subr.mxu0 0.0
    %2827 = vmatpush2.msra.mxu0 0.0
    %2828 = vmatprep.subr.mxu0 0.0
    %2829 = vmatpush2.msra.mxu0 0.0
    %2830 = vmatprep.subr.mxu0 0.0
    %2831 = vmatpush2.msra.mxu0 0.0
    %2832 = vmatprep.subr.mxu0 0.0
    %2833 = vmatpush2.msra.mxu0 0.0
    %2834 = vmatprep.subr.mxu0 0.0
    %2835 = vmatpush2.msra.mxu0 0.0
    %2836 = vmatprep.subr.mxu0 0.0
    %2837 = vmatpush2.msra.mxu0 0.0
    %2838 = vmatprep.subr.mxu0 0.0
    %2839 = vmatpush2.msra.mxu0 0.0
    %2840 = vmatprep.subr.mxu0 0.0
    %2841 = vmatpush2.msra.mxu0 0.0
    %2842 = vmatprep.subr.mxu0 0.0
    %2843 = vmatpush2.msra.mxu0 0.0
    %2844 = vmatprep.subr.mxu0 %v2756
    %2845 = vmatpush2.msra.mxu0 %v2755
    %2846 = vmatprep.subr.mxu0 %v2752
    %2847 = vmatpush2.msra.mxu0 %v2751
    %2848 = vmatprep.mubr.f32.mxu0 %v2782
    %2849 = vmatmul.mubr.f32.gmra.mxu0 %v2685
    %v2850 = vpop.f32.mrf.mxu0
    %v2851 = vadd.f32 %v2764, %v2850
    %v2852 = vpop.f32.mrf.mxu0
    %v2853 = vadd.f32 %v2768, %v2852
    %2854 = vdwg.mxu0
    %2855 = vmatprep.subr.mxu0 %v2750
    %2856 = vmatpush1.msra.mxu0 %v2749
    %2857 = vmatprep.subr.mxu0 %v2746
    %2858 = vmatpush1.msra.mxu0 %v2745
    %2859 = vmatprep.subr.mxu0 %v2742
    %2860 = vmatpush1.msra.mxu0 %v2741
    %2861 = vmatprep.subr.mxu0 %v2738
    %2862 = vmatpush1.msra.mxu0 %v2737
    %2863 = vmatprep.subr.mxu0 %v2734
    %2864 = vmatpush1.msra.mxu0 %v2733
    %2865 = vmatprep.subr.mxu0 %v2730
    %2866 = vmatpush1.msra.mxu0 %v2729
    %2867 = vmatprep.subr.mxu0 %v2726
    %2868 = vmatpush1.msra.mxu0 %v2725
    %2869 = vmatprep.subr.mxu0 %v2722
    %2870 = vmatpush1.msra.mxu0 %v2721
    %2871 = vmatprep.subr.mxu0 %v2718
    %2872 = vmatpush1.msra.mxu0 %v2717
    %2873 = vmatprep.subr.mxu0 %v2714
    %2874 = vmatpush1.msra.mxu0 %v2713
    %2875 = vmatprep.subr.mxu0 %v2710
    %2876 = vmatpush1.msra.mxu0 %v2709
    %2877 = vmatprep.subr.mxu0 %v2706
    %2878 = vmatpush1.msra.mxu0 %v2705
    %2879 = vmatprep.subr.mxu0 %v2702
    %2880 = vmatpush1.msra.mxu0 %v2701
    %2881 = vmatprep.subr.mxu0 %v2698
    %2882 = vmatpush1.msra.mxu0 %v2697
    %2883 = vmatprep.subr.mxu0 %v2694
    %2884 = vmatpush1.msra.mxu0 %v2693
    %2885 = vmatprep.subr.mxu0 %v2690
    %2886 = vmatpush1.msra.mxu0 %v2689
    %2887 = vmatprep.subr.mxu0 0.0
    %2888 = vmatpush2.msra.mxu0 0.0
    %2889 = vmatprep.subr.mxu0 0.0
    %2890 = vmatpush2.msra.mxu0 0.0
    %2891 = vmatprep.subr.mxu0 0.0
    %2892 = vmatpush2.msra.mxu0 0.0
    %2893 = vmatprep.subr.mxu0 0.0
    %2894 = vmatpush2.msra.mxu0 0.0
    %2895 = vmatprep.subr.mxu0 0.0
    %2896 = vmatpush2.msra.mxu0 0.0
    %2897 = vmatprep.subr.mxu0 0.0
    %2898 = vmatpush2.msra.mxu0 0.0
    %2899 = vmatprep.subr.mxu0 0.0
    %2900 = vmatpush2.msra.mxu0 0.0
    %2901 = vmatprep.subr.mxu0 0.0
    %2902 = vmatpush2.msra.mxu0 0.0
    %2903 = vmatprep.subr.mxu0 0.0
    %2904 = vmatpush2.msra.mxu0 0.0
    %2905 = vmatprep.subr.mxu0 0.0
    %2906 = vmatpush2.msra.mxu0 0.0
    %2907 = vmatprep.subr.mxu0 0.0
    %2908 = vmatpush2.msra.mxu0 0.0
    %2909 = vmatprep.subr.mxu0 0.0
    %2910 = vmatpush2.msra.mxu0 0.0
    %2911 = vmatprep.subr.mxu0 0.0
    %2912 = vmatpush2.msra.mxu0 0.0
    %2913 = vmatprep.subr.mxu0 0.0
    %2914 = vmatpush2.msra.mxu0 0.0
    %2915 = vmatprep.subr.mxu0 %v2758
    %2916 = vmatpush2.msra.mxu0 %v2757
    %2917 = vmatprep.subr.mxu0 %v2754
    %2918 = vmatpush2.msra.mxu0 %v2753
    %2919 = vmatprep.mubr.f32.mxu0 %v2782
    %2920 = vmatmul.mubr.f32.gmra.mxu0 %v2685
    %v2921 = vpop.f32.mrf.mxu0
    %v2922 = vadd.f32 %v2772, %v2921
    %v2923 = vpop.f32.mrf.mxu0
    %v2924 = vadd.f32 %v2776, %v2923
    %2925 = vdwg.mxu0
    %2926 = vst [vmem:[#allocation3 + $0x40] sm:$0xff] %v2851
    %2927 = vst [vmem:[#allocation3 + $0x48] sm:$0xff] %v2853
    %2928 = vst [vmem:[#allocation3 + $0x50] sm:$0xff] %v2922
    %2929 = vst [vmem:[#allocation3 + $0x58] sm:$0xff] %v2924
    %v2930 = vld [vmem:[#allocation2 + $0xc0] sm:$0xff]
    %v2931 = vld [vmem:[#allocation2 + $0xc8] sm:$0xff]
    %v2932 = vld [vmem:[#allocation2 + $0xd0] sm:$0xff]
    %v2933 = vld [vmem:[#allocation2 + $0xd8] sm:$0xff]
    %v2934 = vld [vmem:[#allocation2 + $0xe0] sm:$0xff]
    %v2935 = vld [vmem:[#allocation2 + $0xe8] sm:$0xff]
    %v2936 = vld [vmem:[#allocation2 + $0xf0] sm:$0xff]
    %v2937 = vld [vmem:[#allocation2 + $0xf8] sm:$0xff]
    %v2938 = vld [vmem:[#allocation7] sm:$0xff]
    %v2939 = vld [vmem:[#allocation7 + $0x8] sm:$0xff]
    %v2940 = vld [vmem:[#allocation7 + $0x10] sm:$0xff]
    %v2941 = vld [vmem:[#allocation7 + $0x18] sm:$0xff]
    %v2942 = vld [vmem:[#allocation7 + $0x20] sm:$0xff]
    %v2943 = vld [vmem:[#allocation7 + $0x28] sm:$0xff]
    %v2944 = vld [vmem:[#allocation7 + $0x30] sm:$0xff]
    %v2945 = vld [vmem:[#allocation7 + $0x38] sm:$0xff]
    %v2946 = vld [vmem:[#allocation7 + $0x40] sm:$0xff]
    %v2947 = vld [vmem:[#allocation7 + $0x48] sm:$0xff]
    %v2948 = vld [vmem:[#allocation7 + $0x50] sm:$0xff]
    %v2949 = vld [vmem:[#allocation7 + $0x58] sm:$0xff]
    %v2950 = vld [vmem:[#allocation7 + $0x60] sm:$0xff]
    %v2951 = vld [vmem:[#allocation7 + $0x68] sm:$0xff]
    %v2952 = vld [vmem:[#allocation7 + $0x70] sm:$0xff]
    %v2953 = vld [vmem:[#allocation7 + $0x78] sm:$0xff]
    %v2954 = vld [vmem:[#allocation7 + $0x80] sm:$0xff]
    %v2955 = vld [vmem:[#allocation7 + $0x88] sm:$0xff]
    %v2956 = vld [vmem:[#allocation7 + $0x90] sm:$0xff]
    %v2957 = vld [vmem:[#allocation7 + $0x98] sm:$0xff]
    %v2958 = vld [vmem:[#allocation7 + $0xa0] sm:$0xff]
    %v2959 = vld [vmem:[#allocation7 + $0xa8] sm:$0xff]
    %v2960 = vld [vmem:[#allocation7 + $0xb0] sm:$0xff]
    %v2961 = vld [vmem:[#allocation7 + $0xb8] sm:$0xff]
    %v2962 = vld [vmem:[#allocation7 + $0xc0] sm:$0xff]
    %v2963 = vld [vmem:[#allocation7 + $0xc8] sm:$0xff]
    %v2964 = vld [vmem:[#allocation7 + $0xd0] sm:$0xff]
    %v2965 = vld [vmem:[#allocation7 + $0xd8] sm:$0xff]
    %v2966 = vld [vmem:[#allocation7 + $0xe0] sm:$0xff]
    %v2967 = vld [vmem:[#allocation7 + $0xe8] sm:$0xff]
    %v2968 = vld [vmem:[#allocation7 + $0xf0] sm:$0xff]
    %v2969 = vld [vmem:[#allocation7 + $0xf8] sm:$0xff]
    %v2970 = vld [vmem:[#allocation7 + $0x100] sm:$0xff]
    %v2971 = vld [vmem:[#allocation7 + $0x108] sm:$0xff]
    %v2972 = vld [vmem:[#allocation7 + $0x110] sm:$0xff]
    %v2973 = vld [vmem:[#allocation7 + $0x118] sm:$0xff]
    %v2974 = vld [vmem:[#allocation7 + $0x120] sm:$0xff]
    %v2975 = vld [vmem:[#allocation7 + $0x128] sm:$0xff]
    %v2976 = vld [vmem:[#allocation7 + $0x130] sm:$0xff]
    %v2977 = vld [vmem:[#allocation7 + $0x138] sm:$0xff]
    %v2978 = vld [vmem:[#allocation7 + $0x140] sm:$0xff]
    %v2979 = vld [vmem:[#allocation7 + $0x148] sm:$0xff]
    %v2980 = vld [vmem:[#allocation7 + $0x150] sm:$0xff]
    %v2981 = vld [vmem:[#allocation7 + $0x158] sm:$0xff]
    %v2982 = vld [vmem:[#allocation7 + $0x160] sm:$0xff]
    %v2983 = vld [vmem:[#allocation7 + $0x168] sm:$0xff]
    %v2984 = vld [vmem:[#allocation7 + $0x170] sm:$0xff]
    %v2985 = vld [vmem:[#allocation7 + $0x178] sm:$0xff]
    %v2986 = vld [vmem:[#allocation7 + $0x180] sm:$0xff]
    %v2987 = vld [vmem:[#allocation7 + $0x188] sm:$0xff]
    %v2988 = vld [vmem:[#allocation7 + $0x190] sm:$0xff]
    %v2989 = vld [vmem:[#allocation7 + $0x198] sm:$0xff]
    %v2990 = vld [vmem:[#allocation7 + $0x1a0] sm:$0xff]
    %v2991 = vld [vmem:[#allocation7 + $0x1a8] sm:$0xff]
    %v2992 = vld [vmem:[#allocation7 + $0x1b0] sm:$0xff]
    %v2993 = vld [vmem:[#allocation7 + $0x1b8] sm:$0xff]
    %v2994 = vld [vmem:[#allocation7 + $0x1c0] sm:$0xff]
    %v2995 = vld [vmem:[#allocation7 + $0x1c8] sm:$0xff]
    %v2996 = vld [vmem:[#allocation7 + $0x1d0] sm:$0xff]
    %v2997 = vld [vmem:[#allocation7 + $0x1d8] sm:$0xff]
    %v2998 = vld [vmem:[#allocation7 + $0x1e0] sm:$0xff]
    %v2999 = vld [vmem:[#allocation7 + $0x1e8] sm:$0xff]
    %v3000 = vld [vmem:[#allocation7 + $0x1f0] sm:$0xff]
    %v3001 = vld [vmem:[#allocation7 + $0x1f8] sm:$0xff]
    %v3002 = vld [vmem:[#allocation7 + $0x200] sm:$0xff]
    %v3003 = vld [vmem:[#allocation7 + $0x208] sm:$0xff]
    %v3004 = vld [vmem:[#allocation7 + $0x210] sm:$0xff]
    %v3005 = vld [vmem:[#allocation7 + $0x218] sm:$0xff]
    %v3006 = vld [vmem:[#allocation7 + $0x220] sm:$0xff]
    %v3007 = vld [vmem:[#allocation7 + $0x228] sm:$0xff]
    %v3008 = vld [vmem:[#allocation7 + $0x230] sm:$0xff]
    %v3009 = vld [vmem:[#allocation7 + $0x238] sm:$0xff]
    %v3010 = vld [vmem:[#allocation7 + $0x240] sm:$0xff]
    %v3011 = vld [vmem:[#allocation7 + $0x248] sm:$0xff]
    %v3012 = vld [vmem:[#allocation7 + $0x250] sm:$0xff]
    %v3013 = vld [vmem:[#allocation7 + $0x258] sm:$0xff]
    %v3014 = vld [vmem:[#allocation7 + $0x260] sm:$0xff]
    %v3015 = vld [vmem:[#allocation7 + $0x268] sm:$0xff]
    %v3016 = vld [vmem:[#allocation7 + $0x270] sm:$0xff]
    %v3017 = vld [vmem:[#allocation7 + $0x278] sm:$0xff]
    %v3018 = vld [vmem:[#allocation7 + $0x280] sm:$0xff]
    %v3019 = vld [vmem:[#allocation7 + $0x288] sm:$0xff]
    %v3020 = vld [vmem:[#allocation7 + $0x290] sm:$0xff]
    %v3021 = vld [vmem:[#allocation7 + $0x298] sm:$0xff]
    %v3022 = vld [vmem:[#allocation7 + $0x2a0] sm:$0xff]
    %v3023 = vld [vmem:[#allocation7 + $0x2a8] sm:$0xff]
    %v3024 = vld [vmem:[#allocation7 + $0x2b0] sm:$0xff]
    %v3025 = vld [vmem:[#allocation7 + $0x2b8] sm:$0xff]
    %v3026 = vld [vmem:[#allocation7 + $0x2c0] sm:$0xff]
    %v3027 = vld [vmem:[#allocation7 + $0x2c8] sm:$0xff]
    %v3028 = vld [vmem:[#allocation7 + $0x2d0] sm:$0xff]
    %v3029 = vld [vmem:[#allocation7 + $0x2d8] sm:$0xff]
    %v3030 = vld [vmem:[#allocation7 + $0x2e0] sm:$0xff]
    %v3031 = vld [vmem:[#allocation7 + $0x2e8] sm:$0xff]
    %v3032 = vld [vmem:[#allocation7 + $0x2f0] sm:$0xff]
    %v3033 = vld [vmem:[#allocation7 + $0x2f8] sm:$0xff]
    %v3034 = vld [vmem:[#allocation7 + $0x300] sm:$0xff]
    %v3035 = vld [vmem:[#allocation7 + $0x308] sm:$0xff]
    %v3036 = vld [vmem:[#allocation7 + $0x310] sm:$0xff]
    %v3037 = vld [vmem:[#allocation7 + $0x318] sm:$0xff]
    %v3038 = vld [vmem:[#allocation7 + $0x320] sm:$0xff]
    %v3039 = vld [vmem:[#allocation7 + $0x328] sm:$0xff]
    %v3040 = vld [vmem:[#allocation7 + $0x330] sm:$0xff]
    %v3041 = vld [vmem:[#allocation7 + $0x338] sm:$0xff]
    %v3042 = vld [vmem:[#allocation7 + $0x340] sm:$0xff]
    %v3043 = vld [vmem:[#allocation7 + $0x348] sm:$0xff]
    %v3044 = vld [vmem:[#allocation7 + $0x350] sm:$0xff]
    %v3045 = vld [vmem:[#allocation7 + $0x358] sm:$0xff]
    %v3046 = vld [vmem:[#allocation7 + $0x360] sm:$0xff]
    %v3047 = vld [vmem:[#allocation7 + $0x368] sm:$0xff]
    %v3048 = vld [vmem:[#allocation7 + $0x370] sm:$0xff]
    %v3049 = vld [vmem:[#allocation7 + $0x378] sm:$0xff]
    %v3050 = vld [vmem:[#allocation7 + $0x380] sm:$0xff]
    %v3051 = vld [vmem:[#allocation7 + $0x388] sm:$0xff]
    %v3052 = vld [vmem:[#allocation7 + $0x390] sm:$0xff]
    %v3053 = vld [vmem:[#allocation7 + $0x398] sm:$0xff]
    %v3054 = vld [vmem:[#allocation7 + $0x3a0] sm:$0xff]
    %v3055 = vld [vmem:[#allocation7 + $0x3a8] sm:$0xff]
    %v3056 = vld [vmem:[#allocation7 + $0x3b0] sm:$0xff]
    %v3057 = vld [vmem:[#allocation7 + $0x3b8] sm:$0xff]
    %v3058 = vld [vmem:[#allocation7 + $0x3c0] sm:$0xff]
    %v3059 = vld [vmem:[#allocation7 + $0x3c8] sm:$0xff]
    %v3060 = vld [vmem:[#allocation7 + $0x3d0] sm:$0xff]
    %v3061 = vld [vmem:[#allocation7 + $0x3d8] sm:$0xff]
    %v3062 = vld [vmem:[#allocation7 + $0x3e0] sm:$0xff]
    %v3063 = vld [vmem:[#allocation7 + $0x3e8] sm:$0xff]
    %v3064 = vld [vmem:[#allocation7 + $0x3f0] sm:$0xff]
    %v3065 = vld [vmem:[#allocation7 + $0x3f8] sm:$0xff]
    %v3066 = vld [vmem:[#allocation7 + $0x400] sm:$0xff]
    %v3067 = vld [vmem:[#allocation7 + $0x408] sm:$0xff]
    %v3068 = vld [vmem:[#allocation7 + $0x410] sm:$0xff]
    %v3069 = vld [vmem:[#allocation7 + $0x418] sm:$0xff]
    %v3070 = vld [vmem:[#allocation7 + $0x420] sm:$0xff]
    %v3071 = vld [vmem:[#allocation7 + $0x428] sm:$0xff]
    %v3072 = vld [vmem:[#allocation7 + $0x430] sm:$0xff]
    %v3073 = vld [vmem:[#allocation7 + $0x438] sm:$0xff]
    %v3074 = vld [vmem:[#allocation7 + $0x440] sm:$0xff]
    %v3075 = vld [vmem:[#allocation7 + $0x448] sm:$0xff]
    %v3076 = vld [vmem:[#allocation7 + $0x450] sm:$0xff]
    %v3077 = vld [vmem:[#allocation7 + $0x458] sm:$0xff]
    %v3078 = vld [vmem:[#allocation7 + $0x460] sm:$0xff]
    %v3079 = vld [vmem:[#allocation7 + $0x468] sm:$0xff]
    %v3080 = vld [vmem:[#allocation7 + $0x470] sm:$0xff]
    %v3081 = vld [vmem:[#allocation7 + $0x478] sm:$0xff]
    %3082 = vmatprep.subr.mxu0 %v3059
    %3083 = vmatpush1.msra.mxu0 %v3058
    %3084 = vmatprep.subr.mxu0 %v3051
    %3085 = vmatpush1.msra.mxu0 %v3050
    %3086 = vmatprep.subr.mxu0 %v3043
    %3087 = vmatpush1.msra.mxu0 %v3042
    %3088 = vmatprep.subr.mxu0 %v3035
    %3089 = vmatpush1.msra.mxu0 %v3034
    %3090 = vmatprep.subr.mxu0 %v3027
    %3091 = vmatpush1.msra.mxu0 %v3026
    %3092 = vmatprep.subr.mxu0 %v3019
    %3093 = vmatpush1.msra.mxu0 %v3018
    %3094 = vmatprep.subr.mxu0 %v3011
    %3095 = vmatpush1.msra.mxu0 %v3010
    %3096 = vmatprep.subr.mxu0 %v3003
    %3097 = vmatpush1.msra.mxu0 %v3002
    %3098 = vmatprep.subr.mxu0 %v2995
    %3099 = vmatpush1.msra.mxu0 %v2994
    %3100 = vmatprep.subr.mxu0 %v2987
    %3101 = vmatpush1.msra.mxu0 %v2986
    %3102 = vmatprep.subr.mxu0 %v2979
    %3103 = vmatpush1.msra.mxu0 %v2978
    %3104 = vmatprep.subr.mxu0 %v2971
    %3105 = vmatpush1.msra.mxu0 %v2970
    %3106 = vmatprep.subr.mxu0 %v2963
    %3107 = vmatpush1.msra.mxu0 %v2962
    %3108 = vmatprep.subr.mxu0 %v2955
    %3109 = vmatpush1.msra.mxu0 %v2954
    %3110 = vmatprep.subr.mxu0 %v2947
    %3111 = vmatpush1.msra.mxu0 %v2946
    %3112 = vmatprep.subr.mxu0 %v2939
    %3113 = vmatpush1.msra.mxu0 %v2938
    %3114 = vmatprep.subr.mxu0 0.0
    %3115 = vmatpush2.msra.mxu0 0.0
    %3116 = vmatprep.subr.mxu0 0.0
    %3117 = vmatpush2.msra.mxu0 0.0
    %3118 = vmatprep.subr.mxu0 0.0
    %3119 = vmatpush2.msra.mxu0 0.0
    %3120 = vmatprep.subr.mxu0 0.0
    %3121 = vmatpush2.msra.mxu0 0.0
    %3122 = vmatprep.subr.mxu0 0.0
    %3123 = vmatpush2.msra.mxu0 0.0
    %3124 = vmatprep.subr.mxu0 0.0
    %3125 = vmatpush2.msra.mxu0 0.0
    %3126 = vmatprep.subr.mxu0 0.0
    %3127 = vmatpush2.msra.mxu0 0.0
    %3128 = vmatprep.subr.mxu0 0.0
    %3129 = vmatpush2.msra.mxu0 0.0
    %3130 = vmatprep.subr.mxu0 0.0
    %3131 = vmatpush2.msra.mxu0 0.0
    %3132 = vmatprep.subr.mxu0 0.0
    %3133 = vmatpush2.msra.mxu0 0.0
    %3134 = vmatprep.subr.mxu0 0.0
    %3135 = vmatpush2.msra.mxu0 0.0
    %3136 = vmatprep.subr.mxu0 0.0
    %3137 = vmatpush2.msra.mxu0 0.0
    %3138 = vmatprep.subr.mxu0 0.0
    %3139 = vmatpush2.msra.mxu0 0.0
    %3140 = vmatprep.subr.mxu0 0.0
    %3141 = vmatpush2.msra.mxu0 0.0
    %3142 = vmatprep.subr.mxu0 %v3075
    %3143 = vmatpush2.msra.mxu0 %v3074
    %3144 = vmatprep.subr.mxu0 %v3067
    %3145 = vmatpush2.msra.mxu0 %v3066
    %3146 = vmatprep.mubr.f32.mxu0 %v2782
    %3147 = vmatmul.mubr.f32.gmra.mxu0 %v2685
    %v3148 = vpop.f32.mrf.mxu0
    %v3149 = vadd.f32 0.0, %v3148
    %v3150 = vpop.f32.mrf.mxu0
    %v3151 = vadd.f32 0.0, %v3150
    %3152 = vdwg.mxu0
    %3153 = vmatprep.subr.mxu0 %v3061
    %3154 = vmatpush1.msra.mxu0 %v3060
    %3155 = vmatprep.subr.mxu0 %v3053
    %3156 = vmatpush1.msra.mxu0 %v3052
    %3157 = vmatprep.subr.mxu0 %v3045
    %3158 = vmatpush1.msra.mxu0 %v3044
    %3159 = vmatprep.subr.mxu0 %v3037
    %3160 = vmatpush1.msra.mxu0 %v3036
    %3161 = vmatprep.subr.mxu0 %v3029
    %3162 = vmatpush1.msra.mxu0 %v3028
    %3163 = vmatprep.subr.mxu0 %v3021
    %3164 = vmatpush1.msra.mxu0 %v3020
    %3165 = vmatprep.subr.mxu0 %v3013
    %3166 = vmatpush1.msra.mxu0 %v3012
    %3167 = vmatprep.subr.mxu0 %v3005
    %3168 = vmatpush1.msra.mxu0 %v3004
    %3169 = vmatprep.subr.mxu0 %v2997
    %3170 = vmatpush1.msra.mxu0 %v2996
    %3171 = vmatprep.subr.mxu0 %v2989
    %3172 = vmatpush1.msra.mxu0 %v2988
    %3173 = vmatprep.subr.mxu0 %v2981
    %3174 = vmatpush1.msra.mxu0 %v2980
    %3175 = vmatprep.subr.mxu0 %v2973
    %3176 = vmatpush1.msra.mxu0 %v2972
    %3177 = vmatprep.subr.mxu0 %v2965
    %3178 = vmatpush1.msra.mxu0 %v2964
    %3179 = vmatprep.subr.mxu0 %v2957
    %3180 = vmatpush1.msra.mxu0 %v2956
    %3181 = vmatprep.subr.mxu0 %v2949
    %3182 = vmatpush1.msra.mxu0 %v2948
    %3183 = vmatprep.subr.mxu0 %v2941
    %3184 = vmatpush1.msra.mxu0 %v2940
    %3185 = vmatprep.subr.mxu0 0.0
    %3186 = vmatpush2.msra.mxu0 0.0
    %3187 = vmatprep.subr.mxu0 0.0
    %3188 = vmatpush2.msra.mxu0 0.0
    %3189 = vmatprep.subr.mxu0 0.0
    %3190 = vmatpush2.msra.mxu0 0.0
    %3191 = vmatprep.subr.mxu0 0.0
    %3192 = vmatpush2.msra.mxu0 0.0
    %3193 = vmatprep.subr.mxu0 0.0
    %3194 = vmatpush2.msra.mxu0 0.0
    %3195 = vmatprep.subr.mxu0 0.0
    %3196 = vmatpush2.msra.mxu0 0.0
    %3197 = vmatprep.subr.mxu0 0.0
    %3198 = vmatpush2.msra.mxu0 0.0
    %3199 = vmatprep.subr.mxu0 0.0
    %3200 = vmatpush2.msra.mxu0 0.0
    %3201 = vmatprep.subr.mxu0 0.0
    %3202 = vmatpush2.msra.mxu0 0.0
    %3203 = vmatprep.subr.mxu0 0.0
    %3204 = vmatpush2.msra.mxu0 0.0
    %3205 = vmatprep.subr.mxu0 0.0
    %3206 = vmatpush2.msra.mxu0 0.0
    %3207 = vmatprep.subr.mxu0 0.0
    %3208 = vmatpush2.msra.mxu0 0.0
    %3209 = vmatprep.subr.mxu0 0.0
    %3210 = vmatpush2.msra.mxu0 0.0
    %3211 = vmatprep.subr.mxu0 0.0
    %3212 = vmatpush2.msra.mxu0 0.0
    %3213 = vmatprep.subr.mxu0 %v3077
    %3214 = vmatpush2.msra.mxu0 %v3076
    %3215 = vmatprep.subr.mxu0 %v3069
    %3216 = vmatpush2.msra.mxu0 %v3068
    %3217 = vmatprep.mubr.f32.mxu0 %v2782
    %3218 = vmatmul.mubr.f32.gmra.mxu0 %v2685
    %v3219 = vpop.f32.mrf.mxu0
    %v3220 = vadd.f32 0.0, %v3219
    %v3221 = vpop.f32.mrf.mxu0
    %v3222 = vadd.f32 0.0, %v3221
    %3223 = vdwg.mxu0
    %3224 = vmatprep.subr.mxu0 %v3063
    %3225 = vmatpush1.msra.mxu0 %v3062
    %3226 = vmatprep.subr.mxu0 %v3055
    %3227 = vmatpush1.msra.mxu0 %v3054
    %3228 = vmatprep.subr.mxu0 %v3047
    %3229 = vmatpush1.msra.mxu0 %v3046
    %3230 = vmatprep.subr.mxu0 %v3039
    %3231 = vmatpush1.msra.mxu0 %v3038
    %3232 = vmatprep.subr.mxu0 %v3031
    %3233 = vmatpush1.msra.mxu0 %v3030
    %3234 = vmatprep.subr.mxu0 %v3023
    %3235 = vmatpush1.msra.mxu0 %v3022
    %3236 = vmatprep.subr.mxu0 %v3015
    %3237 = vmatpush1.msra.mxu0 %v3014
    %3238 = vmatprep.subr.mxu0 %v3007
    %3239 = vmatpush1.msra.mxu0 %v3006
    %3240 = vmatprep.subr.mxu0 %v2999
    %3241 = vmatpush1.msra.mxu0 %v2998
    %3242 = vmatprep.subr.mxu0 %v2991
    %3243 = vmatpush1.msra.mxu0 %v2990
    %3244 = vmatprep.subr.mxu0 %v2983
    %3245 = vmatpush1.msra.mxu0 %v2982
    %3246 = vmatprep.subr.mxu0 %v2975
    %3247 = vmatpush1.msra.mxu0 %v2974
    %3248 = vmatprep.subr.mxu0 %v2967
    %3249 = vmatpush1.msra.mxu0 %v2966
    %3250 = vmatprep.subr.mxu0 %v2959
    %3251 = vmatpush1.msra.mxu0 %v2958
    %3252 = vmatprep.subr.mxu0 %v2951
    %3253 = vmatpush1.msra.mxu0 %v2950
    %3254 = vmatprep.subr.mxu0 %v2943
    %3255 = vmatpush1.msra.mxu0 %v2942
    %3256 = vmatprep.subr.mxu0 0.0
    %3257 = vmatpush2.msra.mxu0 0.0
    %3258 = vmatprep.subr.mxu0 0.0
    %3259 = vmatpush2.msra.mxu0 0.0
    %3260 = vmatprep.subr.mxu0 0.0
    %3261 = vmatpush2.msra.mxu0 0.0
    %3262 = vmatprep.subr.mxu0 0.0
    %3263 = vmatpush2.msra.mxu0 0.0
    %3264 = vmatprep.subr.mxu0 0.0
    %3265 = vmatpush2.msra.mxu0 0.0
    %3266 = vmatprep.subr.mxu0 0.0
    %3267 = vmatpush2.msra.mxu0 0.0
    %3268 = vmatprep.subr.mxu0 0.0
    %3269 = vmatpush2.msra.mxu0 0.0
    %3270 = vmatprep.subr.mxu0 0.0
    %3271 = vmatpush2.msra.mxu0 0.0
    %3272 = vmatprep.subr.mxu0 0.0
    %3273 = vmatpush2.msra.mxu0 0.0
    %3274 = vmatprep.subr.mxu0 0.0
    %3275 = vmatpush2.msra.mxu0 0.0
    %3276 = vmatprep.subr.mxu0 0.0
    %3277 = vmatpush2.msra.mxu0 0.0
    %3278 = vmatprep.subr.mxu0 0.0
    %3279 = vmatpush2.msra.mxu0 0.0
    %3280 = vmatprep.subr.mxu0 0.0
    %3281 = vmatpush2.msra.mxu0 0.0
    %3282 = vmatprep.subr.mxu0 0.0
    %3283 = vmatpush2.msra.mxu0 0.0
    %3284 = vmatprep.subr.mxu0 %v3079
    %3285 = vmatpush2.msra.mxu0 %v3078
    %3286 = vmatprep.subr.mxu0 %v3071
    %3287 = vmatpush2.msra.mxu0 %v3070
    %3288 = vmatprep.mubr.f32.mxu0 %v2782
    %3289 = vmatmul.mubr.f32.gmra.mxu0 %v2685
    %v3290 = vpop.f32.mrf.mxu0
    %v3291 = vadd.f32 0.0, %v3290
    %v3292 = vpop.f32.mrf.mxu0
    %v3293 = vadd.f32 0.0, %v3292
    %3294 = vdwg.mxu0
    %3295 = vmatprep.subr.mxu0 %v3065
    %3296 = vmatpush1.msra.mxu0 %v3064
    %3297 = vmatprep.subr.mxu0 %v3057
    %3298 = vmatpush1.msra.mxu0 %v3056
    %3299 = vmatprep.subr.mxu0 %v3049
    %3300 = vmatpush1.msra.mxu0 %v3048
    %3301 = vmatprep.subr.mxu0 %v3041
    %3302 = vmatpush1.msra.mxu0 %v3040
    %3303 = vmatprep.subr.mxu0 %v3033
    %3304 = vmatpush1.msra.mxu0 %v3032
    %3305 = vmatprep.subr.mxu0 %v3025
    %3306 = vmatpush1.msra.mxu0 %v3024
    %3307 = vmatprep.subr.mxu0 %v3017
    %3308 = vmatpush1.msra.mxu0 %v3016
    %3309 = vmatprep.subr.mxu0 %v3009
    %3310 = vmatpush1.msra.mxu0 %v3008
    %3311 = vmatprep.subr.mxu0 %v3001
    %3312 = vmatpush1.msra.mxu0 %v3000
    %3313 = vmatprep.subr.mxu0 %v2993
    %3314 = vmatpush1.msra.mxu0 %v2992
    %3315 = vmatprep.subr.mxu0 %v2985
    %3316 = vmatpush1.msra.mxu0 %v2984
    %3317 = vmatprep.subr.mxu0 %v2977
    %3318 = vmatpush1.msra.mxu0 %v2976
    %3319 = vmatprep.subr.mxu0 %v2969
    %3320 = vmatpush1.msra.mxu0 %v2968
    %3321 = vmatprep.subr.mxu0 %v2961
    %3322 = vmatpush1.msra.mxu0 %v2960
    %3323 = vmatprep.subr.mxu0 %v2953
    %3324 = vmatpush1.msra.mxu0 %v2952
    %3325 = vmatprep.subr.mxu0 %v2945
    %3326 = vmatpush1.msra.mxu0 %v2944
    %3327 = vmatprep.subr.mxu0 0.0
    %3328 = vmatpush2.msra.mxu0 0.0
    %3329 = vmatprep.subr.mxu0 0.0
    %3330 = vmatpush2.msra.mxu0 0.0
    %3331 = vmatprep.subr.mxu0 0.0
    %3332 = vmatpush2.msra.mxu0 0.0
    %3333 = vmatprep.subr.mxu0 0.0
    %3334 = vmatpush2.msra.mxu0 0.0
    %3335 = vmatprep.subr.mxu0 0.0
    %3336 = vmatpush2.msra.mxu0 0.0
    %3337 = vmatprep.subr.mxu0 0.0
    %3338 = vmatpush2.msra.mxu0 0.0
    %3339 = vmatprep.subr.mxu0 0.0
    %3340 = vmatpush2.msra.mxu0 0.0
    %3341 = vmatprep.subr.mxu0 0.0
    %3342 = vmatpush2.msra.mxu0 0.0
    %3343 = vmatprep.subr.mxu0 0.0
    %3344 = vmatpush2.msra.mxu0 0.0
    %3345 = vmatprep.subr.mxu0 0.0
    %3346 = vmatpush2.msra.mxu0 0.0
    %3347 = vmatprep.subr.mxu0 0.0
    %3348 = vmatpush2.msra.mxu0 0.0
    %3349 = vmatprep.subr.mxu0 0.0
    %3350 = vmatpush2.msra.mxu0 0.0
    %3351 = vmatprep.subr.mxu0 0.0
    %3352 = vmatpush2.msra.mxu0 0.0
    %3353 = vmatprep.subr.mxu0 0.0
    %3354 = vmatpush2.msra.mxu0 0.0
    %3355 = vmatprep.subr.mxu0 %v3081
    %3356 = vmatpush2.msra.mxu0 %v3080
    %3357 = vmatprep.subr.mxu0 %v3073
    %3358 = vmatpush2.msra.mxu0 %v3072
    %3359 = vmatprep.mubr.f32.mxu0 %v2782
    %3360 = vmatmul.mubr.f32.gmra.mxu0 %v2685
    %v3361 = vpop.f32.mrf.mxu0
    %v3362 = vadd.f32 0.0, %v3361
    %v3363 = vpop.f32.mrf.mxu0
    %v3364 = vadd.f32 0.0, %v3363
    %3365 = vdwg.mxu0
    %v3366 = vadd.f32 %v2930, %v3149
    %v3367 = vadd.f32 %v2931, %v3151
    %v3368 = vadd.f32 %v2932, %v3220
    %v3369 = vadd.f32 %v2933, %v3222
    %v3370 = vadd.f32 %v2934, %v3291
    %v3371 = vadd.f32 %v2935, %v3293
    %v3372 = vadd.f32 %v2936, %v3362
    %v3373 = vadd.f32 %v2937, %v3364
    %v3374 = vxor.u32 %v3366, 2147483648
    %v3375 = vxor.u32 %v3367, 2147483648
    %v3376 = vxor.u32 %v3368, 2147483648
    %v3377 = vxor.u32 %v3369, 2147483648
    %v3378 = vxor.u32 %v3370, 2147483648
    %v3379 = vxor.u32 %v3371, 2147483648
    %v3380 = vmul.f32 %v3374, 1.442695
    %v3381 = vpow.pop %v3380
    %v3382 = vmul.f32 %v3375, 1.442695
    %v3383 = vpow.pop %v3382
    %v3384 = vmul.f32 %v3376, 1.442695
    %v3385 = vpow.pop %v3384
    %v3386 = vmul.f32 %v3377, 1.442695
    %v3387 = vpow.pop %v3386
    %v3388 = vmul.f32 %v3378, 1.442695
    %v3389 = vpow.pop %v3388
    %v3390 = vmul.f32 %v3379, 1.442695
    %v3391 = vpow.pop %v3390
    %v3392 = vadd.f32 %v3381, 1.0
    %v3393 = vadd.f32 %v3383, 1.0
    %v3394 = vadd.f32 %v3385, 1.0
    %v3395 = vadd.f32 %v3387, 1.0
    %v3396 = vadd.f32 %v3389, 1.0
    %v3397 = vadd.f32 %v3391, 1.0
    %v3398 = vrcp.pop %v3392
    %v3399 = vmul.f32 1.0, %v3398
    %v3400 = vrcp.pop %v3393
    %v3401 = vmul.f32 1.0, %v3400
    %v3402 = vrcp.pop %v3394
    %v3403 = vmul.f32 1.0, %v3402
    %v3404 = vrcp.pop %v3395
    %v3405 = vmul.f32 1.0, %v3404
    %v3406 = vrcp.pop %v3396
    %v3407 = vmul.f32 1.0, %v3406
    %v3408 = vrcp.pop %v3397
    %v3409 = vmul.f32 1.0, %v3408
    %v3410 = vtanh.pop %v3372
    %v3411 = vtanh.pop %v3373
    %v3412 = vmul.f32 %v3403, %v2681
    %v3413 = vmul.f32 %v3405, %v2682
    %v3414 = vmul.f32 %v3399, %v3410
    %v3415 = vmul.f32 %v3401, %v3411
    %v3416 = vadd.f32 %v3412, %v3414
    %v3417 = vadd.f32 %v3413, %v3415
    %v3418 = vtanh.pop %v3416
    %v3419 = vtanh.pop %v3417
    %v3420 = vmul.f32 %v3407, %v3418
    %v3421 = vmul.f32 %v3409, %v3419
    %v3422 = vld [vmem:[#allocation9] sm:$0xff]
    %v3423 = vld [vmem:[#allocation9 + $0x8] sm:$0xff]
    %v3424 = vld [vmem:[#allocation9 + $0x10] sm:$0xff]
    %v3425 = vld [vmem:[#allocation9 + $0x18] sm:$0xff]
    %v3426 = vld [vmem:[#allocation9 + $0x20] sm:$0xff]
    %v3427 = vld [vmem:[#allocation9 + $0x28] sm:$0xff]
    %v3428 = vld [vmem:[#allocation9 + $0x30] sm:$0xff]
    %v3429 = vld [vmem:[#allocation9 + $0x38] sm:$0xff]
    %v3430 = vld [vmem:[#allocation9 + $0x40] sm:$0xff]
    %v3431 = vld [vmem:[#allocation9 + $0x48] sm:$0xff]
    %v3432 = vld [vmem:[#allocation9 + $0x50] sm:$0xff]
    %v3433 = vld [vmem:[#allocation9 + $0x58] sm:$0xff]
    %v3434 = vld [vmem:[#allocation9 + $0x60] sm:$0xff]
    %v3435 = vld [vmem:[#allocation9 + $0x68] sm:$0xff]
    %v3436 = vld [vmem:[#allocation9 + $0x70] sm:$0xff]
    %v3437 = vld [vmem:[#allocation9 + $0x78] sm:$0xff]
    %v3438 = vld [vmem:[#allocation9 + $0x80] sm:$0xff]
    %v3439 = vld [vmem:[#allocation9 + $0x88] sm:$0xff]
    %v3440 = vld [vmem:[#allocation9 + $0x90] sm:$0xff]
    %v3441 = vld [vmem:[#allocation9 + $0x98] sm:$0xff]
    %v3442 = vld [vmem:[#allocation9 + $0xa0] sm:$0xff]
    %v3443 = vld [vmem:[#allocation9 + $0xa8] sm:$0xff]
    %v3444 = vld [vmem:[#allocation9 + $0xb0] sm:$0xff]
    %v3445 = vld [vmem:[#allocation9 + $0xb8] sm:$0xff]
    %v3446 = vld [vmem:[#allocation9 + $0xc0] sm:$0xff]
    %v3447 = vld [vmem:[#allocation9 + $0xc8] sm:$0xff]
    %v3448 = vld [vmem:[#allocation9 + $0xd0] sm:$0xff]
    %v3449 = vld [vmem:[#allocation9 + $0xd8] sm:$0xff]
    %v3450 = vld [vmem:[#allocation9 + $0xe0] sm:$0xff]
    %v3451 = vld [vmem:[#allocation9 + $0xe8] sm:$0xff]
    %v3452 = vld [vmem:[#allocation9 + $0xf0] sm:$0xff]
    %v3453 = vld [vmem:[#allocation9 + $0xf8] sm:$0xff]
    %v3454 = vld [vmem:[#allocation9 + $0x100] sm:$0xff]
    %v3455 = vld [vmem:[#allocation9 + $0x108] sm:$0xff]
    %v3456 = vld [vmem:[#allocation9 + $0x110] sm:$0xff]
    %v3457 = vld [vmem:[#allocation9 + $0x118] sm:$0xff]
    %v3458 = vld [vmem:[#allocation9 + $0x120] sm:$0xff]
    %v3459 = vld [vmem:[#allocation9 + $0x128] sm:$0xff]
    %v3460 = vld [vmem:[#allocation9 + $0x130] sm:$0xff]
    %v3461 = vld [vmem:[#allocation9 + $0x138] sm:$0xff]
    %v3462 = vld [vmem:[#allocation9 + $0x140] sm:$0xff]
    %v3463 = vld [vmem:[#allocation9 + $0x148] sm:$0xff]
    %v3464 = vld [vmem:[#allocation9 + $0x150] sm:$0xff]
    %v3465 = vld [vmem:[#allocation9 + $0x158] sm:$0xff]
    %v3466 = vld [vmem:[#allocation9 + $0x160] sm:$0xff]
    %v3467 = vld [vmem:[#allocation9 + $0x168] sm:$0xff]
    %v3468 = vld [vmem:[#allocation9 + $0x170] sm:$0xff]
    %v3469 = vld [vmem:[#allocation9 + $0x178] sm:$0xff]
    %v3470 = vld [vmem:[#allocation9 + $0x180] sm:$0xff]
    %v3471 = vld [vmem:[#allocation9 + $0x188] sm:$0xff]
    %v3472 = vld [vmem:[#allocation9 + $0x190] sm:$0xff]
    %v3473 = vld [vmem:[#allocation9 + $0x198] sm:$0xff]
    %v3474 = vld [vmem:[#allocation9 + $0x1a0] sm:$0xff]
    %v3475 = vld [vmem:[#allocation9 + $0x1a8] sm:$0xff]
    %v3476 = vld [vmem:[#allocation9 + $0x1b0] sm:$0xff]
    %v3477 = vld [vmem:[#allocation9 + $0x1b8] sm:$0xff]
    %v3478 = vld [vmem:[#allocation9 + $0x1c0] sm:$0xff]
    %v3479 = vld [vmem:[#allocation9 + $0x1c8] sm:$0xff]
    %v3480 = vld [vmem:[#allocation9 + $0x1d0] sm:$0xff]
    %v3481 = vld [vmem:[#allocation9 + $0x1d8] sm:$0xff]
    %v3482 = vld [vmem:[#allocation9 + $0x1e0] sm:$0xff]
    %v3483 = vld [vmem:[#allocation9 + $0x1e8] sm:$0xff]
    %v3484 = vld [vmem:[#allocation9 + $0x1f0] sm:$0xff]
    %v3485 = vld [vmem:[#allocation9 + $0x1f8] sm:$0xff]
    %v3486 = vld [vmem:[#allocation9 + $0x200] sm:$0xff]
    %v3487 = vld [vmem:[#allocation9 + $0x208] sm:$0xff]
    %v3488 = vld [vmem:[#allocation9 + $0x210] sm:$0xff]
    %v3489 = vld [vmem:[#allocation9 + $0x218] sm:$0xff]
    %v3490 = vld [vmem:[#allocation9 + $0x220] sm:$0xff]
    %v3491 = vld [vmem:[#allocation9 + $0x228] sm:$0xff]
    %v3492 = vld [vmem:[#allocation9 + $0x230] sm:$0xff]
    %v3493 = vld [vmem:[#allocation9 + $0x238] sm:$0xff]
    %v3494 = vld [vmem:[%s6] sm:$0xf]
    %v3496 = vlaneseq
    %v3497 = vshrl.u32 %v3496, 7
    %v3498 = vsub.s32 0, %v3497
    %v3499 = vrot.slane %v3494, %v3498
    %v3500 = vlaneseq
    %v3501 = vshrl.u32 %v3500, 7
    %v3502 = vsub.s32 1, %v3501
    %v3503 = vrot.slane %v3494, %v3502
    %v3504 = vlaneseq
    %v3505 = vshrl.u32 %v3504, 7
    %v3506 = vsub.s32 2, %v3505
    %v3507 = vrot.slane %v3494, %v3506
    %v3508 = vlaneseq
    %v3509 = vshrl.u32 %v3508, 7
    %v3510 = vsub.s32 3, %v3509
    %v3511 = vrot.slane %v3494, %v3510
    %v3517 = vsel %vm873, %v3421, 0
    %3519 = vmatprep.subr.mxu0 %v3483
    %3520 = vmatpush1.msra.mxu0 %v3482
    %3521 = vmatprep.subr.mxu0 %v3479
    %3522 = vmatpush1.msra.mxu0 %v3478
    %3523 = vmatprep.subr.mxu0 %v3475
    %3524 = vmatpush1.msra.mxu0 %v3474
    %3525 = vmatprep.subr.mxu0 %v3471
    %3526 = vmatpush1.msra.mxu0 %v3470
    %3527 = vmatprep.subr.mxu0 %v3467
    %3528 = vmatpush1.msra.mxu0 %v3466
    %3529 = vmatprep.subr.mxu0 %v3463
    %3530 = vmatpush1.msra.mxu0 %v3462
    %3531 = vmatprep.subr.mxu0 %v3459
    %3532 = vmatpush1.msra.mxu0 %v3458
    %3533 = vmatprep.subr.mxu0 %v3455
    %3534 = vmatpush1.msra.mxu0 %v3454
    %3535 = vmatprep.subr.mxu0 %v3451
    %3536 = vmatpush1.msra.mxu0 %v3450
    %3537 = vmatprep.subr.mxu0 %v3447
    %3538 = vmatpush1.msra.mxu0 %v3446
    %3539 = vmatprep.subr.mxu0 %v3443
    %3540 = vmatpush1.msra.mxu0 %v3442
    %3541 = vmatprep.subr.mxu0 %v3439
    %3542 = vmatpush1.msra.mxu0 %v3438
    %3543 = vmatprep.subr.mxu0 %v3435
    %3544 = vmatpush1.msra.mxu0 %v3434
    %3545 = vmatprep.subr.mxu0 %v3431
    %3546 = vmatpush1.msra.mxu0 %v3430
    %3547 = vmatprep.subr.mxu0 %v3427
    %3548 = vmatpush1.msra.mxu0 %v3426
    %3549 = vmatprep.subr.mxu0 %v3423
    %3550 = vmatpush1.msra.mxu0 %v3422
    %3551 = vmatprep.subr.mxu0 0.0
    %3552 = vmatpush2.msra.mxu0 0.0
    %3553 = vmatprep.subr.mxu0 0.0
    %3554 = vmatpush2.msra.mxu0 0.0
    %3555 = vmatprep.subr.mxu0 0.0
    %3556 = vmatpush2.msra.mxu0 0.0
    %3557 = vmatprep.subr.mxu0 0.0
    %3558 = vmatpush2.msra.mxu0 0.0
    %3559 = vmatprep.subr.mxu0 0.0
    %3560 = vmatpush2.msra.mxu0 0.0
    %3561 = vmatprep.subr.mxu0 0.0
    %3562 = vmatpush2.msra.mxu0 0.0
    %3563 = vmatprep.subr.mxu0 0.0
    %3564 = vmatpush2.msra.mxu0 0.0
    %3565 = vmatprep.subr.mxu0 0.0
    %3566 = vmatpush2.msra.mxu0 0.0
    %3567 = vmatprep.subr.mxu0 0.0
    %3568 = vmatpush2.msra.mxu0 0.0
    %3569 = vmatprep.subr.mxu0 0.0
    %3570 = vmatpush2.msra.mxu0 0.0
    %3571 = vmatprep.subr.mxu0 0.0
    %3572 = vmatpush2.msra.mxu0 0.0
    %3573 = vmatprep.subr.mxu0 0.0
    %3574 = vmatpush2.msra.mxu0 0.0
    %3575 = vmatprep.subr.mxu0 0.0
    %3576 = vmatpush2.msra.mxu0 0.0
    %3577 = vmatprep.subr.mxu0 0.0
    %3578 = vmatpush2.msra.mxu0 0.0
    %3579 = vmatprep.subr.mxu0 %v3491
    %3580 = vmatpush2.msra.mxu0 %v3490
    %3581 = vmatprep.subr.mxu0 %v3487
    %3582 = vmatpush2.msra.mxu0 %v3486
    %3583 = vmatprep.mubr.f32.mxu0 %v3517
    %3584 = vmatmul.mubr.f32.gmra.mxu0 %v3420
    %v3585 = vpop.f32.mrf.mxu0
    %v3586 = vadd.f32 %v3499, %v3585
    %v3587 = vpop.f32.mrf.mxu0
    %v3588 = vadd.f32 %v3503, %v3587
    %3589 = vdwg.mxu0
    %3590 = vmatprep.subr.mxu0 %v3485
    %3591 = vmatpush1.msra.mxu0 %v3484
    %3592 = vmatprep.subr.mxu0 %v3481
    %3593 = vmatpush1.msra.mxu0 %v3480
    %3594 = vmatprep.subr.mxu0 %v3477
    %3595 = vmatpush1.msra.mxu0 %v3476
    %3596 = vmatprep.subr.mxu0 %v3473
    %3597 = vmatpush1.msra.mxu0 %v3472
    %3598 = vmatprep.subr.mxu0 %v3469
    %3599 = vmatpush1.msra.mxu0 %v3468
    %3600 = vmatprep.subr.mxu0 %v3465
    %3601 = vmatpush1.msra.mxu0 %v3464
    %3602 = vmatprep.subr.mxu0 %v3461
    %3603 = vmatpush1.msra.mxu0 %v3460
    %3604 = vmatprep.subr.mxu0 %v3457
    %3605 = vmatpush1.msra.mxu0 %v3456
    %3606 = vmatprep.subr.mxu0 %v3453
    %3607 = vmatpush1.msra.mxu0 %v3452
    %3608 = vmatprep.subr.mxu0 %v3449
    %3609 = vmatpush1.msra.mxu0 %v3448
    %3610 = vmatprep.subr.mxu0 %v3445
    %3611 = vmatpush1.msra.mxu0 %v3444
    %3612 = vmatprep.subr.mxu0 %v3441
    %3613 = vmatpush1.msra.mxu0 %v3440
    %3614 = vmatprep.subr.mxu0 %v3437
    %3615 = vmatpush1.msra.mxu0 %v3436
    %3616 = vmatprep.subr.mxu0 %v3433
    %3617 = vmatpush1.msra.mxu0 %v3432
    %3618 = vmatprep.subr.mxu0 %v3429
    %3619 = vmatpush1.msra.mxu0 %v3428
    %3620 = vmatprep.subr.mxu0 %v3425
    %3621 = vmatpush1.msra.mxu0 %v3424
    %3622 = vmatprep.subr.mxu0 0.0
    %3623 = vmatpush2.msra.mxu0 0.0
    %3624 = vmatprep.subr.mxu0 0.0
    %3625 = vmatpush2.msra.mxu0 0.0
    %3626 = vmatprep.subr.mxu0 0.0
    %3627 = vmatpush2.msra.mxu0 0.0
    %3628 = vmatprep.subr.mxu0 0.0
    %3629 = vmatpush2.msra.mxu0 0.0
    %3630 = vmatprep.subr.mxu0 0.0
    %3631 = vmatpush2.msra.mxu0 0.0
    %3632 = vmatprep.subr.mxu0 0.0
    %3633 = vmatpush2.msra.mxu0 0.0
    %3634 = vmatprep.subr.mxu0 0.0
    %3635 = vmatpush2.msra.mxu0 0.0
    %3636 = vmatprep.subr.mxu0 0.0
    %3637 = vmatpush2.msra.mxu0 0.0
    %3638 = vmatprep.subr.mxu0 0.0
    %3639 = vmatpush2.msra.mxu0 0.0
    %3640 = vmatprep.subr.mxu0 0.0
    %3641 = vmatpush2.msra.mxu0 0.0
    %3642 = vmatprep.subr.mxu0 0.0
    %3643 = vmatpush2.msra.mxu0 0.0
    %3644 = vmatprep.subr.mxu0 0.0
    %3645 = vmatpush2.msra.mxu0 0.0
    %3646 = vmatprep.subr.mxu0 0.0
    %3647 = vmatpush2.msra.mxu0 0.0
    %3648 = vmatprep.subr.mxu0 0.0
    %3649 = vmatpush2.msra.mxu0 0.0
    %3650 = vmatprep.subr.mxu0 %v3493
    %3651 = vmatpush2.msra.mxu0 %v3492
    %3652 = vmatprep.subr.mxu0 %v3489
    %3653 = vmatpush2.msra.mxu0 %v3488
    %3654 = vmatprep.mubr.f32.mxu0 %v3517
    %3655 = vmatmul.mubr.f32.gmra.mxu0 %v3420
    %v3656 = vpop.f32.mrf.mxu0
    %v3657 = vadd.f32 %v3507, %v3656
    %v3658 = vpop.f32.mrf.mxu0
    %v3659 = vadd.f32 %v3511, %v3658
    %3660 = vdwg.mxu0
    %3661 = vst [vmem:[#allocation3 + $0x60] sm:$0xff] %v3586
    %3662 = vst [vmem:[#allocation3 + $0x68] sm:$0xff] %v3588
    %3663 = vst [vmem:[#allocation3 + $0x70] sm:$0xff] %v3657
    %3664 = vst [vmem:[#allocation3 + $0x78] sm:$0xff] %v3659
    %v3665 = vld [vmem:[#allocation2 + $0x100] sm:$0xff]
    %v3666 = vld [vmem:[#allocation2 + $0x108] sm:$0xff]
    %v3667 = vld [vmem:[#allocation2 + $0x110] sm:$0xff]
    %v3668 = vld [vmem:[#allocation2 + $0x118] sm:$0xff]
    %v3669 = vld [vmem:[#allocation2 + $0x120] sm:$0xff]
    %v3670 = vld [vmem:[#allocation2 + $0x128] sm:$0xff]
    %v3671 = vld [vmem:[#allocation2 + $0x130] sm:$0xff]
    %v3672 = vld [vmem:[#allocation2 + $0x138] sm:$0xff]
    %v3673 = vld [vmem:[#allocation7] sm:$0xff]
    %v3674 = vld [vmem:[#allocation7 + $0x8] sm:$0xff]
    %v3675 = vld [vmem:[#allocation7 + $0x10] sm:$0xff]
    %v3676 = vld [vmem:[#allocation7 + $0x18] sm:$0xff]
    %v3677 = vld [vmem:[#allocation7 + $0x20] sm:$0xff]
    %v3678 = vld [vmem:[#allocation7 + $0x28] sm:$0xff]
    %v3679 = vld [vmem:[#allocation7 + $0x30] sm:$0xff]
    %v3680 = vld [vmem:[#allocation7 + $0x38] sm:$0xff]
    %v3681 = vld [vmem:[#allocation7 + $0x40] sm:$0xff]
    %v3682 = vld [vmem:[#allocation7 + $0x48] sm:$0xff]
    %v3683 = vld [vmem:[#allocation7 + $0x50] sm:$0xff]
    %v3684 = vld [vmem:[#allocation7 + $0x58] sm:$0xff]
    %v3685 = vld [vmem:[#allocation7 + $0x60] sm:$0xff]
    %v3686 = vld [vmem:[#allocation7 + $0x68] sm:$0xff]
    %v3687 = vld [vmem:[#allocation7 + $0x70] sm:$0xff]
    %v3688 = vld [vmem:[#allocation7 + $0x78] sm:$0xff]
    %v3689 = vld [vmem:[#allocation7 + $0x80] sm:$0xff]
    %v3690 = vld [vmem:[#allocation7 + $0x88] sm:$0xff]
    %v3691 = vld [vmem:[#allocation7 + $0x90] sm:$0xff]
    %v3692 = vld [vmem:[#allocation7 + $0x98] sm:$0xff]
    %v3693 = vld [vmem:[#allocation7 + $0xa0] sm:$0xff]
    %v3694 = vld [vmem:[#allocation7 + $0xa8] sm:$0xff]
    %v3695 = vld [vmem:[#allocation7 + $0xb0] sm:$0xff]
    %v3696 = vld [vmem:[#allocation7 + $0xb8] sm:$0xff]
    %v3697 = vld [vmem:[#allocation7 + $0xc0] sm:$0xff]
    %v3698 = vld [vmem:[#allocation7 + $0xc8] sm:$0xff]
    %v3699 = vld [vmem:[#allocation7 + $0xd0] sm:$0xff]
    %v3700 = vld [vmem:[#allocation7 + $0xd8] sm:$0xff]
    %v3701 = vld [vmem:[#allocation7 + $0xe0] sm:$0xff]
    %v3702 = vld [vmem:[#allocation7 + $0xe8] sm:$0xff]
    %v3703 = vld [vmem:[#allocation7 + $0xf0] sm:$0xff]
    %v3704 = vld [vmem:[#allocation7 + $0xf8] sm:$0xff]
    %v3705 = vld [vmem:[#allocation7 + $0x100] sm:$0xff]
    %v3706 = vld [vmem:[#allocation7 + $0x108] sm:$0xff]
    %v3707 = vld [vmem:[#allocation7 + $0x110] sm:$0xff]
    %v3708 = vld [vmem:[#allocation7 + $0x118] sm:$0xff]
    %v3709 = vld [vmem:[#allocation7 + $0x120] sm:$0xff]
    %v3710 = vld [vmem:[#allocation7 + $0x128] sm:$0xff]
    %v3711 = vld [vmem:[#allocation7 + $0x130] sm:$0xff]
    %v3712 = vld [vmem:[#allocation7 + $0x138] sm:$0xff]
    %v3713 = vld [vmem:[#allocation7 + $0x140] sm:$0xff]
    %v3714 = vld [vmem:[#allocation7 + $0x148] sm:$0xff]
    %v3715 = vld [vmem:[#allocation7 + $0x150] sm:$0xff]
    %v3716 = vld [vmem:[#allocation7 + $0x158] sm:$0xff]
    %v3717 = vld [vmem:[#allocation7 + $0x160] sm:$0xff]
    %v3718 = vld [vmem:[#allocation7 + $0x168] sm:$0xff]
    %v3719 = vld [vmem:[#allocation7 + $0x170] sm:$0xff]
    %v3720 = vld [vmem:[#allocation7 + $0x178] sm:$0xff]
    %v3721 = vld [vmem:[#allocation7 + $0x180] sm:$0xff]
    %v3722 = vld [vmem:[#allocation7 + $0x188] sm:$0xff]
    %v3723 = vld [vmem:[#allocation7 + $0x190] sm:$0xff]
    %v3724 = vld [vmem:[#allocation7 + $0x198] sm:$0xff]
    %v3725 = vld [vmem:[#allocation7 + $0x1a0] sm:$0xff]
    %v3726 = vld [vmem:[#allocation7 + $0x1a8] sm:$0xff]
    %v3727 = vld [vmem:[#allocation7 + $0x1b0] sm:$0xff]
    %v3728 = vld [vmem:[#allocation7 + $0x1b8] sm:$0xff]
    %v3729 = vld [vmem:[#allocation7 + $0x1c0] sm:$0xff]
    %v3730 = vld [vmem:[#allocation7 + $0x1c8] sm:$0xff]
    %v3731 = vld [vmem:[#allocation7 + $0x1d0] sm:$0xff]
    %v3732 = vld [vmem:[#allocation7 + $0x1d8] sm:$0xff]
    %v3733 = vld [vmem:[#allocation7 + $0x1e0] sm:$0xff]
    %v3734 = vld [vmem:[#allocation7 + $0x1e8] sm:$0xff]
    %v3735 = vld [vmem:[#allocation7 + $0x1f0] sm:$0xff]
    %v3736 = vld [vmem:[#allocation7 + $0x1f8] sm:$0xff]
    %v3737 = vld [vmem:[#allocation7 + $0x200] sm:$0xff]
    %v3738 = vld [vmem:[#allocation7 + $0x208] sm:$0xff]
    %v3739 = vld [vmem:[#allocation7 + $0x210] sm:$0xff]
    %v3740 = vld [vmem:[#allocation7 + $0x218] sm:$0xff]
    %v3741 = vld [vmem:[#allocation7 + $0x220] sm:$0xff]
    %v3742 = vld [vmem:[#allocation7 + $0x228] sm:$0xff]
    %v3743 = vld [vmem:[#allocation7 + $0x230] sm:$0xff]
    %v3744 = vld [vmem:[#allocation7 + $0x238] sm:$0xff]
    %v3745 = vld [vmem:[#allocation7 + $0x240] sm:$0xff]
    %v3746 = vld [vmem:[#allocation7 + $0x248] sm:$0xff]
    %v3747 = vld [vmem:[#allocation7 + $0x250] sm:$0xff]
    %v3748 = vld [vmem:[#allocation7 + $0x258] sm:$0xff]
    %v3749 = vld [vmem:[#allocation7 + $0x260] sm:$0xff]
    %v3750 = vld [vmem:[#allocation7 + $0x268] sm:$0xff]
    %v3751 = vld [vmem:[#allocation7 + $0x270] sm:$0xff]
    %v3752 = vld [vmem:[#allocation7 + $0x278] sm:$0xff]
    %v3753 = vld [vmem:[#allocation7 + $0x280] sm:$0xff]
    %v3754 = vld [vmem:[#allocation7 + $0x288] sm:$0xff]
    %v3755 = vld [vmem:[#allocation7 + $0x290] sm:$0xff]
    %v3756 = vld [vmem:[#allocation7 + $0x298] sm:$0xff]
    %v3757 = vld [vmem:[#allocation7 + $0x2a0] sm:$0xff]
    %v3758 = vld [vmem:[#allocation7 + $0x2a8] sm:$0xff]
    %v3759 = vld [vmem:[#allocation7 + $0x2b0] sm:$0xff]
    %v3760 = vld [vmem:[#allocation7 + $0x2b8] sm:$0xff]
    %v3761 = vld [vmem:[#allocation7 + $0x2c0] sm:$0xff]
    %v3762 = vld [vmem:[#allocation7 + $0x2c8] sm:$0xff]
    %v3763 = vld [vmem:[#allocation7 + $0x2d0] sm:$0xff]
    %v3764 = vld [vmem:[#allocation7 + $0x2d8] sm:$0xff]
    %v3765 = vld [vmem:[#allocation7 + $0x2e0] sm:$0xff]
    %v3766 = vld [vmem:[#allocation7 + $0x2e8] sm:$0xff]
    %v3767 = vld [vmem:[#allocation7 + $0x2f0] sm:$0xff]
    %v3768 = vld [vmem:[#allocation7 + $0x2f8] sm:$0xff]
    %v3769 = vld [vmem:[#allocation7 + $0x300] sm:$0xff]
    %v3770 = vld [vmem:[#allocation7 + $0x308] sm:$0xff]
    %v3771 = vld [vmem:[#allocation7 + $0x310] sm:$0xff]
    %v3772 = vld [vmem:[#allocation7 + $0x318] sm:$0xff]
    %v3773 = vld [vmem:[#allocation7 + $0x320] sm:$0xff]
    %v3774 = vld [vmem:[#allocation7 + $0x328] sm:$0xff]
    %v3775 = vld [vmem:[#allocation7 + $0x330] sm:$0xff]
    %v3776 = vld [vmem:[#allocation7 + $0x338] sm:$0xff]
    %v3777 = vld [vmem:[#allocation7 + $0x340] sm:$0xff]
    %v3778 = vld [vmem:[#allocation7 + $0x348] sm:$0xff]
    %v3779 = vld [vmem:[#allocation7 + $0x350] sm:$0xff]
    %v3780 = vld [vmem:[#allocation7 + $0x358] sm:$0xff]
    %v3781 = vld [vmem:[#allocation7 + $0x360] sm:$0xff]
    %v3782 = vld [vmem:[#allocation7 + $0x368] sm:$0xff]
    %v3783 = vld [vmem:[#allocation7 + $0x370] sm:$0xff]
    %v3784 = vld [vmem:[#allocation7 + $0x378] sm:$0xff]
    %v3785 = vld [vmem:[#allocation7 + $0x380] sm:$0xff]
    %v3786 = vld [vmem:[#allocation7 + $0x388] sm:$0xff]
    %v3787 = vld [vmem:[#allocation7 + $0x390] sm:$0xff]
    %v3788 = vld [vmem:[#allocation7 + $0x398] sm:$0xff]
    %v3789 = vld [vmem:[#allocation7 + $0x3a0] sm:$0xff]
    %v3790 = vld [vmem:[#allocation7 + $0x3a8] sm:$0xff]
    %v3791 = vld [vmem:[#allocation7 + $0x3b0] sm:$0xff]
    %v3792 = vld [vmem:[#allocation7 + $0x3b8] sm:$0xff]
    %v3793 = vld [vmem:[#allocation7 + $0x3c0] sm:$0xff]
    %v3794 = vld [vmem:[#allocation7 + $0x3c8] sm:$0xff]
    %v3795 = vld [vmem:[#allocation7 + $0x3d0] sm:$0xff]
    %v3796 = vld [vmem:[#allocation7 + $0x3d8] sm:$0xff]
    %v3797 = vld [vmem:[#allocation7 + $0x3e0] sm:$0xff]
    %v3798 = vld [vmem:[#allocation7 + $0x3e8] sm:$0xff]
    %v3799 = vld [vmem:[#allocation7 + $0x3f0] sm:$0xff]
    %v3800 = vld [vmem:[#allocation7 + $0x3f8] sm:$0xff]
    %v3801 = vld [vmem:[#allocation7 + $0x400] sm:$0xff]
    %v3802 = vld [vmem:[#allocation7 + $0x408] sm:$0xff]
    %v3803 = vld [vmem:[#allocation7 + $0x410] sm:$0xff]
    %v3804 = vld [vmem:[#allocation7 + $0x418] sm:$0xff]
    %v3805 = vld [vmem:[#allocation7 + $0x420] sm:$0xff]
    %v3806 = vld [vmem:[#allocation7 + $0x428] sm:$0xff]
    %v3807 = vld [vmem:[#allocation7 + $0x430] sm:$0xff]
    %v3808 = vld [vmem:[#allocation7 + $0x438] sm:$0xff]
    %v3809 = vld [vmem:[#allocation7 + $0x440] sm:$0xff]
    %v3810 = vld [vmem:[#allocation7 + $0x448] sm:$0xff]
    %v3811 = vld [vmem:[#allocation7 + $0x450] sm:$0xff]
    %v3812 = vld [vmem:[#allocation7 + $0x458] sm:$0xff]
    %v3813 = vld [vmem:[#allocation7 + $0x460] sm:$0xff]
    %v3814 = vld [vmem:[#allocation7 + $0x468] sm:$0xff]
    %v3815 = vld [vmem:[#allocation7 + $0x470] sm:$0xff]
    %v3816 = vld [vmem:[#allocation7 + $0x478] sm:$0xff]
    %3817 = vmatprep.subr.mxu0 %v3794
    %3818 = vmatpush1.msra.mxu0 %v3793
    %3819 = vmatprep.subr.mxu0 %v3786
    %3820 = vmatpush1.msra.mxu0 %v3785
    %3821 = vmatprep.subr.mxu0 %v3778
    %3822 = vmatpush1.msra.mxu0 %v3777
    %3823 = vmatprep.subr.mxu0 %v3770
    %3824 = vmatpush1.msra.mxu0 %v3769
    %3825 = vmatprep.subr.mxu0 %v3762
    %3826 = vmatpush1.msra.mxu0 %v3761
    %3827 = vmatprep.subr.mxu0 %v3754
    %3828 = vmatpush1.msra.mxu0 %v3753
    %3829 = vmatprep.subr.mxu0 %v3746
    %3830 = vmatpush1.msra.mxu0 %v3745
    %3831 = vmatprep.subr.mxu0 %v3738
    %3832 = vmatpush1.msra.mxu0 %v3737
    %3833 = vmatprep.subr.mxu0 %v3730
    %3834 = vmatpush1.msra.mxu0 %v3729
    %3835 = vmatprep.subr.mxu0 %v3722
    %3836 = vmatpush1.msra.mxu0 %v3721
    %3837 = vmatprep.subr.mxu0 %v3714
    %3838 = vmatpush1.msra.mxu0 %v3713
    %3839 = vmatprep.subr.mxu0 %v3706
    %3840 = vmatpush1.msra.mxu0 %v3705
    %3841 = vmatprep.subr.mxu0 %v3698
    %3842 = vmatpush1.msra.mxu0 %v3697
    %3843 = vmatprep.subr.mxu0 %v3690
    %3844 = vmatpush1.msra.mxu0 %v3689
    %3845 = vmatprep.subr.mxu0 %v3682
    %3846 = vmatpush1.msra.mxu0 %v3681
    %3847 = vmatprep.subr.mxu0 %v3674
    %3848 = vmatpush1.msra.mxu0 %v3673
    %3849 = vmatprep.subr.mxu0 0.0
    %3850 = vmatpush2.msra.mxu0 0.0
    %3851 = vmatprep.subr.mxu0 0.0
    %3852 = vmatpush2.msra.mxu0 0.0
    %3853 = vmatprep.subr.mxu0 0.0
    %3854 = vmatpush2.msra.mxu0 0.0
    %3855 = vmatprep.subr.mxu0 0.0
    %3856 = vmatpush2.msra.mxu0 0.0
    %3857 = vmatprep.subr.mxu0 0.0
    %3858 = vmatpush2.msra.mxu0 0.0
    %3859 = vmatprep.subr.mxu0 0.0
    %3860 = vmatpush2.msra.mxu0 0.0
    %3861 = vmatprep.subr.mxu0 0.0
    %3862 = vmatpush2.msra.mxu0 0.0
    %3863 = vmatprep.subr.mxu0 0.0
    %3864 = vmatpush2.msra.mxu0 0.0
    %3865 = vmatprep.subr.mxu0 0.0
    %3866 = vmatpush2.msra.mxu0 0.0
    %3867 = vmatprep.subr.mxu0 0.0
    %3868 = vmatpush2.msra.mxu0 0.0
    %3869 = vmatprep.subr.mxu0 0.0
    %3870 = vmatpush2.msra.mxu0 0.0
    %3871 = vmatprep.subr.mxu0 0.0
    %3872 = vmatpush2.msra.mxu0 0.0
    %3873 = vmatprep.subr.mxu0 0.0
    %3874 = vmatpush2.msra.mxu0 0.0
    %3875 = vmatprep.subr.mxu0 0.0
    %3876 = vmatpush2.msra.mxu0 0.0
    %3877 = vmatprep.subr.mxu0 %v3810
    %3878 = vmatpush2.msra.mxu0 %v3809
    %3879 = vmatprep.subr.mxu0 %v3802
    %3880 = vmatpush2.msra.mxu0 %v3801
    %3881 = vmatprep.mubr.f32.mxu0 %v3517
    %3882 = vmatmul.mubr.f32.gmra.mxu0 %v3420
    %v3883 = vpop.f32.mrf.mxu0
    %v3884 = vadd.f32 0.0, %v3883
    %v3885 = vpop.f32.mrf.mxu0
    %v3886 = vadd.f32 0.0, %v3885
    %3887 = vdwg.mxu0
    %3888 = vmatprep.subr.mxu0 %v3796
    %3889 = vmatpush1.msra.mxu0 %v3795
    %3890 = vmatprep.subr.mxu0 %v3788
    %3891 = vmatpush1.msra.mxu0 %v3787
    %3892 = vmatprep.subr.mxu0 %v3780
    %3893 = vmatpush1.msra.mxu0 %v3779
    %3894 = vmatprep.subr.mxu0 %v3772
    %3895 = vmatpush1.msra.mxu0 %v3771
    %3896 = vmatprep.subr.mxu0 %v3764
    %3897 = vmatpush1.msra.mxu0 %v3763
    %3898 = vmatprep.subr.mxu0 %v3756
    %3899 = vmatpush1.msra.mxu0 %v3755
    %3900 = vmatprep.subr.mxu0 %v3748
    %3901 = vmatpush1.msra.mxu0 %v3747
    %3902 = vmatprep.subr.mxu0 %v3740
    %3903 = vmatpush1.msra.mxu0 %v3739
    %3904 = vmatprep.subr.mxu0 %v3732
    %3905 = vmatpush1.msra.mxu0 %v3731
    %3906 = vmatprep.subr.mxu0 %v3724
    %3907 = vmatpush1.msra.mxu0 %v3723
    %3908 = vmatprep.subr.mxu0 %v3716
    %3909 = vmatpush1.msra.mxu0 %v3715
    %3910 = vmatprep.subr.mxu0 %v3708
    %3911 = vmatpush1.msra.mxu0 %v3707
    %3912 = vmatprep.subr.mxu0 %v3700
    %3913 = vmatpush1.msra.mxu0 %v3699
    %3914 = vmatprep.subr.mxu0 %v3692
    %3915 = vmatpush1.msra.mxu0 %v3691
    %3916 = vmatprep.subr.mxu0 %v3684
    %3917 = vmatpush1.msra.mxu0 %v3683
    %3918 = vmatprep.subr.mxu0 %v3676
    %3919 = vmatpush1.msra.mxu0 %v3675
    %3920 = vmatprep.subr.mxu0 0.0
    %3921 = vmatpush2.msra.mxu0 0.0
    %3922 = vmatprep.subr.mxu0 0.0
    %3923 = vmatpush2.msra.mxu0 0.0
    %3924 = vmatprep.subr.mxu0 0.0
    %3925 = vmatpush2.msra.mxu0 0.0
    %3926 = vmatprep.subr.mxu0 0.0
    %3927 = vmatpush2.msra.mxu0 0.0
    %3928 = vmatprep.subr.mxu0 0.0
    %3929 = vmatpush2.msra.mxu0 0.0
    %3930 = vmatprep.subr.mxu0 0.0
    %3931 = vmatpush2.msra.mxu0 0.0
    %3932 = vmatprep.subr.mxu0 0.0
    %3933 = vmatpush2.msra.mxu0 0.0
    %3934 = vmatprep.subr.mxu0 0.0
    %3935 = vmatpush2.msra.mxu0 0.0
    %3936 = vmatprep.subr.mxu0 0.0
    %3937 = vmatpush2.msra.mxu0 0.0
    %3938 = vmatprep.subr.mxu0 0.0
    %3939 = vmatpush2.msra.mxu0 0.0
    %3940 = vmatprep.subr.mxu0 0.0
    %3941 = vmatpush2.msra.mxu0 0.0
    %3942 = vmatprep.subr.mxu0 0.0
    %3943 = vmatpush2.msra.mxu0 0.0
    %3944 = vmatprep.subr.mxu0 0.0
    %3945 = vmatpush2.msra.mxu0 0.0
    %3946 = vmatprep.subr.mxu0 0.0
    %3947 = vmatpush2.msra.mxu0 0.0
    %3948 = vmatprep.subr.mxu0 %v3812
    %3949 = vmatpush2.msra.mxu0 %v3811
    %3950 = vmatprep.subr.mxu0 %v3804
    %3951 = vmatpush2.msra.mxu0 %v3803
    %3952 = vmatprep.mubr.f32.mxu0 %v3517
    %3953 = vmatmul.mubr.f32.gmra.mxu0 %v3420
    %v3954 = vpop.f32.mrf.mxu0
    %v3955 = vadd.f32 0.0, %v3954
    %v3956 = vpop.f32.mrf.mxu0
    %v3957 = vadd.f32 0.0, %v3956
    %3958 = vdwg.mxu0
    %3959 = vmatprep.subr.mxu0 %v3798
    %3960 = vmatpush1.msra.mxu0 %v3797
    %3961 = vmatprep.subr.mxu0 %v3790
    %3962 = vmatpush1.msra.mxu0 %v3789
    %3963 = vmatprep.subr.mxu0 %v3782
    %3964 = vmatpush1.msra.mxu0 %v3781
    %3965 = vmatprep.subr.mxu0 %v3774
    %3966 = vmatpush1.msra.mxu0 %v3773
    %3967 = vmatprep.subr.mxu0 %v3766
    %3968 = vmatpush1.msra.mxu0 %v3765
    %3969 = vmatprep.subr.mxu0 %v3758
    %3970 = vmatpush1.msra.mxu0 %v3757
    %3971 = vmatprep.subr.mxu0 %v3750
    %3972 = vmatpush1.msra.mxu0 %v3749
    %3973 = vmatprep.subr.mxu0 %v3742
    %3974 = vmatpush1.msra.mxu0 %v3741
    %3975 = vmatprep.subr.mxu0 %v3734
    %3976 = vmatpush1.msra.mxu0 %v3733
    %3977 = vmatprep.subr.mxu0 %v3726
    %3978 = vmatpush1.msra.mxu0 %v3725
    %3979 = vmatprep.subr.mxu0 %v3718
    %3980 = vmatpush1.msra.mxu0 %v3717
    %3981 = vmatprep.subr.mxu0 %v3710
    %3982 = vmatpush1.msra.mxu0 %v3709
    %3983 = vmatprep.subr.mxu0 %v3702
    %3984 = vmatpush1.msra.mxu0 %v3701
    %3985 = vmatprep.subr.mxu0 %v3694
    %3986 = vmatpush1.msra.mxu0 %v3693
    %3987 = vmatprep.subr.mxu0 %v3686
    %3988 = vmatpush1.msra.mxu0 %v3685
    %3989 = vmatprep.subr.mxu0 %v3678
    %3990 = vmatpush1.msra.mxu0 %v3677
    %3991 = vmatprep.subr.mxu0 0.0
    %3992 = vmatpush2.msra.mxu0 0.0
    %3993 = vmatprep.subr.mxu0 0.0
    %3994 = vmatpush2.msra.mxu0 0.0
    %3995 = vmatprep.subr.mxu0 0.0
    %3996 = vmatpush2.msra.mxu0 0.0
    %3997 = vmatprep.subr.mxu0 0.0
    %3998 = vmatpush2.msra.mxu0 0.0
    %3999 = vmatprep.subr.mxu0 0.0
    %4000 = vmatpush2.msra.mxu0 0.0
    %4001 = vmatprep.subr.mxu0 0.0
    %4002 = vmatpush2.msra.mxu0 0.0
    %4003 = vmatprep.subr.mxu0 0.0
    %4004 = vmatpush2.msra.mxu0 0.0
    %4005 = vmatprep.subr.mxu0 0.0
    %4006 = vmatpush2.msra.mxu0 0.0
    %4007 = vmatprep.subr.mxu0 0.0
    %4008 = vmatpush2.msra.mxu0 0.0
    %4009 = vmatprep.subr.mxu0 0.0
    %4010 = vmatpush2.msra.mxu0 0.0
    %4011 = vmatprep.subr.mxu0 0.0
    %4012 = vmatpush2.msra.mxu0 0.0
    %4013 = vmatprep.subr.mxu0 0.0
    %4014 = vmatpush2.msra.mxu0 0.0
    %4015 = vmatprep.subr.mxu0 0.0
    %4016 = vmatpush2.msra.mxu0 0.0
    %4017 = vmatprep.subr.mxu0 0.0
    %4018 = vmatpush2.msra.mxu0 0.0
    %4019 = vmatprep.subr.mxu0 %v3814
    %4020 = vmatpush2.msra.mxu0 %v3813
    %4021 = vmatprep.subr.mxu0 %v3806
    %4022 = vmatpush2.msra.mxu0 %v3805
    %4023 = vmatprep.mubr.f32.mxu0 %v3517
    %4024 = vmatmul.mubr.f32.gmra.mxu0 %v3420
    %v4025 = vpop.f32.mrf.mxu0
    %v4026 = vadd.f32 0.0, %v4025
    %v4027 = vpop.f32.mrf.mxu0
    %v4028 = vadd.f32 0.0, %v4027
    %4029 = vdwg.mxu0
    %4030 = vmatprep.subr.mxu0 %v3800
    %4031 = vmatpush1.msra.mxu0 %v3799
    %4032 = vmatprep.subr.mxu0 %v3792
    %4033 = vmatpush1.msra.mxu0 %v3791
    %4034 = vmatprep.subr.mxu0 %v3784
    %4035 = vmatpush1.msra.mxu0 %v3783
    %4036 = vmatprep.subr.mxu0 %v3776
    %4037 = vmatpush1.msra.mxu0 %v3775
    %4038 = vmatprep.subr.mxu0 %v3768
    %4039 = vmatpush1.msra.mxu0 %v3767
    %4040 = vmatprep.subr.mxu0 %v3760
    %4041 = vmatpush1.msra.mxu0 %v3759
    %4042 = vmatprep.subr.mxu0 %v3752
    %4043 = vmatpush1.msra.mxu0 %v3751
    %4044 = vmatprep.subr.mxu0 %v3744
    %4045 = vmatpush1.msra.mxu0 %v3743
    %4046 = vmatprep.subr.mxu0 %v3736
    %4047 = vmatpush1.msra.mxu0 %v3735
    %4048 = vmatprep.subr.mxu0 %v3728
    %4049 = vmatpush1.msra.mxu0 %v3727
    %4050 = vmatprep.subr.mxu0 %v3720
    %4051 = vmatpush1.msra.mxu0 %v3719
    %4052 = vmatprep.subr.mxu0 %v3712
    %4053 = vmatpush1.msra.mxu0 %v3711
    %4054 = vmatprep.subr.mxu0 %v3704
    %4055 = vmatpush1.msra.mxu0 %v3703
    %4056 = vmatprep.subr.mxu0 %v3696
    %4057 = vmatpush1.msra.mxu0 %v3695
    %4058 = vmatprep.subr.mxu0 %v3688
    %4059 = vmatpush1.msra.mxu0 %v3687
    %4060 = vmatprep.subr.mxu0 %v3680
    %4061 = vmatpush1.msra.mxu0 %v3679
    %4062 = vmatprep.subr.mxu0 0.0
    %4063 = vmatpush2.msra.mxu0 0.0
    %4064 = vmatprep.subr.mxu0 0.0
    %4065 = vmatpush2.msra.mxu0 0.0
    %4066 = vmatprep.subr.mxu0 0.0
    %4067 = vmatpush2.msra.mxu0 0.0
    %4068 = vmatprep.subr.mxu0 0.0
    %4069 = vmatpush2.msra.mxu0 0.0
    %4070 = vmatprep.subr.mxu0 0.0
    %4071 = vmatpush2.msra.mxu0 0.0
    %4072 = vmatprep.subr.mxu0 0.0
    %4073 = vmatpush2.msra.mxu0 0.0
    %4074 = vmatprep.subr.mxu0 0.0
    %4075 = vmatpush2.msra.mxu0 0.0
    %4076 = vmatprep.subr.mxu0 0.0
    %4077 = vmatpush2.msra.mxu0 0.0
    %4078 = vmatprep.subr.mxu0 0.0
    %4079 = vmatpush2.msra.mxu0 0.0
    %4080 = vmatprep.subr.mxu0 0.0
    %4081 = vmatpush2.msra.mxu0 0.0
    %4082 = vmatprep.subr.mxu0 0.0
    %4083 = vmatpush2.msra.mxu0 0.0
    %4084 = vmatprep.subr.mxu0 0.0
    %4085 = vmatpush2.msra.mxu0 0.0
    %4086 = vmatprep.subr.mxu0 0.0
    %4087 = vmatpush2.msra.mxu0 0.0
    %4088 = vmatprep.subr.mxu0 0.0
    %4089 = vmatpush2.msra.mxu0 0.0
    %4090 = vmatprep.subr.mxu0 %v3816
    %4091 = vmatpush2.msra.mxu0 %v3815
    %4092 = vmatprep.subr.mxu0 %v3808
    %4093 = vmatpush2.msra.mxu0 %v3807
    %4094 = vmatprep.mubr.f32.mxu0 %v3517
    %4095 = vmatmul.mubr.f32.gmra.mxu0 %v3420
    %v4096 = vpop.f32.mrf.mxu0
    %v4097 = vadd.f32 0.0, %v4096
    %v4098 = vpop.f32.mrf.mxu0
    %v4099 = vadd.f32 0.0, %v4098
    %4100 = vdwg.mxu0
    %v4101 = vadd.f32 %v3665, %v3884
    %v4102 = vadd.f32 %v3666, %v3886
    %v4103 = vadd.f32 %v3667, %v3955
    %v4104 = vadd.f32 %v3668, %v3957
    %v4105 = vadd.f32 %v3669, %v4026
    %v4106 = vadd.f32 %v3670, %v4028
    %v4107 = vadd.f32 %v3671, %v4097
    %v4108 = vadd.f32 %v3672, %v4099
    %v4109 = vxor.u32 %v4101, 2147483648
    %v4110 = vxor.u32 %v4102, 2147483648
    %v4111 = vxor.u32 %v4103, 2147483648
    %v4112 = vxor.u32 %v4104, 2147483648
    %v4113 = vxor.u32 %v4105, 2147483648
    %v4114 = vxor.u32 %v4106, 2147483648
    %v4115 = vmul.f32 %v4109, 1.442695
    %v4116 = vpow.pop %v4115
    %v4117 = vmul.f32 %v4110, 1.442695
    %v4118 = vpow.pop %v4117
    %v4119 = vmul.f32 %v4111, 1.442695
    %v4120 = vpow.pop %v4119
    %v4121 = vmul.f32 %v4112, 1.442695
    %v4122 = vpow.pop %v4121
    %v4123 = vmul.f32 %v4113, 1.442695
    %v4124 = vpow.pop %v4123
    %v4125 = vmul.f32 %v4114, 1.442695
    %v4126 = vpow.pop %v4125
    %v4127 = vadd.f32 %v4116, 1.0
    %v4128 = vadd.f32 %v4118, 1.0
    %v4129 = vadd.f32 %v4120, 1.0
    %v4130 = vadd.f32 %v4122, 1.0
    %v4131 = vadd.f32 %v4124, 1.0
    %v4132 = vadd.f32 %v4126, 1.0
    %v4133 = vrcp.pop %v4127
    %v4134 = vmul.f32 1.0, %v4133
    %v4135 = vrcp.pop %v4128
    %v4136 = vmul.f32 1.0, %v4135
    %v4137 = vrcp.pop %v4129
    %v4138 = vmul.f32 1.0, %v4137
    %v4139 = vrcp.pop %v4130
    %v4140 = vmul.f32 1.0, %v4139
    %v4141 = vrcp.pop %v4131
    %v4142 = vmul.f32 1.0, %v4141
    %v4143 = vrcp.pop %v4132
    %v4144 = vmul.f32 1.0, %v4143
    %v4145 = vtanh.pop %v4107
    %v4146 = vtanh.pop %v4108
    %v4147 = vmul.f32 %v4138, %v3416
    %v4148 = vmul.f32 %v4140, %v3417
    %v4149 = vmul.f32 %v4134, %v4145
    %v4150 = vmul.f32 %v4136, %v4146
    %v4151 = vadd.f32 %v4147, %v4149
    %v4152 = vadd.f32 %v4148, %v4150
    %v4153 = vtanh.pop %v4151
    %v4154 = vtanh.pop %v4152
    %v4155 = vmul.f32 %v4142, %v4153
    %v4156 = vmul.f32 %v4144, %v4154
    %v4157 = vld [vmem:[#allocation9] sm:$0xff]
    %v4158 = vld [vmem:[#allocation9 + $0x8] sm:$0xff]
    %v4159 = vld [vmem:[#allocation9 + $0x10] sm:$0xff]
    %v4160 = vld [vmem:[#allocation9 + $0x18] sm:$0xff]
    %v4161 = vld [vmem:[#allocation9 + $0x20] sm:$0xff]
    %v4162 = vld [vmem:[#allocation9 + $0x28] sm:$0xff]
    %v4163 = vld [vmem:[#allocation9 + $0x30] sm:$0xff]
    %v4164 = vld [vmem:[#allocation9 + $0x38] sm:$0xff]
    %v4165 = vld [vmem:[#allocation9 + $0x40] sm:$0xff]
    %v4166 = vld [vmem:[#allocation9 + $0x48] sm:$0xff]
    %v4167 = vld [vmem:[#allocation9 + $0x50] sm:$0xff]
    %v4168 = vld [vmem:[#allocation9 + $0x58] sm:$0xff]
    %v4169 = vld [vmem:[#allocation9 + $0x60] sm:$0xff]
    %v4170 = vld [vmem:[#allocation9 + $0x68] sm:$0xff]
    %v4171 = vld [vmem:[#allocation9 + $0x70] sm:$0xff]
    %v4172 = vld [vmem:[#allocation9 + $0x78] sm:$0xff]
    %v4173 = vld [vmem:[#allocation9 + $0x80] sm:$0xff]
    %v4174 = vld [vmem:[#allocation9 + $0x88] sm:$0xff]
    %v4175 = vld [vmem:[#allocation9 + $0x90] sm:$0xff]
    %v4176 = vld [vmem:[#allocation9 + $0x98] sm:$0xff]
    %v4177 = vld [vmem:[#allocation9 + $0xa0] sm:$0xff]
    %v4178 = vld [vmem:[#allocation9 + $0xa8] sm:$0xff]
    %v4179 = vld [vmem:[#allocation9 + $0xb0] sm:$0xff]
    %v4180 = vld [vmem:[#allocation9 + $0xb8] sm:$0xff]
    %v4181 = vld [vmem:[#allocation9 + $0xc0] sm:$0xff]
    %v4182 = vld [vmem:[#allocation9 + $0xc8] sm:$0xff]
    %v4183 = vld [vmem:[#allocation9 + $0xd0] sm:$0xff]
    %v4184 = vld [vmem:[#allocation9 + $0xd8] sm:$0xff]
    %v4185 = vld [vmem:[#allocation9 + $0xe0] sm:$0xff]
    %v4186 = vld [vmem:[#allocation9 + $0xe8] sm:$0xff]
    %v4187 = vld [vmem:[#allocation9 + $0xf0] sm:$0xff]
    %v4188 = vld [vmem:[#allocation9 + $0xf8] sm:$0xff]
    %v4189 = vld [vmem:[#allocation9 + $0x100] sm:$0xff]
    %v4190 = vld [vmem:[#allocation9 + $0x108] sm:$0xff]
    %v4191 = vld [vmem:[#allocation9 + $0x110] sm:$0xff]
    %v4192 = vld [vmem:[#allocation9 + $0x118] sm:$0xff]
    %v4193 = vld [vmem:[#allocation9 + $0x120] sm:$0xff]
    %v4194 = vld [vmem:[#allocation9 + $0x128] sm:$0xff]
    %v4195 = vld [vmem:[#allocation9 + $0x130] sm:$0xff]
    %v4196 = vld [vmem:[#allocation9 + $0x138] sm:$0xff]
    %v4197 = vld [vmem:[#allocation9 + $0x140] sm:$0xff]
    %v4198 = vld [vmem:[#allocation9 + $0x148] sm:$0xff]
    %v4199 = vld [vmem:[#allocation9 + $0x150] sm:$0xff]
    %v4200 = vld [vmem:[#allocation9 + $0x158] sm:$0xff]
    %v4201 = vld [vmem:[#allocation9 + $0x160] sm:$0xff]
    %v4202 = vld [vmem:[#allocation9 + $0x168] sm:$0xff]
    %v4203 = vld [vmem:[#allocation9 + $0x170] sm:$0xff]
    %v4204 = vld [vmem:[#allocation9 + $0x178] sm:$0xff]
    %v4205 = vld [vmem:[#allocation9 + $0x180] sm:$0xff]
    %v4206 = vld [vmem:[#allocation9 + $0x188] sm:$0xff]
    %v4207 = vld [vmem:[#allocation9 + $0x190] sm:$0xff]
    %v4208 = vld [vmem:[#allocation9 + $0x198] sm:$0xff]
    %v4209 = vld [vmem:[#allocation9 + $0x1a0] sm:$0xff]
    %v4210 = vld [vmem:[#allocation9 + $0x1a8] sm:$0xff]
    %v4211 = vld [vmem:[#allocation9 + $0x1b0] sm:$0xff]
    %v4212 = vld [vmem:[#allocation9 + $0x1b8] sm:$0xff]
    %v4213 = vld [vmem:[#allocation9 + $0x1c0] sm:$0xff]
    %v4214 = vld [vmem:[#allocation9 + $0x1c8] sm:$0xff]
    %v4215 = vld [vmem:[#allocation9 + $0x1d0] sm:$0xff]
    %v4216 = vld [vmem:[#allocation9 + $0x1d8] sm:$0xff]
    %v4217 = vld [vmem:[#allocation9 + $0x1e0] sm:$0xff]
    %v4218 = vld [vmem:[#allocation9 + $0x1e8] sm:$0xff]
    %v4219 = vld [vmem:[#allocation9 + $0x1f0] sm:$0xff]
    %v4220 = vld [vmem:[#allocation9 + $0x1f8] sm:$0xff]
    %v4221 = vld [vmem:[#allocation9 + $0x200] sm:$0xff]
    %v4222 = vld [vmem:[#allocation9 + $0x208] sm:$0xff]
    %v4223 = vld [vmem:[#allocation9 + $0x210] sm:$0xff]
    %v4224 = vld [vmem:[#allocation9 + $0x218] sm:$0xff]
    %v4225 = vld [vmem:[#allocation9 + $0x220] sm:$0xff]
    %v4226 = vld [vmem:[#allocation9 + $0x228] sm:$0xff]
    %v4227 = vld [vmem:[#allocation9 + $0x230] sm:$0xff]
    %v4228 = vld [vmem:[#allocation9 + $0x238] sm:$0xff]
    %v4229 = vld [vmem:[%s6] sm:$0xf]
    %v4231 = vlaneseq
    %v4232 = vshrl.u32 %v4231, 7
    %v4233 = vsub.s32 0, %v4232
    %v4234 = vrot.slane %v4229, %v4233
    %v4235 = vlaneseq
    %v4236 = vshrl.u32 %v4235, 7
    %v4237 = vsub.s32 1, %v4236
    %v4238 = vrot.slane %v4229, %v4237
    %v4239 = vlaneseq
    %v4240 = vshrl.u32 %v4239, 7
    %v4241 = vsub.s32 2, %v4240
    %v4242 = vrot.slane %v4229, %v4241
    %v4243 = vlaneseq
    %v4244 = vshrl.u32 %v4243, 7
    %v4245 = vsub.s32 3, %v4244
    %v4246 = vrot.slane %v4229, %v4245
    %v4252 = vsel %vm873, %v4156, 0
    %4254 = vmatprep.subr.mxu0 %v4218
    %4255 = vmatpush1.msra.mxu0 %v4217
    %4256 = vmatprep.subr.mxu0 %v4214
    %4257 = vmatpush1.msra.mxu0 %v4213
    %4258 = vmatprep.subr.mxu0 %v4210
    %4259 = vmatpush1.msra.mxu0 %v4209
    %4260 = vmatprep.subr.mxu0 %v4206
    %4261 = vmatpush1.msra.mxu0 %v4205
    %4262 = vmatprep.subr.mxu0 %v4202
    %4263 = vmatpush1.msra.mxu0 %v4201
    %4264 = vmatprep.subr.mxu0 %v4198
    %4265 = vmatpush1.msra.mxu0 %v4197
    %4266 = vmatprep.subr.mxu0 %v4194
    %4267 = vmatpush1.msra.mxu0 %v4193
    %4268 = vmatprep.subr.mxu0 %v4190
    %4269 = vmatpush1.msra.mxu0 %v4189
    %4270 = vmatprep.subr.mxu0 %v4186
    %4271 = vmatpush1.msra.mxu0 %v4185
    %4272 = vmatprep.subr.mxu0 %v4182
    %4273 = vmatpush1.msra.mxu0 %v4181
    %4274 = vmatprep.subr.mxu0 %v4178
    %4275 = vmatpush1.msra.mxu0 %v4177
    %4276 = vmatprep.subr.mxu0 %v4174
    %4277 = vmatpush1.msra.mxu0 %v4173
    %4278 = vmatprep.subr.mxu0 %v4170
    %4279 = vmatpush1.msra.mxu0 %v4169
    %4280 = vmatprep.subr.mxu0 %v4166
    %4281 = vmatpush1.msra.mxu0 %v4165
    %4282 = vmatprep.subr.mxu0 %v4162
    %4283 = vmatpush1.msra.mxu0 %v4161
    %4284 = vmatprep.subr.mxu0 %v4158
    %4285 = vmatpush1.msra.mxu0 %v4157
    %4286 = vmatprep.subr.mxu0 0.0
    %4287 = vmatpush2.msra.mxu0 0.0
    %4288 = vmatprep.subr.mxu0 0.0
    %4289 = vmatpush2.msra.mxu0 0.0
    %4290 = vmatprep.subr.mxu0 0.0
    %4291 = vmatpush2.msra.mxu0 0.0
    %4292 = vmatprep.subr.mxu0 0.0
    %4293 = vmatpush2.msra.mxu0 0.0
    %4294 = vmatprep.subr.mxu0 0.0
    %4295 = vmatpush2.msra.mxu0 0.0
    %4296 = vmatprep.subr.mxu0 0.0
    %4297 = vmatpush2.msra.mxu0 0.0
    %4298 = vmatprep.subr.mxu0 0.0
    %4299 = vmatpush2.msra.mxu0 0.0
    %4300 = vmatprep.subr.mxu0 0.0
    %4301 = vmatpush2.msra.mxu0 0.0
    %4302 = vmatprep.subr.mxu0 0.0
    %4303 = vmatpush2.msra.mxu0 0.0
    %4304 = vmatprep.subr.mxu0 0.0
    %4305 = vmatpush2.msra.mxu0 0.0
    %4306 = vmatprep.subr.mxu0 0.0
    %4307 = vmatpush2.msra.mxu0 0.0
    %4308 = vmatprep.subr.mxu0 0.0
    %4309 = vmatpush2.msra.mxu0 0.0
    %4310 = vmatprep.subr.mxu0 0.0
    %4311 = vmatpush2.msra.mxu0 0.0
    %4312 = vmatprep.subr.mxu0 0.0
    %4313 = vmatpush2.msra.mxu0 0.0
    %4314 = vmatprep.subr.mxu0 %v4226
    %4315 = vmatpush2.msra.mxu0 %v4225
    %4316 = vmatprep.subr.mxu0 %v4222
    %4317 = vmatpush2.msra.mxu0 %v4221
    %4318 = vmatprep.mubr.f32.mxu0 %v4252
    %4319 = vmatmul.mubr.f32.gmra.mxu0 %v4155
    %v4320 = vpop.f32.mrf.mxu0
    %v4321 = vadd.f32 %v4234, %v4320
    %v4322 = vpop.f32.mrf.mxu0
    %v4323 = vadd.f32 %v4238, %v4322
    %4324 = vdwg.mxu0
    %4325 = vmatprep.subr.mxu0 %v4220
    %4326 = vmatpush1.msra.mxu0 %v4219
    %4327 = vmatprep.subr.mxu0 %v4216
    %4328 = vmatpush1.msra.mxu0 %v4215
    %4329 = vmatprep.subr.mxu0 %v4212
    %4330 = vmatpush1.msra.mxu0 %v4211
    %4331 = vmatprep.subr.mxu0 %v4208
    %4332 = vmatpush1.msra.mxu0 %v4207
    %4333 = vmatprep.subr.mxu0 %v4204
    %4334 = vmatpush1.msra.mxu0 %v4203
    %4335 = vmatprep.subr.mxu0 %v4200
    %4336 = vmatpush1.msra.mxu0 %v4199
    %4337 = vmatprep.subr.mxu0 %v4196
    %4338 = vmatpush1.msra.mxu0 %v4195
    %4339 = vmatprep.subr.mxu0 %v4192
    %4340 = vmatpush1.msra.mxu0 %v4191
    %4341 = vmatprep.subr.mxu0 %v4188
    %4342 = vmatpush1.msra.mxu0 %v4187
    %4343 = vmatprep.subr.mxu0 %v4184
    %4344 = vmatpush1.msra.mxu0 %v4183
    %4345 = vmatprep.subr.mxu0 %v4180
    %4346 = vmatpush1.msra.mxu0 %v4179
    %4347 = vmatprep.subr.mxu0 %v4176
    %4348 = vmatpush1.msra.mxu0 %v4175
    %4349 = vmatprep.subr.mxu0 %v4172
    %4350 = vmatpush1.msra.mxu0 %v4171
    %4351 = vmatprep.subr.mxu0 %v4168
    %4352 = vmatpush1.msra.mxu0 %v4167
    %4353 = vmatprep.subr.mxu0 %v4164
    %4354 = vmatpush1.msra.mxu0 %v4163
    %4355 = vmatprep.subr.mxu0 %v4160
    %4356 = vmatpush1.msra.mxu0 %v4159
    %4357 = vmatprep.subr.mxu0 0.0
    %4358 = vmatpush2.msra.mxu0 0.0
    %4359 = vmatprep.subr.mxu0 0.0
    %4360 = vmatpush2.msra.mxu0 0.0
    %4361 = vmatprep.subr.mxu0 0.0
    %4362 = vmatpush2.msra.mxu0 0.0
    %4363 = vmatprep.subr.mxu0 0.0
    %4364 = vmatpush2.msra.mxu0 0.0
    %4365 = vmatprep.subr.mxu0 0.0
    %4366 = vmatpush2.msra.mxu0 0.0
    %4367 = vmatprep.subr.mxu0 0.0
    %4368 = vmatpush2.msra.mxu0 0.0
    %4369 = vmatprep.subr.mxu0 0.0
    %4370 = vmatpush2.msra.mxu0 0.0
    %4371 = vmatprep.subr.mxu0 0.0
    %4372 = vmatpush2.msra.mxu0 0.0
    %4373 = vmatprep.subr.mxu0 0.0
    %4374 = vmatpush2.msra.mxu0 0.0
    %4375 = vmatprep.subr.mxu0 0.0
    %4376 = vmatpush2.msra.mxu0 0.0
    %4377 = vmatprep.subr.mxu0 0.0
    %4378 = vmatpush2.msra.mxu0 0.0
    %4379 = vmatprep.subr.mxu0 0.0
    %4380 = vmatpush2.msra.mxu0 0.0
    %4381 = vmatprep.subr.mxu0 0.0
    %4382 = vmatpush2.msra.mxu0 0.0
    %4383 = vmatprep.subr.mxu0 0.0
    %4384 = vmatpush2.msra.mxu0 0.0
    %4385 = vmatprep.subr.mxu0 %v4228
    %4386 = vmatpush2.msra.mxu0 %v4227
    %4387 = vmatprep.subr.mxu0 %v4224
    %4388 = vmatpush2.msra.mxu0 %v4223
    %4389 = vmatprep.mubr.f32.mxu0 %v4252
    %4390 = vmatmul.mubr.f32.gmra.mxu0 %v4155
    %v4391 = vpop.f32.mrf.mxu0
    %v4392 = vadd.f32 %v4242, %v4391
    %v4393 = vpop.f32.mrf.mxu0
    %v4394 = vadd.f32 %v4246, %v4393
    %4395 = vdwg.mxu0
    %4396 = vst [vmem:[#allocation3 + $0x80] sm:$0xff] %v4321
    %4397 = vst [vmem:[#allocation3 + $0x88] sm:$0xff] %v4323
    %4398 = vst [vmem:[#allocation3 + $0x90] sm:$0xff] %v4392
    %4399 = vst [vmem:[#allocation3 + $0x98] sm:$0xff] %v4394
    %v4400 = vld [vmem:[#allocation2 + $0x140] sm:$0xff]
    %v4401 = vld [vmem:[#allocation2 + $0x148] sm:$0xff]
    %v4402 = vld [vmem:[#allocation2 + $0x150] sm:$0xff]
    %v4403 = vld [vmem:[#allocation2 + $0x158] sm:$0xff]
    %v4404 = vld [vmem:[#allocation2 + $0x160] sm:$0xff]
    %v4405 = vld [vmem:[#allocation2 + $0x168] sm:$0xff]
    %v4406 = vld [vmem:[#allocation2 + $0x170] sm:$0xff]
    %v4407 = vld [vmem:[#allocation2 + $0x178] sm:$0xff]
    %v4408 = vld [vmem:[#allocation7] sm:$0xff]
    %v4409 = vld [vmem:[#allocation7 + $0x8] sm:$0xff]
    %v4410 = vld [vmem:[#allocation7 + $0x10] sm:$0xff]
    %v4411 = vld [vmem:[#allocation7 + $0x18] sm:$0xff]
    %v4412 = vld [vmem:[#allocation7 + $0x20] sm:$0xff]
    %v4413 = vld [vmem:[#allocation7 + $0x28] sm:$0xff]
    %v4414 = vld [vmem:[#allocation7 + $0x30] sm:$0xff]
    %v4415 = vld [vmem:[#allocation7 + $0x38] sm:$0xff]
    %v4416 = vld [vmem:[#allocation7 + $0x40] sm:$0xff]
    %v4417 = vld [vmem:[#allocation7 + $0x48] sm:$0xff]
    %v4418 = vld [vmem:[#allocation7 + $0x50] sm:$0xff]
    %v4419 = vld [vmem:[#allocation7 + $0x58] sm:$0xff]
    %v4420 = vld [vmem:[#allocation7 + $0x60] sm:$0xff]
    %v4421 = vld [vmem:[#allocation7 + $0x68] sm:$0xff]
    %v4422 = vld [vmem:[#allocation7 + $0x70] sm:$0xff]
    %v4423 = vld [vmem:[#allocation7 + $0x78] sm:$0xff]
    %v4424 = vld [vmem:[#allocation7 + $0x80] sm:$0xff]
    %v4425 = vld [vmem:[#allocation7 + $0x88] sm:$0xff]
    %v4426 = vld [vmem:[#allocation7 + $0x90] sm:$0xff]
    %v4427 = vld [vmem:[#allocation7 + $0x98] sm:$0xff]
    %v4428 = vld [vmem:[#allocation7 + $0xa0] sm:$0xff]
    %v4429 = vld [vmem:[#allocation7 + $0xa8] sm:$0xff]
    %v4430 = vld [vmem:[#allocation7 + $0xb0] sm:$0xff]
    %v4431 = vld [vmem:[#allocation7 + $0xb8] sm:$0xff]
    %v4432 = vld [vmem:[#allocation7 + $0xc0] sm:$0xff]
    %v4433 = vld [vmem:[#allocation7 + $0xc8] sm:$0xff]
    %v4434 = vld [vmem:[#allocation7 + $0xd0] sm:$0xff]
    %v4435 = vld [vmem:[#allocation7 + $0xd8] sm:$0xff]
    %v4436 = vld [vmem:[#allocation7 + $0xe0] sm:$0xff]
    %v4437 = vld [vmem:[#allocation7 + $0xe8] sm:$0xff]
    %v4438 = vld [vmem:[#allocation7 + $0xf0] sm:$0xff]
    %v4439 = vld [vmem:[#allocation7 + $0xf8] sm:$0xff]
    %v4440 = vld [vmem:[#allocation7 + $0x100] sm:$0xff]
    %v4441 = vld [vmem:[#allocation7 + $0x108] sm:$0xff]
    %v4442 = vld [vmem:[#allocation7 + $0x110] sm:$0xff]
    %v4443 = vld [vmem:[#allocation7 + $0x118] sm:$0xff]
    %v4444 = vld [vmem:[#allocation7 + $0x120] sm:$0xff]
    %v4445 = vld [vmem:[#allocation7 + $0x128] sm:$0xff]
    %v4446 = vld [vmem:[#allocation7 + $0x130] sm:$0xff]
    %v4447 = vld [vmem:[#allocation7 + $0x138] sm:$0xff]
    %v4448 = vld [vmem:[#allocation7 + $0x140] sm:$0xff]
    %v4449 = vld [vmem:[#allocation7 + $0x148] sm:$0xff]
    %v4450 = vld [vmem:[#allocation7 + $0x150] sm:$0xff]
    %v4451 = vld [vmem:[#allocation7 + $0x158] sm:$0xff]
    %v4452 = vld [vmem:[#allocation7 + $0x160] sm:$0xff]
    %v4453 = vld [vmem:[#allocation7 + $0x168] sm:$0xff]
    %v4454 = vld [vmem:[#allocation7 + $0x170] sm:$0xff]
    %v4455 = vld [vmem:[#allocation7 + $0x178] sm:$0xff]
    %v4456 = vld [vmem:[#allocation7 + $0x180] sm:$0xff]
    %v4457 = vld [vmem:[#allocation7 + $0x188] sm:$0xff]
    %v4458 = vld [vmem:[#allocation7 + $0x190] sm:$0xff]
    %v4459 = vld [vmem:[#allocation7 + $0x198] sm:$0xff]
    %v4460 = vld [vmem:[#allocation7 + $0x1a0] sm:$0xff]
    %v4461 = vld [vmem:[#allocation7 + $0x1a8] sm:$0xff]
    %v4462 = vld [vmem:[#allocation7 + $0x1b0] sm:$0xff]
    %v4463 = vld [vmem:[#allocation7 + $0x1b8] sm:$0xff]
    %v4464 = vld [vmem:[#allocation7 + $0x1c0] sm:$0xff]
    %v4465 = vld [vmem:[#allocation7 + $0x1c8] sm:$0xff]
    %v4466 = vld [vmem:[#allocation7 + $0x1d0] sm:$0xff]
    %v4467 = vld [vmem:[#allocation7 + $0x1d8] sm:$0xff]
    %v4468 = vld [vmem:[#allocation7 + $0x1e0] sm:$0xff]
    %v4469 = vld [vmem:[#allocation7 + $0x1e8] sm:$0xff]
    %v4470 = vld [vmem:[#allocation7 + $0x1f0] sm:$0xff]
    %v4471 = vld [vmem:[#allocation7 + $0x1f8] sm:$0xff]
    %v4472 = vld [vmem:[#allocation7 + $0x200] sm:$0xff]
    %v4473 = vld [vmem:[#allocation7 + $0x208] sm:$0xff]
    %v4474 = vld [vmem:[#allocation7 + $0x210] sm:$0xff]
    %v4475 = vld [vmem:[#allocation7 + $0x218] sm:$0xff]
    %v4476 = vld [vmem:[#allocation7 + $0x220] sm:$0xff]
    %v4477 = vld [vmem:[#allocation7 + $0x228] sm:$0xff]
    %v4478 = vld [vmem:[#allocation7 + $0x230] sm:$0xff]
    %v4479 = vld [vmem:[#allocation7 + $0x238] sm:$0xff]
    %v4480 = vld [vmem:[#allocation7 + $0x240] sm:$0xff]
    %v4481 = vld [vmem:[#allocation7 + $0x248] sm:$0xff]
    %v4482 = vld [vmem:[#allocation7 + $0x250] sm:$0xff]
    %v4483 = vld [vmem:[#allocation7 + $0x258] sm:$0xff]
    %v4484 = vld [vmem:[#allocation7 + $0x260] sm:$0xff]
    %v4485 = vld [vmem:[#allocation7 + $0x268] sm:$0xff]
    %v4486 = vld [vmem:[#allocation7 + $0x270] sm:$0xff]
    %v4487 = vld [vmem:[#allocation7 + $0x278] sm:$0xff]
    %v4488 = vld [vmem:[#allocation7 + $0x280] sm:$0xff]
    %v4489 = vld [vmem:[#allocation7 + $0x288] sm:$0xff]
    %v4490 = vld [vmem:[#allocation7 + $0x290] sm:$0xff]
    %v4491 = vld [vmem:[#allocation7 + $0x298] sm:$0xff]
    %v4492 = vld [vmem:[#allocation7 + $0x2a0] sm:$0xff]
    %v4493 = vld [vmem:[#allocation7 + $0x2a8] sm:$0xff]
    %v4494 = vld [vmem:[#allocation7 + $0x2b0] sm:$0xff]
    %v4495 = vld [vmem:[#allocation7 + $0x2b8] sm:$0xff]
    %v4496 = vld [vmem:[#allocation7 + $0x2c0] sm:$0xff]
    %v4497 = vld [vmem:[#allocation7 + $0x2c8] sm:$0xff]
    %v4498 = vld [vmem:[#allocation7 + $0x2d0] sm:$0xff]
    %v4499 = vld [vmem:[#allocation7 + $0x2d8] sm:$0xff]
    %v4500 = vld [vmem:[#allocation7 + $0x2e0] sm:$0xff]
    %v4501 = vld [vmem:[#allocation7 + $0x2e8] sm:$0xff]
    %v4502 = vld [vmem:[#allocation7 + $0x2f0] sm:$0xff]
    %v4503 = vld [vmem:[#allocation7 + $0x2f8] sm:$0xff]
    %v4504 = vld [vmem:[#allocation7 + $0x300] sm:$0xff]
    %v4505 = vld [vmem:[#allocation7 + $0x308] sm:$0xff]
    %v4506 = vld [vmem:[#allocation7 + $0x310] sm:$0xff]
    %v4507 = vld [vmem:[#allocation7 + $0x318] sm:$0xff]
    %v4508 = vld [vmem:[#allocation7 + $0x320] sm:$0xff]
    %v4509 = vld [vmem:[#allocation7 + $0x328] sm:$0xff]
    %v4510 = vld [vmem:[#allocation7 + $0x330] sm:$0xff]
    %v4511 = vld [vmem:[#allocation7 + $0x338] sm:$0xff]
    %v4512 = vld [vmem:[#allocation7 + $0x340] sm:$0xff]
    %v4513 = vld [vmem:[#allocation7 + $0x348] sm:$0xff]
    %v4514 = vld [vmem:[#allocation7 + $0x350] sm:$0xff]
    %v4515 = vld [vmem:[#allocation7 + $0x358] sm:$0xff]
    %v4516 = vld [vmem:[#allocation7 + $0x360] sm:$0xff]
    %v4517 = vld [vmem:[#allocation7 + $0x368] sm:$0xff]
    %v4518 = vld [vmem:[#allocation7 + $0x370] sm:$0xff]
    %v4519 = vld [vmem:[#allocation7 + $0x378] sm:$0xff]
    %v4520 = vld [vmem:[#allocation7 + $0x380] sm:$0xff]
    %v4521 = vld [vmem:[#allocation7 + $0x388] sm:$0xff]
    %v4522 = vld [vmem:[#allocation7 + $0x390] sm:$0xff]
    %v4523 = vld [vmem:[#allocation7 + $0x398] sm:$0xff]
    %v4524 = vld [vmem:[#allocation7 + $0x3a0] sm:$0xff]
    %v4525 = vld [vmem:[#allocation7 + $0x3a8] sm:$0xff]
    %v4526 = vld [vmem:[#allocation7 + $0x3b0] sm:$0xff]
    %v4527 = vld [vmem:[#allocation7 + $0x3b8] sm:$0xff]
    %v4528 = vld [vmem:[#allocation7 + $0x3c0] sm:$0xff]
    %v4529 = vld [vmem:[#allocation7 + $0x3c8] sm:$0xff]
    %v4530 = vld [vmem:[#allocation7 + $0x3d0] sm:$0xff]
    %v4531 = vld [vmem:[#allocation7 + $0x3d8] sm:$0xff]
    %v4532 = vld [vmem:[#allocation7 + $0x3e0] sm:$0xff]
    %v4533 = vld [vmem:[#allocation7 + $0x3e8] sm:$0xff]
    %v4534 = vld [vmem:[#allocation7 + $0x3f0] sm:$0xff]
    %v4535 = vld [vmem:[#allocation7 + $0x3f8] sm:$0xff]
    %v4536 = vld [vmem:[#allocation7 + $0x400] sm:$0xff]
    %v4537 = vld [vmem:[#allocation7 + $0x408] sm:$0xff]
    %v4538 = vld [vmem:[#allocation7 + $0x410] sm:$0xff]
    %v4539 = vld [vmem:[#allocation7 + $0x418] sm:$0xff]
    %v4540 = vld [vmem:[#allocation7 + $0x420] sm:$0xff]
    %v4541 = vld [vmem:[#allocation7 + $0x428] sm:$0xff]
    %v4542 = vld [vmem:[#allocation7 + $0x430] sm:$0xff]
    %v4543 = vld [vmem:[#allocation7 + $0x438] sm:$0xff]
    %v4544 = vld [vmem:[#allocation7 + $0x440] sm:$0xff]
    %v4545 = vld [vmem:[#allocation7 + $0x448] sm:$0xff]
    %v4546 = vld [vmem:[#allocation7 + $0x450] sm:$0xff]
    %v4547 = vld [vmem:[#allocation7 + $0x458] sm:$0xff]
    %v4548 = vld [vmem:[#allocation7 + $0x460] sm:$0xff]
    %v4549 = vld [vmem:[#allocation7 + $0x468] sm:$0xff]
    %v4550 = vld [vmem:[#allocation7 + $0x470] sm:$0xff]
    %v4551 = vld [vmem:[#allocation7 + $0x478] sm:$0xff]
    %4552 = vmatprep.subr.mxu0 %v4529
    %4553 = vmatpush1.msra.mxu0 %v4528
    %4554 = vmatprep.subr.mxu0 %v4521
    %4555 = vmatpush1.msra.mxu0 %v4520
    %4556 = vmatprep.subr.mxu0 %v4513
    %4557 = vmatpush1.msra.mxu0 %v4512
    %4558 = vmatprep.subr.mxu0 %v4505
    %4559 = vmatpush1.msra.mxu0 %v4504
    %4560 = vmatprep.subr.mxu0 %v4497
    %4561 = vmatpush1.msra.mxu0 %v4496
    %4562 = vmatprep.subr.mxu0 %v4489
    %4563 = vmatpush1.msra.mxu0 %v4488
    %4564 = vmatprep.subr.mxu0 %v4481
    %4565 = vmatpush1.msra.mxu0 %v4480
    %4566 = vmatprep.subr.mxu0 %v4473
    %4567 = vmatpush1.msra.mxu0 %v4472
    %4568 = vmatprep.subr.mxu0 %v4465
    %4569 = vmatpush1.msra.mxu0 %v4464
    %4570 = vmatprep.subr.mxu0 %v4457
    %4571 = vmatpush1.msra.mxu0 %v4456
    %4572 = vmatprep.subr.mxu0 %v4449
    %4573 = vmatpush1.msra.mxu0 %v4448
    %4574 = vmatprep.subr.mxu0 %v4441
    %4575 = vmatpush1.msra.mxu0 %v4440
    %4576 = vmatprep.subr.mxu0 %v4433
    %4577 = vmatpush1.msra.mxu0 %v4432
    %4578 = vmatprep.subr.mxu0 %v4425
    %4579 = vmatpush1.msra.mxu0 %v4424
    %4580 = vmatprep.subr.mxu0 %v4417
    %4581 = vmatpush1.msra.mxu0 %v4416
    %4582 = vmatprep.subr.mxu0 %v4409
    %4583 = vmatpush1.msra.mxu0 %v4408
    %4584 = vmatprep.subr.mxu0 0.0
    %4585 = vmatpush2.msra.mxu0 0.0
    %4586 = vmatprep.subr.mxu0 0.0
    %4587 = vmatpush2.msra.mxu0 0.0
    %4588 = vmatprep.subr.mxu0 0.0
    %4589 = vmatpush2.msra.mxu0 0.0
    %4590 = vmatprep.subr.mxu0 0.0
    %4591 = vmatpush2.msra.mxu0 0.0
    %4592 = vmatprep.subr.mxu0 0.0
    %4593 = vmatpush2.msra.mxu0 0.0
    %4594 = vmatprep.subr.mxu0 0.0
    %4595 = vmatpush2.msra.mxu0 0.0
    %4596 = vmatprep.subr.mxu0 0.0
    %4597 = vmatpush2.msra.mxu0 0.0
    %4598 = vmatprep.subr.mxu0 0.0
    %4599 = vmatpush2.msra.mxu0 0.0
    %4600 = vmatprep.subr.mxu0 0.0
    %4601 = vmatpush2.msra.mxu0 0.0
    %4602 = vmatprep.subr.mxu0 0.0
    %4603 = vmatpush2.msra.mxu0 0.0
    %4604 = vmatprep.subr.mxu0 0.0
    %4605 = vmatpush2.msra.mxu0 0.0
    %4606 = vmatprep.subr.mxu0 0.0
    %4607 = vmatpush2.msra.mxu0 0.0
    %4608 = vmatprep.subr.mxu0 0.0
    %4609 = vmatpush2.msra.mxu0 0.0
    %4610 = vmatprep.subr.mxu0 0.0
    %4611 = vmatpush2.msra.mxu0 0.0
    %4612 = vmatprep.subr.mxu0 %v4545
    %4613 = vmatpush2.msra.mxu0 %v4544
    %4614 = vmatprep.subr.mxu0 %v4537
    %4615 = vmatpush2.msra.mxu0 %v4536
    %4616 = vmatprep.mubr.f32.mxu0 %v4252
    %4617 = vmatmul.mubr.f32.gmra.mxu0 %v4155
    %v4618 = vpop.f32.mrf.mxu0
    %v4619 = vadd.f32 0.0, %v4618
    %v4620 = vpop.f32.mrf.mxu0
    %v4621 = vadd.f32 0.0, %v4620
    %4622 = vdwg.mxu0
    %4623 = vmatprep.subr.mxu0 %v4531
    %4624 = vmatpush1.msra.mxu0 %v4530
    %4625 = vmatprep.subr.mxu0 %v4523
    %4626 = vmatpush1.msra.mxu0 %v4522
    %4627 = vmatprep.subr.mxu0 %v4515
    %4628 = vmatpush1.msra.mxu0 %v4514
    %4629 = vmatprep.subr.mxu0 %v4507
    %4630 = vmatpush1.msra.mxu0 %v4506
    %4631 = vmatprep.subr.mxu0 %v4499
    %4632 = vmatpush1.msra.mxu0 %v4498
    %4633 = vmatprep.subr.mxu0 %v4491
    %4634 = vmatpush1.msra.mxu0 %v4490
    %4635 = vmatprep.subr.mxu0 %v4483
    %4636 = vmatpush1.msra.mxu0 %v4482
    %4637 = vmatprep.subr.mxu0 %v4475
    %4638 = vmatpush1.msra.mxu0 %v4474
    %4639 = vmatprep.subr.mxu0 %v4467
    %4640 = vmatpush1.msra.mxu0 %v4466
    %4641 = vmatprep.subr.mxu0 %v4459
    %4642 = vmatpush1.msra.mxu0 %v4458
    %4643 = vmatprep.subr.mxu0 %v4451
    %4644 = vmatpush1.msra.mxu0 %v4450
    %4645 = vmatprep.subr.mxu0 %v4443
    %4646 = vmatpush1.msra.mxu0 %v4442
    %4647 = vmatprep.subr.mxu0 %v4435
    %4648 = vmatpush1.msra.mxu0 %v4434
    %4649 = vmatprep.subr.mxu0 %v4427
    %4650 = vmatpush1.msra.mxu0 %v4426
    %4651 = vmatprep.subr.mxu0 %v4419
    %4652 = vmatpush1.msra.mxu0 %v4418
    %4653 = vmatprep.subr.mxu0 %v4411
    %4654 = vmatpush1.msra.mxu0 %v4410
    %4655 = vmatprep.subr.mxu0 0.0
    %4656 = vmatpush2.msra.mxu0 0.0
    %4657 = vmatprep.subr.mxu0 0.0
    %4658 = vmatpush2.msra.mxu0 0.0
    %4659 = vmatprep.subr.mxu0 0.0
    %4660 = vmatpush2.msra.mxu0 0.0
    %4661 = vmatprep.subr.mxu0 0.0
    %4662 = vmatpush2.msra.mxu0 0.0
    %4663 = vmatprep.subr.mxu0 0.0
    %4664 = vmatpush2.msra.mxu0 0.0
    %4665 = vmatprep.subr.mxu0 0.0
    %4666 = vmatpush2.msra.mxu0 0.0
    %4667 = vmatprep.subr.mxu0 0.0
    %4668 = vmatpush2.msra.mxu0 0.0
    %4669 = vmatprep.subr.mxu0 0.0
    %4670 = vmatpush2.msra.mxu0 0.0
    %4671 = vmatprep.subr.mxu0 0.0
    %4672 = vmatpush2.msra.mxu0 0.0
    %4673 = vmatprep.subr.mxu0 0.0
    %4674 = vmatpush2.msra.mxu0 0.0
    %4675 = vmatprep.subr.mxu0 0.0
    %4676 = vmatpush2.msra.mxu0 0.0
    %4677 = vmatprep.subr.mxu0 0.0
    %4678 = vmatpush2.msra.mxu0 0.0
    %4679 = vmatprep.subr.mxu0 0.0
    %4680 = vmatpush2.msra.mxu0 0.0
    %4681 = vmatprep.subr.mxu0 0.0
    %4682 = vmatpush2.msra.mxu0 0.0
    %4683 = vmatprep.subr.mxu0 %v4547
    %4684 = vmatpush2.msra.mxu0 %v4546
    %4685 = vmatprep.subr.mxu0 %v4539
    %4686 = vmatpush2.msra.mxu0 %v4538
    %4687 = vmatprep.mubr.f32.mxu0 %v4252
    %4688 = vmatmul.mubr.f32.gmra.mxu0 %v4155
    %v4689 = vpop.f32.mrf.mxu0
    %v4690 = vadd.f32 0.0, %v4689
    %v4691 = vpop.f32.mrf.mxu0
    %v4692 = vadd.f32 0.0, %v4691
    %4693 = vdwg.mxu0
    %4694 = vmatprep.subr.mxu0 %v4533
    %4695 = vmatpush1.msra.mxu0 %v4532
    %4696 = vmatprep.subr.mxu0 %v4525
    %4697 = vmatpush1.msra.mxu0 %v4524
    %4698 = vmatprep.subr.mxu0 %v4517
    %4699 = vmatpush1.msra.mxu0 %v4516
    %4700 = vmatprep.subr.mxu0 %v4509
    %4701 = vmatpush1.msra.mxu0 %v4508
    %4702 = vmatprep.subr.mxu0 %v4501
    %4703 = vmatpush1.msra.mxu0 %v4500
    %4704 = vmatprep.subr.mxu0 %v4493
    %4705 = vmatpush1.msra.mxu0 %v4492
    %4706 = vmatprep.subr.mxu0 %v4485
    %4707 = vmatpush1.msra.mxu0 %v4484
    %4708 = vmatprep.subr.mxu0 %v4477
    %4709 = vmatpush1.msra.mxu0 %v4476
    %4710 = vmatprep.subr.mxu0 %v4469
    %4711 = vmatpush1.msra.mxu0 %v4468
    %4712 = vmatprep.subr.mxu0 %v4461
    %4713 = vmatpush1.msra.mxu0 %v4460
    %4714 = vmatprep.subr.mxu0 %v4453
    %4715 = vmatpush1.msra.mxu0 %v4452
    %4716 = vmatprep.subr.mxu0 %v4445
    %4717 = vmatpush1.msra.mxu0 %v4444
    %4718 = vmatprep.subr.mxu0 %v4437
    %4719 = vmatpush1.msra.mxu0 %v4436
    %4720 = vmatprep.subr.mxu0 %v4429
    %4721 = vmatpush1.msra.mxu0 %v4428
    %4722 = vmatprep.subr.mxu0 %v4421
    %4723 = vmatpush1.msra.mxu0 %v4420
    %4724 = vmatprep.subr.mxu0 %v4413
    %4725 = vmatpush1.msra.mxu0 %v4412
    %4726 = vmatprep.subr.mxu0 0.0
    %4727 = vmatpush2.msra.mxu0 0.0
    %4728 = vmatprep.subr.mxu0 0.0
    %4729 = vmatpush2.msra.mxu0 0.0
    %4730 = vmatprep.subr.mxu0 0.0
    %4731 = vmatpush2.msra.mxu0 0.0
    %4732 = vmatprep.subr.mxu0 0.0
    %4733 = vmatpush2.msra.mxu0 0.0
    %4734 = vmatprep.subr.mxu0 0.0
    %4735 = vmatpush2.msra.mxu0 0.0
    %4736 = vmatprep.subr.mxu0 0.0
    %4737 = vmatpush2.msra.mxu0 0.0
    %4738 = vmatprep.subr.mxu0 0.0
    %4739 = vmatpush2.msra.mxu0 0.0
    %4740 = vmatprep.subr.mxu0 0.0
    %4741 = vmatpush2.msra.mxu0 0.0
    %4742 = vmatprep.subr.mxu0 0.0
    %4743 = vmatpush2.msra.mxu0 0.0
    %4744 = vmatprep.subr.mxu0 0.0
    %4745 = vmatpush2.msra.mxu0 0.0
    %4746 = vmatprep.subr.mxu0 0.0
    %4747 = vmatpush2.msra.mxu0 0.0
    %4748 = vmatprep.subr.mxu0 0.0
    %4749 = vmatpush2.msra.mxu0 0.0
    %4750 = vmatprep.subr.mxu0 0.0
    %4751 = vmatpush2.msra.mxu0 0.0
    %4752 = vmatprep.subr.mxu0 0.0
    %4753 = vmatpush2.msra.mxu0 0.0
    %4754 = vmatprep.subr.mxu0 %v4549
    %4755 = vmatpush2.msra.mxu0 %v4548
    %4756 = vmatprep.subr.mxu0 %v4541
    %4757 = vmatpush2.msra.mxu0 %v4540
    %4758 = vmatprep.mubr.f32.mxu0 %v4252
    %4759 = vmatmul.mubr.f32.gmra.mxu0 %v4155
    %v4760 = vpop.f32.mrf.mxu0
    %v4761 = vadd.f32 0.0, %v4760
    %v4762 = vpop.f32.mrf.mxu0
    %v4763 = vadd.f32 0.0, %v4762
    %4764 = vdwg.mxu0
    %4765 = vmatprep.subr.mxu0 %v4535
    %4766 = vmatpush1.msra.mxu0 %v4534
    %4767 = vmatprep.subr.mxu0 %v4527
    %4768 = vmatpush1.msra.mxu0 %v4526
    %4769 = vmatprep.subr.mxu0 %v4519
    %4770 = vmatpush1.msra.mxu0 %v4518
    %4771 = vmatprep.subr.mxu0 %v4511
    %4772 = vmatpush1.msra.mxu0 %v4510
    %4773 = vmatprep.subr.mxu0 %v4503
    %4774 = vmatpush1.msra.mxu0 %v4502
    %4775 = vmatprep.subr.mxu0 %v4495
    %4776 = vmatpush1.msra.mxu0 %v4494
    %4777 = vmatprep.subr.mxu0 %v4487
    %4778 = vmatpush1.msra.mxu0 %v4486
    %4779 = vmatprep.subr.mxu0 %v4479
    %4780 = vmatpush1.msra.mxu0 %v4478
    %4781 = vmatprep.subr.mxu0 %v4471
    %4782 = vmatpush1.msra.mxu0 %v4470
    %4783 = vmatprep.subr.mxu0 %v4463
    %4784 = vmatpush1.msra.mxu0 %v4462
    %4785 = vmatprep.subr.mxu0 %v4455
    %4786 = vmatpush1.msra.mxu0 %v4454
    %4787 = vmatprep.subr.mxu0 %v4447
    %4788 = vmatpush1.msra.mxu0 %v4446
    %4789 = vmatprep.subr.mxu0 %v4439
    %4790 = vmatpush1.msra.mxu0 %v4438
    %4791 = vmatprep.subr.mxu0 %v4431
    %4792 = vmatpush1.msra.mxu0 %v4430
    %4793 = vmatprep.subr.mxu0 %v4423
    %4794 = vmatpush1.msra.mxu0 %v4422
    %4795 = vmatprep.subr.mxu0 %v4415
    %4796 = vmatpush1.msra.mxu0 %v4414
    %4797 = vmatprep.subr.mxu0 0.0
    %4798 = vmatpush2.msra.mxu0 0.0
    %4799 = vmatprep.subr.mxu0 0.0
    %4800 = vmatpush2.msra.mxu0 0.0
    %4801 = vmatprep.subr.mxu0 0.0
    %4802 = vmatpush2.msra.mxu0 0.0
    %4803 = vmatprep.subr.mxu0 0.0
    %4804 = vmatpush2.msra.mxu0 0.0
    %4805 = vmatprep.subr.mxu0 0.0
    %4806 = vmatpush2.msra.mxu0 0.0
    %4807 = vmatprep.subr.mxu0 0.0
    %4808 = vmatpush2.msra.mxu0 0.0
    %4809 = vmatprep.subr.mxu0 0.0
    %4810 = vmatpush2.msra.mxu0 0.0
    %4811 = vmatprep.subr.mxu0 0.0
    %4812 = vmatpush2.msra.mxu0 0.0
    %4813 = vmatprep.subr.mxu0 0.0
    %4814 = vmatpush2.msra.mxu0 0.0
    %4815 = vmatprep.subr.mxu0 0.0
    %4816 = vmatpush2.msra.mxu0 0.0
    %4817 = vmatprep.subr.mxu0 0.0
    %4818 = vmatpush2.msra.mxu0 0.0
    %4819 = vmatprep.subr.mxu0 0.0
    %4820 = vmatpush2.msra.mxu0 0.0
    %4821 = vmatprep.subr.mxu0 0.0
    %4822 = vmatpush2.msra.mxu0 0.0
    %4823 = vmatprep.subr.mxu0 0.0
    %4824 = vmatpush2.msra.mxu0 0.0
    %4825 = vmatprep.subr.mxu0 %v4551
    %4826 = vmatpush2.msra.mxu0 %v4550
    %4827 = vmatprep.subr.mxu0 %v4543
    %4828 = vmatpush2.msra.mxu0 %v4542
    %4829 = vmatprep.mubr.f32.mxu0 %v4252
    %4830 = vmatmul.mubr.f32.gmra.mxu0 %v4155
    %v4831 = vpop.f32.mrf.mxu0
    %v4832 = vadd.f32 0.0, %v4831
    %v4833 = vpop.f32.mrf.mxu0
    %v4834 = vadd.f32 0.0, %v4833
    %4835 = vdwg.mxu0
    %v4836 = vadd.f32 %v4400, %v4619
    %v4837 = vadd.f32 %v4401, %v4621
    %v4838 = vadd.f32 %v4402, %v4690
    %v4839 = vadd.f32 %v4403, %v4692
    %v4840 = vadd.f32 %v4404, %v4761
    %v4841 = vadd.f32 %v4405, %v4763
    %v4842 = vadd.f32 %v4406, %v4832
    %v4843 = vadd.f32 %v4407, %v4834
    %v4844 = vxor.u32 %v4836, 2147483648
    %v4845 = vxor.u32 %v4837, 2147483648
    %v4846 = vxor.u32 %v4838, 2147483648
    %v4847 = vxor.u32 %v4839, 2147483648
    %v4848 = vxor.u32 %v4840, 2147483648
    %v4849 = vxor.u32 %v4841, 2147483648
    %v4850 = vmul.f32 %v4844, 1.442695
    %v4851 = vpow.pop %v4850
    %v4852 = vmul.f32 %v4845, 1.442695
    %v4853 = vpow.pop %v4852
    %v4854 = vmul.f32 %v4846, 1.442695
    %v4855 = vpow.pop %v4854
    %v4856 = vmul.f32 %v4847, 1.442695
    %v4857 = vpow.pop %v4856
    %v4858 = vmul.f32 %v4848, 1.442695
    %v4859 = vpow.pop %v4858
    %v4860 = vmul.f32 %v4849, 1.442695
    %v4861 = vpow.pop %v4860
    %v4862 = vadd.f32 %v4851, 1.0
    %v4863 = vadd.f32 %v4853, 1.0
    %v4864 = vadd.f32 %v4855, 1.0
    %v4865 = vadd.f32 %v4857, 1.0
    %v4866 = vadd.f32 %v4859, 1.0
    %v4867 = vadd.f32 %v4861, 1.0
    %v4868 = vrcp.pop %v4862
    %v4869 = vmul.f32 1.0, %v4868
    %v4870 = vrcp.pop %v4863
    %v4871 = vmul.f32 1.0, %v4870
    %v4872 = vrcp.pop %v4864
    %v4873 = vmul.f32 1.0, %v4872
    %v4874 = vrcp.pop %v4865
    %v4875 = vmul.f32 1.0, %v4874
    %v4876 = vrcp.pop %v4866
    %v4877 = vmul.f32 1.0, %v4876
    %v4878 = vrcp.pop %v4867
    %v4879 = vmul.f32 1.0, %v4878
    %v4880 = vtanh.pop %v4842
    %v4881 = vtanh.pop %v4843
    %v4882 = vmul.f32 %v4873, %v4151
    %v4883 = vmul.f32 %v4875, %v4152
    %v4884 = vmul.f32 %v4869, %v4880
    %v4885 = vmul.f32 %v4871, %v4881
    %v4886 = vadd.f32 %v4882, %v4884
    %v4887 = vadd.f32 %v4883, %v4885
    %v4888 = vtanh.pop %v4886
    %v4889 = vtanh.pop %v4887
    %v4890 = vmul.f32 %v4877, %v4888
    %v4891 = vmul.f32 %v4879, %v4889
    %v4892 = vld [vmem:[#allocation9] sm:$0xff]
    %v4893 = vld [vmem:[#allocation9 + $0x8] sm:$0xff]
    %v4894 = vld [vmem:[#allocation9 + $0x10] sm:$0xff]
    %v4895 = vld [vmem:[#allocation9 + $0x18] sm:$0xff]
    %v4896 = vld [vmem:[#allocation9 + $0x20] sm:$0xff]
    %v4897 = vld [vmem:[#allocation9 + $0x28] sm:$0xff]
    %v4898 = vld [vmem:[#allocation9 + $0x30] sm:$0xff]
    %v4899 = vld [vmem:[#allocation9 + $0x38] sm:$0xff]
    %v4900 = vld [vmem:[#allocation9 + $0x40] sm:$0xff]
    %v4901 = vld [vmem:[#allocation9 + $0x48] sm:$0xff]
    %v4902 = vld [vmem:[#allocation9 + $0x50] sm:$0xff]
    %v4903 = vld [vmem:[#allocation9 + $0x58] sm:$0xff]
    %v4904 = vld [vmem:[#allocation9 + $0x60] sm:$0xff]
    %v4905 = vld [vmem:[#allocation9 + $0x68] sm:$0xff]
    %v4906 = vld [vmem:[#allocation9 + $0x70] sm:$0xff]
    %v4907 = vld [vmem:[#allocation9 + $0x78] sm:$0xff]
    %v4908 = vld [vmem:[#allocation9 + $0x80] sm:$0xff]
    %v4909 = vld [vmem:[#allocation9 + $0x88] sm:$0xff]
    %v4910 = vld [vmem:[#allocation9 + $0x90] sm:$0xff]
    %v4911 = vld [vmem:[#allocation9 + $0x98] sm:$0xff]
    %v4912 = vld [vmem:[#allocation9 + $0xa0] sm:$0xff]
    %v4913 = vld [vmem:[#allocation9 + $0xa8] sm:$0xff]
    %v4914 = vld [vmem:[#allocation9 + $0xb0] sm:$0xff]
    %v4915 = vld [vmem:[#allocation9 + $0xb8] sm:$0xff]
    %v4916 = vld [vmem:[#allocation9 + $0xc0] sm:$0xff]
    %v4917 = vld [vmem:[#allocation9 + $0xc8] sm:$0xff]
    %v4918 = vld [vmem:[#allocation9 + $0xd0] sm:$0xff]
    %v4919 = vld [vmem:[#allocation9 + $0xd8] sm:$0xff]
    %v4920 = vld [vmem:[#allocation9 + $0xe0] sm:$0xff]
    %v4921 = vld [vmem:[#allocation9 + $0xe8] sm:$0xff]
    %v4922 = vld [vmem:[#allocation9 + $0xf0] sm:$0xff]
    %v4923 = vld [vmem:[#allocation9 + $0xf8] sm:$0xff]
    %v4924 = vld [vmem:[#allocation9 + $0x100] sm:$0xff]
    %v4925 = vld [vmem:[#allocation9 + $0x108] sm:$0xff]
    %v4926 = vld [vmem:[#allocation9 + $0x110] sm:$0xff]
    %v4927 = vld [vmem:[#allocation9 + $0x118] sm:$0xff]
    %v4928 = vld [vmem:[#allocation9 + $0x120] sm:$0xff]
    %v4929 = vld [vmem:[#allocation9 + $0x128] sm:$0xff]
    %v4930 = vld [vmem:[#allocation9 + $0x130] sm:$0xff]
    %v4931 = vld [vmem:[#allocation9 + $0x138] sm:$0xff]
    %v4932 = vld [vmem:[#allocation9 + $0x140] sm:$0xff]
    %v4933 = vld [vmem:[#allocation9 + $0x148] sm:$0xff]
    %v4934 = vld [vmem:[#allocation9 + $0x150] sm:$0xff]
    %v4935 = vld [vmem:[#allocation9 + $0x158] sm:$0xff]
    %v4936 = vld [vmem:[#allocation9 + $0x160] sm:$0xff]
    %v4937 = vld [vmem:[#allocation9 + $0x168] sm:$0xff]
    %v4938 = vld [vmem:[#allocation9 + $0x170] sm:$0xff]
    %v4939 = vld [vmem:[#allocation9 + $0x178] sm:$0xff]
    %v4940 = vld [vmem:[#allocation9 + $0x180] sm:$0xff]
    %v4941 = vld [vmem:[#allocation9 + $0x188] sm:$0xff]
    %v4942 = vld [vmem:[#allocation9 + $0x190] sm:$0xff]
    %v4943 = vld [vmem:[#allocation9 + $0x198] sm:$0xff]
    %v4944 = vld [vmem:[#allocation9 + $0x1a0] sm:$0xff]
    %v4945 = vld [vmem:[#allocation9 + $0x1a8] sm:$0xff]
    %v4946 = vld [vmem:[#allocation9 + $0x1b0] sm:$0xff]
    %v4947 = vld [vmem:[#allocation9 + $0x1b8] sm:$0xff]
    %v4948 = vld [vmem:[#allocation9 + $0x1c0] sm:$0xff]
    %v4949 = vld [vmem:[#allocation9 + $0x1c8] sm:$0xff]
    %v4950 = vld [vmem:[#allocation9 + $0x1d0] sm:$0xff]
    %v4951 = vld [vmem:[#allocation9 + $0x1d8] sm:$0xff]
    %v4952 = vld [vmem:[#allocation9 + $0x1e0] sm:$0xff]
    %v4953 = vld [vmem:[#allocation9 + $0x1e8] sm:$0xff]
    %v4954 = vld [vmem:[#allocation9 + $0x1f0] sm:$0xff]
    %v4955 = vld [vmem:[#allocation9 + $0x1f8] sm:$0xff]
    %v4956 = vld [vmem:[#allocation9 + $0x200] sm:$0xff]
    %v4957 = vld [vmem:[#allocation9 + $0x208] sm:$0xff]
    %v4958 = vld [vmem:[#allocation9 + $0x210] sm:$0xff]
    %v4959 = vld [vmem:[#allocation9 + $0x218] sm:$0xff]
    %v4960 = vld [vmem:[#allocation9 + $0x220] sm:$0xff]
    %v4961 = vld [vmem:[#allocation9 + $0x228] sm:$0xff]
    %v4962 = vld [vmem:[#allocation9 + $0x230] sm:$0xff]
    %v4963 = vld [vmem:[#allocation9 + $0x238] sm:$0xff]
    %v4964 = vld [vmem:[%s6] sm:$0xf]
    %v4966 = vlaneseq
    %v4967 = vshrl.u32 %v4966, 7
    %v4968 = vsub.s32 0, %v4967
    %v4969 = vrot.slane %v4964, %v4968
    %v4970 = vlaneseq
    %v4971 = vshrl.u32 %v4970, 7
    %v4972 = vsub.s32 1, %v4971
    %v4973 = vrot.slane %v4964, %v4972
    %v4974 = vlaneseq
    %v4975 = vshrl.u32 %v4974, 7
    %v4976 = vsub.s32 2, %v4975
    %v4977 = vrot.slane %v4964, %v4976
    %v4978 = vlaneseq
    %v4979 = vshrl.u32 %v4978, 7
    %v4980 = vsub.s32 3, %v4979
    %v4981 = vrot.slane %v4964, %v4980
    %v4987 = vsel %vm873, %v4891, 0
    %4989 = vmatprep.subr.mxu0 %v4953
    %4990 = vmatpush1.msra.mxu0 %v4952
    %4991 = vmatprep.subr.mxu0 %v4949
    %4992 = vmatpush1.msra.mxu0 %v4948
    %4993 = vmatprep.subr.mxu0 %v4945
    %4994 = vmatpush1.msra.mxu0 %v4944
    %4995 = vmatprep.subr.mxu0 %v4941
    %4996 = vmatpush1.msra.mxu0 %v4940
    %4997 = vmatprep.subr.mxu0 %v4937
    %4998 = vmatpush1.msra.mxu0 %v4936
    %4999 = vmatprep.subr.mxu0 %v4933
    %5000 = vmatpush1.msra.mxu0 %v4932
    %5001 = vmatprep.subr.mxu0 %v4929
    %5002 = vmatpush1.msra.mxu0 %v4928
    %5003 = vmatprep.subr.mxu0 %v4925
    %5004 = vmatpush1.msra.mxu0 %v4924
    %5005 = vmatprep.subr.mxu0 %v4921
    %5006 = vmatpush1.msra.mxu0 %v4920
    %5007 = vmatprep.subr.mxu0 %v4917
    %5008 = vmatpush1.msra.mxu0 %v4916
    %5009 = vmatprep.subr.mxu0 %v4913
    %5010 = vmatpush1.msra.mxu0 %v4912
    %5011 = vmatprep.subr.mxu0 %v4909
    %5012 = vmatpush1.msra.mxu0 %v4908
    %5013 = vmatprep.subr.mxu0 %v4905
    %5014 = vmatpush1.msra.mxu0 %v4904
    %5015 = vmatprep.subr.mxu0 %v4901
    %5016 = vmatpush1.msra.mxu0 %v4900
    %5017 = vmatprep.subr.mxu0 %v4897
    %5018 = vmatpush1.msra.mxu0 %v4896
    %5019 = vmatprep.subr.mxu0 %v4893
    %5020 = vmatpush1.msra.mxu0 %v4892
    %5021 = vmatprep.subr.mxu0 0.0
    %5022 = vmatpush2.msra.mxu0 0.0
    %5023 = vmatprep.subr.mxu0 0.0
    %5024 = vmatpush2.msra.mxu0 0.0
    %5025 = vmatprep.subr.mxu0 0.0
    %5026 = vmatpush2.msra.mxu0 0.0
    %5027 = vmatprep.subr.mxu0 0.0
    %5028 = vmatpush2.msra.mxu0 0.0
    %5029 = vmatprep.subr.mxu0 0.0
    %5030 = vmatpush2.msra.mxu0 0.0
    %5031 = vmatprep.subr.mxu0 0.0
    %5032 = vmatpush2.msra.mxu0 0.0
    %5033 = vmatprep.subr.mxu0 0.0
    %5034 = vmatpush2.msra.mxu0 0.0
    %5035 = vmatprep.subr.mxu0 0.0
    %5036 = vmatpush2.msra.mxu0 0.0
    %5037 = vmatprep.subr.mxu0 0.0
    %5038 = vmatpush2.msra.mxu0 0.0
    %5039 = vmatprep.subr.mxu0 0.0
    %5040 = vmatpush2.msra.mxu0 0.0
    %5041 = vmatprep.subr.mxu0 0.0
    %5042 = vmatpush2.msra.mxu0 0.0
    %5043 = vmatprep.subr.mxu0 0.0
    %5044 = vmatpush2.msra.mxu0 0.0
    %5045 = vmatprep.subr.mxu0 0.0
    %5046 = vmatpush2.msra.mxu0 0.0
    %5047 = vmatprep.subr.mxu0 0.0
    %5048 = vmatpush2.msra.mxu0 0.0
    %5049 = vmatprep.subr.mxu0 %v4961
    %5050 = vmatpush2.msra.mxu0 %v4960
    %5051 = vmatprep.subr.mxu0 %v4957
    %5052 = vmatpush2.msra.mxu0 %v4956
    %5053 = vmatprep.mubr.f32.mxu0 %v4987
    %5054 = vmatmul.mubr.f32.gmra.mxu0 %v4890
    %v5055 = vpop.f32.mrf.mxu0
    %v5056 = vadd.f32 %v4969, %v5055
    %v5057 = vpop.f32.mrf.mxu0
    %v5058 = vadd.f32 %v4973, %v5057
    %5059 = vdwg.mxu0
    %5060 = vmatprep.subr.mxu0 %v4955
    %5061 = vmatpush1.msra.mxu0 %v4954
    %5062 = vmatprep.subr.mxu0 %v4951
    %5063 = vmatpush1.msra.mxu0 %v4950
    %5064 = vmatprep.subr.mxu0 %v4947
    %5065 = vmatpush1.msra.mxu0 %v4946
    %5066 = vmatprep.subr.mxu0 %v4943
    %5067 = vmatpush1.msra.mxu0 %v4942
    %5068 = vmatprep.subr.mxu0 %v4939
    %5069 = vmatpush1.msra.mxu0 %v4938
    %5070 = vmatprep.subr.mxu0 %v4935
    %5071 = vmatpush1.msra.mxu0 %v4934
    %5072 = vmatprep.subr.mxu0 %v4931
    %5073 = vmatpush1.msra.mxu0 %v4930
    %5074 = vmatprep.subr.mxu0 %v4927
    %5075 = vmatpush1.msra.mxu0 %v4926
    %5076 = vmatprep.subr.mxu0 %v4923
    %5077 = vmatpush1.msra.mxu0 %v4922
    %5078 = vmatprep.subr.mxu0 %v4919
    %5079 = vmatpush1.msra.mxu0 %v4918
    %5080 = vmatprep.subr.mxu0 %v4915
    %5081 = vmatpush1.msra.mxu0 %v4914
    %5082 = vmatprep.subr.mxu0 %v4911
    %5083 = vmatpush1.msra.mxu0 %v4910
    %5084 = vmatprep.subr.mxu0 %v4907
    %5085 = vmatpush1.msra.mxu0 %v4906
    %5086 = vmatprep.subr.mxu0 %v4903
    %5087 = vmatpush1.msra.mxu0 %v4902
    %5088 = vmatprep.subr.mxu0 %v4899
    %5089 = vmatpush1.msra.mxu0 %v4898
    %5090 = vmatprep.subr.mxu0 %v4895
    %5091 = vmatpush1.msra.mxu0 %v4894
    %5092 = vmatprep.subr.mxu0 0.0
    %5093 = vmatpush2.msra.mxu0 0.0
    %5094 = vmatprep.subr.mxu0 0.0
    %5095 = vmatpush2.msra.mxu0 0.0
    %5096 = vmatprep.subr.mxu0 0.0
    %5097 = vmatpush2.msra.mxu0 0.0
    %5098 = vmatprep.subr.mxu0 0.0
    %5099 = vmatpush2.msra.mxu0 0.0
    %5100 = vmatprep.subr.mxu0 0.0
    %5101 = vmatpush2.msra.mxu0 0.0
    %5102 = vmatprep.subr.mxu0 0.0
    %5103 = vmatpush2.msra.mxu0 0.0
    %5104 = vmatprep.subr.mxu0 0.0
    %5105 = vmatpush2.msra.mxu0 0.0
    %5106 = vmatprep.subr.mxu0 0.0
    %5107 = vmatpush2.msra.mxu0 0.0
    %5108 = vmatprep.subr.mxu0 0.0
    %5109 = vmatpush2.msra.mxu0 0.0
    %5110 = vmatprep.subr.mxu0 0.0
    %5111 = vmatpush2.msra.mxu0 0.0
    %5112 = vmatprep.subr.mxu0 0.0
    %5113 = vmatpush2.msra.mxu0 0.0
    %5114 = vmatprep.subr.mxu0 0.0
    %5115 = vmatpush2.msra.mxu0 0.0
    %5116 = vmatprep.subr.mxu0 0.0
    %5117 = vmatpush2.msra.mxu0 0.0
    %5118 = vmatprep.subr.mxu0 0.0
    %5119 = vmatpush2.msra.mxu0 0.0
    %5120 = vmatprep.subr.mxu0 %v4963
    %5121 = vmatpush2.msra.mxu0 %v4962
    %5122 = vmatprep.subr.mxu0 %v4959
    %5123 = vmatpush2.msra.mxu0 %v4958
    %5124 = vmatprep.mubr.f32.mxu0 %v4987
    %5125 = vmatmul.mubr.f32.gmra.mxu0 %v4890
    %v5126 = vpop.f32.mrf.mxu0
    %v5127 = vadd.f32 %v4977, %v5126
    %v5128 = vpop.f32.mrf.mxu0
    %v5129 = vadd.f32 %v4981, %v5128
    %5130 = vdwg.mxu0
    %5131 = vst [vmem:[#allocation3 + $0xa0] sm:$0xff] %v5056
    %5132 = vst [vmem:[#allocation3 + $0xa8] sm:$0xff] %v5058
    %5133 = vst [vmem:[#allocation3 + $0xb0] sm:$0xff] %v5127
    %5134 = vst [vmem:[#allocation3 + $0xb8] sm:$0xff] %v5129
    %v5135 = vld [vmem:[#allocation2 + $0x180] sm:$0xff]
    %v5136 = vld [vmem:[#allocation2 + $0x188] sm:$0xff]
    %v5137 = vld [vmem:[#allocation2 + $0x190] sm:$0xff]
    %v5138 = vld [vmem:[#allocation2 + $0x198] sm:$0xff]
    %v5139 = vld [vmem:[#allocation2 + $0x1a0] sm:$0xff]
    %v5140 = vld [vmem:[#allocation2 + $0x1a8] sm:$0xff]
    %v5141 = vld [vmem:[#allocation2 + $0x1b0] sm:$0xff]
    %v5142 = vld [vmem:[#allocation2 + $0x1b8] sm:$0xff]
    %v5143 = vld [vmem:[#allocation7] sm:$0xff]
    %v5144 = vld [vmem:[#allocation7 + $0x8] sm:$0xff]
    %v5145 = vld [vmem:[#allocation7 + $0x10] sm:$0xff]
    %v5146 = vld [vmem:[#allocation7 + $0x18] sm:$0xff]
    %v5147 = vld [vmem:[#allocation7 + $0x20] sm:$0xff]
    %v5148 = vld [vmem:[#allocation7 + $0x28] sm:$0xff]
    %v5149 = vld [vmem:[#allocation7 + $0x30] sm:$0xff]
    %v5150 = vld [vmem:[#allocation7 + $0x38] sm:$0xff]
    %v5151 = vld [vmem:[#allocation7 + $0x40] sm:$0xff]
    %v5152 = vld [vmem:[#allocation7 + $0x48] sm:$0xff]
    %v5153 = vld [vmem:[#allocation7 + $0x50] sm:$0xff]
    %v5154 = vld [vmem:[#allocation7 + $0x58] sm:$0xff]
    %v5155 = vld [vmem:[#allocation7 + $0x60] sm:$0xff]
    %v5156 = vld [vmem:[#allocation7 + $0x68] sm:$0xff]
    %v5157 = vld [vmem:[#allocation7 + $0x70] sm:$0xff]
    %v5158 = vld [vmem:[#allocation7 + $0x78] sm:$0xff]
    %v5159 = vld [vmem:[#allocation7 + $0x80] sm:$0xff]
    %v5160 = vld [vmem:[#allocation7 + $0x88] sm:$0xff]
    %v5161 = vld [vmem:[#allocation7 + $0x90] sm:$0xff]
    %v5162 = vld [vmem:[#allocation7 + $0x98] sm:$0xff]
    %v5163 = vld [vmem:[#allocation7 + $0xa0] sm:$0xff]
    %v5164 = vld [vmem:[#allocation7 + $0xa8] sm:$0xff]
    %v5165 = vld [vmem:[#allocation7 + $0xb0] sm:$0xff]
    %v5166 = vld [vmem:[#allocation7 + $0xb8] sm:$0xff]
    %v5167 = vld [vmem:[#allocation7 + $0xc0] sm:$0xff]
    %v5168 = vld [vmem:[#allocation7 + $0xc8] sm:$0xff]
    %v5169 = vld [vmem:[#allocation7 + $0xd0] sm:$0xff]
    %v5170 = vld [vmem:[#allocation7 + $0xd8] sm:$0xff]
    %v5171 = vld [vmem:[#allocation7 + $0xe0] sm:$0xff]
    %v5172 = vld [vmem:[#allocation7 + $0xe8] sm:$0xff]
    %v5173 = vld [vmem:[#allocation7 + $0xf0] sm:$0xff]
    %v5174 = vld [vmem:[#allocation7 + $0xf8] sm:$0xff]
    %v5175 = vld [vmem:[#allocation7 + $0x100] sm:$0xff]
    %v5176 = vld [vmem:[#allocation7 + $0x108] sm:$0xff]
    %v5177 = vld [vmem:[#allocation7 + $0x110] sm:$0xff]
    %v5178 = vld [vmem:[#allocation7 + $0x118] sm:$0xff]
    %v5179 = vld [vmem:[#allocation7 + $0x120] sm:$0xff]
    %v5180 = vld [vmem:[#allocation7 + $0x128] sm:$0xff]
    %v5181 = vld [vmem:[#allocation7 + $0x130] sm:$0xff]
    %v5182 = vld [vmem:[#allocation7 + $0x138] sm:$0xff]
    %v5183 = vld [vmem:[#allocation7 + $0x140] sm:$0xff]
    %v5184 = vld [vmem:[#allocation7 + $0x148] sm:$0xff]
    %v5185 = vld [vmem:[#allocation7 + $0x150] sm:$0xff]
    %v5186 = vld [vmem:[#allocation7 + $0x158] sm:$0xff]
    %v5187 = vld [vmem:[#allocation7 + $0x160] sm:$0xff]
    %v5188 = vld [vmem:[#allocation7 + $0x168] sm:$0xff]
    %v5189 = vld [vmem:[#allocation7 + $0x170] sm:$0xff]
    %v5190 = vld [vmem:[#allocation7 + $0x178] sm:$0xff]
    %v5191 = vld [vmem:[#allocation7 + $0x180] sm:$0xff]
    %v5192 = vld [vmem:[#allocation7 + $0x188] sm:$0xff]
    %v5193 = vld [vmem:[#allocation7 + $0x190] sm:$0xff]
    %v5194 = vld [vmem:[#allocation7 + $0x198] sm:$0xff]
    %v5195 = vld [vmem:[#allocation7 + $0x1a0] sm:$0xff]
    %v5196 = vld [vmem:[#allocation7 + $0x1a8] sm:$0xff]
    %v5197 = vld [vmem:[#allocation7 + $0x1b0] sm:$0xff]
    %v5198 = vld [vmem:[#allocation7 + $0x1b8] sm:$0xff]
    %v5199 = vld [vmem:[#allocation7 + $0x1c0] sm:$0xff]
    %v5200 = vld [vmem:[#allocation7 + $0x1c8] sm:$0xff]
    %v5201 = vld [vmem:[#allocation7 + $0x1d0] sm:$0xff]
    %v5202 = vld [vmem:[#allocation7 + $0x1d8] sm:$0xff]
    %v5203 = vld [vmem:[#allocation7 + $0x1e0] sm:$0xff]
    %v5204 = vld [vmem:[#allocation7 + $0x1e8] sm:$0xff]
    %v5205 = vld [vmem:[#allocation7 + $0x1f0] sm:$0xff]
    %v5206 = vld [vmem:[#allocation7 + $0x1f8] sm:$0xff]
    %v5207 = vld [vmem:[#allocation7 + $0x200] sm:$0xff]
    %v5208 = vld [vmem:[#allocation7 + $0x208] sm:$0xff]
    %v5209 = vld [vmem:[#allocation7 + $0x210] sm:$0xff]
    %v5210 = vld [vmem:[#allocation7 + $0x218] sm:$0xff]
    %v5211 = vld [vmem:[#allocation7 + $0x220] sm:$0xff]
    %v5212 = vld [vmem:[#allocation7 + $0x228] sm:$0xff]
    %v5213 = vld [vmem:[#allocation7 + $0x230] sm:$0xff]
    %v5214 = vld [vmem:[#allocation7 + $0x238] sm:$0xff]
    %v5215 = vld [vmem:[#allocation7 + $0x240] sm:$0xff]
    %v5216 = vld [vmem:[#allocation7 + $0x248] sm:$0xff]
    %v5217 = vld [vmem:[#allocation7 + $0x250] sm:$0xff]
    %v5218 = vld [vmem:[#allocation7 + $0x258] sm:$0xff]
    %v5219 = vld [vmem:[#allocation7 + $0x260] sm:$0xff]
    %v5220 = vld [vmem:[#allocation7 + $0x268] sm:$0xff]
    %v5221 = vld [vmem:[#allocation7 + $0x270] sm:$0xff]
    %v5222 = vld [vmem:[#allocation7 + $0x278] sm:$0xff]
    %v5223 = vld [vmem:[#allocation7 + $0x280] sm:$0xff]
    %v5224 = vld [vmem:[#allocation7 + $0x288] sm:$0xff]
    %v5225 = vld [vmem:[#allocation7 + $0x290] sm:$0xff]
    %v5226 = vld [vmem:[#allocation7 + $0x298] sm:$0xff]
    %v5227 = vld [vmem:[#allocation7 + $0x2a0] sm:$0xff]
    %v5228 = vld [vmem:[#allocation7 + $0x2a8] sm:$0xff]
    %v5229 = vld [vmem:[#allocation7 + $0x2b0] sm:$0xff]
    %v5230 = vld [vmem:[#allocation7 + $0x2b8] sm:$0xff]
    %v5231 = vld [vmem:[#allocation7 + $0x2c0] sm:$0xff]
    %v5232 = vld [vmem:[#allocation7 + $0x2c8] sm:$0xff]
    %v5233 = vld [vmem:[#allocation7 + $0x2d0] sm:$0xff]
    %v5234 = vld [vmem:[#allocation7 + $0x2d8] sm:$0xff]
    %v5235 = vld [vmem:[#allocation7 + $0x2e0] sm:$0xff]
    %v5236 = vld [vmem:[#allocation7 + $0x2e8] sm:$0xff]
    %v5237 = vld [vmem:[#allocation7 + $0x2f0] sm:$0xff]
    %v5238 = vld [vmem:[#allocation7 + $0x2f8] sm:$0xff]
    %v5239 = vld [vmem:[#allocation7 + $0x300] sm:$0xff]
    %v5240 = vld [vmem:[#allocation7 + $0x308] sm:$0xff]
    %v5241 = vld [vmem:[#allocation7 + $0x310] sm:$0xff]
    %v5242 = vld [vmem:[#allocation7 + $0x318] sm:$0xff]
    %v5243 = vld [vmem:[#allocation7 + $0x320] sm:$0xff]
    %v5244 = vld [vmem:[#allocation7 + $0x328] sm:$0xff]
    %v5245 = vld [vmem:[#allocation7 + $0x330] sm:$0xff]
    %v5246 = vld [vmem:[#allocation7 + $0x338] sm:$0xff]
    %v5247 = vld [vmem:[#allocation7 + $0x340] sm:$0xff]
    %v5248 = vld [vmem:[#allocation7 + $0x348] sm:$0xff]
    %v5249 = vld [vmem:[#allocation7 + $0x350] sm:$0xff]
    %v5250 = vld [vmem:[#allocation7 + $0x358] sm:$0xff]
    %v5251 = vld [vmem:[#allocation7 + $0x360] sm:$0xff]
    %v5252 = vld [vmem:[#allocation7 + $0x368] sm:$0xff]
    %v5253 = vld [vmem:[#allocation7 + $0x370] sm:$0xff]
    %v5254 = vld [vmem:[#allocation7 + $0x378] sm:$0xff]
    %v5255 = vld [vmem:[#allocation7 + $0x380] sm:$0xff]
    %v5256 = vld [vmem:[#allocation7 + $0x388] sm:$0xff]
    %v5257 = vld [vmem:[#allocation7 + $0x390] sm:$0xff]
    %v5258 = vld [vmem:[#allocation7 + $0x398] sm:$0xff]
    %v5259 = vld [vmem:[#allocation7 + $0x3a0] sm:$0xff]
    %v5260 = vld [vmem:[#allocation7 + $0x3a8] sm:$0xff]
    %v5261 = vld [vmem:[#allocation7 + $0x3b0] sm:$0xff]
    %v5262 = vld [vmem:[#allocation7 + $0x3b8] sm:$0xff]
    %v5263 = vld [vmem:[#allocation7 + $0x3c0] sm:$0xff]
    %v5264 = vld [vmem:[#allocation7 + $0x3c8] sm:$0xff]
    %v5265 = vld [vmem:[#allocation7 + $0x3d0] sm:$0xff]
    %v5266 = vld [vmem:[#allocation7 + $0x3d8] sm:$0xff]
    %v5267 = vld [vmem:[#allocation7 + $0x3e0] sm:$0xff]
    %v5268 = vld [vmem:[#allocation7 + $0x3e8] sm:$0xff]
    %v5269 = vld [vmem:[#allocation7 + $0x3f0] sm:$0xff]
    %v5270 = vld [vmem:[#allocation7 + $0x3f8] sm:$0xff]
    %v5271 = vld [vmem:[#allocation7 + $0x400] sm:$0xff]
    %v5272 = vld [vmem:[#allocation7 + $0x408] sm:$0xff]
    %v5273 = vld [vmem:[#allocation7 + $0x410] sm:$0xff]
    %v5274 = vld [vmem:[#allocation7 + $0x418] sm:$0xff]
    %v5275 = vld [vmem:[#allocation7 + $0x420] sm:$0xff]
    %v5276 = vld [vmem:[#allocation7 + $0x428] sm:$0xff]
    %v5277 = vld [vmem:[#allocation7 + $0x430] sm:$0xff]
    %v5278 = vld [vmem:[#allocation7 + $0x438] sm:$0xff]
    %v5279 = vld [vmem:[#allocation7 + $0x440] sm:$0xff]
    %v5280 = vld [vmem:[#allocation7 + $0x448] sm:$0xff]
    %v5281 = vld [vmem:[#allocation7 + $0x450] sm:$0xff]
    %v5282 = vld [vmem:[#allocation7 + $0x458] sm:$0xff]
    %v5283 = vld [vmem:[#allocation7 + $0x460] sm:$0xff]
    %v5284 = vld [vmem:[#allocation7 + $0x468] sm:$0xff]
    %v5285 = vld [vmem:[#allocation7 + $0x470] sm:$0xff]
    %v5286 = vld [vmem:[#allocation7 + $0x478] sm:$0xff]
    %5287 = vmatprep.subr.mxu0 %v5264
    %5288 = vmatpush1.msra.mxu0 %v5263
    %5289 = vmatprep.subr.mxu0 %v5256
    %5290 = vmatpush1.msra.mxu0 %v5255
    %5291 = vmatprep.subr.mxu0 %v5248
    %5292 = vmatpush1.msra.mxu0 %v5247
    %5293 = vmatprep.subr.mxu0 %v5240
    %5294 = vmatpush1.msra.mxu0 %v5239
    %5295 = vmatprep.subr.mxu0 %v5232
    %5296 = vmatpush1.msra.mxu0 %v5231
    %5297 = vmatprep.subr.mxu0 %v5224
    %5298 = vmatpush1.msra.mxu0 %v5223
    %5299 = vmatprep.subr.mxu0 %v5216
    %5300 = vmatpush1.msra.mxu0 %v5215
    %5301 = vmatprep.subr.mxu0 %v5208
    %5302 = vmatpush1.msra.mxu0 %v5207
    %5303 = vmatprep.subr.mxu0 %v5200
    %5304 = vmatpush1.msra.mxu0 %v5199
    %5305 = vmatprep.subr.mxu0 %v5192
    %5306 = vmatpush1.msra.mxu0 %v5191
    %5307 = vmatprep.subr.mxu0 %v5184
    %5308 = vmatpush1.msra.mxu0 %v5183
    %5309 = vmatprep.subr.mxu0 %v5176
    %5310 = vmatpush1.msra.mxu0 %v5175
    %5311 = vmatprep.subr.mxu0 %v5168
    %5312 = vmatpush1.msra.mxu0 %v5167
    %5313 = vmatprep.subr.mxu0 %v5160
    %5314 = vmatpush1.msra.mxu0 %v5159
    %5315 = vmatprep.subr.mxu0 %v5152
    %5316 = vmatpush1.msra.mxu0 %v5151
    %5317 = vmatprep.subr.mxu0 %v5144
    %5318 = vmatpush1.msra.mxu0 %v5143
    %5319 = vmatprep.subr.mxu0 0.0
    %5320 = vmatpush2.msra.mxu0 0.0
    %5321 = vmatprep.subr.mxu0 0.0
    %5322 = vmatpush2.msra.mxu0 0.0
    %5323 = vmatprep.subr.mxu0 0.0
    %5324 = vmatpush2.msra.mxu0 0.0
    %5325 = vmatprep.subr.mxu0 0.0
    %5326 = vmatpush2.msra.mxu0 0.0
    %5327 = vmatprep.subr.mxu0 0.0
    %5328 = vmatpush2.msra.mxu0 0.0
    %5329 = vmatprep.subr.mxu0 0.0
    %5330 = vmatpush2.msra.mxu0 0.0
    %5331 = vmatprep.subr.mxu0 0.0
    %5332 = vmatpush2.msra.mxu0 0.0
    %5333 = vmatprep.subr.mxu0 0.0
    %5334 = vmatpush2.msra.mxu0 0.0
    %5335 = vmatprep.subr.mxu0 0.0
    %5336 = vmatpush2.msra.mxu0 0.0
    %5337 = vmatprep.subr.mxu0 0.0
    %5338 = vmatpush2.msra.mxu0 0.0
    %5339 = vmatprep.subr.mxu0 0.0
    %5340 = vmatpush2.msra.mxu0 0.0
    %5341 = vmatprep.subr.mxu0 0.0
    %5342 = vmatpush2.msra.mxu0 0.0
    %5343 = vmatprep.subr.mxu0 0.0
    %5344 = vmatpush2.msra.mxu0 0.0
    %5345 = vmatprep.subr.mxu0 0.0
    %5346 = vmatpush2.msra.mxu0 0.0
    %5347 = vmatprep.subr.mxu0 %v5280
    %5348 = vmatpush2.msra.mxu0 %v5279
    %5349 = vmatprep.subr.mxu0 %v5272
    %5350 = vmatpush2.msra.mxu0 %v5271
    %5351 = vmatprep.mubr.f32.mxu0 %v4987
    %5352 = vmatmul.mubr.f32.gmra.mxu0 %v4890
    %v5353 = vpop.f32.mrf.mxu0
    %v5354 = vadd.f32 0.0, %v5353
    %v5355 = vpop.f32.mrf.mxu0
    %v5356 = vadd.f32 0.0, %v5355
    %5357 = vdwg.mxu0
    %5358 = vmatprep.subr.mxu0 %v5266
    %5359 = vmatpush1.msra.mxu0 %v5265
    %5360 = vmatprep.subr.mxu0 %v5258
    %5361 = vmatpush1.msra.mxu0 %v5257
    %5362 = vmatprep.subr.mxu0 %v5250
    %5363 = vmatpush1.msra.mxu0 %v5249
    %5364 = vmatprep.subr.mxu0 %v5242
    %5365 = vmatpush1.msra.mxu0 %v5241
    %5366 = vmatprep.subr.mxu0 %v5234
    %5367 = vmatpush1.msra.mxu0 %v5233
    %5368 = vmatprep.subr.mxu0 %v5226
    %5369 = vmatpush1.msra.mxu0 %v5225
    %5370 = vmatprep.subr.mxu0 %v5218
    %5371 = vmatpush1.msra.mxu0 %v5217
    %5372 = vmatprep.subr.mxu0 %v5210
    %5373 = vmatpush1.msra.mxu0 %v5209
    %5374 = vmatprep.subr.mxu0 %v5202
    %5375 = vmatpush1.msra.mxu0 %v5201
    %5376 = vmatprep.subr.mxu0 %v5194
    %5377 = vmatpush1.msra.mxu0 %v5193
    %5378 = vmatprep.subr.mxu0 %v5186
    %5379 = vmatpush1.msra.mxu0 %v5185
    %5380 = vmatprep.subr.mxu0 %v5178
    %5381 = vmatpush1.msra.mxu0 %v5177
    %5382 = vmatprep.subr.mxu0 %v5170
    %5383 = vmatpush1.msra.mxu0 %v5169
    %5384 = vmatprep.subr.mxu0 %v5162
    %5385 = vmatpush1.msra.mxu0 %v5161
    %5386 = vmatprep.subr.mxu0 %v5154
    %5387 = vmatpush1.msra.mxu0 %v5153
    %5388 = vmatprep.subr.mxu0 %v5146
    %5389 = vmatpush1.msra.mxu0 %v5145
    %5390 = vmatprep.subr.mxu0 0.0
    %5391 = vmatpush2.msra.mxu0 0.0
    %5392 = vmatprep.subr.mxu0 0.0
    %5393 = vmatpush2.msra.mxu0 0.0
    %5394 = vmatprep.subr.mxu0 0.0
    %5395 = vmatpush2.msra.mxu0 0.0
    %5396 = vmatprep.subr.mxu0 0.0
    %5397 = vmatpush2.msra.mxu0 0.0
    %5398 = vmatprep.subr.mxu0 0.0
    %5399 = vmatpush2.msra.mxu0 0.0
    %5400 = vmatprep.subr.mxu0 0.0
    %5401 = vmatpush2.msra.mxu0 0.0
    %5402 = vmatprep.subr.mxu0 0.0
    %5403 = vmatpush2.msra.mxu0 0.0
    %5404 = vmatprep.subr.mxu0 0.0
    %5405 = vmatpush2.msra.mxu0 0.0
    %5406 = vmatprep.subr.mxu0 0.0
    %5407 = vmatpush2.msra.mxu0 0.0
    %5408 = vmatprep.subr.mxu0 0.0
    %5409 = vmatpush2.msra.mxu0 0.0
    %5410 = vmatprep.subr.mxu0 0.0
    %5411 = vmatpush2.msra.mxu0 0.0
    %5412 = vmatprep.subr.mxu0 0.0
    %5413 = vmatpush2.msra.mxu0 0.0
    %5414 = vmatprep.subr.mxu0 0.0
    %5415 = vmatpush2.msra.mxu0 0.0
    %5416 = vmatprep.subr.mxu0 0.0
    %5417 = vmatpush2.msra.mxu0 0.0
    %5418 = vmatprep.subr.mxu0 %v5282
    %5419 = vmatpush2.msra.mxu0 %v5281
    %5420 = vmatprep.subr.mxu0 %v5274
    %5421 = vmatpush2.msra.mxu0 %v5273
    %5422 = vmatprep.mubr.f32.mxu0 %v4987
    %5423 = vmatmul.mubr.f32.gmra.mxu0 %v4890
    %v5424 = vpop.f32.mrf.mxu0
    %v5425 = vadd.f32 0.0, %v5424
    %v5426 = vpop.f32.mrf.mxu0
    %v5427 = vadd.f32 0.0, %v5426
    %5428 = vdwg.mxu0
    %5429 = vmatprep.subr.mxu0 %v5268
    %5430 = vmatpush1.msra.mxu0 %v5267
    %5431 = vmatprep.subr.mxu0 %v5260
    %5432 = vmatpush1.msra.mxu0 %v5259
    %5433 = vmatprep.subr.mxu0 %v5252
    %5434 = vmatpush1.msra.mxu0 %v5251
    %5435 = vmatprep.subr.mxu0 %v5244
    %5436 = vmatpush1.msra.mxu0 %v5243
    %5437 = vmatprep.subr.mxu0 %v5236
    %5438 = vmatpush1.msra.mxu0 %v5235
    %5439 = vmatprep.subr.mxu0 %v5228
    %5440 = vmatpush1.msra.mxu0 %v5227
    %5441 = vmatprep.subr.mxu0 %v5220
    %5442 = vmatpush1.msra.mxu0 %v5219
    %5443 = vmatprep.subr.mxu0 %v5212
    %5444 = vmatpush1.msra.mxu0 %v5211
    %5445 = vmatprep.subr.mxu0 %v5204
    %5446 = vmatpush1.msra.mxu0 %v5203
    %5447 = vmatprep.subr.mxu0 %v5196
    %5448 = vmatpush1.msra.mxu0 %v5195
    %5449 = vmatprep.subr.mxu0 %v5188
    %5450 = vmatpush1.msra.mxu0 %v5187
    %5451 = vmatprep.subr.mxu0 %v5180
    %5452 = vmatpush1.msra.mxu0 %v5179
    %5453 = vmatprep.subr.mxu0 %v5172
    %5454 = vmatpush1.msra.mxu0 %v5171
    %5455 = vmatprep.subr.mxu0 %v5164
    %5456 = vmatpush1.msra.mxu0 %v5163
    %5457 = vmatprep.subr.mxu0 %v5156
    %5458 = vmatpush1.msra.mxu0 %v5155
    %5459 = vmatprep.subr.mxu0 %v5148
    %5460 = vmatpush1.msra.mxu0 %v5147
    %5461 = vmatprep.subr.mxu0 0.0
    %5462 = vmatpush2.msra.mxu0 0.0
    %5463 = vmatprep.subr.mxu0 0.0
    %5464 = vmatpush2.msra.mxu0 0.0
    %5465 = vmatprep.subr.mxu0 0.0
    %5466 = vmatpush2.msra.mxu0 0.0
    %5467 = vmatprep.subr.mxu0 0.0
    %5468 = vmatpush2.msra.mxu0 0.0
    %5469 = vmatprep.subr.mxu0 0.0
    %5470 = vmatpush2.msra.mxu0 0.0
    %5471 = vmatprep.subr.mxu0 0.0
    %5472 = vmatpush2.msra.mxu0 0.0
    %5473 = vmatprep.subr.mxu0 0.0
    %5474 = vmatpush2.msra.mxu0 0.0
    %5475 = vmatprep.subr.mxu0 0.0
    %5476 = vmatpush2.msra.mxu0 0.0
    %5477 = vmatprep.subr.mxu0 0.0
    %5478 = vmatpush2.msra.mxu0 0.0
    %5479 = vmatprep.subr.mxu0 0.0
    %5480 = vmatpush2.msra.mxu0 0.0
    %5481 = vmatprep.subr.mxu0 0.0
    %5482 = vmatpush2.msra.mxu0 0.0
    %5483 = vmatprep.subr.mxu0 0.0
    %5484 = vmatpush2.msra.mxu0 0.0
    %5485 = vmatprep.subr.mxu0 0.0
    %5486 = vmatpush2.msra.mxu0 0.0
    %5487 = vmatprep.subr.mxu0 0.0
    %5488 = vmatpush2.msra.mxu0 0.0
    %5489 = vmatprep.subr.mxu0 %v5284
    %5490 = vmatpush2.msra.mxu0 %v5283
    %5491 = vmatprep.subr.mxu0 %v5276
    %5492 = vmatpush2.msra.mxu0 %v5275
    %5493 = vmatprep.mubr.f32.mxu0 %v4987
    %5494 = vmatmul.mubr.f32.gmra.mxu0 %v4890
    %v5495 = vpop.f32.mrf.mxu0
    %v5496 = vadd.f32 0.0, %v5495
    %v5497 = vpop.f32.mrf.mxu0
    %v5498 = vadd.f32 0.0, %v5497
    %5499 = vdwg.mxu0
    %5500 = vmatprep.subr.mxu0 %v5270
    %5501 = vmatpush1.msra.mxu0 %v5269
    %5502 = vmatprep.subr.mxu0 %v5262
    %5503 = vmatpush1.msra.mxu0 %v5261
    %5504 = vmatprep.subr.mxu0 %v5254
    %5505 = vmatpush1.msra.mxu0 %v5253
    %5506 = vmatprep.subr.mxu0 %v5246
    %5507 = vmatpush1.msra.mxu0 %v5245
    %5508 = vmatprep.subr.mxu0 %v5238
    %5509 = vmatpush1.msra.mxu0 %v5237
    %5510 = vmatprep.subr.mxu0 %v5230
    %5511 = vmatpush1.msra.mxu0 %v5229
    %5512 = vmatprep.subr.mxu0 %v5222
    %5513 = vmatpush1.msra.mxu0 %v5221
    %5514 = vmatprep.subr.mxu0 %v5214
    %5515 = vmatpush1.msra.mxu0 %v5213
    %5516 = vmatprep.subr.mxu0 %v5206
    %5517 = vmatpush1.msra.mxu0 %v5205
    %5518 = vmatprep.subr.mxu0 %v5198
    %5519 = vmatpush1.msra.mxu0 %v5197
    %5520 = vmatprep.subr.mxu0 %v5190
    %5521 = vmatpush1.msra.mxu0 %v5189
    %5522 = vmatprep.subr.mxu0 %v5182
    %5523 = vmatpush1.msra.mxu0 %v5181
    %5524 = vmatprep.subr.mxu0 %v5174
    %5525 = vmatpush1.msra.mxu0 %v5173
    %5526 = vmatprep.subr.mxu0 %v5166
    %5527 = vmatpush1.msra.mxu0 %v5165
    %5528 = vmatprep.subr.mxu0 %v5158
    %5529 = vmatpush1.msra.mxu0 %v5157
    %5530 = vmatprep.subr.mxu0 %v5150
    %5531 = vmatpush1.msra.mxu0 %v5149
    %5532 = vmatprep.subr.mxu0 0.0
    %5533 = vmatpush2.msra.mxu0 0.0
    %5534 = vmatprep.subr.mxu0 0.0
    %5535 = vmatpush2.msra.mxu0 0.0
    %5536 = vmatprep.subr.mxu0 0.0
    %5537 = vmatpush2.msra.mxu0 0.0
    %5538 = vmatprep.subr.mxu0 0.0
    %5539 = vmatpush2.msra.mxu0 0.0
    %5540 = vmatprep.subr.mxu0 0.0
    %5541 = vmatpush2.msra.mxu0 0.0
    %5542 = vmatprep.subr.mxu0 0.0
    %5543 = vmatpush2.msra.mxu0 0.0
    %5544 = vmatprep.subr.mxu0 0.0
    %5545 = vmatpush2.msra.mxu0 0.0
    %5546 = vmatprep.subr.mxu0 0.0
    %5547 = vmatpush2.msra.mxu0 0.0
    %5548 = vmatprep.subr.mxu0 0.0
    %5549 = vmatpush2.msra.mxu0 0.0
    %5550 = vmatprep.subr.mxu0 0.0
    %5551 = vmatpush2.msra.mxu0 0.0
    %5552 = vmatprep.subr.mxu0 0.0
    %5553 = vmatpush2.msra.mxu0 0.0
    %5554 = vmatprep.subr.mxu0 0.0
    %5555 = vmatpush2.msra.mxu0 0.0
    %5556 = vmatprep.subr.mxu0 0.0
    %5557 = vmatpush2.msra.mxu0 0.0
    %5558 = vmatprep.subr.mxu0 0.0
    %5559 = vmatpush2.msra.mxu0 0.0
    %5560 = vmatprep.subr.mxu0 %v5286
    %5561 = vmatpush2.msra.mxu0 %v5285
    %5562 = vmatprep.subr.mxu0 %v5278
    %5563 = vmatpush2.msra.mxu0 %v5277
    %5564 = vmatprep.mubr.f32.mxu0 %v4987
    %5565 = vmatmul.mubr.f32.gmra.mxu0 %v4890
    %v5566 = vpop.f32.mrf.mxu0
    %v5567 = vadd.f32 0.0, %v5566
    %v5568 = vpop.f32.mrf.mxu0
    %v5569 = vadd.f32 0.0, %v5568
    %5570 = vdwg.mxu0
    %v5571 = vadd.f32 %v5135, %v5354
    %v5572 = vadd.f32 %v5136, %v5356
    %v5573 = vadd.f32 %v5137, %v5425
    %v5574 = vadd.f32 %v5138, %v5427
    %v5575 = vadd.f32 %v5139, %v5496
    %v5576 = vadd.f32 %v5140, %v5498
    %v5577 = vadd.f32 %v5141, %v5567
    %v5578 = vadd.f32 %v5142, %v5569
    %v5579 = vxor.u32 %v5571, 2147483648
    %v5580 = vxor.u32 %v5572, 2147483648
    %v5581 = vxor.u32 %v5573, 2147483648
    %v5582 = vxor.u32 %v5574, 2147483648
    %v5583 = vxor.u32 %v5575, 2147483648
    %v5584 = vxor.u32 %v5576, 2147483648
    %v5585 = vmul.f32 %v5579, 1.442695
    %v5586 = vpow.pop %v5585
    %v5587 = vmul.f32 %v5580, 1.442695
    %v5588 = vpow.pop %v5587
    %v5589 = vmul.f32 %v5581, 1.442695
    %v5590 = vpow.pop %v5589
    %v5591 = vmul.f32 %v5582, 1.442695
    %v5592 = vpow.pop %v5591
    %v5593 = vmul.f32 %v5583, 1.442695
    %v5594 = vpow.pop %v5593
    %v5595 = vmul.f32 %v5584, 1.442695
    %v5596 = vpow.pop %v5595
    %v5597 = vadd.f32 %v5586, 1.0
    %v5598 = vadd.f32 %v5588, 1.0
    %v5599 = vadd.f32 %v5590, 1.0
    %v5600 = vadd.f32 %v5592, 1.0
    %v5601 = vadd.f32 %v5594, 1.0
    %v5602 = vadd.f32 %v5596, 1.0
    %v5603 = vrcp.pop %v5597
    %v5604 = vmul.f32 1.0, %v5603
    %v5605 = vrcp.pop %v5598
    %v5606 = vmul.f32 1.0, %v5605
    %v5607 = vrcp.pop %v5599
    %v5608 = vmul.f32 1.0, %v5607
    %v5609 = vrcp.pop %v5600
    %v5610 = vmul.f32 1.0, %v5609
    %v5611 = vrcp.pop %v5601
    %v5612 = vmul.f32 1.0, %v5611
    %v5613 = vrcp.pop %v5602
    %v5614 = vmul.f32 1.0, %v5613
    %v5615 = vtanh.pop %v5577
    %v5616 = vtanh.pop %v5578
    %v5617 = vmul.f32 %v5608, %v4886
    %v5618 = vmul.f32 %v5610, %v4887
    %v5619 = vmul.f32 %v5604, %v5615
    %v5620 = vmul.f32 %v5606, %v5616
    %v5621 = vadd.f32 %v5617, %v5619
    %v5622 = vadd.f32 %v5618, %v5620
    %v5623 = vtanh.pop %v5621
    %v5624 = vtanh.pop %v5622
    %v5625 = vmul.f32 %v5612, %v5623
    %v5626 = vmul.f32 %v5614, %v5624
    %v5627 = vld [vmem:[#allocation9] sm:$0xff]
    %v5628 = vld [vmem:[#allocation9 + $0x8] sm:$0xff]
    %v5629 = vld [vmem:[#allocation9 + $0x10] sm:$0xff]
    %v5630 = vld [vmem:[#allocation9 + $0x18] sm:$0xff]
    %v5631 = vld [vmem:[#allocation9 + $0x20] sm:$0xff]
    %v5632 = vld [vmem:[#allocation9 + $0x28] sm:$0xff]
    %v5633 = vld [vmem:[#allocation9 + $0x30] sm:$0xff]
    %v5634 = vld [vmem:[#allocation9 + $0x38] sm:$0xff]
    %v5635 = vld [vmem:[#allocation9 + $0x40] sm:$0xff]
    %v5636 = vld [vmem:[#allocation9 + $0x48] sm:$0xff]
    %v5637 = vld [vmem:[#allocation9 + $0x50] sm:$0xff]
    %v5638 = vld [vmem:[#allocation9 + $0x58] sm:$0xff]
    %v5639 = vld [vmem:[#allocation9 + $0x60] sm:$0xff]
    %v5640 = vld [vmem:[#allocation9 + $0x68] sm:$0xff]
    %v5641 = vld [vmem:[#allocation9 + $0x70] sm:$0xff]
    %v5642 = vld [vmem:[#allocation9 + $0x78] sm:$0xff]
    %v5643 = vld [vmem:[#allocation9 + $0x80] sm:$0xff]
    %v5644 = vld [vmem:[#allocation9 + $0x88] sm:$0xff]
    %v5645 = vld [vmem:[#allocation9 + $0x90] sm:$0xff]
    %v5646 = vld [vmem:[#allocation9 + $0x98] sm:$0xff]
    %v5647 = vld [vmem:[#allocation9 + $0xa0] sm:$0xff]
    %v5648 = vld [vmem:[#allocation9 + $0xa8] sm:$0xff]
    %v5649 = vld [vmem:[#allocation9 + $0xb0] sm:$0xff]
    %v5650 = vld [vmem:[#allocation9 + $0xb8] sm:$0xff]
    %v5651 = vld [vmem:[#allocation9 + $0xc0] sm:$0xff]
    %v5652 = vld [vmem:[#allocation9 + $0xc8] sm:$0xff]
    %v5653 = vld [vmem:[#allocation9 + $0xd0] sm:$0xff]
    %v5654 = vld [vmem:[#allocation9 + $0xd8] sm:$0xff]
    %v5655 = vld [vmem:[#allocation9 + $0xe0] sm:$0xff]
    %v5656 = vld [vmem:[#allocation9 + $0xe8] sm:$0xff]
    %v5657 = vld [vmem:[#allocation9 + $0xf0] sm:$0xff]
    %v5658 = vld [vmem:[#allocation9 + $0xf8] sm:$0xff]
    %v5659 = vld [vmem:[#allocation9 + $0x100] sm:$0xff]
    %v5660 = vld [vmem:[#allocation9 + $0x108] sm:$0xff]
    %v5661 = vld [vmem:[#allocation9 + $0x110] sm:$0xff]
    %v5662 = vld [vmem:[#allocation9 + $0x118] sm:$0xff]
    %v5663 = vld [vmem:[#allocation9 + $0x120] sm:$0xff]
    %v5664 = vld [vmem:[#allocation9 + $0x128] sm:$0xff]
    %v5665 = vld [vmem:[#allocation9 + $0x130] sm:$0xff]
    %v5666 = vld [vmem:[#allocation9 + $0x138] sm:$0xff]
    %v5667 = vld [vmem:[#allocation9 + $0x140] sm:$0xff]
    %v5668 = vld [vmem:[#allocation9 + $0x148] sm:$0xff]
    %v5669 = vld [vmem:[#allocation9 + $0x150] sm:$0xff]
    %v5670 = vld [vmem:[#allocation9 + $0x158] sm:$0xff]
    %v5671 = vld [vmem:[#allocation9 + $0x160] sm:$0xff]
    %v5672 = vld [vmem:[#allocation9 + $0x168] sm:$0xff]
    %v5673 = vld [vmem:[#allocation9 + $0x170] sm:$0xff]
    %v5674 = vld [vmem:[#allocation9 + $0x178] sm:$0xff]
    %v5675 = vld [vmem:[#allocation9 + $0x180] sm:$0xff]
    %v5676 = vld [vmem:[#allocation9 + $0x188] sm:$0xff]
    %v5677 = vld [vmem:[#allocation9 + $0x190] sm:$0xff]
    %v5678 = vld [vmem:[#allocation9 + $0x198] sm:$0xff]
    %v5679 = vld [vmem:[#allocation9 + $0x1a0] sm:$0xff]
    %v5680 = vld [vmem:[#allocation9 + $0x1a8] sm:$0xff]
    %v5681 = vld [vmem:[#allocation9 + $0x1b0] sm:$0xff]
    %v5682 = vld [vmem:[#allocation9 + $0x1b8] sm:$0xff]
    %v5683 = vld [vmem:[#allocation9 + $0x1c0] sm:$0xff]
    %v5684 = vld [vmem:[#allocation9 + $0x1c8] sm:$0xff]
    %v5685 = vld [vmem:[#allocation9 + $0x1d0] sm:$0xff]
    %v5686 = vld [vmem:[#allocation9 + $0x1d8] sm:$0xff]
    %v5687 = vld [vmem:[#allocation9 + $0x1e0] sm:$0xff]
    %v5688 = vld [vmem:[#allocation9 + $0x1e8] sm:$0xff]
    %v5689 = vld [vmem:[#allocation9 + $0x1f0] sm:$0xff]
    %v5690 = vld [vmem:[#allocation9 + $0x1f8] sm:$0xff]
    %v5691 = vld [vmem:[#allocation9 + $0x200] sm:$0xff]
    %v5692 = vld [vmem:[#allocation9 + $0x208] sm:$0xff]
    %v5693 = vld [vmem:[#allocation9 + $0x210] sm:$0xff]
    %v5694 = vld [vmem:[#allocation9 + $0x218] sm:$0xff]
    %v5695 = vld [vmem:[#allocation9 + $0x220] sm:$0xff]
    %v5696 = vld [vmem:[#allocation9 + $0x228] sm:$0xff]
    %v5697 = vld [vmem:[#allocation9 + $0x230] sm:$0xff]
    %v5698 = vld [vmem:[#allocation9 + $0x238] sm:$0xff]
    %v5699 = vld [vmem:[%s6] sm:$0xf]
    %v5701 = vlaneseq
    %v5702 = vshrl.u32 %v5701, 7
    %v5703 = vsub.s32 0, %v5702
    %v5704 = vrot.slane %v5699, %v5703
    %v5705 = vlaneseq
    %v5706 = vshrl.u32 %v5705, 7
    %v5707 = vsub.s32 1, %v5706
    %v5708 = vrot.slane %v5699, %v5707
    %v5709 = vlaneseq
    %v5710 = vshrl.u32 %v5709, 7
    %v5711 = vsub.s32 2, %v5710
    %v5712 = vrot.slane %v5699, %v5711
    %v5713 = vlaneseq
    %v5714 = vshrl.u32 %v5713, 7
    %v5715 = vsub.s32 3, %v5714
    %v5716 = vrot.slane %v5699, %v5715
    %v5722 = vsel %vm873, %v5626, 0
    %5724 = vmatprep.subr.mxu0 %v5688
    %5725 = vmatpush1.msra.mxu0 %v5687
    %5726 = vmatprep.subr.mxu0 %v5684
    %5727 = vmatpush1.msra.mxu0 %v5683
    %5728 = vmatprep.subr.mxu0 %v5680
    %5729 = vmatpush1.msra.mxu0 %v5679
    %5730 = vmatprep.subr.mxu0 %v5676
    %5731 = vmatpush1.msra.mxu0 %v5675
    %5732 = vmatprep.subr.mxu0 %v5672
    %5733 = vmatpush1.msra.mxu0 %v5671
    %5734 = vmatprep.subr.mxu0 %v5668
    %5735 = vmatpush1.msra.mxu0 %v5667
    %5736 = vmatprep.subr.mxu0 %v5664
    %5737 = vmatpush1.msra.mxu0 %v5663
    %5738 = vmatprep.subr.mxu0 %v5660
    %5739 = vmatpush1.msra.mxu0 %v5659
    %5740 = vmatprep.subr.mxu0 %v5656
    %5741 = vmatpush1.msra.mxu0 %v5655
    %5742 = vmatprep.subr.mxu0 %v5652
    %5743 = vmatpush1.msra.mxu0 %v5651
    %5744 = vmatprep.subr.mxu0 %v5648
    %5745 = vmatpush1.msra.mxu0 %v5647
    %5746 = vmatprep.subr.mxu0 %v5644
    %5747 = vmatpush1.msra.mxu0 %v5643
    %5748 = vmatprep.subr.mxu0 %v5640
    %5749 = vmatpush1.msra.mxu0 %v5639
    %5750 = vmatprep.subr.mxu0 %v5636
    %5751 = vmatpush1.msra.mxu0 %v5635
    %5752 = vmatprep.subr.mxu0 %v5632
    %5753 = vmatpush1.msra.mxu0 %v5631
    %5754 = vmatprep.subr.mxu0 %v5628
    %5755 = vmatpush1.msra.mxu0 %v5627
    %5756 = vmatprep.subr.mxu0 0.0
    %5757 = vmatpush2.msra.mxu0 0.0
    %5758 = vmatprep.subr.mxu0 0.0
    %5759 = vmatpush2.msra.mxu0 0.0
    %5760 = vmatprep.subr.mxu0 0.0
    %5761 = vmatpush2.msra.mxu0 0.0
    %5762 = vmatprep.subr.mxu0 0.0
    %5763 = vmatpush2.msra.mxu0 0.0
    %5764 = vmatprep.subr.mxu0 0.0
    %5765 = vmatpush2.msra.mxu0 0.0
    %5766 = vmatprep.subr.mxu0 0.0
    %5767 = vmatpush2.msra.mxu0 0.0
    %5768 = vmatprep.subr.mxu0 0.0
    %5769 = vmatpush2.msra.mxu0 0.0
    %5770 = vmatprep.subr.mxu0 0.0
    %5771 = vmatpush2.msra.mxu0 0.0
    %5772 = vmatprep.subr.mxu0 0.0
    %5773 = vmatpush2.msra.mxu0 0.0
    %5774 = vmatprep.subr.mxu0 0.0
    %5775 = vmatpush2.msra.mxu0 0.0
    %5776 = vmatprep.subr.mxu0 0.0
    %5777 = vmatpush2.msra.mxu0 0.0
    %5778 = vmatprep.subr.mxu0 0.0
    %5779 = vmatpush2.msra.mxu0 0.0
    %5780 = vmatprep.subr.mxu0 0.0
    %5781 = vmatpush2.msra.mxu0 0.0
    %5782 = vmatprep.subr.mxu0 0.0
    %5783 = vmatpush2.msra.mxu0 0.0
    %5784 = vmatprep.subr.mxu0 %v5696
    %5785 = vmatpush2.msra.mxu0 %v5695
    %5786 = vmatprep.subr.mxu0 %v5692
    %5787 = vmatpush2.msra.mxu0 %v5691
    %5788 = vmatprep.mubr.f32.mxu0 %v5722
    %5789 = vmatmul.mubr.f32.gmra.mxu0 %v5625
    %v5790 = vpop.f32.mrf.mxu0
    %v5791 = vadd.f32 %v5704, %v5790
    %v5792 = vpop.f32.mrf.mxu0
    %v5793 = vadd.f32 %v5708, %v5792
    %5794 = vdwg.mxu0
    %5795 = vmatprep.subr.mxu0 %v5690
    %5796 = vmatpush1.msra.mxu0 %v5689
    %5797 = vmatprep.subr.mxu0 %v5686
    %5798 = vmatpush1.msra.mxu0 %v5685
    %5799 = vmatprep.subr.mxu0 %v5682
    %5800 = vmatpush1.msra.mxu0 %v5681
    %5801 = vmatprep.subr.mxu0 %v5678
    %5802 = vmatpush1.msra.mxu0 %v5677
    %5803 = vmatprep.subr.mxu0 %v5674
    %5804 = vmatpush1.msra.mxu0 %v5673
    %5805 = vmatprep.subr.mxu0 %v5670
    %5806 = vmatpush1.msra.mxu0 %v5669
    %5807 = vmatprep.subr.mxu0 %v5666
    %5808 = vmatpush1.msra.mxu0 %v5665
    %5809 = vmatprep.subr.mxu0 %v5662
    %5810 = vmatpush1.msra.mxu0 %v5661
    %5811 = vmatprep.subr.mxu0 %v5658
    %5812 = vmatpush1.msra.mxu0 %v5657
    %5813 = vmatprep.subr.mxu0 %v5654
    %5814 = vmatpush1.msra.mxu0 %v5653
    %5815 = vmatprep.subr.mxu0 %v5650
    %5816 = vmatpush1.msra.mxu0 %v5649
    %5817 = vmatprep.subr.mxu0 %v5646
    %5818 = vmatpush1.msra.mxu0 %v5645
    %5819 = vmatprep.subr.mxu0 %v5642
    %5820 = vmatpush1.msra.mxu0 %v5641
    %5821 = vmatprep.subr.mxu0 %v5638
    %5822 = vmatpush1.msra.mxu0 %v5637
    %5823 = vmatprep.subr.mxu0 %v5634
    %5824 = vmatpush1.msra.mxu0 %v5633
    %5825 = vmatprep.subr.mxu0 %v5630
    %5826 = vmatpush1.msra.mxu0 %v5629
    %5827 = vmatprep.subr.mxu0 0.0
    %5828 = vmatpush2.msra.mxu0 0.0
    %5829 = vmatprep.subr.mxu0 0.0
    %5830 = vmatpush2.msra.mxu0 0.0
    %5831 = vmatprep.subr.mxu0 0.0
    %5832 = vmatpush2.msra.mxu0 0.0
    %5833 = vmatprep.subr.mxu0 0.0
    %5834 = vmatpush2.msra.mxu0 0.0
    %5835 = vmatprep.subr.mxu0 0.0
    %5836 = vmatpush2.msra.mxu0 0.0
    %5837 = vmatprep.subr.mxu0 0.0
    %5838 = vmatpush2.msra.mxu0 0.0
    %5839 = vmatprep.subr.mxu0 0.0
    %5840 = vmatpush2.msra.mxu0 0.0
    %5841 = vmatprep.subr.mxu0 0.0
    %5842 = vmatpush2.msra.mxu0 0.0
    %5843 = vmatprep.subr.mxu0 0.0
    %5844 = vmatpush2.msra.mxu0 0.0
    %5845 = vmatprep.subr.mxu0 0.0
    %5846 = vmatpush2.msra.mxu0 0.0
    %5847 = vmatprep.subr.mxu0 0.0
    %5848 = vmatpush2.msra.mxu0 0.0
    %5849 = vmatprep.subr.mxu0 0.0
    %5850 = vmatpush2.msra.mxu0 0.0
    %5851 = vmatprep.subr.mxu0 0.0
    %5852 = vmatpush2.msra.mxu0 0.0
    %5853 = vmatprep.subr.mxu0 0.0
    %5854 = vmatpush2.msra.mxu0 0.0
    %5855 = vmatprep.subr.mxu0 %v5698
    %5856 = vmatpush2.msra.mxu0 %v5697
    %5857 = vmatprep.subr.mxu0 %v5694
    %5858 = vmatpush2.msra.mxu0 %v5693
    %5859 = vmatprep.mubr.f32.mxu0 %v5722
    %5860 = vmatmul.mubr.f32.gmra.mxu0 %v5625
    %v5861 = vpop.f32.mrf.mxu0
    %v5862 = vadd.f32 %v5712, %v5861
    %v5863 = vpop.f32.mrf.mxu0
    %v5864 = vadd.f32 %v5716, %v5863
    %5865 = vdwg.mxu0
    %5866 = vst [vmem:[#allocation3 + $0xc0] sm:$0xff] %v5791
    %5867 = vst [vmem:[#allocation3 + $0xc8] sm:$0xff] %v5793
    %5868 = vst [vmem:[#allocation3 + $0xd0] sm:$0xff] %v5862
    %5869 = vst [vmem:[#allocation3 + $0xd8] sm:$0xff] %v5864
    %v5870 = vld [vmem:[#allocation2 + $0x1c0] sm:$0xff]
    %v5871 = vld [vmem:[#allocation2 + $0x1c8] sm:$0xff]
    %v5872 = vld [vmem:[#allocation2 + $0x1d0] sm:$0xff]
    %v5873 = vld [vmem:[#allocation2 + $0x1d8] sm:$0xff]
    %v5874 = vld [vmem:[#allocation2 + $0x1e0] sm:$0xff]
    %v5875 = vld [vmem:[#allocation2 + $0x1e8] sm:$0xff]
    %v5876 = vld [vmem:[#allocation2 + $0x1f0] sm:$0xff]
    %v5877 = vld [vmem:[#allocation2 + $0x1f8] sm:$0xff]
    %v5878 = vld [vmem:[#allocation7] sm:$0xff]
    %v5879 = vld [vmem:[#allocation7 + $0x8] sm:$0xff]
    %v5880 = vld [vmem:[#allocation7 + $0x10] sm:$0xff]
    %v5881 = vld [vmem:[#allocation7 + $0x18] sm:$0xff]
    %v5882 = vld [vmem:[#allocation7 + $0x20] sm:$0xff]
    %v5883 = vld [vmem:[#allocation7 + $0x28] sm:$0xff]
    %v5884 = vld [vmem:[#allocation7 + $0x30] sm:$0xff]
    %v5885 = vld [vmem:[#allocation7 + $0x38] sm:$0xff]
    %v5886 = vld [vmem:[#allocation7 + $0x40] sm:$0xff]
    %v5887 = vld [vmem:[#allocation7 + $0x48] sm:$0xff]
    %v5888 = vld [vmem:[#allocation7 + $0x50] sm:$0xff]
    %v5889 = vld [vmem:[#allocation7 + $0x58] sm:$0xff]
    %v5890 = vld [vmem:[#allocation7 + $0x60] sm:$0xff]
    %v5891 = vld [vmem:[#allocation7 + $0x68] sm:$0xff]
    %v5892 = vld [vmem:[#allocation7 + $0x70] sm:$0xff]
    %v5893 = vld [vmem:[#allocation7 + $0x78] sm:$0xff]
    %v5894 = vld [vmem:[#allocation7 + $0x80] sm:$0xff]
    %v5895 = vld [vmem:[#allocation7 + $0x88] sm:$0xff]
    %v5896 = vld [vmem:[#allocation7 + $0x90] sm:$0xff]
    %v5897 = vld [vmem:[#allocation7 + $0x98] sm:$0xff]
    %v5898 = vld [vmem:[#allocation7 + $0xa0] sm:$0xff]
    %v5899 = vld [vmem:[#allocation7 + $0xa8] sm:$0xff]
    %v5900 = vld [vmem:[#allocation7 + $0xb0] sm:$0xff]
    %v5901 = vld [vmem:[#allocation7 + $0xb8] sm:$0xff]
    %v5902 = vld [vmem:[#allocation7 + $0xc0] sm:$0xff]
    %v5903 = vld [vmem:[#allocation7 + $0xc8] sm:$0xff]
    %v5904 = vld [vmem:[#allocation7 + $0xd0] sm:$0xff]
    %v5905 = vld [vmem:[#allocation7 + $0xd8] sm:$0xff]
    %v5906 = vld [vmem:[#allocation7 + $0xe0] sm:$0xff]
    %v5907 = vld [vmem:[#allocation7 + $0xe8] sm:$0xff]
    %v5908 = vld [vmem:[#allocation7 + $0xf0] sm:$0xff]
    %v5909 = vld [vmem:[#allocation7 + $0xf8] sm:$0xff]
    %v5910 = vld [vmem:[#allocation7 + $0x100] sm:$0xff]
    %v5911 = vld [vmem:[#allocation7 + $0x108] sm:$0xff]
    %v5912 = vld [vmem:[#allocation7 + $0x110] sm:$0xff]
    %v5913 = vld [vmem:[#allocation7 + $0x118] sm:$0xff]
    %v5914 = vld [vmem:[#allocation7 + $0x120] sm:$0xff]
    %v5915 = vld [vmem:[#allocation7 + $0x128] sm:$0xff]
    %v5916 = vld [vmem:[#allocation7 + $0x130] sm:$0xff]
    %v5917 = vld [vmem:[#allocation7 + $0x138] sm:$0xff]
    %v5918 = vld [vmem:[#allocation7 + $0x140] sm:$0xff]
    %v5919 = vld [vmem:[#allocation7 + $0x148] sm:$0xff]
    %v5920 = vld [vmem:[#allocation7 + $0x150] sm:$0xff]
    %v5921 = vld [vmem:[#allocation7 + $0x158] sm:$0xff]
    %v5922 = vld [vmem:[#allocation7 + $0x160] sm:$0xff]
    %v5923 = vld [vmem:[#allocation7 + $0x168] sm:$0xff]
    %v5924 = vld [vmem:[#allocation7 + $0x170] sm:$0xff]
    %v5925 = vld [vmem:[#allocation7 + $0x178] sm:$0xff]
    %v5926 = vld [vmem:[#allocation7 + $0x180] sm:$0xff]
    %v5927 = vld [vmem:[#allocation7 + $0x188] sm:$0xff]
    %v5928 = vld [vmem:[#allocation7 + $0x190] sm:$0xff]
    %v5929 = vld [vmem:[#allocation7 + $0x198] sm:$0xff]
    %v5930 = vld [vmem:[#allocation7 + $0x1a0] sm:$0xff]
    %v5931 = vld [vmem:[#allocation7 + $0x1a8] sm:$0xff]
    %v5932 = vld [vmem:[#allocation7 + $0x1b0] sm:$0xff]
    %v5933 = vld [vmem:[#allocation7 + $0x1b8] sm:$0xff]
    %v5934 = vld [vmem:[#allocation7 + $0x1c0] sm:$0xff]
    %v5935 = vld [vmem:[#allocation7 + $0x1c8] sm:$0xff]
    %v5936 = vld [vmem:[#allocation7 + $0x1d0] sm:$0xff]
    %v5937 = vld [vmem:[#allocation7 + $0x1d8] sm:$0xff]
    %v5938 = vld [vmem:[#allocation7 + $0x1e0] sm:$0xff]
    %v5939 = vld [vmem:[#allocation7 + $0x1e8] sm:$0xff]
    %v5940 = vld [vmem:[#allocation7 + $0x1f0] sm:$0xff]
    %v5941 = vld [vmem:[#allocation7 + $0x1f8] sm:$0xff]
    %v5942 = vld [vmem:[#allocation7 + $0x200] sm:$0xff]
    %v5943 = vld [vmem:[#allocation7 + $0x208] sm:$0xff]
    %v5944 = vld [vmem:[#allocation7 + $0x210] sm:$0xff]
    %v5945 = vld [vmem:[#allocation7 + $0x218] sm:$0xff]
    %v5946 = vld [vmem:[#allocation7 + $0x220] sm:$0xff]
    %v5947 = vld [vmem:[#allocation7 + $0x228] sm:$0xff]
    %v5948 = vld [vmem:[#allocation7 + $0x230] sm:$0xff]
    %v5949 = vld [vmem:[#allocation7 + $0x238] sm:$0xff]
    %v5950 = vld [vmem:[#allocation7 + $0x240] sm:$0xff]
    %v5951 = vld [vmem:[#allocation7 + $0x248] sm:$0xff]
    %v5952 = vld [vmem:[#allocation7 + $0x250] sm:$0xff]
    %v5953 = vld [vmem:[#allocation7 + $0x258] sm:$0xff]
    %v5954 = vld [vmem:[#allocation7 + $0x260] sm:$0xff]
    %v5955 = vld [vmem:[#allocation7 + $0x268] sm:$0xff]
    %v5956 = vld [vmem:[#allocation7 + $0x270] sm:$0xff]
    %v5957 = vld [vmem:[#allocation7 + $0x278] sm:$0xff]
    %v5958 = vld [vmem:[#allocation7 + $0x280] sm:$0xff]
    %v5959 = vld [vmem:[#allocation7 + $0x288] sm:$0xff]
    %v5960 = vld [vmem:[#allocation7 + $0x290] sm:$0xff]
    %v5961 = vld [vmem:[#allocation7 + $0x298] sm:$0xff]
    %v5962 = vld [vmem:[#allocation7 + $0x2a0] sm:$0xff]
    %v5963 = vld [vmem:[#allocation7 + $0x2a8] sm:$0xff]
    %v5964 = vld [vmem:[#allocation7 + $0x2b0] sm:$0xff]
    %v5965 = vld [vmem:[#allocation7 + $0x2b8] sm:$0xff]
    %v5966 = vld [vmem:[#allocation7 + $0x2c0] sm:$0xff]
    %v5967 = vld [vmem:[#allocation7 + $0x2c8] sm:$0xff]
    %v5968 = vld [vmem:[#allocation7 + $0x2d0] sm:$0xff]
    %v5969 = vld [vmem:[#allocation7 + $0x2d8] sm:$0xff]
    %v5970 = vld [vmem:[#allocation7 + $0x2e0] sm:$0xff]
    %v5971 = vld [vmem:[#allocation7 + $0x2e8] sm:$0xff]
    %v5972 = vld [vmem:[#allocation7 + $0x2f0] sm:$0xff]
    %v5973 = vld [vmem:[#allocation7 + $0x2f8] sm:$0xff]
    %v5974 = vld [vmem:[#allocation7 + $0x300] sm:$0xff]
    %v5975 = vld [vmem:[#allocation7 + $0x308] sm:$0xff]
    %v5976 = vld [vmem:[#allocation7 + $0x310] sm:$0xff]
    %v5977 = vld [vmem:[#allocation7 + $0x318] sm:$0xff]
    %v5978 = vld [vmem:[#allocation7 + $0x320] sm:$0xff]
    %v5979 = vld [vmem:[#allocation7 + $0x328] sm:$0xff]
    %v5980 = vld [vmem:[#allocation7 + $0x330] sm:$0xff]
    %v5981 = vld [vmem:[#allocation7 + $0x338] sm:$0xff]
    %v5982 = vld [vmem:[#allocation7 + $0x340] sm:$0xff]
    %v5983 = vld [vmem:[#allocation7 + $0x348] sm:$0xff]
    %v5984 = vld [vmem:[#allocation7 + $0x350] sm:$0xff]
    %v5985 = vld [vmem:[#allocation7 + $0x358] sm:$0xff]
    %v5986 = vld [vmem:[#allocation7 + $0x360] sm:$0xff]
    %v5987 = vld [vmem:[#allocation7 + $0x368] sm:$0xff]
    %v5988 = vld [vmem:[#allocation7 + $0x370] sm:$0xff]
    %v5989 = vld [vmem:[#allocation7 + $0x378] sm:$0xff]
    %v5990 = vld [vmem:[#allocation7 + $0x380] sm:$0xff]
    %v5991 = vld [vmem:[#allocation7 + $0x388] sm:$0xff]
    %v5992 = vld [vmem:[#allocation7 + $0x390] sm:$0xff]
    %v5993 = vld [vmem:[#allocation7 + $0x398] sm:$0xff]
    %v5994 = vld [vmem:[#allocation7 + $0x3a0] sm:$0xff]
    %v5995 = vld [vmem:[#allocation7 + $0x3a8] sm:$0xff]
    %v5996 = vld [vmem:[#allocation7 + $0x3b0] sm:$0xff]
    %v5997 = vld [vmem:[#allocation7 + $0x3b8] sm:$0xff]
    %v5998 = vld [vmem:[#allocation7 + $0x3c0] sm:$0xff]
    %v5999 = vld [vmem:[#allocation7 + $0x3c8] sm:$0xff]
    %v6000 = vld [vmem:[#allocation7 + $0x3d0] sm:$0xff]
    %v6001 = vld [vmem:[#allocation7 + $0x3d8] sm:$0xff]
    %v6002 = vld [vmem:[#allocation7 + $0x3e0] sm:$0xff]
    %v6003 = vld [vmem:[#allocation7 + $0x3e8] sm:$0xff]
    %v6004 = vld [vmem:[#allocation7 + $0x3f0] sm:$0xff]
    %v6005 = vld [vmem:[#allocation7 + $0x3f8] sm:$0xff]
    %v6006 = vld [vmem:[#allocation7 + $0x400] sm:$0xff]
    %v6007 = vld [vmem:[#allocation7 + $0x408] sm:$0xff]
    %v6008 = vld [vmem:[#allocation7 + $0x410] sm:$0xff]
    %v6009 = vld [vmem:[#allocation7 + $0x418] sm:$0xff]
    %v6010 = vld [vmem:[#allocation7 + $0x420] sm:$0xff]
    %v6011 = vld [vmem:[#allocation7 + $0x428] sm:$0xff]
    %v6012 = vld [vmem:[#allocation7 + $0x430] sm:$0xff]
    %v6013 = vld [vmem:[#allocation7 + $0x438] sm:$0xff]
    %v6014 = vld [vmem:[#allocation7 + $0x440] sm:$0xff]
    %v6015 = vld [vmem:[#allocation7 + $0x448] sm:$0xff]
    %v6016 = vld [vmem:[#allocation7 + $0x450] sm:$0xff]
    %v6017 = vld [vmem:[#allocation7 + $0x458] sm:$0xff]
    %v6018 = vld [vmem:[#allocation7 + $0x460] sm:$0xff]
    %v6019 = vld [vmem:[#allocation7 + $0x468] sm:$0xff]
    %v6020 = vld [vmem:[#allocation7 + $0x470] sm:$0xff]
    %v6021 = vld [vmem:[#allocation7 + $0x478] sm:$0xff]
    %6022 = vmatprep.subr.mxu0 %v5999
    %6023 = vmatpush1.msra.mxu0 %v5998
    %6024 = vmatprep.subr.mxu0 %v5991
    %6025 = vmatpush1.msra.mxu0 %v5990
    %6026 = vmatprep.subr.mxu0 %v5983
    %6027 = vmatpush1.msra.mxu0 %v5982
    %6028 = vmatprep.subr.mxu0 %v5975
    %6029 = vmatpush1.msra.mxu0 %v5974
    %6030 = vmatprep.subr.mxu0 %v5967
    %6031 = vmatpush1.msra.mxu0 %v5966
    %6032 = vmatprep.subr.mxu0 %v5959
    %6033 = vmatpush1.msra.mxu0 %v5958
    %6034 = vmatprep.subr.mxu0 %v5951
    %6035 = vmatpush1.msra.mxu0 %v5950
    %6036 = vmatprep.subr.mxu0 %v5943
    %6037 = vmatpush1.msra.mxu0 %v5942
    %6038 = vmatprep.subr.mxu0 %v5935
    %6039 = vmatpush1.msra.mxu0 %v5934
    %6040 = vmatprep.subr.mxu0 %v5927
    %6041 = vmatpush1.msra.mxu0 %v5926
    %6042 = vmatprep.subr.mxu0 %v5919
    %6043 = vmatpush1.msra.mxu0 %v5918
    %6044 = vmatprep.subr.mxu0 %v5911
    %6045 = vmatpush1.msra.mxu0 %v5910
    %6046 = vmatprep.subr.mxu0 %v5903
    %6047 = vmatpush1.msra.mxu0 %v5902
    %6048 = vmatprep.subr.mxu0 %v5895
    %6049 = vmatpush1.msra.mxu0 %v5894
    %6050 = vmatprep.subr.mxu0 %v5887
    %6051 = vmatpush1.msra.mxu0 %v5886
    %6052 = vmatprep.subr.mxu0 %v5879
    %6053 = vmatpush1.msra.mxu0 %v5878
    %6054 = vmatprep.subr.mxu0 0.0
    %6055 = vmatpush2.msra.mxu0 0.0
    %6056 = vmatprep.subr.mxu0 0.0
    %6057 = vmatpush2.msra.mxu0 0.0
    %6058 = vmatprep.subr.mxu0 0.0
    %6059 = vmatpush2.msra.mxu0 0.0
    %6060 = vmatprep.subr.mxu0 0.0
    %6061 = vmatpush2.msra.mxu0 0.0
    %6062 = vmatprep.subr.mxu0 0.0
    %6063 = vmatpush2.msra.mxu0 0.0
    %6064 = vmatprep.subr.mxu0 0.0
    %6065 = vmatpush2.msra.mxu0 0.0
    %6066 = vmatprep.subr.mxu0 0.0
    %6067 = vmatpush2.msra.mxu0 0.0
    %6068 = vmatprep.subr.mxu0 0.0
    %6069 = vmatpush2.msra.mxu0 0.0
    %6070 = vmatprep.subr.mxu0 0.0
    %6071 = vmatpush2.msra.mxu0 0.0
    %6072 = vmatprep.subr.mxu0 0.0
    %6073 = vmatpush2.msra.mxu0 0.0
    %6074 = vmatprep.subr.mxu0 0.0
    %6075 = vmatpush2.msra.mxu0 0.0
    %6076 = vmatprep.subr.mxu0 0.0
    %6077 = vmatpush2.msra.mxu0 0.0
    %6078 = vmatprep.subr.mxu0 0.0
    %6079 = vmatpush2.msra.mxu0 0.0
    %6080 = vmatprep.subr.mxu0 0.0
    %6081 = vmatpush2.msra.mxu0 0.0
    %6082 = vmatprep.subr.mxu0 %v6015
    %6083 = vmatpush2.msra.mxu0 %v6014
    %6084 = vmatprep.subr.mxu0 %v6007
    %6085 = vmatpush2.msra.mxu0 %v6006
    %6086 = vmatprep.mubr.f32.mxu0 %v5722
    %6087 = vmatmul.mubr.f32.gmra.mxu0 %v5625
    %v6088 = vpop.f32.mrf.mxu0
    %v6089 = vadd.f32 0.0, %v6088
    %v6090 = vpop.f32.mrf.mxu0
    %v6091 = vadd.f32 0.0, %v6090
    %6092 = vdwg.mxu0
    %6093 = vmatprep.subr.mxu0 %v6001
    %6094 = vmatpush1.msra.mxu0 %v6000
    %6095 = vmatprep.subr.mxu0 %v5993
    %6096 = vmatpush1.msra.mxu0 %v5992
    %6097 = vmatprep.subr.mxu0 %v5985
    %6098 = vmatpush1.msra.mxu0 %v5984
    %6099 = vmatprep.subr.mxu0 %v5977
    %6100 = vmatpush1.msra.mxu0 %v5976
    %6101 = vmatprep.subr.mxu0 %v5969
    %6102 = vmatpush1.msra.mxu0 %v5968
    %6103 = vmatprep.subr.mxu0 %v5961
    %6104 = vmatpush1.msra.mxu0 %v5960
    %6105 = vmatprep.subr.mxu0 %v5953
    %6106 = vmatpush1.msra.mxu0 %v5952
    %6107 = vmatprep.subr.mxu0 %v5945
    %6108 = vmatpush1.msra.mxu0 %v5944
    %6109 = vmatprep.subr.mxu0 %v5937
    %6110 = vmatpush1.msra.mxu0 %v5936
    %6111 = vmatprep.subr.mxu0 %v5929
    %6112 = vmatpush1.msra.mxu0 %v5928
    %6113 = vmatprep.subr.mxu0 %v5921
    %6114 = vmatpush1.msra.mxu0 %v5920
    %6115 = vmatprep.subr.mxu0 %v5913
    %6116 = vmatpush1.msra.mxu0 %v5912
    %6117 = vmatprep.subr.mxu0 %v5905
    %6118 = vmatpush1.msra.mxu0 %v5904
    %6119 = vmatprep.subr.mxu0 %v5897
    %6120 = vmatpush1.msra.mxu0 %v5896
    %6121 = vmatprep.subr.mxu0 %v5889
    %6122 = vmatpush1.msra.mxu0 %v5888
    %6123 = vmatprep.subr.mxu0 %v5881
    %6124 = vmatpush1.msra.mxu0 %v5880
    %6125 = vmatprep.subr.mxu0 0.0
    %6126 = vmatpush2.msra.mxu0 0.0
    %6127 = vmatprep.subr.mxu0 0.0
    %6128 = vmatpush2.msra.mxu0 0.0
    %6129 = vmatprep.subr.mxu0 0.0
    %6130 = vmatpush2.msra.mxu0 0.0
    %6131 = vmatprep.subr.mxu0 0.0
    %6132 = vmatpush2.msra.mxu0 0.0
    %6133 = vmatprep.subr.mxu0 0.0
    %6134 = vmatpush2.msra.mxu0 0.0
    %6135 = vmatprep.subr.mxu0 0.0
    %6136 = vmatpush2.msra.mxu0 0.0
    %6137 = vmatprep.subr.mxu0 0.0
    %6138 = vmatpush2.msra.mxu0 0.0
    %6139 = vmatprep.subr.mxu0 0.0
    %6140 = vmatpush2.msra.mxu0 0.0
    %6141 = vmatprep.subr.mxu0 0.0
    %6142 = vmatpush2.msra.mxu0 0.0
    %6143 = vmatprep.subr.mxu0 0.0
    %6144 = vmatpush2.msra.mxu0 0.0
    %6145 = vmatprep.subr.mxu0 0.0
    %6146 = vmatpush2.msra.mxu0 0.0
    %6147 = vmatprep.subr.mxu0 0.0
    %6148 = vmatpush2.msra.mxu0 0.0
    %6149 = vmatprep.subr.mxu0 0.0
    %6150 = vmatpush2.msra.mxu0 0.0
    %6151 = vmatprep.subr.mxu0 0.0
    %6152 = vmatpush2.msra.mxu0 0.0
    %6153 = vmatprep.subr.mxu0 %v6017
    %6154 = vmatpush2.msra.mxu0 %v6016
    %6155 = vmatprep.subr.mxu0 %v6009
    %6156 = vmatpush2.msra.mxu0 %v6008
    %6157 = vmatprep.mubr.f32.mxu0 %v5722
    %6158 = vmatmul.mubr.f32.gmra.mxu0 %v5625
    %v6159 = vpop.f32.mrf.mxu0
    %v6160 = vadd.f32 0.0, %v6159
    %v6161 = vpop.f32.mrf.mxu0
    %v6162 = vadd.f32 0.0, %v6161
    %6163 = vdwg.mxu0
    %6164 = vmatprep.subr.mxu0 %v6003
    %6165 = vmatpush1.msra.mxu0 %v6002
    %6166 = vmatprep.subr.mxu0 %v5995
    %6167 = vmatpush1.msra.mxu0 %v5994
    %6168 = vmatprep.subr.mxu0 %v5987
    %6169 = vmatpush1.msra.mxu0 %v5986
    %6170 = vmatprep.subr.mxu0 %v5979
    %6171 = vmatpush1.msra.mxu0 %v5978
    %6172 = vmatprep.subr.mxu0 %v5971
    %6173 = vmatpush1.msra.mxu0 %v5970
    %6174 = vmatprep.subr.mxu0 %v5963
    %6175 = vmatpush1.msra.mxu0 %v5962
    %6176 = vmatprep.subr.mxu0 %v5955
    %6177 = vmatpush1.msra.mxu0 %v5954
    %6178 = vmatprep.subr.mxu0 %v5947
    %6179 = vmatpush1.msra.mxu0 %v5946
    %6180 = vmatprep.subr.mxu0 %v5939
    %6181 = vmatpush1.msra.mxu0 %v5938
    %6182 = vmatprep.subr.mxu0 %v5931
    %6183 = vmatpush1.msra.mxu0 %v5930
    %6184 = vmatprep.subr.mxu0 %v5923
    %6185 = vmatpush1.msra.mxu0 %v5922
    %6186 = vmatprep.subr.mxu0 %v5915
    %6187 = vmatpush1.msra.mxu0 %v5914
    %6188 = vmatprep.subr.mxu0 %v5907
    %6189 = vmatpush1.msra.mxu0 %v5906
    %6190 = vmatprep.subr.mxu0 %v5899
    %6191 = vmatpush1.msra.mxu0 %v5898
    %6192 = vmatprep.subr.mxu0 %v5891
    %6193 = vmatpush1.msra.mxu0 %v5890
    %6194 = vmatprep.subr.mxu0 %v5883
    %6195 = vmatpush1.msra.mxu0 %v5882
    %6196 = vmatprep.subr.mxu0 0.0
    %6197 = vmatpush2.msra.mxu0 0.0
    %6198 = vmatprep.subr.mxu0 0.0
    %6199 = vmatpush2.msra.mxu0 0.0
    %6200 = vmatprep.subr.mxu0 0.0
    %6201 = vmatpush2.msra.mxu0 0.0
    %6202 = vmatprep.subr.mxu0 0.0
    %6203 = vmatpush2.msra.mxu0 0.0
    %6204 = vmatprep.subr.mxu0 0.0
    %6205 = vmatpush2.msra.mxu0 0.0
    %6206 = vmatprep.subr.mxu0 0.0
    %6207 = vmatpush2.msra.mxu0 0.0
    %6208 = vmatprep.subr.mxu0 0.0
    %6209 = vmatpush2.msra.mxu0 0.0
    %6210 = vmatprep.subr.mxu0 0.0
    %6211 = vmatpush2.msra.mxu0 0.0
    %6212 = vmatprep.subr.mxu0 0.0
    %6213 = vmatpush2.msra.mxu0 0.0
    %6214 = vmatprep.subr.mxu0 0.0
    %6215 = vmatpush2.msra.mxu0 0.0
    %6216 = vmatprep.subr.mxu0 0.0
    %6217 = vmatpush2.msra.mxu0 0.0
    %6218 = vmatprep.subr.mxu0 0.0
    %6219 = vmatpush2.msra.mxu0 0.0
    %6220 = vmatprep.subr.mxu0 0.0
    %6221 = vmatpush2.msra.mxu0 0.0
    %6222 = vmatprep.subr.mxu0 0.0
    %6223 = vmatpush2.msra.mxu0 0.0
    %6224 = vmatprep.subr.mxu0 %v6019
    %6225 = vmatpush2.msra.mxu0 %v6018
    %6226 = vmatprep.subr.mxu0 %v6011
    %6227 = vmatpush2.msra.mxu0 %v6010
    %6228 = vmatprep.mubr.f32.mxu0 %v5722
    %6229 = vmatmul.mubr.f32.gmra.mxu0 %v5625
    %v6230 = vpop.f32.mrf.mxu0
    %v6231 = vadd.f32 0.0, %v6230
    %v6232 = vpop.f32.mrf.mxu0
    %v6233 = vadd.f32 0.0, %v6232
    %6234 = vdwg.mxu0
    %6235 = vmatprep.subr.mxu0 %v6005
    %6236 = vmatpush1.msra.mxu0 %v6004
    %6237 = vmatprep.subr.mxu0 %v5997
    %6238 = vmatpush1.msra.mxu0 %v5996
    %6239 = vmatprep.subr.mxu0 %v5989
    %6240 = vmatpush1.msra.mxu0 %v5988
    %6241 = vmatprep.subr.mxu0 %v5981
    %6242 = vmatpush1.msra.mxu0 %v5980
    %6243 = vmatprep.subr.mxu0 %v5973
    %6244 = vmatpush1.msra.mxu0 %v5972
    %6245 = vmatprep.subr.mxu0 %v5965
    %6246 = vmatpush1.msra.mxu0 %v5964
    %6247 = vmatprep.subr.mxu0 %v5957
    %6248 = vmatpush1.msra.mxu0 %v5956
    %6249 = vmatprep.subr.mxu0 %v5949
    %6250 = vmatpush1.msra.mxu0 %v5948
    %6251 = vmatprep.subr.mxu0 %v5941
    %6252 = vmatpush1.msra.mxu0 %v5940
    %6253 = vmatprep.subr.mxu0 %v5933
    %6254 = vmatpush1.msra.mxu0 %v5932
    %6255 = vmatprep.subr.mxu0 %v5925
    %6256 = vmatpush1.msra.mxu0 %v5924
    %6257 = vmatprep.subr.mxu0 %v5917
    %6258 = vmatpush1.msra.mxu0 %v5916
    %6259 = vmatprep.subr.mxu0 %v5909
    %6260 = vmatpush1.msra.mxu0 %v5908
    %6261 = vmatprep.subr.mxu0 %v5901
    %6262 = vmatpush1.msra.mxu0 %v5900
    %6263 = vmatprep.subr.mxu0 %v5893
    %6264 = vmatpush1.msra.mxu0 %v5892
    %6265 = vmatprep.subr.mxu0 %v5885
    %6266 = vmatpush1.msra.mxu0 %v5884
    %6267 = vmatprep.subr.mxu0 0.0
    %6268 = vmatpush2.msra.mxu0 0.0
    %6269 = vmatprep.subr.mxu0 0.0
    %6270 = vmatpush2.msra.mxu0 0.0
    %6271 = vmatprep.subr.mxu0 0.0
    %6272 = vmatpush2.msra.mxu0 0.0
    %6273 = vmatprep.subr.mxu0 0.0
    %6274 = vmatpush2.msra.mxu0 0.0
    %6275 = vmatprep.subr.mxu0 0.0
    %6276 = vmatpush2.msra.mxu0 0.0
    %6277 = vmatprep.subr.mxu0 0.0
    %6278 = vmatpush2.msra.mxu0 0.0
    %6279 = vmatprep.subr.mxu0 0.0
    %6280 = vmatpush2.msra.mxu0 0.0
    %6281 = vmatprep.subr.mxu0 0.0
    %6282 = vmatpush2.msra.mxu0 0.0
    %6283 = vmatprep.subr.mxu0 0.0
    %6284 = vmatpush2.msra.mxu0 0.0
    %6285 = vmatprep.subr.mxu0 0.0
    %6286 = vmatpush2.msra.mxu0 0.0
    %6287 = vmatprep.subr.mxu0 0.0
    %6288 = vmatpush2.msra.mxu0 0.0
    %6289 = vmatprep.subr.mxu0 0.0
    %6290 = vmatpush2.msra.mxu0 0.0
    %6291 = vmatprep.subr.mxu0 0.0
    %6292 = vmatpush2.msra.mxu0 0.0
    %6293 = vmatprep.subr.mxu0 0.0
    %6294 = vmatpush2.msra.mxu0 0.0
    %6295 = vmatprep.subr.mxu0 %v6021
    %6296 = vmatpush2.msra.mxu0 %v6020
    %6297 = vmatprep.subr.mxu0 %v6013
    %6298 = vmatpush2.msra.mxu0 %v6012
    %6299 = vmatprep.mubr.f32.mxu0 %v5722
    %6300 = vmatmul.mubr.f32.gmra.mxu0 %v5625
    %v6301 = vpop.f32.mrf.mxu0
    %v6302 = vadd.f32 0.0, %v6301
    %v6303 = vpop.f32.mrf.mxu0
    %v6304 = vadd.f32 0.0, %v6303
    %6305 = vdwg.mxu0
    %v6306 = vadd.f32 %v5870, %v6089
    %v6307 = vadd.f32 %v5871, %v6091
    %v6308 = vadd.f32 %v5872, %v6160
    %v6309 = vadd.f32 %v5873, %v6162
    %v6310 = vadd.f32 %v5874, %v6231
    %v6311 = vadd.f32 %v5875, %v6233
    %v6312 = vadd.f32 %v5876, %v6302
    %v6313 = vadd.f32 %v5877, %v6304
    %v6314 = vxor.u32 %v6306, 2147483648
    %v6315 = vxor.u32 %v6307, 2147483648
    %v6316 = vxor.u32 %v6308, 2147483648
    %v6317 = vxor.u32 %v6309, 2147483648
    %v6318 = vxor.u32 %v6310, 2147483648
    %v6319 = vxor.u32 %v6311, 2147483648
    %v6320 = vmul.f32 %v6314, 1.442695
    %v6321 = vpow.pop %v6320
    %v6322 = vmul.f32 %v6315, 1.442695
    %v6323 = vpow.pop %v6322
    %v6324 = vmul.f32 %v6316, 1.442695
    %v6325 = vpow.pop %v6324
    %v6326 = vmul.f32 %v6317, 1.442695
    %v6327 = vpow.pop %v6326
    %v6328 = vmul.f32 %v6318, 1.442695
    %v6329 = vpow.pop %v6328
    %v6330 = vmul.f32 %v6319, 1.442695
    %v6331 = vpow.pop %v6330
    %v6332 = vadd.f32 %v6321, 1.0
    %v6333 = vadd.f32 %v6323, 1.0
    %v6334 = vadd.f32 %v6325, 1.0
    %v6335 = vadd.f32 %v6327, 1.0
    %v6336 = vadd.f32 %v6329, 1.0
    %v6337 = vadd.f32 %v6331, 1.0
    %v6338 = vrcp.pop %v6332
    %v6339 = vmul.f32 1.0, %v6338
    %v6340 = vrcp.pop %v6333
    %v6341 = vmul.f32 1.0, %v6340
    %v6342 = vrcp.pop %v6334
    %v6343 = vmul.f32 1.0, %v6342
    %v6344 = vrcp.pop %v6335
    %v6345 = vmul.f32 1.0, %v6344
    %v6346 = vrcp.pop %v6336
    %v6347 = vmul.f32 1.0, %v6346
    %v6348 = vrcp.pop %v6337
    %v6349 = vmul.f32 1.0, %v6348
    %v6350 = vtanh.pop %v6312
    %v6351 = vtanh.pop %v6313
    %v6352 = vmul.f32 %v6343, %v5621
    %v6353 = vmul.f32 %v6345, %v5622
    %v6354 = vmul.f32 %v6339, %v6350
    %v6355 = vmul.f32 %v6341, %v6351
    %v6356 = vadd.f32 %v6352, %v6354
    %v6357 = vadd.f32 %v6353, %v6355
    %v6358 = vtanh.pop %v6356
    %v6359 = vtanh.pop %v6357
    %v6360 = vmul.f32 %v6347, %v6358
    %v6361 = vmul.f32 %v6349, %v6359
    %v6362 = vld [vmem:[#allocation9] sm:$0xff]
    %v6363 = vld [vmem:[#allocation9 + $0x8] sm:$0xff]
    %v6364 = vld [vmem:[#allocation9 + $0x10] sm:$0xff]
    %v6365 = vld [vmem:[#allocation9 + $0x18] sm:$0xff]
    %v6366 = vld [vmem:[#allocation9 + $0x20] sm:$0xff]
    %v6367 = vld [vmem:[#allocation9 + $0x28] sm:$0xff]
    %v6368 = vld [vmem:[#allocation9 + $0x30] sm:$0xff]
    %v6369 = vld [vmem:[#allocation9 + $0x38] sm:$0xff]
    %v6370 = vld [vmem:[#allocation9 + $0x40] sm:$0xff]
    %v6371 = vld [vmem:[#allocation9 + $0x48] sm:$0xff]
    %v6372 = vld [vmem:[#allocation9 + $0x50] sm:$0xff]
    %v6373 = vld [vmem:[#allocation9 + $0x58] sm:$0xff]
    %v6374 = vld [vmem:[#allocation9 + $0x60] sm:$0xff]
    %v6375 = vld [vmem:[#allocation9 + $0x68] sm:$0xff]
    %v6376 = vld [vmem:[#allocation9 + $0x70] sm:$0xff]
    %v6377 = vld [vmem:[#allocation9 + $0x78] sm:$0xff]
    %v6378 = vld [vmem:[#allocation9 + $0x80] sm:$0xff]
    %v6379 = vld [vmem:[#allocation9 + $0x88] sm:$0xff]
    %v6380 = vld [vmem:[#allocation9 + $0x90] sm:$0xff]
    %v6381 = vld [vmem:[#allocation9 + $0x98] sm:$0xff]
    %v6382 = vld [vmem:[#allocation9 + $0xa0] sm:$0xff]
    %v6383 = vld [vmem:[#allocation9 + $0xa8] sm:$0xff]
    %v6384 = vld [vmem:[#allocation9 + $0xb0] sm:$0xff]
    %v6385 = vld [vmem:[#allocation9 + $0xb8] sm:$0xff]
    %v6386 = vld [vmem:[#allocation9 + $0xc0] sm:$0xff]
    %v6387 = vld [vmem:[#allocation9 + $0xc8] sm:$0xff]
    %v6388 = vld [vmem:[#allocation9 + $0xd0] sm:$0xff]
    %v6389 = vld [vmem:[#allocation9 + $0xd8] sm:$0xff]
    %v6390 = vld [vmem:[#allocation9 + $0xe0] sm:$0xff]
    %v6391 = vld [vmem:[#allocation9 + $0xe8] sm:$0xff]
    %v6392 = vld [vmem:[#allocation9 + $0xf0] sm:$0xff]
    %v6393 = vld [vmem:[#allocation9 + $0xf8] sm:$0xff]
    %v6394 = vld [vmem:[#allocation9 + $0x100] sm:$0xff]
    %v6395 = vld [vmem:[#allocation9 + $0x108] sm:$0xff]
    %v6396 = vld [vmem:[#allocation9 + $0x110] sm:$0xff]
    %v6397 = vld [vmem:[#allocation9 + $0x118] sm:$0xff]
    %v6398 = vld [vmem:[#allocation9 + $0x120] sm:$0xff]
    %v6399 = vld [vmem:[#allocation9 + $0x128] sm:$0xff]
    %v6400 = vld [vmem:[#allocation9 + $0x130] sm:$0xff]
    %v6401 = vld [vmem:[#allocation9 + $0x138] sm:$0xff]
    %v6402 = vld [vmem:[#allocation9 + $0x140] sm:$0xff]
    %v6403 = vld [vmem:[#allocation9 + $0x148] sm:$0xff]
    %v6404 = vld [vmem:[#allocation9 + $0x150] sm:$0xff]
    %v6405 = vld [vmem:[#allocation9 + $0x158] sm:$0xff]
    %v6406 = vld [vmem:[#allocation9 + $0x160] sm:$0xff]
    %v6407 = vld [vmem:[#allocation9 + $0x168] sm:$0xff]
    %v6408 = vld [vmem:[#allocation9 + $0x170] sm:$0xff]
    %v6409 = vld [vmem:[#allocation9 + $0x178] sm:$0xff]
    %v6410 = vld [vmem:[#allocation9 + $0x180] sm:$0xff]
    %v6411 = vld [vmem:[#allocation9 + $0x188] sm:$0xff]
    %v6412 = vld [vmem:[#allocation9 + $0x190] sm:$0xff]
    %v6413 = vld [vmem:[#allocation9 + $0x198] sm:$0xff]
    %v6414 = vld [vmem:[#allocation9 + $0x1a0] sm:$0xff]
    %v6415 = vld [vmem:[#allocation9 + $0x1a8] sm:$0xff]
    %v6416 = vld [vmem:[#allocation9 + $0x1b0] sm:$0xff]
    %v6417 = vld [vmem:[#allocation9 + $0x1b8] sm:$0xff]
    %v6418 = vld [vmem:[#allocation9 + $0x1c0] sm:$0xff]
    %v6419 = vld [vmem:[#allocation9 + $0x1c8] sm:$0xff]
    %v6420 = vld [vmem:[#allocation9 + $0x1d0] sm:$0xff]
    %v6421 = vld [vmem:[#allocation9 + $0x1d8] sm:$0xff]
    %v6422 = vld [vmem:[#allocation9 + $0x1e0] sm:$0xff]
    %v6423 = vld [vmem:[#allocation9 + $0x1e8] sm:$0xff]
    %v6424 = vld [vmem:[#allocation9 + $0x1f0] sm:$0xff]
    %v6425 = vld [vmem:[#allocation9 + $0x1f8] sm:$0xff]
    %v6426 = vld [vmem:[#allocation9 + $0x200] sm:$0xff]
    %v6427 = vld [vmem:[#allocation9 + $0x208] sm:$0xff]
    %v6428 = vld [vmem:[#allocation9 + $0x210] sm:$0xff]
    %v6429 = vld [vmem:[#allocation9 + $0x218] sm:$0xff]
    %v6430 = vld [vmem:[#allocation9 + $0x220] sm:$0xff]
    %v6431 = vld [vmem:[#allocation9 + $0x228] sm:$0xff]
    %v6432 = vld [vmem:[#allocation9 + $0x230] sm:$0xff]
    %v6433 = vld [vmem:[#allocation9 + $0x238] sm:$0xff]
    %v6434 = vld [vmem:[%s6] sm:$0xf]
    %v6436 = vlaneseq
    %v6437 = vshrl.u32 %v6436, 7
    %v6438 = vsub.s32 0, %v6437
    %v6439 = vrot.slane %v6434, %v6438
    %v6440 = vlaneseq
    %v6441 = vshrl.u32 %v6440, 7
    %v6442 = vsub.s32 1, %v6441
    %v6443 = vrot.slane %v6434, %v6442
    %v6444 = vlaneseq
    %v6445 = vshrl.u32 %v6444, 7
    %v6446 = vsub.s32 2, %v6445
    %v6447 = vrot.slane %v6434, %v6446
    %v6448 = vlaneseq
    %v6449 = vshrl.u32 %v6448, 7
    %v6450 = vsub.s32 3, %v6449
    %v6451 = vrot.slane %v6434, %v6450
    %v6457 = vsel %vm873, %v6361, 0
    %6459 = vmatprep.subr.mxu0 %v6423
    %6460 = vmatpush1.msra.mxu0 %v6422
    %6461 = vmatprep.subr.mxu0 %v6419
    %6462 = vmatpush1.msra.mxu0 %v6418
    %6463 = vmatprep.subr.mxu0 %v6415
    %6464 = vmatpush1.msra.mxu0 %v6414
    %6465 = vmatprep.subr.mxu0 %v6411
    %6466 = vmatpush1.msra.mxu0 %v6410
    %6467 = vmatprep.subr.mxu0 %v6407
    %6468 = vmatpush1.msra.mxu0 %v6406
    %6469 = vmatprep.subr.mxu0 %v6403
    %6470 = vmatpush1.msra.mxu0 %v6402
    %6471 = vmatprep.subr.mxu0 %v6399
    %6472 = vmatpush1.msra.mxu0 %v6398
    %6473 = vmatprep.subr.mxu0 %v6395
    %6474 = vmatpush1.msra.mxu0 %v6394
    %6475 = vmatprep.subr.mxu0 %v6391
    %6476 = vmatpush1.msra.mxu0 %v6390
    %6477 = vmatprep.subr.mxu0 %v6387
    %6478 = vmatpush1.msra.mxu0 %v6386
    %6479 = vmatprep.subr.mxu0 %v6383
    %6480 = vmatpush1.msra.mxu0 %v6382
    %6481 = vmatprep.subr.mxu0 %v6379
    %6482 = vmatpush1.msra.mxu0 %v6378
    %6483 = vmatprep.subr.mxu0 %v6375
    %6484 = vmatpush1.msra.mxu0 %v6374
    %6485 = vmatprep.subr.mxu0 %v6371
    %6486 = vmatpush1.msra.mxu0 %v6370
    %6487 = vmatprep.subr.mxu0 %v6367
    %6488 = vmatpush1.msra.mxu0 %v6366
    %6489 = vmatprep.subr.mxu0 %v6363
    %6490 = vmatpush1.msra.mxu0 %v6362
    %6491 = vmatprep.subr.mxu0 0.0
    %6492 = vmatpush2.msra.mxu0 0.0
    %6493 = vmatprep.subr.mxu0 0.0
    %6494 = vmatpush2.msra.mxu0 0.0
    %6495 = vmatprep.subr.mxu0 0.0
    %6496 = vmatpush2.msra.mxu0 0.0
    %6497 = vmatprep.subr.mxu0 0.0
    %6498 = vmatpush2.msra.mxu0 0.0
    %6499 = vmatprep.subr.mxu0 0.0
    %6500 = vmatpush2.msra.mxu0 0.0
    %6501 = vmatprep.subr.mxu0 0.0
    %6502 = vmatpush2.msra.mxu0 0.0
    %6503 = vmatprep.subr.mxu0 0.0
    %6504 = vmatpush2.msra.mxu0 0.0
    %6505 = vmatprep.subr.mxu0 0.0
    %6506 = vmatpush2.msra.mxu0 0.0
    %6507 = vmatprep.subr.mxu0 0.0
    %6508 = vmatpush2.msra.mxu0 0.0
    %6509 = vmatprep.subr.mxu0 0.0
    %6510 = vmatpush2.msra.mxu0 0.0
    %6511 = vmatprep.subr.mxu0 0.0
    %6512 = vmatpush2.msra.mxu0 0.0
    %6513 = vmatprep.subr.mxu0 0.0
    %6514 = vmatpush2.msra.mxu0 0.0
    %6515 = vmatprep.subr.mxu0 0.0
    %6516 = vmatpush2.msra.mxu0 0.0
    %6517 = vmatprep.subr.mxu0 0.0
    %6518 = vmatpush2.msra.mxu0 0.0
    %6519 = vmatprep.subr.mxu0 %v6431
    %6520 = vmatpush2.msra.mxu0 %v6430
    %6521 = vmatprep.subr.mxu0 %v6427
    %6522 = vmatpush2.msra.mxu0 %v6426
    %6523 = vmatprep.mubr.f32.mxu0 %v6457
    %6524 = vmatmul.mubr.f32.gmra.mxu0 %v6360
    %v6525 = vpop.f32.mrf.mxu0
    %v6526 = vadd.f32 %v6439, %v6525
    %v6527 = vpop.f32.mrf.mxu0
    %v6528 = vadd.f32 %v6443, %v6527
    %6529 = vdwg.mxu0
    %6530 = vmatprep.subr.mxu0 %v6425
    %6531 = vmatpush1.msra.mxu0 %v6424
    %6532 = vmatprep.subr.mxu0 %v6421
    %6533 = vmatpush1.msra.mxu0 %v6420
    %6534 = vmatprep.subr.mxu0 %v6417
    %6535 = vmatpush1.msra.mxu0 %v6416
    %6536 = vmatprep.subr.mxu0 %v6413
    %6537 = vmatpush1.msra.mxu0 %v6412
    %6538 = vmatprep.subr.mxu0 %v6409
    %6539 = vmatpush1.msra.mxu0 %v6408
    %6540 = vmatprep.subr.mxu0 %v6405
    %6541 = vmatpush1.msra.mxu0 %v6404
    %6542 = vmatprep.subr.mxu0 %v6401
    %6543 = vmatpush1.msra.mxu0 %v6400
    %6544 = vmatprep.subr.mxu0 %v6397
    %6545 = vmatpush1.msra.mxu0 %v6396
    %6546 = vmatprep.subr.mxu0 %v6393
    %6547 = vmatpush1.msra.mxu0 %v6392
    %6548 = vmatprep.subr.mxu0 %v6389
    %6549 = vmatpush1.msra.mxu0 %v6388
    %6550 = vmatprep.subr.mxu0 %v6385
    %6551 = vmatpush1.msra.mxu0 %v6384
    %6552 = vmatprep.subr.mxu0 %v6381
    %6553 = vmatpush1.msra.mxu0 %v6380
    %6554 = vmatprep.subr.mxu0 %v6377
    %6555 = vmatpush1.msra.mxu0 %v6376
    %6556 = vmatprep.subr.mxu0 %v6373
    %6557 = vmatpush1.msra.mxu0 %v6372
    %6558 = vmatprep.subr.mxu0 %v6369
    %6559 = vmatpush1.msra.mxu0 %v6368
    %6560 = vmatprep.subr.mxu0 %v6365
    %6561 = vmatpush1.msra.mxu0 %v6364
    %6562 = vmatprep.subr.mxu0 0.0
    %6563 = vmatpush2.msra.mxu0 0.0
    %6564 = vmatprep.subr.mxu0 0.0
    %6565 = vmatpush2.msra.mxu0 0.0
    %6566 = vmatprep.subr.mxu0 0.0
    %6567 = vmatpush2.msra.mxu0 0.0
    %6568 = vmatprep.subr.mxu0 0.0
    %6569 = vmatpush2.msra.mxu0 0.0
    %6570 = vmatprep.subr.mxu0 0.0
    %6571 = vmatpush2.msra.mxu0 0.0
    %6572 = vmatprep.subr.mxu0 0.0
    %6573 = vmatpush2.msra.mxu0 0.0
    %6574 = vmatprep.subr.mxu0 0.0
    %6575 = vmatpush2.msra.mxu0 0.0
    %6576 = vmatprep.subr.mxu0 0.0
    %6577 = vmatpush2.msra.mxu0 0.0
    %6578 = vmatprep.subr.mxu0 0.0
    %6579 = vmatpush2.msra.mxu0 0.0
    %6580 = vmatprep.subr.mxu0 0.0
    %6581 = vmatpush2.msra.mxu0 0.0
    %6582 = vmatprep.subr.mxu0 0.0
    %6583 = vmatpush2.msra.mxu0 0.0
    %6584 = vmatprep.subr.mxu0 0.0
    %6585 = vmatpush2.msra.mxu0 0.0
    %6586 = vmatprep.subr.mxu0 0.0
    %6587 = vmatpush2.msra.mxu0 0.0
    %6588 = vmatprep.subr.mxu0 0.0
    %6589 = vmatpush2.msra.mxu0 0.0
    %6590 = vmatprep.subr.mxu0 %v6433
    %6591 = vmatpush2.msra.mxu0 %v6432
    %6592 = vmatprep.subr.mxu0 %v6429
    %6593 = vmatpush2.msra.mxu0 %v6428
    %6594 = vmatprep.mubr.f32.mxu0 %v6457
    %6595 = vmatmul.mubr.f32.gmra.mxu0 %v6360
    %v6596 = vpop.f32.mrf.mxu0
    %v6597 = vadd.f32 %v6447, %v6596
    %v6598 = vpop.f32.mrf.mxu0
    %v6599 = vadd.f32 %v6451, %v6598
    %6600 = vdwg.mxu0
    %6601 = vst [vmem:[#allocation3 + $0xe0] sm:$0xff] %v6526
    %6602 = vst [vmem:[#allocation3 + $0xe8] sm:$0xff] %v6528
    %6603 = vst [vmem:[#allocation3 + $0xf0] sm:$0xff] %v6597
    %6604 = vst [vmem:[#allocation3 + $0xf8] sm:$0xff] %v6599
    %v6605 = vld [vmem:[#allocation3] sm:$0xff]
    %v6606 = vld [vmem:[#allocation3 + $0x8] sm:$0xff]
    %v6607 = vld [vmem:[#allocation3 + $0x10] sm:$0xff]
    %v6608 = vld [vmem:[#allocation3 + $0x18] sm:$0xff]
    %v6609 = vld [vmem:[#allocation10] sm:$0xff]
    %v6610 = vld [vmem:[#allocation10 + $0x8] sm:$0xff]
    %v6611 = vld [vmem:[#allocation10 + $0x10] sm:$0xff]
    %v6612 = vld [vmem:[#allocation10 + $0x18] sm:$0xff]
    %v6613 = vld [vmem:[#allocation10 + $0x20] sm:$0xff]
    %v6614 = vld [vmem:[#allocation10 + $0x28] sm:$0xff]
    %v6615 = vld [vmem:[#allocation10 + $0x30] sm:$0xff]
    %v6616 = vld [vmem:[#allocation10 + $0x38] sm:$0xff]
    %v6617 = vld [vmem:[#allocation10 + $0x40] sm:$0xff]
    %v6618 = vld [vmem:[#allocation10 + $0x48] sm:$0xff]
    %v6619 = vld [vmem:[#allocation10 + $0x50] sm:$0xff]
    %v6620 = vld [vmem:[#allocation10 + $0x58] sm:$0xff]
    %v6621 = vld [vmem:[#allocation10 + $0x60] sm:$0xff]
    %v6622 = vld [vmem:[#allocation10 + $0x68] sm:$0xff]
    %v6623 = vld [vmem:[#allocation10 + $0x70] sm:$0xff]
    %v6624 = vld [vmem:[#allocation10 + $0x78] sm:$0xff]
    %v6625 = vld [vmem:[#allocation10 + $0x80] sm:$0xff]
    %v6626 = vld [vmem:[#allocation10 + $0x88] sm:$0xff]
    %v6627 = vld [vmem:[#allocation10 + $0x90] sm:$0xff]
    %v6628 = vld [vmem:[#allocation10 + $0x98] sm:$0xff]
    %v6629 = vld [vmem:[#allocation10 + $0xa0] sm:$0xff]
    %v6630 = vld [vmem:[#allocation10 + $0xa8] sm:$0xff]
    %v6631 = vld [vmem:[#allocation10 + $0xb0] sm:$0xff]
    %v6632 = vld [vmem:[#allocation10 + $0xb8] sm:$0xff]
    %v6633 = vld [vmem:[#allocation10 + $0xc0] sm:$0xff]
    %v6634 = vld [vmem:[#allocation10 + $0xc8] sm:$0xff]
    %v6635 = vld [vmem:[#allocation10 + $0xd0] sm:$0xff]
    %v6636 = vld [vmem:[#allocation10 + $0xd8] sm:$0xff]
    %v6637 = vld [vmem:[#allocation10 + $0xe0] sm:$0xff]
    %v6638 = vld [vmem:[#allocation10 + $0xe8] sm:$0xff]
    %v6639 = vld [vmem:[#allocation10 + $0xf0] sm:$0xff]
    %v6640 = vld [vmem:[#allocation10 + $0xf8] sm:$0xff]
    %v6641 = vld [vmem:[#allocation10 + $0x100] sm:$0xff]
    %v6642 = vld [vmem:[#allocation10 + $0x108] sm:$0xff]
    %v6643 = vld [vmem:[#allocation10 + $0x110] sm:$0xff]
    %v6644 = vld [vmem:[#allocation10 + $0x118] sm:$0xff]
    %v6645 = vld [vmem:[#allocation10 + $0x120] sm:$0xff]
    %v6646 = vld [vmem:[#allocation10 + $0x128] sm:$0xff]
    %v6647 = vld [vmem:[#allocation10 + $0x130] sm:$0xff]
    %v6648 = vld [vmem:[#allocation10 + $0x138] sm:$0xff]
    %v6649 = vld [vmem:[#allocation10 + $0x140] sm:$0xff]
    %v6650 = vld [vmem:[#allocation10 + $0x148] sm:$0xff]
    %v6651 = vld [vmem:[#allocation10 + $0x150] sm:$0xff]
    %v6652 = vld [vmem:[#allocation10 + $0x158] sm:$0xff]
    %v6653 = vld [vmem:[#allocation10 + $0x160] sm:$0xff]
    %v6654 = vld [vmem:[#allocation10 + $0x168] sm:$0xff]
    %v6655 = vld [vmem:[#allocation10 + $0x170] sm:$0xff]
    %v6656 = vld [vmem:[#allocation10 + $0x178] sm:$0xff]
    %vm6657 = vcmask 785408
    %v6658 = vsel %vm6657, 0.0, 0
    %6660 = vmatprep.subr.mxu0 0.0
    %6661 = vmatpush1.msra.mxu0 0.0
    %6662 = vmatprep.subr.mxu0 0.0
    %6663 = vmatpush1.msra.mxu0 0.0
    %6664 = vmatprep.subr.mxu0 0.0
    %6665 = vmatpush1.msra.mxu0 0.0
    %6666 = vmatprep.subr.mxu0 0.0
    %6667 = vmatpush1.msra.mxu0 0.0
    %6668 = vmatprep.subr.mxu0 %v6654
    %6669 = vmatpush1.msra.mxu0 %v6653
    %6670 = vmatprep.subr.mxu0 %v6650
    %6671 = vmatpush1.msra.mxu0 %v6649
    %6672 = vmatprep.subr.mxu0 %v6646
    %6673 = vmatpush1.msra.mxu0 %v6645
    %6674 = vmatprep.subr.mxu0 %v6642
    %6675 = vmatpush1.msra.mxu0 %v6641
    %6676 = vmatprep.subr.mxu0 %v6638
    %6677 = vmatpush1.msra.mxu0 %v6637
    %6678 = vmatprep.subr.mxu0 %v6634
    %6679 = vmatpush1.msra.mxu0 %v6633
    %6680 = vmatprep.subr.mxu0 %v6630
    %6681 = vmatpush1.msra.mxu0 %v6629
    %6682 = vmatprep.subr.mxu0 %v6626
    %6683 = vmatpush1.msra.mxu0 %v6625
    %6684 = vmatprep.subr.mxu0 %v6622
    %6685 = vmatpush1.msra.mxu0 %v6621
    %6686 = vmatprep.subr.mxu0 %v6618
    %6687 = vmatpush1.msra.mxu0 %v6617
    %6688 = vmatprep.subr.mxu0 %v6614
    %6689 = vmatpush1.msra.mxu0 %v6613
    %6690 = vmatprep.subr.mxu0 %v6610
    %6691 = vmatpush1.msra.mxu0 %v6609
    %6692 = vmatprep.subr.mxu0 0.0
    %6693 = vmatpush2.msra.mxu0 0.0
    %6694 = vmatprep.subr.mxu0 0.0
    %6695 = vmatpush2.msra.mxu0 0.0
    %6696 = vmatprep.subr.mxu0 0.0
    %6697 = vmatpush2.msra.mxu0 0.0
    %6698 = vmatprep.subr.mxu0 0.0
    %6699 = vmatpush2.msra.mxu0 0.0
    %6700 = vmatprep.subr.mxu0 0.0
    %6701 = vmatpush2.msra.mxu0 0.0
    %6702 = vmatprep.subr.mxu0 0.0
    %6703 = vmatpush2.msra.mxu0 0.0
    %6704 = vmatprep.subr.mxu0 0.0
    %6705 = vmatpush2.msra.mxu0 0.0
    %6706 = vmatprep.subr.mxu0 0.0
    %6707 = vmatpush2.msra.mxu0 0.0
    %6708 = vmatprep.subr.mxu0 0.0
    %6709 = vmatpush2.msra.mxu0 0.0
    %6710 = vmatprep.subr.mxu0 0.0
    %6711 = vmatpush2.msra.mxu0 0.0
    %6712 = vmatprep.subr.mxu0 0.0
    %6713 = vmatpush2.msra.mxu0 0.0
    %6714 = vmatprep.subr.mxu0 0.0
    %6715 = vmatpush2.msra.mxu0 0.0
    %6716 = vmatprep.subr.mxu0 0.0
    %6717 = vmatpush2.msra.mxu0 0.0
    %6718 = vmatprep.subr.mxu0 0.0
    %6719 = vmatpush2.msra.mxu0 0.0
    %6720 = vmatprep.subr.mxu0 0.0
    %6721 = vmatpush2.msra.mxu0 0.0
    %6722 = vmatprep.subr.mxu0 0.0
    %6723 = vmatpush2.msra.mxu0 0.0
    %6724 = vmatprep.mubr.f32.mxu0 0.0
    %6725 = vmatmul.mubr.f32.gmra.mxu0 %v6658
    %v6726 = vpop.f32.mrf.mxu0
    %v6727 = vadd.f32 0.0, %v6726
    %v6728 = vpop.f32.mrf.mxu0
    %v6729 = vadd.f32 0.0, %v6728
    %6730 = vdwg.mxu0
    %6731 = vmatprep.subr.mxu0 0.0
    %6732 = vmatpush1.msra.mxu0 0.0
    %6733 = vmatprep.subr.mxu0 0.0
    %6734 = vmatpush1.msra.mxu0 0.0
    %6735 = vmatprep.subr.mxu0 0.0
    %6736 = vmatpush1.msra.mxu0 0.0
    %6737 = vmatprep.subr.mxu0 0.0
    %6738 = vmatpush1.msra.mxu0 0.0
    %6739 = vmatprep.subr.mxu0 %v6656
    %6740 = vmatpush1.msra.mxu0 %v6655
    %6741 = vmatprep.subr.mxu0 %v6652
    %6742 = vmatpush1.msra.mxu0 %v6651
    %6743 = vmatprep.subr.mxu0 %v6648
    %6744 = vmatpush1.msra.mxu0 %v6647
    %6745 = vmatprep.subr.mxu0 %v6644
    %6746 = vmatpush1.msra.mxu0 %v6643
    %6747 = vmatprep.subr.mxu0 %v6640
    %6748 = vmatpush1.msra.mxu0 %v6639
    %6749 = vmatprep.subr.mxu0 %v6636
    %6750 = vmatpush1.msra.mxu0 %v6635
    %6751 = vmatprep.subr.mxu0 %v6632
    %6752 = vmatpush1.msra.mxu0 %v6631
    %6753 = vmatprep.subr.mxu0 %v6628
    %6754 = vmatpush1.msra.mxu0 %v6627
    %6755 = vmatprep.subr.mxu0 %v6624
    %6756 = vmatpush1.msra.mxu0 %v6623
    %6757 = vmatprep.subr.mxu0 %v6620
    %6758 = vmatpush1.msra.mxu0 %v6619
    %6759 = vmatprep.subr.mxu0 %v6616
    %6760 = vmatpush1.msra.mxu0 %v6615
    %6761 = vmatprep.subr.mxu0 %v6612
    %6762 = vmatpush1.msra.mxu0 %v6611
    %6763 = vmatprep.subr.mxu0 0.0
    %6764 = vmatpush2.msra.mxu0 0.0
    %6765 = vmatprep.subr.mxu0 0.0
    %6766 = vmatpush2.msra.mxu0 0.0
    %6767 = vmatprep.subr.mxu0 0.0
    %6768 = vmatpush2.msra.mxu0 0.0
    %6769 = vmatprep.subr.mxu0 0.0
    %6770 = vmatpush2.msra.mxu0 0.0
    %6771 = vmatprep.subr.mxu0 0.0
    %6772 = vmatpush2.msra.mxu0 0.0
    %6773 = vmatprep.subr.mxu0 0.0
    %6774 = vmatpush2.msra.mxu0 0.0
    %6775 = vmatprep.subr.mxu0 0.0
    %6776 = vmatpush2.msra.mxu0 0.0
    %6777 = vmatprep.subr.mxu0 0.0
    %6778 = vmatpush2.msra.mxu0 0.0
    %6779 = vmatprep.subr.mxu0 0.0
    %6780 = vmatpush2.msra.mxu0 0.0
    %6781 = vmatprep.subr.mxu0 0.0
    %6782 = vmatpush2.msra.mxu0 0.0
    %6783 = vmatprep.subr.mxu0 0.0
    %6784 = vmatpush2.msra.mxu0 0.0
    %6785 = vmatprep.subr.mxu0 0.0
    %6786 = vmatpush2.msra.mxu0 0.0
    %6787 = vmatprep.subr.mxu0 0.0
    %6788 = vmatpush2.msra.mxu0 0.0
    %6789 = vmatprep.subr.mxu0 0.0
    %6790 = vmatpush2.msra.mxu0 0.0
    %6791 = vmatprep.subr.mxu0 0.0
    %6792 = vmatpush2.msra.mxu0 0.0
    %6793 = vmatprep.subr.mxu0 0.0
    %6794 = vmatpush2.msra.mxu0 0.0
    %6795 = vmatprep.mubr.f32.mxu0 0.0
    %6796 = vmatmul.mubr.f32.gmra.mxu0 %v6658
    %v6797 = vpop.f32.mrf.mxu0
    %v6798 = vadd.f32 0.0, %v6797
    %v6799 = vpop.f32.mrf.mxu0
    %v6800 = vadd.f32 0.0, %v6799
    %6801 = vdwg.mxu0
    %v6802 = vadd.f32 %v6605, %v6727
    %v6803 = vadd.f32 %v6606, %v6729
    %v6804 = vadd.f32 %v6607, %v6798
    %v6805 = vadd.f32 %v6608, %v6800
    %v6806 = vxor.u32 %v6802, 2147483648
    %v6807 = vxor.u32 %v6803, 2147483648
    %v6808 = vxor.u32 %v6804, 2147483648
    %v6809 = vmul.f32 %v6806, 1.442695
    %v6810 = vpow.pop %v6809
    %v6811 = vmul.f32 %v6807, 1.442695
    %v6812 = vpow.pop %v6811
    %v6813 = vmul.f32 %v6808, 1.442695
    %v6814 = vpow.pop %v6813
    %v6815 = vadd.f32 %v6810, 1.0
    %v6816 = vadd.f32 %v6812, 1.0
    %v6817 = vadd.f32 %v6814, 1.0
    %v6818 = vrcp.pop %v6815
    %v6819 = vmul.f32 1.0, %v6818
    %v6820 = vrcp.pop %v6816
    %v6821 = vmul.f32 1.0, %v6820
    %v6822 = vrcp.pop %v6817
    %v6823 = vmul.f32 1.0, %v6822
    %v6824 = vtanh.pop %v6805
    %v6825 = vmul.f32 %v6821, 0.0
    %v6826 = vmul.f32 %v6819, %v6824
    %v6827 = vadd.f32 %v6825, %v6826
    %v6828 = vtanh.pop %v6827
    %v6829 = vmul.f32 %v6823, %v6828
    %v6830 = vld [vmem:[#allocation3 + $0x20] sm:$0xff]
    %v6831 = vld [vmem:[#allocation3 + $0x28] sm:$0xff]
    %v6832 = vld [vmem:[#allocation3 + $0x30] sm:$0xff]
    %v6833 = vld [vmem:[#allocation3 + $0x38] sm:$0xff]
    %v6835 = vsel %vm6657, %v6829, 0
    %6837 = vmatprep.subr.mxu0 0.0
    %6838 = vmatpush1.msra.mxu0 0.0
    %6839 = vmatprep.subr.mxu0 0.0
    %6840 = vmatpush1.msra.mxu0 0.0
    %6841 = vmatprep.subr.mxu0 0.0
    %6842 = vmatpush1.msra.mxu0 0.0
    %6843 = vmatprep.subr.mxu0 0.0
    %6844 = vmatpush1.msra.mxu0 0.0
    %6845 = vmatprep.subr.mxu0 %v6654
    %6846 = vmatpush1.msra.mxu0 %v6653
    %6847 = vmatprep.subr.mxu0 %v6650
    %6848 = vmatpush1.msra.mxu0 %v6649
    %6849 = vmatprep.subr.mxu0 %v6646
    %6850 = vmatpush1.msra.mxu0 %v6645
    %6851 = vmatprep.subr.mxu0 %v6642
    %6852 = vmatpush1.msra.mxu0 %v6641
    %6853 = vmatprep.subr.mxu0 %v6638
    %6854 = vmatpush1.msra.mxu0 %v6637
    %6855 = vmatprep.subr.mxu0 %v6634
    %6856 = vmatpush1.msra.mxu0 %v6633
    %6857 = vmatprep.subr.mxu0 %v6630
    %6858 = vmatpush1.msra.mxu0 %v6629
    %6859 = vmatprep.subr.mxu0 %v6626
    %6860 = vmatpush1.msra.mxu0 %v6625
    %6861 = vmatprep.subr.mxu0 %v6622
    %6862 = vmatpush1.msra.mxu0 %v6621
    %6863 = vmatprep.subr.mxu0 %v6618
    %6864 = vmatpush1.msra.mxu0 %v6617
    %6865 = vmatprep.subr.mxu0 %v6614
    %6866 = vmatpush1.msra.mxu0 %v6613
    %6867 = vmatprep.subr.mxu0 %v6610
    %6868 = vmatpush1.msra.mxu0 %v6609
    %6869 = vmatprep.subr.mxu0 0.0
    %6870 = vmatpush2.msra.mxu0 0.0
    %6871 = vmatprep.subr.mxu0 0.0
    %6872 = vmatpush2.msra.mxu0 0.0
    %6873 = vmatprep.subr.mxu0 0.0
    %6874 = vmatpush2.msra.mxu0 0.0
    %6875 = vmatprep.subr.mxu0 0.0
    %6876 = vmatpush2.msra.mxu0 0.0
    %6877 = vmatprep.subr.mxu0 0.0
    %6878 = vmatpush2.msra.mxu0 0.0
    %6879 = vmatprep.subr.mxu0 0.0
    %6880 = vmatpush2.msra.mxu0 0.0
    %6881 = vmatprep.subr.mxu0 0.0
    %6882 = vmatpush2.msra.mxu0 0.0
    %6883 = vmatprep.subr.mxu0 0.0
    %6884 = vmatpush2.msra.mxu0 0.0
    %6885 = vmatprep.subr.mxu0 0.0
    %6886 = vmatpush2.msra.mxu0 0.0
    %6887 = vmatprep.subr.mxu0 0.0
    %6888 = vmatpush2.msra.mxu0 0.0
    %6889 = vmatprep.subr.mxu0 0.0
    %6890 = vmatpush2.msra.mxu0 0.0
    %6891 = vmatprep.subr.mxu0 0.0
    %6892 = vmatpush2.msra.mxu0 0.0
    %6893 = vmatprep.subr.mxu0 0.0
    %6894 = vmatpush2.msra.mxu0 0.0
    %6895 = vmatprep.subr.mxu0 0.0
    %6896 = vmatpush2.msra.mxu0 0.0
    %6897 = vmatprep.subr.mxu0 0.0
    %6898 = vmatpush2.msra.mxu0 0.0
    %6899 = vmatprep.subr.mxu0 0.0
    %6900 = vmatpush2.msra.mxu0 0.0
    %6901 = vmatprep.mubr.f32.mxu0 0.0
    %6902 = vmatmul.mubr.f32.gmra.mxu0 %v6835
    %v6903 = vpop.f32.mrf.mxu0
    %v6904 = vadd.f32 0.0, %v6903
    %v6905 = vpop.f32.mrf.mxu0
    %v6906 = vadd.f32 0.0, %v6905
    %6907 = vdwg.mxu0
    %6908 = vmatprep.subr.mxu0 0.0
    %6909 = vmatpush1.msra.mxu0 0.0
    %6910 = vmatprep.subr.mxu0 0.0
    %6911 = vmatpush1.msra.mxu0 0.0
    %6912 = vmatprep.subr.mxu0 0.0
    %6913 = vmatpush1.msra.mxu0 0.0
    %6914 = vmatprep.subr.mxu0 0.0
    %6915 = vmatpush1.msra.mxu0 0.0
    %6916 = vmatprep.subr.mxu0 %v6656
    %6917 = vmatpush1.msra.mxu0 %v6655
    %6918 = vmatprep.subr.mxu0 %v6652
    %6919 = vmatpush1.msra.mxu0 %v6651
    %6920 = vmatprep.subr.mxu0 %v6648
    %6921 = vmatpush1.msra.mxu0 %v6647
    %6922 = vmatprep.subr.mxu0 %v6644
    %6923 = vmatpush1.msra.mxu0 %v6643
    %6924 = vmatprep.subr.mxu0 %v6640
    %6925 = vmatpush1.msra.mxu0 %v6639
    %6926 = vmatprep.subr.mxu0 %v6636
    %6927 = vmatpush1.msra.mxu0 %v6635
    %6928 = vmatprep.subr.mxu0 %v6632
    %6929 = vmatpush1.msra.mxu0 %v6631
    %6930 = vmatprep.subr.mxu0 %v6628
    %6931 = vmatpush1.msra.mxu0 %v6627
    %6932 = vmatprep.subr.mxu0 %v6624
    %6933 = vmatpush1.msra.mxu0 %v6623
    %6934 = vmatprep.subr.mxu0 %v6620
    %6935 = vmatpush1.msra.mxu0 %v6619
    %6936 = vmatprep.subr.mxu0 %v6616
    %6937 = vmatpush1.msra.mxu0 %v6615
    %6938 = vmatprep.subr.mxu0 %v6612
    %6939 = vmatpush1.msra.mxu0 %v6611
    %6940 = vmatprep.subr.mxu0 0.0
    %6941 = vmatpush2.msra.mxu0 0.0
    %6942 = vmatprep.subr.mxu0 0.0
    %6943 = vmatpush2.msra.mxu0 0.0
    %6944 = vmatprep.subr.mxu0 0.0
    %6945 = vmatpush2.msra.mxu0 0.0
    %6946 = vmatprep.subr.mxu0 0.0
    %6947 = vmatpush2.msra.mxu0 0.0
    %6948 = vmatprep.subr.mxu0 0.0
    %6949 = vmatpush2.msra.mxu0 0.0
    %6950 = vmatprep.subr.mxu0 0.0
    %6951 = vmatpush2.msra.mxu0 0.0
    %6952 = vmatprep.subr.mxu0 0.0
    %6953 = vmatpush2.msra.mxu0 0.0
    %6954 = vmatprep.subr.mxu0 0.0
    %6955 = vmatpush2.msra.mxu0 0.0
    %6956 = vmatprep.subr.mxu0 0.0
    %6957 = vmatpush2.msra.mxu0 0.0
    %6958 = vmatprep.subr.mxu0 0.0
    %6959 = vmatpush2.msra.mxu0 0.0
    %6960 = vmatprep.subr.mxu0 0.0
    %6961 = vmatpush2.msra.mxu0 0.0
    %6962 = vmatprep.subr.mxu0 0.0
    %6963 = vmatpush2.msra.mxu0 0.0
    %6964 = vmatprep.subr.mxu0 0.0
    %6965 = vmatpush2.msra.mxu0 0.0
    %6966 = vmatprep.subr.mxu0 0.0
    %6967 = vmatpush2.msra.mxu0 0.0
    %6968 = vmatprep.subr.mxu0 0.0
    %6969 = vmatpush2.msra.mxu0 0.0
    %6970 = vmatprep.subr.mxu0 0.0
    %6971 = vmatpush2.msra.mxu0 0.0
    %6972 = vmatprep.mubr.f32.mxu0 0.0
    %6973 = vmatmul.mubr.f32.gmra.mxu0 %v6835
    %v6974 = vpop.f32.mrf.mxu0
    %v6975 = vadd.f32 0.0, %v6974
    %v6976 = vpop.f32.mrf.mxu0
    %v6977 = vadd.f32 0.0, %v6976
    %6978 = vdwg.mxu0
    %v6979 = vadd.f32 %v6830, %v6904
    %v6980 = vadd.f32 %v6831, %v6906
    %v6981 = vadd.f32 %v6832, %v6975
    %v6982 = vadd.f32 %v6833, %v6977
    %v6983 = vxor.u32 %v6979, 2147483648
    %v6984 = vxor.u32 %v6980, 2147483648
    %v6985 = vxor.u32 %v6981, 2147483648
    %v6986 = vmul.f32 %v6983, 1.442695
    %v6987 = vpow.pop %v6986
    %v6988 = vmul.f32 %v6984, 1.442695
    %v6989 = vpow.pop %v6988
    %v6990 = vmul.f32 %v6985, 1.442695
    %v6991 = vpow.pop %v6990
    %v6992 = vadd.f32 %v6987, 1.0
    %v6993 = vadd.f32 %v6989, 1.0
    %v6994 = vadd.f32 %v6991, 1.0
    %v6995 = vrcp.pop %v6992
    %v6996 = vmul.f32 1.0, %v6995
    %v6997 = vrcp.pop %v6993
    %v6998 = vmul.f32 1.0, %v6997
    %v6999 = vrcp.pop %v6994
    %v7000 = vmul.f32 1.0, %v6999
    %v7001 = vtanh.pop %v6982
    %v7002 = vmul.f32 %v6998, %v6827
    %v7003 = vmul.f32 %v6996, %v7001
    %v7004 = vadd.f32 %v7002, %v7003
    %v7005 = vtanh.pop %v7004
    %v7006 = vmul.f32 %v7000, %v7005
    %v7007 = vld [vmem:[#allocation3 + $0x40] sm:$0xff]
    %v7008 = vld [vmem:[#allocation3 + $0x48] sm:$0xff]
    %v7009 = vld [vmem:[#allocation3 + $0x50] sm:$0xff]
    %v7010 = vld [vmem:[#allocation3 + $0x58] sm:$0xff]
    %v7012 = vsel %vm6657, %v7006, 0
    %7014 = vmatprep.subr.mxu0 0.0
    %7015 = vmatpush1.msra.mxu0 0.0
    %7016 = vmatprep.subr.mxu0 0.0
    %7017 = vmatpush1.msra.mxu0 0.0
    %7018 = vmatprep.subr.mxu0 0.0
    %7019 = vmatpush1.msra.mxu0 0.0
    %7020 = vmatprep.subr.mxu0 0.0
    %7021 = vmatpush1.msra.mxu0 0.0
    %7022 = vmatprep.subr.mxu0 %v6654
    %7023 = vmatpush1.msra.mxu0 %v6653
    %7024 = vmatprep.subr.mxu0 %v6650
    %7025 = vmatpush1.msra.mxu0 %v6649
    %7026 = vmatprep.subr.mxu0 %v6646
    %7027 = vmatpush1.msra.mxu0 %v6645
    %7028 = vmatprep.subr.mxu0 %v6642
    %7029 = vmatpush1.msra.mxu0 %v6641
    %7030 = vmatprep.subr.mxu0 %v6638
    %7031 = vmatpush1.msra.mxu0 %v6637
    %7032 = vmatprep.subr.mxu0 %v6634
    %7033 = vmatpush1.msra.mxu0 %v6633
    %7034 = vmatprep.subr.mxu0 %v6630
    %7035 = vmatpush1.msra.mxu0 %v6629
    %7036 = vmatprep.subr.mxu0 %v6626
    %7037 = vmatpush1.msra.mxu0 %v6625
    %7038 = vmatprep.subr.mxu0 %v6622
    %7039 = vmatpush1.msra.mxu0 %v6621
    %7040 = vmatprep.subr.mxu0 %v6618
    %7041 = vmatpush1.msra.mxu0 %v6617
    %7042 = vmatprep.subr.mxu0 %v6614
    %7043 = vmatpush1.msra.mxu0 %v6613
    %7044 = vmatprep.subr.mxu0 %v6610
    %7045 = vmatpush1.msra.mxu0 %v6609
    %7046 = vmatprep.subr.mxu0 0.0
    %7047 = vmatpush2.msra.mxu0 0.0
    %7048 = vmatprep.subr.mxu0 0.0
    %7049 = vmatpush2.msra.mxu0 0.0
    %7050 = vmatprep.subr.mxu0 0.0
    %7051 = vmatpush2.msra.mxu0 0.0
    %7052 = vmatprep.subr.mxu0 0.0
    %7053 = vmatpush2.msra.mxu0 0.0
    %7054 = vmatprep.subr.mxu0 0.0
    %7055 = vmatpush2.msra.mxu0 0.0
    %7056 = vmatprep.subr.mxu0 0.0
    %7057 = vmatpush2.msra.mxu0 0.0
    %7058 = vmatprep.subr.mxu0 0.0
    %7059 = vmatpush2.msra.mxu0 0.0
    %7060 = vmatprep.subr.mxu0 0.0
    %7061 = vmatpush2.msra.mxu0 0.0
    %7062 = vmatprep.subr.mxu0 0.0
    %7063 = vmatpush2.msra.mxu0 0.0
    %7064 = vmatprep.subr.mxu0 0.0
    %7065 = vmatpush2.msra.mxu0 0.0
    %7066 = vmatprep.subr.mxu0 0.0
    %7067 = vmatpush2.msra.mxu0 0.0
    %7068 = vmatprep.subr.mxu0 0.0
    %7069 = vmatpush2.msra.mxu0 0.0
    %7070 = vmatprep.subr.mxu0 0.0
    %7071 = vmatpush2.msra.mxu0 0.0
    %7072 = vmatprep.subr.mxu0 0.0
    %7073 = vmatpush2.msra.mxu0 0.0
    %7074 = vmatprep.subr.mxu0 0.0
    %7075 = vmatpush2.msra.mxu0 0.0
    %7076 = vmatprep.subr.mxu0 0.0
    %7077 = vmatpush2.msra.mxu0 0.0
    %7078 = vmatprep.mubr.f32.mxu0 0.0
    %7079 = vmatmul.mubr.f32.gmra.mxu0 %v7012
    %v7080 = vpop.f32.mrf.mxu0
    %v7081 = vadd.f32 0.0, %v7080
    %v7082 = vpop.f32.mrf.mxu0
    %v7083 = vadd.f32 0.0, %v7082
    %7084 = vdwg.mxu0
    %7085 = vmatprep.subr.mxu0 0.0
    %7086 = vmatpush1.msra.mxu0 0.0
    %7087 = vmatprep.subr.mxu0 0.0
    %7088 = vmatpush1.msra.mxu0 0.0
    %7089 = vmatprep.subr.mxu0 0.0
    %7090 = vmatpush1.msra.mxu0 0.0
    %7091 = vmatprep.subr.mxu0 0.0
    %7092 = vmatpush1.msra.mxu0 0.0
    %7093 = vmatprep.subr.mxu0 %v6656
    %7094 = vmatpush1.msra.mxu0 %v6655
    %7095 = vmatprep.subr.mxu0 %v6652
    %7096 = vmatpush1.msra.mxu0 %v6651
    %7097 = vmatprep.subr.mxu0 %v6648
    %7098 = vmatpush1.msra.mxu0 %v6647
    %7099 = vmatprep.subr.mxu0 %v6644
    %7100 = vmatpush1.msra.mxu0 %v6643
    %7101 = vmatprep.subr.mxu0 %v6640
    %7102 = vmatpush1.msra.mxu0 %v6639
    %7103 = vmatprep.subr.mxu0 %v6636
    %7104 = vmatpush1.msra.mxu0 %v6635
    %7105 = vmatprep.subr.mxu0 %v6632
    %7106 = vmatpush1.msra.mxu0 %v6631
    %7107 = vmatprep.subr.mxu0 %v6628
    %7108 = vmatpush1.msra.mxu0 %v6627
    %7109 = vmatprep.subr.mxu0 %v6624
    %7110 = vmatpush1.msra.mxu0 %v6623
    %7111 = vmatprep.subr.mxu0 %v6620
    %7112 = vmatpush1.msra.mxu0 %v6619
    %7113 = vmatprep.subr.mxu0 %v6616
    %7114 = vmatpush1.msra.mxu0 %v6615
    %7115 = vmatprep.subr.mxu0 %v6612
    %7116 = vmatpush1.msra.mxu0 %v6611
    %7117 = vmatprep.subr.mxu0 0.0
    %7118 = vmatpush2.msra.mxu0 0.0
    %7119 = vmatprep.subr.mxu0 0.0
    %7120 = vmatpush2.msra.mxu0 0.0
    %7121 = vmatprep.subr.mxu0 0.0
    %7122 = vmatpush2.msra.mxu0 0.0
    %7123 = vmatprep.subr.mxu0 0.0
    %7124 = vmatpush2.msra.mxu0 0.0
    %7125 = vmatprep.subr.mxu0 0.0
    %7126 = vmatpush2.msra.mxu0 0.0
    %7127 = vmatprep.subr.mxu0 0.0
    %7128 = vmatpush2.msra.mxu0 0.0
    %7129 = vmatprep.subr.mxu0 0.0
    %7130 = vmatpush2.msra.mxu0 0.0
    %7131 = vmatprep.subr.mxu0 0.0
    %7132 = vmatpush2.msra.mxu0 0.0
    %7133 = vmatprep.subr.mxu0 0.0
    %7134 = vmatpush2.msra.mxu0 0.0
    %7135 = vmatprep.subr.mxu0 0.0
    %7136 = vmatpush2.msra.mxu0 0.0
    %7137 = vmatprep.subr.mxu0 0.0
    %7138 = vmatpush2.msra.mxu0 0.0
    %7139 = vmatprep.subr.mxu0 0.0
    %7140 = vmatpush2.msra.mxu0 0.0
    %7141 = vmatprep.subr.mxu0 0.0
    %7142 = vmatpush2.msra.mxu0 0.0
    %7143 = vmatprep.subr.mxu0 0.0
    %7144 = vmatpush2.msra.mxu0 0.0
    %7145 = vmatprep.subr.mxu0 0.0
    %7146 = vmatpush2.msra.mxu0 0.0
    %7147 = vmatprep.subr.mxu0 0.0
    %7148 = vmatpush2.msra.mxu0 0.0
    %7149 = vmatprep.mubr.f32.mxu0 0.0
    %7150 = vmatmul.mubr.f32.gmra.mxu0 %v7012
    %v7151 = vpop.f32.mrf.mxu0
    %v7152 = vadd.f32 0.0, %v7151
    %v7153 = vpop.f32.mrf.mxu0
    %v7154 = vadd.f32 0.0, %v7153
    %7155 = vdwg.mxu0
    %v7156 = vadd.f32 %v7007, %v7081
    %v7157 = vadd.f32 %v7008, %v7083
    %v7158 = vadd.f32 %v7009, %v7152
    %v7159 = vadd.f32 %v7010, %v7154
    %v7160 = vxor.u32 %v7156, 2147483648
    %v7161 = vxor.u32 %v7157, 2147483648
    %v7162 = vxor.u32 %v7158, 2147483648
    %v7163 = vmul.f32 %v7160, 1.442695
    %v7164 = vpow.pop %v7163
    %v7165 = vmul.f32 %v7161, 1.442695
    %v7166 = vpow.pop %v7165
    %v7167 = vmul.f32 %v7162, 1.442695
    %v7168 = vpow.pop %v7167
    %v7169 = vadd.f32 %v7164, 1.0
    %v7170 = vadd.f32 %v7166, 1.0
    %v7171 = vadd.f32 %v7168, 1.0
    %v7172 = vrcp.pop %v7169
    %v7173 = vmul.f32 1.0, %v7172
    %v7174 = vrcp.pop %v7170
    %v7175 = vmul.f32 1.0, %v7174
    %v7176 = vrcp.pop %v7171
    %v7177 = vmul.f32 1.0, %v7176
    %v7178 = vtanh.pop %v7159
    %v7179 = vmul.f32 %v7175, %v7004
    %v7180 = vmul.f32 %v7173, %v7178
    %v7181 = vadd.f32 %v7179, %v7180
    %v7182 = vtanh.pop %v7181
    %v7183 = vmul.f32 %v7177, %v7182
    %v7184 = vld [vmem:[#allocation3 + $0x60] sm:$0xff]
    %v7185 = vld [vmem:[#allocation3 + $0x68] sm:$0xff]
    %v7186 = vld [vmem:[#allocation3 + $0x70] sm:$0xff]
    %v7187 = vld [vmem:[#allocation3 + $0x78] sm:$0xff]
    %v7189 = vsel %vm6657, %v7183, 0
    %7191 = vmatprep.subr.mxu0 0.0
    %7192 = vmatpush1.msra.mxu0 0.0
    %7193 = vmatprep.subr.mxu0 0.0
    %7194 = vmatpush1.msra.mxu0 0.0
    %7195 = vmatprep.subr.mxu0 0.0
    %7196 = vmatpush1.msra.mxu0 0.0
    %7197 = vmatprep.subr.mxu0 0.0
    %7198 = vmatpush1.msra.mxu0 0.0
    %7199 = vmatprep.subr.mxu0 %v6654
    %7200 = vmatpush1.msra.mxu0 %v6653
    %7201 = vmatprep.subr.mxu0 %v6650
    %7202 = vmatpush1.msra.mxu0 %v6649
    %7203 = vmatprep.subr.mxu0 %v6646
    %7204 = vmatpush1.msra.mxu0 %v6645
    %7205 = vmatprep.subr.mxu0 %v6642
    %7206 = vmatpush1.msra.mxu0 %v6641
    %7207 = vmatprep.subr.mxu0 %v6638
    %7208 = vmatpush1.msra.mxu0 %v6637
    %7209 = vmatprep.subr.mxu0 %v6634
    %7210 = vmatpush1.msra.mxu0 %v6633
    %7211 = vmatprep.subr.mxu0 %v6630
    %7212 = vmatpush1.msra.mxu0 %v6629
    %7213 = vmatprep.subr.mxu0 %v6626
    %7214 = vmatpush1.msra.mxu0 %v6625
    %7215 = vmatprep.subr.mxu0 %v6622
    %7216 = vmatpush1.msra.mxu0 %v6621
    %7217 = vmatprep.subr.mxu0 %v6618
    %7218 = vmatpush1.msra.mxu0 %v6617
    %7219 = vmatprep.subr.mxu0 %v6614
    %7220 = vmatpush1.msra.mxu0 %v6613
    %7221 = vmatprep.subr.mxu0 %v6610
    %7222 = vmatpush1.msra.mxu0 %v6609
    %7223 = vmatprep.subr.mxu0 0.0
    %7224 = vmatpush2.msra.mxu0 0.0
    %7225 = vmatprep.subr.mxu0 0.0
    %7226 = vmatpush2.msra.mxu0 0.0
    %7227 = vmatprep.subr.mxu0 0.0
    %7228 = vmatpush2.msra.mxu0 0.0
    %7229 = vmatprep.subr.mxu0 0.0
    %7230 = vmatpush2.msra.mxu0 0.0
    %7231 = vmatprep.subr.mxu0 0.0
    %7232 = vmatpush2.msra.mxu0 0.0
    %7233 = vmatprep.subr.mxu0 0.0
    %7234 = vmatpush2.msra.mxu0 0.0
    %7235 = vmatprep.subr.mxu0 0.0
    %7236 = vmatpush2.msra.mxu0 0.0
    %7237 = vmatprep.subr.mxu0 0.0
    %7238 = vmatpush2.msra.mxu0 0.0
    %7239 = vmatprep.subr.mxu0 0.0
    %7240 = vmatpush2.msra.mxu0 0.0
    %7241 = vmatprep.subr.mxu0 0.0
    %7242 = vmatpush2.msra.mxu0 0.0
    %7243 = vmatprep.subr.mxu0 0.0
    %7244 = vmatpush2.msra.mxu0 0.0
    %7245 = vmatprep.subr.mxu0 0.0
    %7246 = vmatpush2.msra.mxu0 0.0
    %7247 = vmatprep.subr.mxu0 0.0
    %7248 = vmatpush2.msra.mxu0 0.0
    %7249 = vmatprep.subr.mxu0 0.0
    %7250 = vmatpush2.msra.mxu0 0.0
    %7251 = vmatprep.subr.mxu0 0.0
    %7252 = vmatpush2.msra.mxu0 0.0
    %7253 = vmatprep.subr.mxu0 0.0
    %7254 = vmatpush2.msra.mxu0 0.0
    %7255 = vmatprep.mubr.f32.mxu0 0.0
    %7256 = vmatmul.mubr.f32.gmra.mxu0 %v7189
    %v7257 = vpop.f32.mrf.mxu0
    %v7258 = vadd.f32 0.0, %v7257
    %v7259 = vpop.f32.mrf.mxu0
    %v7260 = vadd.f32 0.0, %v7259
    %7261 = vdwg.mxu0
    %7262 = vmatprep.subr.mxu0 0.0
    %7263 = vmatpush1.msra.mxu0 0.0
    %7264 = vmatprep.subr.mxu0 0.0
    %7265 = vmatpush1.msra.mxu0 0.0
    %7266 = vmatprep.subr.mxu0 0.0
    %7267 = vmatpush1.msra.mxu0 0.0
    %7268 = vmatprep.subr.mxu0 0.0
    %7269 = vmatpush1.msra.mxu0 0.0
    %7270 = vmatprep.subr.mxu0 %v6656
    %7271 = vmatpush1.msra.mxu0 %v6655
    %7272 = vmatprep.subr.mxu0 %v6652
    %7273 = vmatpush1.msra.mxu0 %v6651
    %7274 = vmatprep.subr.mxu0 %v6648
    %7275 = vmatpush1.msra.mxu0 %v6647
    %7276 = vmatprep.subr.mxu0 %v6644
    %7277 = vmatpush1.msra.mxu0 %v6643
    %7278 = vmatprep.subr.mxu0 %v6640
    %7279 = vmatpush1.msra.mxu0 %v6639
    %7280 = vmatprep.subr.mxu0 %v6636
    %7281 = vmatpush1.msra.mxu0 %v6635
    %7282 = vmatprep.subr.mxu0 %v6632
    %7283 = vmatpush1.msra.mxu0 %v6631
    %7284 = vmatprep.subr.mxu0 %v6628
    %7285 = vmatpush1.msra.mxu0 %v6627
    %7286 = vmatprep.subr.mxu0 %v6624
    %7287 = vmatpush1.msra.mxu0 %v6623
    %7288 = vmatprep.subr.mxu0 %v6620
    %7289 = vmatpush1.msra.mxu0 %v6619
    %7290 = vmatprep.subr.mxu0 %v6616
    %7291 = vmatpush1.msra.mxu0 %v6615
    %7292 = vmatprep.subr.mxu0 %v6612
    %7293 = vmatpush1.msra.mxu0 %v6611
    %7294 = vmatprep.subr.mxu0 0.0
    %7295 = vmatpush2.msra.mxu0 0.0
    %7296 = vmatprep.subr.mxu0 0.0
    %7297 = vmatpush2.msra.mxu0 0.0
    %7298 = vmatprep.subr.mxu0 0.0
    %7299 = vmatpush2.msra.mxu0 0.0
    %7300 = vmatprep.subr.mxu0 0.0
    %7301 = vmatpush2.msra.mxu0 0.0
    %7302 = vmatprep.subr.mxu0 0.0
    %7303 = vmatpush2.msra.mxu0 0.0
    %7304 = vmatprep.subr.mxu0 0.0
    %7305 = vmatpush2.msra.mxu0 0.0
    %7306 = vmatprep.subr.mxu0 0.0
    %7307 = vmatpush2.msra.mxu0 0.0
    %7308 = vmatprep.subr.mxu0 0.0
    %7309 = vmatpush2.msra.mxu0 0.0
    %7310 = vmatprep.subr.mxu0 0.0
    %7311 = vmatpush2.msra.mxu0 0.0
    %7312 = vmatprep.subr.mxu0 0.0
    %7313 = vmatpush2.msra.mxu0 0.0
    %7314 = vmatprep.subr.mxu0 0.0
    %7315 = vmatpush2.msra.mxu0 0.0
    %7316 = vmatprep.subr.mxu0 0.0
    %7317 = vmatpush2.msra.mxu0 0.0
    %7318 = vmatprep.subr.mxu0 0.0
    %7319 = vmatpush2.msra.mxu0 0.0
    %7320 = vmatprep.subr.mxu0 0.0
    %7321 = vmatpush2.msra.mxu0 0.0
    %7322 = vmatprep.subr.mxu0 0.0
    %7323 = vmatpush2.msra.mxu0 0.0
    %7324 = vmatprep.subr.mxu0 0.0
    %7325 = vmatpush2.msra.mxu0 0.0
    %7326 = vmatprep.mubr.f32.mxu0 0.0
    %7327 = vmatmul.mubr.f32.gmra.mxu0 %v7189
    %v7328 = vpop.f32.mrf.mxu0
    %v7329 = vadd.f32 0.0, %v7328
    %v7330 = vpop.f32.mrf.mxu0
    %v7331 = vadd.f32 0.0, %v7330
    %7332 = vdwg.mxu0
    %v7333 = vadd.f32 %v7184, %v7258
    %v7334 = vadd.f32 %v7185, %v7260
    %v7335 = vadd.f32 %v7186, %v7329
    %v7336 = vadd.f32 %v7187, %v7331
    %v7337 = vxor.u32 %v7333, 2147483648
    %v7338 = vxor.u32 %v7334, 2147483648
    %v7339 = vxor.u32 %v7335, 2147483648
    %v7340 = vmul.f32 %v7337, 1.442695
    %v7341 = vpow.pop %v7340
    %v7342 = vmul.f32 %v7338, 1.442695
    %v7343 = vpow.pop %v7342
    %v7344 = vmul.f32 %v7339, 1.442695
    %v7345 = vpow.pop %v7344
    %v7346 = vadd.f32 %v7341, 1.0
    %v7347 = vadd.f32 %v7343, 1.0
    %v7348 = vadd.f32 %v7345, 1.0
    %v7349 = vrcp.pop %v7346
    %v7350 = vmul.f32 1.0, %v7349
    %v7351 = vrcp.pop %v7347
    %v7352 = vmul.f32 1.0, %v7351
    %v7353 = vrcp.pop %v7348
    %v7354 = vmul.f32 1.0, %v7353
    %v7355 = vtanh.pop %v7336
    %v7356 = vmul.f32 %v7352, %v7181
    %v7357 = vmul.f32 %v7350, %v7355
    %v7358 = vadd.f32 %v7356, %v7357
    %v7359 = vtanh.pop %v7358
    %v7360 = vmul.f32 %v7354, %v7359
    %v7361 = vld [vmem:[#allocation3 + $0x80] sm:$0xff]
    %v7362 = vld [vmem:[#allocation3 + $0x88] sm:$0xff]
    %v7363 = vld [vmem:[#allocation3 + $0x90] sm:$0xff]
    %v7364 = vld [vmem:[#allocation3 + $0x98] sm:$0xff]
    %v7366 = vsel %vm6657, %v7360, 0
    %7368 = vmatprep.subr.mxu0 0.0
    %7369 = vmatpush1.msra.mxu0 0.0
    %7370 = vmatprep.subr.mxu0 0.0
    %7371 = vmatpush1.msra.mxu0 0.0
    %7372 = vmatprep.subr.mxu0 0.0
    %7373 = vmatpush1.msra.mxu0 0.0
    %7374 = vmatprep.subr.mxu0 0.0
    %7375 = vmatpush1.msra.mxu0 0.0
    %7376 = vmatprep.subr.mxu0 %v6654
    %7377 = vmatpush1.msra.mxu0 %v6653
    %7378 = vmatprep.subr.mxu0 %v6650
    %7379 = vmatpush1.msra.mxu0 %v6649
    %7380 = vmatprep.subr.mxu0 %v6646
    %7381 = vmatpush1.msra.mxu0 %v6645
    %7382 = vmatprep.subr.mxu0 %v6642
    %7383 = vmatpush1.msra.mxu0 %v6641
    %7384 = vmatprep.subr.mxu0 %v6638
    %7385 = vmatpush1.msra.mxu0 %v6637
    %7386 = vmatprep.subr.mxu0 %v6634
    %7387 = vmatpush1.msra.mxu0 %v6633
    %7388 = vmatprep.subr.mxu0 %v6630
    %7389 = vmatpush1.msra.mxu0 %v6629
    %7390 = vmatprep.subr.mxu0 %v6626
    %7391 = vmatpush1.msra.mxu0 %v6625
    %7392 = vmatprep.subr.mxu0 %v6622
    %7393 = vmatpush1.msra.mxu0 %v6621
    %7394 = vmatprep.subr.mxu0 %v6618
    %7395 = vmatpush1.msra.mxu0 %v6617
    %7396 = vmatprep.subr.mxu0 %v6614
    %7397 = vmatpush1.msra.mxu0 %v6613
    %7398 = vmatprep.subr.mxu0 %v6610
    %7399 = vmatpush1.msra.mxu0 %v6609
    %7400 = vmatprep.subr.mxu0 0.0
    %7401 = vmatpush2.msra.mxu0 0.0
    %7402 = vmatprep.subr.mxu0 0.0
    %7403 = vmatpush2.msra.mxu0 0.0
    %7404 = vmatprep.subr.mxu0 0.0
    %7405 = vmatpush2.msra.mxu0 0.0
    %7406 = vmatprep.subr.mxu0 0.0
    %7407 = vmatpush2.msra.mxu0 0.0
    %7408 = vmatprep.subr.mxu0 0.0
    %7409 = vmatpush2.msra.mxu0 0.0
    %7410 = vmatprep.subr.mxu0 0.0
    %7411 = vmatpush2.msra.mxu0 0.0
    %7412 = vmatprep.subr.mxu0 0.0
    %7413 = vmatpush2.msra.mxu0 0.0
    %7414 = vmatprep.subr.mxu0 0.0
    %7415 = vmatpush2.msra.mxu0 0.0
    %7416 = vmatprep.subr.mxu0 0.0
    %7417 = vmatpush2.msra.mxu0 0.0
    %7418 = vmatprep.subr.mxu0 0.0
    %7419 = vmatpush2.msra.mxu0 0.0
    %7420 = vmatprep.subr.mxu0 0.0
    %7421 = vmatpush2.msra.mxu0 0.0
    %7422 = vmatprep.subr.mxu0 0.0
    %7423 = vmatpush2.msra.mxu0 0.0
    %7424 = vmatprep.subr.mxu0 0.0
    %7425 = vmatpush2.msra.mxu0 0.0
    %7426 = vmatprep.subr.mxu0 0.0
    %7427 = vmatpush2.msra.mxu0 0.0
    %7428 = vmatprep.subr.mxu0 0.0
    %7429 = vmatpush2.msra.mxu0 0.0
    %7430 = vmatprep.subr.mxu0 0.0
    %7431 = vmatpush2.msra.mxu0 0.0
    %7432 = vmatprep.mubr.f32.mxu0 0.0
    %7433 = vmatmul.mubr.f32.gmra.mxu0 %v7366
    %v7434 = vpop.f32.mrf.mxu0
    %v7435 = vadd.f32 0.0, %v7434
    %v7436 = vpop.f32.mrf.mxu0
    %v7437 = vadd.f32 0.0, %v7436
    %7438 = vdwg.mxu0
    %7439 = vmatprep.subr.mxu0 0.0
    %7440 = vmatpush1.msra.mxu0 0.0
    %7441 = vmatprep.subr.mxu0 0.0
    %7442 = vmatpush1.msra.mxu0 0.0
    %7443 = vmatprep.subr.mxu0 0.0
    %7444 = vmatpush1.msra.mxu0 0.0
    %7445 = vmatprep.subr.mxu0 0.0
    %7446 = vmatpush1.msra.mxu0 0.0
    %7447 = vmatprep.subr.mxu0 %v6656
    %7448 = vmatpush1.msra.mxu0 %v6655
    %7449 = vmatprep.subr.mxu0 %v6652
    %7450 = vmatpush1.msra.mxu0 %v6651
    %7451 = vmatprep.subr.mxu0 %v6648
    %7452 = vmatpush1.msra.mxu0 %v6647
    %7453 = vmatprep.subr.mxu0 %v6644
    %7454 = vmatpush1.msra.mxu0 %v6643
    %7455 = vmatprep.subr.mxu0 %v6640
    %7456 = vmatpush1.msra.mxu0 %v6639
    %7457 = vmatprep.subr.mxu0 %v6636
    %7458 = vmatpush1.msra.mxu0 %v6635
    %7459 = vmatprep.subr.mxu0 %v6632
    %7460 = vmatpush1.msra.mxu0 %v6631
    %7461 = vmatprep.subr.mxu0 %v6628
    %7462 = vmatpush1.msra.mxu0 %v6627
    %7463 = vmatprep.subr.mxu0 %v6624
    %7464 = vmatpush1.msra.mxu0 %v6623
    %7465 = vmatprep.subr.mxu0 %v6620
    %7466 = vmatpush1.msra.mxu0 %v6619
    %7467 = vmatprep.subr.mxu0 %v6616
    %7468 = vmatpush1.msra.mxu0 %v6615
    %7469 = vmatprep.subr.mxu0 %v6612
    %7470 = vmatpush1.msra.mxu0 %v6611
    %7471 = vmatprep.subr.mxu0 0.0
    %7472 = vmatpush2.msra.mxu0 0.0
    %7473 = vmatprep.subr.mxu0 0.0
    %7474 = vmatpush2.msra.mxu0 0.0
    %7475 = vmatprep.subr.mxu0 0.0
    %7476 = vmatpush2.msra.mxu0 0.0
    %7477 = vmatprep.subr.mxu0 0.0
    %7478 = vmatpush2.msra.mxu0 0.0
    %7479 = vmatprep.subr.mxu0 0.0
    %7480 = vmatpush2.msra.mxu0 0.0
    %7481 = vmatprep.subr.mxu0 0.0
    %7482 = vmatpush2.msra.mxu0 0.0
    %7483 = vmatprep.subr.mxu0 0.0
    %7484 = vmatpush2.msra.mxu0 0.0
    %7485 = vmatprep.subr.mxu0 0.0
    %7486 = vmatpush2.msra.mxu0 0.0
    %7487 = vmatprep.subr.mxu0 0.0
    %7488 = vmatpush2.msra.mxu0 0.0
    %7489 = vmatprep.subr.mxu0 0.0
    %7490 = vmatpush2.msra.mxu0 0.0
    %7491 = vmatprep.subr.mxu0 0.0
    %7492 = vmatpush2.msra.mxu0 0.0
    %7493 = vmatprep.subr.mxu0 0.0
    %7494 = vmatpush2.msra.mxu0 0.0
    %7495 = vmatprep.subr.mxu0 0.0
    %7496 = vmatpush2.msra.mxu0 0.0
    %7497 = vmatprep.subr.mxu0 0.0
    %7498 = vmatpush2.msra.mxu0 0.0
    %7499 = vmatprep.subr.mxu0 0.0
    %7500 = vmatpush2.msra.mxu0 0.0
    %7501 = vmatprep.subr.mxu0 0.0
    %7502 = vmatpush2.msra.mxu0 0.0
    %7503 = vmatprep.mubr.f32.mxu0 0.0
    %7504 = vmatmul.mubr.f32.gmra.mxu0 %v7366
    %v7505 = vpop.f32.mrf.mxu0
    %v7506 = vadd.f32 0.0, %v7505
    %v7507 = vpop.f32.mrf.mxu0
    %v7508 = vadd.f32 0.0, %v7507
    %7509 = vdwg.mxu0
    %v7510 = vadd.f32 %v7361, %v7435
    %v7511 = vadd.f32 %v7362, %v7437
    %v7512 = vadd.f32 %v7363, %v7506
    %v7513 = vadd.f32 %v7364, %v7508
    %v7514 = vxor.u32 %v7510, 2147483648
    %v7515 = vxor.u32 %v7511, 2147483648
    %v7516 = vxor.u32 %v7512, 2147483648
    %v7517 = vmul.f32 %v7514, 1.442695
    %v7518 = vpow.pop %v7517
    %v7519 = vmul.f32 %v7515, 1.442695
    %v7520 = vpow.pop %v7519
    %v7521 = vmul.f32 %v7516, 1.442695
    %v7522 = vpow.pop %v7521
    %v7523 = vadd.f32 %v7518, 1.0
    %v7524 = vadd.f32 %v7520, 1.0
    %v7525 = vadd.f32 %v7522, 1.0
    %v7526 = vrcp.pop %v7523
    %v7527 = vmul.f32 1.0, %v7526
    %v7528 = vrcp.pop %v7524
    %v7529 = vmul.f32 1.0, %v7528
    %v7530 = vrcp.pop %v7525
    %v7531 = vmul.f32 1.0, %v7530
    %v7532 = vtanh.pop %v7513
    %v7533 = vmul.f32 %v7529, %v7358
    %v7534 = vmul.f32 %v7527, %v7532
    %v7535 = vadd.f32 %v7533, %v7534
    %v7536 = vtanh.pop %v7535
    %v7537 = vmul.f32 %v7531, %v7536
    %v7538 = vld [vmem:[#allocation3 + $0xa0] sm:$0xff]
    %v7539 = vld [vmem:[#allocation3 + $0xa8] sm:$0xff]
    %v7540 = vld [vmem:[#allocation3 + $0xb0] sm:$0xff]
    %v7541 = vld [vmem:[#allocation3 + $0xb8] sm:$0xff]
    %v7543 = vsel %vm6657, %v7537, 0
    %7545 = vmatprep.subr.mxu0 0.0
    %7546 = vmatpush1.msra.mxu0 0.0
    %7547 = vmatprep.subr.mxu0 0.0
    %7548 = vmatpush1.msra.mxu0 0.0
    %7549 = vmatprep.subr.mxu0 0.0
    %7550 = vmatpush1.msra.mxu0 0.0
    %7551 = vmatprep.subr.mxu0 0.0
    %7552 = vmatpush1.msra.mxu0 0.0
    %7553 = vmatprep.subr.mxu0 %v6654
    %7554 = vmatpush1.msra.mxu0 %v6653
    %7555 = vmatprep.subr.mxu0 %v6650
    %7556 = vmatpush1.msra.mxu0 %v6649
    %7557 = vmatprep.subr.mxu0 %v6646
    %7558 = vmatpush1.msra.mxu0 %v6645
    %7559 = vmatprep.subr.mxu0 %v6642
    %7560 = vmatpush1.msra.mxu0 %v6641
    %7561 = vmatprep.subr.mxu0 %v6638
    %7562 = vmatpush1.msra.mxu0 %v6637
    %7563 = vmatprep.subr.mxu0 %v6634
    %7564 = vmatpush1.msra.mxu0 %v6633
    %7565 = vmatprep.subr.mxu0 %v6630
    %7566 = vmatpush1.msra.mxu0 %v6629
    %7567 = vmatprep.subr.mxu0 %v6626
    %7568 = vmatpush1.msra.mxu0 %v6625
    %7569 = vmatprep.subr.mxu0 %v6622
    %7570 = vmatpush1.msra.mxu0 %v6621
    %7571 = vmatprep.subr.mxu0 %v6618
    %7572 = vmatpush1.msra.mxu0 %v6617
    %7573 = vmatprep.subr.mxu0 %v6614
    %7574 = vmatpush1.msra.mxu0 %v6613
    %7575 = vmatprep.subr.mxu0 %v6610
    %7576 = vmatpush1.msra.mxu0 %v6609
    %7577 = vmatprep.subr.mxu0 0.0
    %7578 = vmatpush2.msra.mxu0 0.0
    %7579 = vmatprep.subr.mxu0 0.0
    %7580 = vmatpush2.msra.mxu0 0.0
    %7581 = vmatprep.subr.mxu0 0.0
    %7582 = vmatpush2.msra.mxu0 0.0
    %7583 = vmatprep.subr.mxu0 0.0
    %7584 = vmatpush2.msra.mxu0 0.0
    %7585 = vmatprep.subr.mxu0 0.0
    %7586 = vmatpush2.msra.mxu0 0.0
    %7587 = vmatprep.subr.mxu0 0.0
    %7588 = vmatpush2.msra.mxu0 0.0
    %7589 = vmatprep.subr.mxu0 0.0
    %7590 = vmatpush2.msra.mxu0 0.0
    %7591 = vmatprep.subr.mxu0 0.0
    %7592 = vmatpush2.msra.mxu0 0.0
    %7593 = vmatprep.subr.mxu0 0.0
    %7594 = vmatpush2.msra.mxu0 0.0
    %7595 = vmatprep.subr.mxu0 0.0
    %7596 = vmatpush2.msra.mxu0 0.0
    %7597 = vmatprep.subr.mxu0 0.0
    %7598 = vmatpush2.msra.mxu0 0.0
    %7599 = vmatprep.subr.mxu0 0.0
    %7600 = vmatpush2.msra.mxu0 0.0
    %7601 = vmatprep.subr.mxu0 0.0
    %7602 = vmatpush2.msra.mxu0 0.0
    %7603 = vmatprep.subr.mxu0 0.0
    %7604 = vmatpush2.msra.mxu0 0.0
    %7605 = vmatprep.subr.mxu0 0.0
    %7606 = vmatpush2.msra.mxu0 0.0
    %7607 = vmatprep.subr.mxu0 0.0
    %7608 = vmatpush2.msra.mxu0 0.0
    %7609 = vmatprep.mubr.f32.mxu0 0.0
    %7610 = vmatmul.mubr.f32.gmra.mxu0 %v7543
    %v7611 = vpop.f32.mrf.mxu0
    %v7612 = vadd.f32 0.0, %v7611
    %v7613 = vpop.f32.mrf.mxu0
    %v7614 = vadd.f32 0.0, %v7613
    %7615 = vdwg.mxu0
    %7616 = vmatprep.subr.mxu0 0.0
    %7617 = vmatpush1.msra.mxu0 0.0
    %7618 = vmatprep.subr.mxu0 0.0
    %7619 = vmatpush1.msra.mxu0 0.0
    %7620 = vmatprep.subr.mxu0 0.0
    %7621 = vmatpush1.msra.mxu0 0.0
    %7622 = vmatprep.subr.mxu0 0.0
    %7623 = vmatpush1.msra.mxu0 0.0
    %7624 = vmatprep.subr.mxu0 %v6656
    %7625 = vmatpush1.msra.mxu0 %v6655
    %7626 = vmatprep.subr.mxu0 %v6652
    %7627 = vmatpush1.msra.mxu0 %v6651
    %7628 = vmatprep.subr.mxu0 %v6648
    %7629 = vmatpush1.msra.mxu0 %v6647
    %7630 = vmatprep.subr.mxu0 %v6644
    %7631 = vmatpush1.msra.mxu0 %v6643
    %7632 = vmatprep.subr.mxu0 %v6640
    %7633 = vmatpush1.msra.mxu0 %v6639
    %7634 = vmatprep.subr.mxu0 %v6636
    %7635 = vmatpush1.msra.mxu0 %v6635
    %7636 = vmatprep.subr.mxu0 %v6632
    %7637 = vmatpush1.msra.mxu0 %v6631
    %7638 = vmatprep.subr.mxu0 %v6628
    %7639 = vmatpush1.msra.mxu0 %v6627
    %7640 = vmatprep.subr.mxu0 %v6624
    %7641 = vmatpush1.msra.mxu0 %v6623
    %7642 = vmatprep.subr.mxu0 %v6620
    %7643 = vmatpush1.msra.mxu0 %v6619
    %7644 = vmatprep.subr.mxu0 %v6616
    %7645 = vmatpush1.msra.mxu0 %v6615
    %7646 = vmatprep.subr.mxu0 %v6612
    %7647 = vmatpush1.msra.mxu0 %v6611
    %7648 = vmatprep.subr.mxu0 0.0
    %7649 = vmatpush2.msra.mxu0 0.0
    %7650 = vmatprep.subr.mxu0 0.0
    %7651 = vmatpush2.msra.mxu0 0.0
    %7652 = vmatprep.subr.mxu0 0.0
    %7653 = vmatpush2.msra.mxu0 0.0
    %7654 = vmatprep.subr.mxu0 0.0
    %7655 = vmatpush2.msra.mxu0 0.0
    %7656 = vmatprep.subr.mxu0 0.0
    %7657 = vmatpush2.msra.mxu0 0.0
    %7658 = vmatprep.subr.mxu0 0.0
    %7659 = vmatpush2.msra.mxu0 0.0
    %7660 = vmatprep.subr.mxu0 0.0
    %7661 = vmatpush2.msra.mxu0 0.0
    %7662 = vmatprep.subr.mxu0 0.0
    %7663 = vmatpush2.msra.mxu0 0.0
    %7664 = vmatprep.subr.mxu0 0.0
    %7665 = vmatpush2.msra.mxu0 0.0
    %7666 = vmatprep.subr.mxu0 0.0
    %7667 = vmatpush2.msra.mxu0 0.0
    %7668 = vmatprep.subr.mxu0 0.0
    %7669 = vmatpush2.msra.mxu0 0.0
    %7670 = vmatprep.subr.mxu0 0.0
    %7671 = vmatpush2.msra.mxu0 0.0
    %7672 = vmatprep.subr.mxu0 0.0
    %7673 = vmatpush2.msra.mxu0 0.0
    %7674 = vmatprep.subr.mxu0 0.0
    %7675 = vmatpush2.msra.mxu0 0.0
    %7676 = vmatprep.subr.mxu0 0.0
    %7677 = vmatpush2.msra.mxu0 0.0
    %7678 = vmatprep.subr.mxu0 0.0
    %7679 = vmatpush2.msra.mxu0 0.0
    %7680 = vmatprep.mubr.f32.mxu0 0.0
    %7681 = vmatmul.mubr.f32.gmra.mxu0 %v7543
    %v7682 = vpop.f32.mrf.mxu0
    %v7683 = vadd.f32 0.0, %v7682
    %v7684 = vpop.f32.mrf.mxu0
    %v7685 = vadd.f32 0.0, %v7684
    %7686 = vdwg.mxu0
    %v7687 = vadd.f32 %v7538, %v7612
    %v7688 = vadd.f32 %v7539, %v7614
    %v7689 = vadd.f32 %v7540, %v7683
    %v7690 = vadd.f32 %v7541, %v7685
    %v7691 = vxor.u32 %v7687, 2147483648
    %v7692 = vxor.u32 %v7688, 2147483648
    %v7693 = vxor.u32 %v7689, 2147483648
    %v7694 = vmul.f32 %v7691, 1.442695
    %v7695 = vpow.pop %v7694
    %v7696 = vmul.f32 %v7692, 1.442695
    %v7697 = vpow.pop %v7696
    %v7698 = vmul.f32 %v7693, 1.442695
    %v7699 = vpow.pop %v7698
    %v7700 = vadd.f32 %v7695, 1.0
    %v7701 = vadd.f32 %v7697, 1.0
    %v7702 = vadd.f32 %v7699, 1.0
    %v7703 = vrcp.pop %v7700
    %v7704 = vmul.f32 1.0, %v7703
    %v7705 = vrcp.pop %v7701
    %v7706 = vmul.f32 1.0, %v7705
    %v7707 = vrcp.pop %v7702
    %v7708 = vmul.f32 1.0, %v7707
    %v7709 = vtanh.pop %v7690
    %v7710 = vmul.f32 %v7706, %v7535
    %v7711 = vmul.f32 %v7704, %v7709
    %v7712 = vadd.f32 %v7710, %v7711
    %v7713 = vtanh.pop %v7712
    %v7714 = vmul.f32 %v7708, %v7713
    %v7715 = vld [vmem:[#allocation3 + $0xc0] sm:$0xff]
    %v7716 = vld [vmem:[#allocation3 + $0xc8] sm:$0xff]
    %v7717 = vld [vmem:[#allocation3 + $0xd0] sm:$0xff]
    %v7718 = vld [vmem:[#allocation3 + $0xd8] sm:$0xff]
    %v7720 = vsel %vm6657, %v7714, 0
    %7722 = vmatprep.subr.mxu0 0.0
    %7723 = vmatpush1.msra.mxu0 0.0
    %7724 = vmatprep.subr.mxu0 0.0
    %7725 = vmatpush1.msra.mxu0 0.0
    %7726 = vmatprep.subr.mxu0 0.0
    %7727 = vmatpush1.msra.mxu0 0.0
    %7728 = vmatprep.subr.mxu0 0.0
    %7729 = vmatpush1.msra.mxu0 0.0
    %7730 = vmatprep.subr.mxu0 %v6654
    %7731 = vmatpush1.msra.mxu0 %v6653
    %7732 = vmatprep.subr.mxu0 %v6650
    %7733 = vmatpush1.msra.mxu0 %v6649
    %7734 = vmatprep.subr.mxu0 %v6646
    %7735 = vmatpush1.msra.mxu0 %v6645
    %7736 = vmatprep.subr.mxu0 %v6642
    %7737 = vmatpush1.msra.mxu0 %v6641
    %7738 = vmatprep.subr.mxu0 %v6638
    %7739 = vmatpush1.msra.mxu0 %v6637
    %7740 = vmatprep.subr.mxu0 %v6634
    %7741 = vmatpush1.msra.mxu0 %v6633
    %7742 = vmatprep.subr.mxu0 %v6630
    %7743 = vmatpush1.msra.mxu0 %v6629
    %7744 = vmatprep.subr.mxu0 %v6626
    %7745 = vmatpush1.msra.mxu0 %v6625
    %7746 = vmatprep.subr.mxu0 %v6622
    %7747 = vmatpush1.msra.mxu0 %v6621
    %7748 = vmatprep.subr.mxu0 %v6618
    %7749 = vmatpush1.msra.mxu0 %v6617
    %7750 = vmatprep.subr.mxu0 %v6614
    %7751 = vmatpush1.msra.mxu0 %v6613
    %7752 = vmatprep.subr.mxu0 %v6610
    %7753 = vmatpush1.msra.mxu0 %v6609
    %7754 = vmatprep.subr.mxu0 0.0
    %7755 = vmatpush2.msra.mxu0 0.0
    %7756 = vmatprep.subr.mxu0 0.0
    %7757 = vmatpush2.msra.mxu0 0.0
    %7758 = vmatprep.subr.mxu0 0.0
    %7759 = vmatpush2.msra.mxu0 0.0
    %7760 = vmatprep.subr.mxu0 0.0
    %7761 = vmatpush2.msra.mxu0 0.0
    %7762 = vmatprep.subr.mxu0 0.0
    %7763 = vmatpush2.msra.mxu0 0.0
    %7764 = vmatprep.subr.mxu0 0.0
    %7765 = vmatpush2.msra.mxu0 0.0
    %7766 = vmatprep.subr.mxu0 0.0
    %7767 = vmatpush2.msra.mxu0 0.0
    %7768 = vmatprep.subr.mxu0 0.0
    %7769 = vmatpush2.msra.mxu0 0.0
    %7770 = vmatprep.subr.mxu0 0.0
    %7771 = vmatpush2.msra.mxu0 0.0
    %7772 = vmatprep.subr.mxu0 0.0
    %7773 = vmatpush2.msra.mxu0 0.0
    %7774 = vmatprep.subr.mxu0 0.0
    %7775 = vmatpush2.msra.mxu0 0.0
    %7776 = vmatprep.subr.mxu0 0.0
    %7777 = vmatpush2.msra.mxu0 0.0
    %7778 = vmatprep.subr.mxu0 0.0
    %7779 = vmatpush2.msra.mxu0 0.0
    %7780 = vmatprep.subr.mxu0 0.0
    %7781 = vmatpush2.msra.mxu0 0.0
    %7782 = vmatprep.subr.mxu0 0.0
    %7783 = vmatpush2.msra.mxu0 0.0
    %7784 = vmatprep.subr.mxu0 0.0
    %7785 = vmatpush2.msra.mxu0 0.0
    %7786 = vmatprep.mubr.f32.mxu0 0.0
    %7787 = vmatmul.mubr.f32.gmra.mxu0 %v7720
    %v7788 = vpop.f32.mrf.mxu0
    %v7789 = vadd.f32 0.0, %v7788
    %v7790 = vpop.f32.mrf.mxu0
    %v7791 = vadd.f32 0.0, %v7790
    %7792 = vdwg.mxu0
    %7793 = vmatprep.subr.mxu0 0.0
    %7794 = vmatpush1.msra.mxu0 0.0
    %7795 = vmatprep.subr.mxu0 0.0
    %7796 = vmatpush1.msra.mxu0 0.0
    %7797 = vmatprep.subr.mxu0 0.0
    %7798 = vmatpush1.msra.mxu0 0.0
    %7799 = vmatprep.subr.mxu0 0.0
    %7800 = vmatpush1.msra.mxu0 0.0
    %7801 = vmatprep.subr.mxu0 %v6656
    %7802 = vmatpush1.msra.mxu0 %v6655
    %7803 = vmatprep.subr.mxu0 %v6652
    %7804 = vmatpush1.msra.mxu0 %v6651
    %7805 = vmatprep.subr.mxu0 %v6648
    %7806 = vmatpush1.msra.mxu0 %v6647
    %7807 = vmatprep.subr.mxu0 %v6644
    %7808 = vmatpush1.msra.mxu0 %v6643
    %7809 = vmatprep.subr.mxu0 %v6640
    %7810 = vmatpush1.msra.mxu0 %v6639
    %7811 = vmatprep.subr.mxu0 %v6636
    %7812 = vmatpush1.msra.mxu0 %v6635
    %7813 = vmatprep.subr.mxu0 %v6632
    %7814 = vmatpush1.msra.mxu0 %v6631
    %7815 = vmatprep.subr.mxu0 %v6628
    %7816 = vmatpush1.msra.mxu0 %v6627
    %7817 = vmatprep.subr.mxu0 %v6624
    %7818 = vmatpush1.msra.mxu0 %v6623
    %7819 = vmatprep.subr.mxu0 %v6620
    %7820 = vmatpush1.msra.mxu0 %v6619
    %7821 = vmatprep.subr.mxu0 %v6616
    %7822 = vmatpush1.msra.mxu0 %v6615
    %7823 = vmatprep.subr.mxu0 %v6612
    %7824 = vmatpush1.msra.mxu0 %v6611
    %7825 = vmatprep.subr.mxu0 0.0
    %7826 = vmatpush2.msra.mxu0 0.0
    %7827 = vmatprep.subr.mxu0 0.0
    %7828 = vmatpush2.msra.mxu0 0.0
    %7829 = vmatprep.subr.mxu0 0.0
    %7830 = vmatpush2.msra.mxu0 0.0
    %7831 = vmatprep.subr.mxu0 0.0
    %7832 = vmatpush2.msra.mxu0 0.0
    %7833 = vmatprep.subr.mxu0 0.0
    %7834 = vmatpush2.msra.mxu0 0.0
    %7835 = vmatprep.subr.mxu0 0.0
    %7836 = vmatpush2.msra.mxu0 0.0
    %7837 = vmatprep.subr.mxu0 0.0
    %7838 = vmatpush2.msra.mxu0 0.0
    %7839 = vmatprep.subr.mxu0 0.0
    %7840 = vmatpush2.msra.mxu0 0.0
    %7841 = vmatprep.subr.mxu0 0.0
    %7842 = vmatpush2.msra.mxu0 0.0
    %7843 = vmatprep.subr.mxu0 0.0
    %7844 = vmatpush2.msra.mxu0 0.0
    %7845 = vmatprep.subr.mxu0 0.0
    %7846 = vmatpush2.msra.mxu0 0.0
    %7847 = vmatprep.subr.mxu0 0.0
    %7848 = vmatpush2.msra.mxu0 0.0
    %7849 = vmatprep.subr.mxu0 0.0
    %7850 = vmatpush2.msra.mxu0 0.0
    %7851 = vmatprep.subr.mxu0 0.0
    %7852 = vmatpush2.msra.mxu0 0.0
    %7853 = vmatprep.subr.mxu0 0.0
    %7854 = vmatpush2.msra.mxu0 0.0
    %7855 = vmatprep.subr.mxu0 0.0
    %7856 = vmatpush2.msra.mxu0 0.0
    %7857 = vmatprep.mubr.f32.mxu0 0.0
    %7858 = vmatmul.mubr.f32.gmra.mxu0 %v7720
    %v7859 = vpop.f32.mrf.mxu0
    %v7860 = vadd.f32 0.0, %v7859
    %v7861 = vpop.f32.mrf.mxu0
    %v7862 = vadd.f32 0.0, %v7861
    %7863 = vdwg.mxu0
    %v7864 = vadd.f32 %v7715, %v7789
    %v7865 = vadd.f32 %v7716, %v7791
    %v7866 = vadd.f32 %v7717, %v7860
    %v7867 = vadd.f32 %v7718, %v7862
    %v7868 = vxor.u32 %v7864, 2147483648
    %v7869 = vxor.u32 %v7865, 2147483648
    %v7870 = vxor.u32 %v7866, 2147483648
    %v7871 = vmul.f32 %v7868, 1.442695
    %v7872 = vpow.pop %v7871
    %v7873 = vmul.f32 %v7869, 1.442695
    %v7874 = vpow.pop %v7873
    %v7875 = vmul.f32 %v7870, 1.442695
    %v7876 = vpow.pop %v7875
    %v7877 = vadd.f32 %v7872, 1.0
    %v7878 = vadd.f32 %v7874, 1.0
    %v7879 = vadd.f32 %v7876, 1.0
    %v7880 = vrcp.pop %v7877
    %v7881 = vmul.f32 1.0, %v7880
    %v7882 = vrcp.pop %v7878
    %v7883 = vmul.f32 1.0, %v7882
    %v7884 = vrcp.pop %v7879
    %v7885 = vmul.f32 1.0, %v7884
    %v7886 = vtanh.pop %v7867
    %v7887 = vmul.f32 %v7883, %v7712
    %v7888 = vmul.f32 %v7881, %v7886
    %v7889 = vadd.f32 %v7887, %v7888
    %v7890 = vtanh.pop %v7889
    %v7891 = vmul.f32 %v7885, %v7890
    %v7892 = vld [vmem:[#allocation3 + $0xe0] sm:$0xff]
    %v7893 = vld [vmem:[#allocation3 + $0xe8] sm:$0xff]
    %v7894 = vld [vmem:[#allocation3 + $0xf0] sm:$0xff]
    %v7895 = vld [vmem:[#allocation3 + $0xf8] sm:$0xff]
    %v7897 = vsel %vm6657, %v7891, 0
    %7899 = vmatprep.subr.mxu0 0.0
    %7900 = vmatpush1.msra.mxu0 0.0
    %7901 = vmatprep.subr.mxu0 0.0
    %7902 = vmatpush1.msra.mxu0 0.0
    %7903 = vmatprep.subr.mxu0 0.0
    %7904 = vmatpush1.msra.mxu0 0.0
    %7905 = vmatprep.subr.mxu0 0.0
    %7906 = vmatpush1.msra.mxu0 0.0
    %7907 = vmatprep.subr.mxu0 %v6654
    %7908 = vmatpush1.msra.mxu0 %v6653
    %7909 = vmatprep.subr.mxu0 %v6650
    %7910 = vmatpush1.msra.mxu0 %v6649
    %7911 = vmatprep.subr.mxu0 %v6646
    %7912 = vmatpush1.msra.mxu0 %v6645
    %7913 = vmatprep.subr.mxu0 %v6642
    %7914 = vmatpush1.msra.mxu0 %v6641
    %7915 = vmatprep.subr.mxu0 %v6638
    %7916 = vmatpush1.msra.mxu0 %v6637
    %7917 = vmatprep.subr.mxu0 %v6634
    %7918 = vmatpush1.msra.mxu0 %v6633
    %7919 = vmatprep.subr.mxu0 %v6630
    %7920 = vmatpush1.msra.mxu0 %v6629
    %7921 = vmatprep.subr.mxu0 %v6626
    %7922 = vmatpush1.msra.mxu0 %v6625
    %7923 = vmatprep.subr.mxu0 %v6622
    %7924 = vmatpush1.msra.mxu0 %v6621
    %7925 = vmatprep.subr.mxu0 %v6618
    %7926 = vmatpush1.msra.mxu0 %v6617
    %7927 = vmatprep.subr.mxu0 %v6614
    %7928 = vmatpush1.msra.mxu0 %v6613
    %7929 = vmatprep.subr.mxu0 %v6610
    %7930 = vmatpush1.msra.mxu0 %v6609
    %7931 = vmatprep.subr.mxu0 0.0
    %7932 = vmatpush2.msra.mxu0 0.0
    %7933 = vmatprep.subr.mxu0 0.0
    %7934 = vmatpush2.msra.mxu0 0.0
    %7935 = vmatprep.subr.mxu0 0.0
    %7936 = vmatpush2.msra.mxu0 0.0
    %7937 = vmatprep.subr.mxu0 0.0
    %7938 = vmatpush2.msra.mxu0 0.0
    %7939 = vmatprep.subr.mxu0 0.0
    %7940 = vmatpush2.msra.mxu0 0.0
    %7941 = vmatprep.subr.mxu0 0.0
    %7942 = vmatpush2.msra.mxu0 0.0
    %7943 = vmatprep.subr.mxu0 0.0
    %7944 = vmatpush2.msra.mxu0 0.0
    %7945 = vmatprep.subr.mxu0 0.0
    %7946 = vmatpush2.msra.mxu0 0.0
    %7947 = vmatprep.subr.mxu0 0.0
    %7948 = vmatpush2.msra.mxu0 0.0
    %7949 = vmatprep.subr.mxu0 0.0
    %7950 = vmatpush2.msra.mxu0 0.0
    %7951 = vmatprep.subr.mxu0 0.0
    %7952 = vmatpush2.msra.mxu0 0.0
    %7953 = vmatprep.subr.mxu0 0.0
    %7954 = vmatpush2.msra.mxu0 0.0
    %7955 = vmatprep.subr.mxu0 0.0
    %7956 = vmatpush2.msra.mxu0 0.0
    %7957 = vmatprep.subr.mxu0 0.0
    %7958 = vmatpush2.msra.mxu0 0.0
    %7959 = vmatprep.subr.mxu0 0.0
    %7960 = vmatpush2.msra.mxu0 0.0
    %7961 = vmatprep.subr.mxu0 0.0
    %7962 = vmatpush2.msra.mxu0 0.0
    %7963 = vmatprep.mubr.f32.mxu0 0.0
    %7964 = vmatmul.mubr.f32.gmra.mxu0 %v7897
    %v7965 = vpop.f32.mrf.mxu0
    %v7966 = vadd.f32 0.0, %v7965
    %v7967 = vpop.f32.mrf.mxu0
    %v7968 = vadd.f32 0.0, %v7967
    %7969 = vdwg.mxu0
    %7970 = vmatprep.subr.mxu0 0.0
    %7971 = vmatpush1.msra.mxu0 0.0
    %7972 = vmatprep.subr.mxu0 0.0
    %7973 = vmatpush1.msra.mxu0 0.0
    %7974 = vmatprep.subr.mxu0 0.0
    %7975 = vmatpush1.msra.mxu0 0.0
    %7976 = vmatprep.subr.mxu0 0.0
    %7977 = vmatpush1.msra.mxu0 0.0
    %7978 = vmatprep.subr.mxu0 %v6656
    %7979 = vmatpush1.msra.mxu0 %v6655
    %7980 = vmatprep.subr.mxu0 %v6652
    %7981 = vmatpush1.msra.mxu0 %v6651
    %7982 = vmatprep.subr.mxu0 %v6648
    %7983 = vmatpush1.msra.mxu0 %v6647
    %7984 = vmatprep.subr.mxu0 %v6644
    %7985 = vmatpush1.msra.mxu0 %v6643
    %7986 = vmatprep.subr.mxu0 %v6640
    %7987 = vmatpush1.msra.mxu0 %v6639
    %7988 = vmatprep.subr.mxu0 %v6636
    %7989 = vmatpush1.msra.mxu0 %v6635
    %7990 = vmatprep.subr.mxu0 %v6632
    %7991 = vmatpush1.msra.mxu0 %v6631
    %7992 = vmatprep.subr.mxu0 %v6628
    %7993 = vmatpush1.msra.mxu0 %v6627
    %7994 = vmatprep.subr.mxu0 %v6624
    %7995 = vmatpush1.msra.mxu0 %v6623
    %7996 = vmatprep.subr.mxu0 %v6620
    %7997 = vmatpush1.msra.mxu0 %v6619
    %7998 = vmatprep.subr.mxu0 %v6616
    %7999 = vmatpush1.msra.mxu0 %v6615
    %8000 = vmatprep.subr.mxu0 %v6612
    %8001 = vmatpush1.msra.mxu0 %v6611
    %8002 = vmatprep.subr.mxu0 0.0
    %8003 = vmatpush2.msra.mxu0 0.0
    %8004 = vmatprep.subr.mxu0 0.0
    %8005 = vmatpush2.msra.mxu0 0.0
    %8006 = vmatprep.subr.mxu0 0.0
    %8007 = vmatpush2.msra.mxu0 0.0
    %8008 = vmatprep.subr.mxu0 0.0
    %8009 = vmatpush2.msra.mxu0 0.0
    %8010 = vmatprep.subr.mxu0 0.0
    %8011 = vmatpush2.msra.mxu0 0.0
    %8012 = vmatprep.subr.mxu0 0.0
    %8013 = vmatpush2.msra.mxu0 0.0
    %8014 = vmatprep.subr.mxu0 0.0
    %8015 = vmatpush2.msra.mxu0 0.0
    %8016 = vmatprep.subr.mxu0 0.0
    %8017 = vmatpush2.msra.mxu0 0.0
    %8018 = vmatprep.subr.mxu0 0.0
    %8019 = vmatpush2.msra.mxu0 0.0
    %8020 = vmatprep.subr.mxu0 0.0
    %8021 = vmatpush2.msra.mxu0 0.0
    %8022 = vmatprep.subr.mxu0 0.0
    %8023 = vmatpush2.msra.mxu0 0.0
    %8024 = vmatprep.subr.mxu0 0.0
    %8025 = vmatpush2.msra.mxu0 0.0
    %8026 = vmatprep.subr.mxu0 0.0
    %8027 = vmatpush2.msra.mxu0 0.0
    %8028 = vmatprep.subr.mxu0 0.0
    %8029 = vmatpush2.msra.mxu0 0.0
    %8030 = vmatprep.subr.mxu0 0.0
    %8031 = vmatpush2.msra.mxu0 0.0
    %8032 = vmatprep.subr.mxu0 0.0
    %8033 = vmatpush2.msra.mxu0 0.0
    %8034 = vmatprep.mubr.f32.mxu0 0.0
    %8035 = vmatmul.mubr.f32.gmra.mxu0 %v7897
    %v8036 = vpop.f32.mrf.mxu0
    %v8037 = vadd.f32 0.0, %v8036
    %v8038 = vpop.f32.mrf.mxu0
    %v8039 = vadd.f32 0.0, %v8038
    %8040 = vdwg.mxu0
    %v8041 = vadd.f32 %v7892, %v7966
    %v8042 = vadd.f32 %v7893, %v7968
    %v8043 = vadd.f32 %v7894, %v8037
    %v8044 = vadd.f32 %v7895, %v8039
    %v8045 = vxor.u32 %v8041, 2147483648
    %v8046 = vxor.u32 %v8042, 2147483648
    %v8047 = vxor.u32 %v8043, 2147483648
    %v8048 = vmul.f32 %v8045, 1.442695
    %v8049 = vpow.pop %v8048
    %v8050 = vmul.f32 %v8046, 1.442695
    %v8051 = vpow.pop %v8050
    %v8052 = vmul.f32 %v8047, 1.442695
    %v8053 = vpow.pop %v8052
    %v8054 = vadd.f32 %v8049, 1.0
    %v8055 = vadd.f32 %v8051, 1.0
    %v8056 = vadd.f32 %v8053, 1.0
    %v8057 = vrcp.pop %v8054
    %v8058 = vmul.f32 1.0, %v8057
    %v8059 = vrcp.pop %v8055
    %v8060 = vmul.f32 1.0, %v8059
    %v8061 = vrcp.pop %v8056
    %v8062 = vmul.f32 1.0, %v8061
    %v8063 = vtanh.pop %v8044
    %v8064 = vmul.f32 %v8060, %v7889
    %v8065 = vmul.f32 %v8058, %v8063
    %v8066 = vadd.f32 %v8064, %v8065
    %v8067 = vtanh.pop %v8066
    %v8068 = vmul.f32 %v8062, %v8067
    %v8069 = vld [vmem:[%s7] sm:$0x1]
    %v8071 = vlaneseq
    %v8072 = vshrl.u32 %v8071, 7
    %v8073 = vsub.s32 0, %v8072
    %v8074 = vrot.slane %v8069, %v8073
    %v8076 = vmul.f32 %v8068, %v8074
    %v8077 = vsel %vm6657, %v8076, 0.0
    %8078 = vadd.xlane.f32.xlu0 %v8077
    %v8079 = vpop.xlane.xlu0 %8078
    %v8080 = vld [vmem:[#allocation4] sm:$0x1]
    %v8082 = vlaneseq
    %v8083 = vshrl.u32 %v8082, 7
    %v8084 = vsub.s32 0, %v8083
    %v8085 = vrot.slane %v8080, %v8084
    %v8087 = vadd.f32 %v8079, %v8085
    %vm8088 = vcmask 7168
    %8089 = vst.msk [vmem:[%s9] sm:$0xff] %vm8088, %v8087
    // Predicated region
    $region54: #{lstm_model_with_bn.1} parent=1 // pred_check
      _
    $region55: #{lstm_model_with_bn.1} parent=1 // pred_check_branch
      %8091 = sbr.rel (0) target = $region57
    $region56: #{lstm_model_with_bn.1} parent=1 // pred_region
      _
    $region57: #{lstm_model_with_bn.1} parent=1 // pred_fallthru
      _
    // Predicated region
    $region58: #{lstm_model_with_bn.1} parent=1 // pred_check
      _
    $region59: #{lstm_model_with_bn.1} parent=1 // pred_check_branch
      %8093 = sbr.rel (0) target = $region61
    $region60: #{lstm_model_with_bn.1} parent=1 // pred_region
      _
    $region61: #{lstm_model_with_bn.1} parent=1 // pred_fallthru
      _
    %8094 = vsyncpa [#allocation6], 1
    %8095 = vsyncpa [#allocation8], 1
    %8096 = vsyncpa [#allocation11], 1

</llo_original>
